<compile_context>
chip_gen: v7x
topology: tpu7x:2x2x1
jax: 0.10.0
libtpu: 0.0.40
codegen_flags: <defaults>
</compile_context>

<pallas_src>
import math
import functools

import jax
import jax.numpy as jnp
from jax import lax
from jax.experimental import pallas as pl
from jax.experimental.pallas import tpu as pltpu

F32 = jnp.float32
BF16 = jnp.bfloat16


def _bf16_dot(a, b):
    """MXU matmul: bf16 operands, f32 accumulate."""
    return jnp.dot(a.astype(BF16), b.astype(BF16), preferred_element_type=F32)


def _ln(x, g, b, eps):
    """f32 LayerNorm over the last dim; g/b are (1, E)."""
    mean = jnp.mean(x, axis=-1, keepdims=True)
    var = jnp.mean((x - mean) ** 2, axis=-1, keepdims=True)
    return (x - mean) * lax.rsqrt(var + eps) * g + b


def _attn_heads(q, kv, bias, ctx_ref, *, H, d, E, scale):
    """Per-head scaled-dot-product attention.

    q   : (Tq, E) f32        kv : (Tk, 2E) f32 (K | V concatenated)
    bias: (Tq, Tk) f32 additive mask
    Head outputs are written into the VMEM scratch ctx_ref (Tq, E) with static
    slices (no concatenate assembly).
    """
    for h in range(H):                                       # static unroll
        q_h = q[:, h * d:(h + 1) * d]                        # (Tq, d)
        k_h = kv[:, h * d:(h + 1) * d]                       # (Tk, d)
        v_h = kv[:, E + h * d:E + (h + 1) * d]               # (Tk, d)
        s = lax.dot_general(q_h, k_h, (((1,), (1,)), ((), ())),
                            preferred_element_type=F32) * scale + bias
        m = jnp.max(s, axis=-1, keepdims=True)
        p = jnp.exp(s - m)
        denom = jnp.sum(p, axis=-1, keepdims=True)
        o_h = jnp.dot(p, v_h, preferred_element_type=F32) \
            * pl.reciprocal(denom, approx=True)
        ctx_ref[:, h * d:(h + 1) * d] = o_h


# ----------------------------------------------------------------------------
# Fused layer kernels (one pallas_call per transformer layer)
# ----------------------------------------------------------------------------

def _encoder_layer_kernel(x_ref, bias_ref,
                          wq_ref, wkv_ref, wo_ref, bq_ref, bkv_ref, bo_ref,
                          ln1g_ref, ln1b_ref,
                          w1_ref, b1_ref, w2_ref, b2_ref,
                          ln2g_ref, ln2b_ref,
                          o_ref, ctx_ref, *, H, d, scale, eps):
    E = H * d
    x = x_ref[...].astype(F32)                                       # (Tq, E)

    # --- self attention ---
    q = _bf16_dot(x, wq_ref[...]) + bq_ref[...]                      # (Tq, E)
    kv = _bf16_dot(x, wkv_ref[...]) + bkv_ref[...]                   # (Tq, 2E)
    _attn_heads(q, kv, bias_ref[0], ctx_ref, H=H, d=d, E=E, scale=scale)
    sa = _bf16_dot(ctx_ref[...], wo_ref[...]) + bo_ref[...]
    h1 = _ln(sa + x, ln1g_ref[...], ln1b_ref[...], eps)              # post-norm

    # --- feed-forward ---
    hidden = jnp.maximum(_bf16_dot(h1, w1_ref[...]) + b1_ref[...], 0.0)
    ff = _bf16_dot(hidden, w2_ref[...]) + b2_ref[...]
    out = _ln(ff + h1, ln2g_ref[...], ln2b_ref[...], eps)

    o_ref[...] = out.astype(o_ref.dtype)


def _decoder_layer_kernel(y_ref, mem_ref, tbias_ref, mbias_ref,
                          swq_ref, swkv_ref, swo_ref, sbq_ref, sbkv_ref, sbo_ref,
                          ln1g_ref, ln1b_ref,
                          cwq_ref, cwkv_ref, cwo_ref, cbq_ref, cbkv_ref, cbo_ref,
                          ln2g_ref, ln2b_ref,
                          w1_ref, b1_ref, w2_ref, b2_ref,
                          ln3g_ref, ln3b_ref,
                          o_ref, ctx_ref, *, H, d, scale, eps):
    E = H * d
    y = y_ref[...].astype(F32)                                       # (T, E)
    mem = mem_ref[...].astype(F32)                                   # (S, E)

    # --- masked self attention ---
    q = _bf16_dot(y, swq_ref[...]) + sbq_ref[...]
    kv = _bf16_dot(y, swkv_ref[...]) + sbkv_ref[...]
    _attn_heads(q, kv, tbias_ref[0], ctx_ref, H=H, d=d, E=E, scale=scale)
    sa = _bf16_dot(ctx_ref[...], swo_ref[...]) + sbo_ref[...]
    y1 = _ln(sa + y, ln1g_ref[...], ln1b_ref[...], eps)

    # --- cross attention (keys/values from encoder memory) ---
    q = _bf16_dot(y1, cwq_ref[...]) + cbq_ref[...]
    kv = _bf16_dot(mem, cwkv_ref[...]) + cbkv_ref[...]
    _attn_heads(q, kv, mbias_ref[0], ctx_ref, H=H, d=d, E=E, scale=scale)
    ca = _bf16_dot(ctx_ref[...], cwo_ref[...]) + cbo_ref[...]
    y2 = _ln(ca + y1, ln2g_ref[...], ln2b_ref[...], eps)

    # --- feed-forward ---
    hidden = jnp.maximum(_bf16_dot(y2, w1_ref[...]) + b1_ref[...], 0.0)
    ff = _bf16_dot(hidden, w2_ref[...]) + b2_ref[...]
    out = _ln(ff + y2, ln3g_ref[...], ln3b_ref[...], eps)

    o_ref[...] = out.astype(o_ref.dtype)


def _ln_kernel(x_ref, g_ref, b_ref, o_ref, *, eps):
    o_ref[...] = _ln(x_ref[...].astype(F32), g_ref[...], b_ref[...], eps).astype(o_ref.dtype)


def _norm_generator_kernel(y_ref, g_ref, b_ref, w_ref, wb_ref, o_ref, *, eps):
    """Decoder final LayerNorm fused with the generator projection (padded lanes)."""
    y = _ln(y_ref[...].astype(F32), g_ref[...], b_ref[...], eps)
    o_ref[...] = (_bf16_dot(y, w_ref[...]) + wb_ref[...]).astype(o_ref.dtype)


# ----------------------------------------------------------------------------
# pallas_call wrappers — grid over batch, "parallel" for v7x megacore
# ----------------------------------------------------------------------------

def _full(shape):
    return pl.BlockSpec(shape, lambda b, n=len(shape): (0,) * n)


_PARALLEL = pltpu.CompilerParams(dimension_semantics=("parallel",))


def encoder_layer(x, bias, p, *, nhead, B, S, E, FF):
    d = E // nhead
    kernel = functools.partial(_encoder_layer_kernel, H=nhead, d=d,
                               scale=1.0 / math.sqrt(d), eps=1e-5)
    a = p["self_attn"]
    return pl.pallas_call(
        kernel,
        out_shape=jax.ShapeDtypeStruct((B * S, E), x.dtype),
        grid_spec=pltpu.PrefetchScalarGridSpec(
            num_scalar_prefetch=0, grid=(B,),
            in_specs=[
                pl.BlockSpec((S, E), lambda b: (b, 0)),        # x (batch slab)
                pl.BlockSpec((1, S, S), lambda b: (b, 0, 0)),  # bias
                _full((E, E)), _full((E, 2 * E)), _full((E, E)),
                _full((1, E)), _full((1, 2 * E)), _full((1, E)),
                _full((1, E)), _full((1, E)),
                _full((E, FF)), _full((1, FF)), _full((FF, E)), _full((1, E)),
                _full((1, E)), _full((1, E)),
            ],
            out_specs=pl.BlockSpec((S, E), lambda b: (b, 0)),
            scratch_shapes=[pltpu.VMEM((S, E), F32)]),
        compiler_params=_PARALLEL,
    )(x, bias,
      a["wq"], a["wkv"], a["wo"], a["bq"], a["bkv"], a["bo"],
      p["ln1_g"], p["ln1_b"],
      p["ffn"]["w1"], p["ffn"]["b1"], p["ffn"]["w2"], p["ffn"]["b2"],
      p["ln2_g"], p["ln2_b"])


def decoder_layer(y, memory, tgt_bias, mem_bias, p, *, nhead, B, T, S, E, FF):
    d = E // nhead
    kernel = functools.partial(_decoder_layer_kernel, H=nhead, d=d,
                               scale=1.0 / math.sqrt(d), eps=1e-5)
    sa, ca = p["self_attn"], p["cross_attn"]
    return pl.pallas_call(
        kernel,
        out_shape=jax.ShapeDtypeStruct((B * T, E), y.dtype),
        grid_spec=pltpu.PrefetchScalarGridSpec(
            num_scalar_prefetch=0, grid=(B,),
            in_specs=[
                pl.BlockSpec((T, E), lambda b: (b, 0)),         # y
                pl.BlockSpec((S, E), lambda b: (b, 0)),         # memory
                pl.BlockSpec((1, T, T), lambda b: (b, 0, 0)),   # tgt bias
                pl.BlockSpec((1, T, S), lambda b: (b, 0, 0)),   # mem bias
                _full((E, E)), _full((E, 2 * E)), _full((E, E)),
                _full((1, E)), _full((1, 2 * E)), _full((1, E)),
                _full((1, E)), _full((1, E)),
                _full((E, E)), _full((E, 2 * E)), _full((E, E)),
                _full((1, E)), _full((1, 2 * E)), _full((1, E)),
                _full((1, E)), _full((1, E)),
                _full((E, FF)), _full((1, FF)), _full((FF, E)), _full((1, E)),
                _full((1, E)), _full((1, E)),
            ],
            out_specs=pl.BlockSpec((T, E), lambda b: (b, 0)),
            scratch_shapes=[pltpu.VMEM((T, E), F32)]),
        compiler_params=_PARALLEL,
    )(y, memory, tgt_bias, mem_bias,
      sa["wq"], sa["wkv"], sa["wo"], sa["bq"], sa["bkv"], sa["bo"],
      p["ln1_g"], p["ln1_b"],
      ca["wq"], ca["wkv"], ca["wo"], ca["bq"], ca["bkv"], ca["bo"],
      p["ln2_g"], p["ln2_b"],
      p["ffn"]["w1"], p["ffn"]["b1"], p["ffn"]["w2"], p["ffn"]["b2"],
      p["ln3_g"], p["ln3_b"])


def layer_norm(x, g, b, *, B, S, E):
    return pl.pallas_call(
        functools.partial(_ln_kernel, eps=1e-5),
        out_shape=jax.ShapeDtypeStruct((B * S, E), x.dtype),
        grid_spec=pltpu.PrefetchScalarGridSpec(
            num_scalar_prefetch=0, grid=(B,),
            in_specs=[pl.BlockSpec((S, E), lambda i: (i, 0)),
                      _full((1, E)), _full((1, E))],
            out_specs=pl.BlockSpec((S, E), lambda i: (i, 0))),
        compiler_params=_PARALLEL,
    )(x, g, b)


def norm_generator(y, g, b, w_pad, b_pad, *, B, T, E):
    Vp = w_pad.shape[1]
    return pl.pallas_call(
        functools.partial(_norm_generator_kernel, eps=1e-5),
        out_shape=jax.ShapeDtypeStruct((B * T, Vp), y.dtype),
        grid_spec=pltpu.PrefetchScalarGridSpec(
            num_scalar_prefetch=0, grid=(B,),
            in_specs=[pl.BlockSpec((T, E), lambda i: (i, 0)),
                      _full((1, E)), _full((1, E)),
                      _full((E, Vp)), _full((1, Vp))],
            out_specs=pl.BlockSpec((T, Vp), lambda i: (i, 0))),
        compiler_params=_PARALLEL,
    )(y, g, b, w_pad, b_pad)


# ----------------------------------------------------------------------------
# Model glue (plain JAX: embedding gather, mask building, layer loop)
# ----------------------------------------------------------------------------

def build_bias(attn_mask, key_padding_mask, B, Tq, Tk):
    """Combine float attn_mask (Tq,Tk) and bool key_padding_mask (B,Tk) into (B,Tq,Tk)."""
    bias = jnp.zeros((B, Tq, Tk), F32)
    if attn_mask is not None:
        bias = bias + attn_mask[None, :, :].astype(F32)
    if key_padding_mask is not None:
        bias = bias + jnp.where(key_padding_mask, -1e9, 0.0).astype(F32)[:, None, :]
    return bias


def seq2seq_transformer_forward(params, src, trg, src_mask, tgt_mask,
                                src_padding_mask, tgt_padding_mask,
                                memory_key_padding_mask, *,
                                nhead, emb_size, dim_feedforward, tgt_vocab_size):
    E, FF = emb_size, dim_feedforward
    S, B = src.shape
    T = trg.shape[0]
    sqrt_e = math.sqrt(E)

    # batch-major embedding gather (no activation transposes afterwards)
    src_emb = jnp.take(params["src_emb"], src.T, axis=0) * sqrt_e \
        + params["pe"][None, :S, :]                                   # (B, S, E)
    tgt_emb = jnp.take(params["tgt_emb"], trg.T, axis=0) * sqrt_e \
        + params["pe"][None, :T, :]                                   # (B, T, E)
    x = src_emb.reshape(B * S, E)
    y = tgt_emb.reshape(B * T, E)

    src_bias = build_bias(src_mask, src_padding_mask, B, S, S)
    tgt_bias = build_bias(tgt_mask, tgt_padding_mask, B, T, T)
    mem_bias = build_bias(None, memory_key_padding_mask, B, T, S)

    # encoder (one fused pallas_call per layer)
    for lp in params["encoder_layers"]:
        x = encoder_layer(x, src_bias, lp, nhead=nhead, B=B, S=S, E=E, FF=FF)
    memory = layer_norm(x, params["enc_norm_g"], params["enc_norm_b"], B=B, S=S, E=E)

    # decoder (one fused pallas_call per layer)
    for lp in params["decoder_layers"]:
        y = decoder_layer(y, memory, tgt_bias, mem_bias, lp,
                          nhead=nhead, B=B, T=T, S=S, E=E, FF=FF)

    # fused decoder-final-LN + generator; padded lanes sliced back to V
    logits_p = norm_generator(y, params["dec_norm_g"], params["dec_norm_b"],
                              params["gen_w"], params["gen_b"], B=B, T=T, E=E)
    logits = logits_p[:, :tgt_vocab_size]
    return logits.reshape(B, T, tgt_vocab_size).transpose(1, 0, 2)    # (T, B, V)


# ----------------------------------------------------------------------------
# Deterministic parameter initialization (all weight prep hoisted here)
# ----------------------------------------------------------------------------

def make_pos_encoding(maxlen, E):
    pos = jnp.arange(maxlen, dtype=F32)[:, None]
    den = jnp.exp(-jnp.arange(0, E, 2, dtype=F32) * math.log(10000.0) / E)
    pe = jnp.zeros((maxlen, E), F32)
    pe = pe.at[:, 0::2].set(jnp.sin(pos * den))
    pe = pe.at[:, 1::2].set(jnp.cos(pos * den))
    return pe                                                        # (maxlen, E)


def init_params(key, num_enc, num_dec, E, nhead, src_vocab, tgt_vocab, ff):
    keys = iter(jax.random.split(key, 256))

    def w(shape, scale=0.05):
        return jax.random.normal(next(keys), shape, F32) * scale

    def mha_p():
        return {"wq": w((E, E)),
                "wkv": jnp.concatenate([w((E, E)), w((E, E))], axis=1),  # K|V fused
                "wo": w((E, E)),
                "bq": jnp.zeros((1, E), F32),
                "bkv": jnp.zeros((1, 2 * E), F32),
                "bo": jnp.zeros((1, E), F32)}

    def ffn_p():
        return {"w1": w((E, ff)), "b1": jnp.zeros((1, ff), F32),
                "w2": w((ff, E)), "b2": jnp.zeros((1, E), F32)}

    def enc_layer_p():
        return {"self_attn": mha_p(), "ffn": ffn_p(),
                "ln1_g": jnp.ones((1, E), F32), "ln1_b": jnp.zeros((1, E), F32),
                "ln2_g": jnp.ones((1, E), F32), "ln2_b": jnp.zeros((1, E), F32)}

    def dec_layer_p():
        return {"self_attn": mha_p(), "cross_attn": mha_p(), "ffn": ffn_p(),
                "ln1_g": jnp.ones((1, E), F32), "ln1_b": jnp.zeros((1, E), F32),
                "ln2_g": jnp.ones((1, E), F32), "ln2_b": jnp.zeros((1, E), F32),
                "ln3_g": jnp.ones((1, E), F32), "ln3_b": jnp.zeros((1, E), F32)}

    # generator weight/bias pre-padded to a 128-lane multiple (lane-dense stores)
    Vp = ((tgt_vocab + 127) // 128) * 128
    gen_w = jnp.pad(w((E, tgt_vocab)), ((0, 0), (0, Vp - tgt_vocab)))
    gen_b = jnp.zeros((1, Vp), F32)

    return {
        "src_emb": w((src_vocab, E), scale=0.1),
        "tgt_emb": w((tgt_vocab, E), scale=0.1),
        "pe": make_pos_encoding(128, E),
        "encoder_layers": [enc_layer_p() for _ in range(num_enc)],
        "decoder_layers": [dec_layer_p() for _ in range(num_dec)],
        "enc_norm_g": jnp.ones((1, E), F32), "enc_norm_b": jnp.zeros((1, E), F32),
        "dec_norm_g": jnp.ones((1, E), F32), "dec_norm_b": jnp.zeros((1, E), F32),
        "gen_w": gen_w, "gen_b": gen_b,
    }


# ----------------------------------------------------------------------------
# Demo
# ----------------------------------------------------------------------------

if __name__ == "__main__":
    # small config consistent with Seq2SeqTransformer.__init__
    NUM_ENC, NUM_DEC = 2, 2
    EMB, NHEAD, FF = 32, 4, 64
    SRC_VOCAB, TGT_VOCAB = 48, 56
    S, T, B = 8, 8, 2

    root = jax.random.PRNGKey(0)
    kp, ks, kt = jax.random.split(root, 3)
    params = init_params(kp, NUM_ENC, NUM_DEC, EMB, NHEAD, SRC_VOCAB, TGT_VOCAB, FF)

    src = jax.random.randint(ks, (S, B), 0, SRC_VOCAB, dtype=jnp.int32)
    trg = jax.random.randint(kt, (T, B), 0, TGT_VOCAB, dtype=jnp.int32)

    # masks: float attention masks (additive), bool key-padding masks (True = masked)
    src_mask = jnp.zeros((S, S), F32)
    tgt_mask = jnp.triu(jnp.ones((T, T), F32), k=1) * -1e9   # causal
    src_padding_mask = jnp.zeros((B, S), bool).at[0, S - 1].set(True)
    tgt_padding_mask = jnp.zeros((B, T), bool).at[1, T - 1].set(True)
    memory_key_padding_mask = src_padding_mask

    fwd = jax.jit(functools.partial(seq2seq_transformer_forward,
                                    nhead=NHEAD, emb_size=EMB,
                                    dim_feedforward=FF, tgt_vocab_size=TGT_VOCAB))
    logits = fwd(params, src, trg, src_mask, tgt_mask,
                 src_padding_mask, tgt_padding_mask, memory_key_padding_mask)
    logits = jax.block_until_ready(logits)

    assert logits.shape == (T, B, TGT_VOCAB)
    assert bool(jnp.all(jnp.isfinite(logits)))
    print("KERNEL_OK")
</pallas_src>

<mosaic_0001>
module attributes {stable_mosaic.version = 11 : i64} {
  func.func @_ln_kernel(%arg0: i32, %arg1: memref<8x32xf32, #tpu.memory_space<vmem>>, %arg2: memref<1x32xf32, #tpu.memory_space<vmem>>, %arg3: memref<1x32xf32, #tpu.memory_space<vmem>>, %arg4: memref<8x32xf32, #tpu.memory_space<vmem>>) attributes {dimension_semantics = [#tpu.dimension_semantics<parallel>], iteration_bounds = array<i64: 2>, scalar_prefetch = 0 : i64, scratch_operands = 0 : i64, tpu.core_type = #tpu.core_type<tc>, window_params = [{transform_indices = @transform_0, window_bounds = array<i64: 8, 32>}, {pipeline_mode = #tpu.pipeline_mode<synchronous>, transform_indices = @transform_1, window_bounds = array<i64: 1, 32>}, {pipeline_mode = #tpu.pipeline_mode<synchronous>, transform_indices = @transform_2, window_bounds = array<i64: 1, 32>}, {transform_indices = @transform_3, window_bounds = array<i64: 8, 32>}]} {
    %c0 = arith.constant 0 : index
    %c0_0 = arith.constant 0 : index
    %0 = vector.load %arg1[%c0, %c0_0] : memref<8x32xf32, #tpu.memory_space<vmem>>, vector<8x32xf32>
    %c0_1 = arith.constant 0 : index
    %c0_2 = arith.constant 0 : index
    %1 = vector.load %arg2[%c0_1, %c0_2] : memref<1x32xf32, #tpu.memory_space<vmem>>, vector<1x32xf32>
    %c0_3 = arith.constant 0 : index
    %c0_4 = arith.constant 0 : index
    %2 = vector.load %arg3[%c0_3, %c0_4] : memref<1x32xf32, #tpu.memory_space<vmem>>, vector<1x32xf32>
    %cst = arith.constant dense<0.000000e+00> : vector<8xf32>
    %3 = vector.multi_reduction <add>, %0, %cst [1] : vector<8x32xf32> to vector<8xf32>
    %4 = vector.shape_cast %3 : vector<8xf32> to vector<8x1xf32>
    %cst_5 = arith.constant 3.200000e+01 : f32
    %5 = vector.broadcast %cst_5 : f32 to vector<8x1xf32>
    %6 = arith.divf %4, %5 : vector<8x1xf32>
    %7 = vector.broadcast %6 : vector<8x1xf32> to vector<8x32xf32>
    %8 = arith.subf %0, %7 : vector<8x32xf32>
    %9 = arith.mulf %8, %8 : vector<8x32xf32>
    %cst_6 = arith.constant dense<0.000000e+00> : vector<8xf32>
    %10 = vector.multi_reduction <add>, %9, %cst_6 [1] : vector<8x32xf32> to vector<8xf32>
    %11 = vector.shape_cast %10 : vector<8xf32> to vector<8x1xf32>
    %cst_7 = arith.constant 3.200000e+01 : f32
    %12 = vector.broadcast %cst_7 : f32 to vector<8x1xf32>
    %13 = arith.divf %11, %12 : vector<8x1xf32>
    %14 = vector.broadcast %6 : vector<8x1xf32> to vector<8x32xf32>
    %15 = arith.subf %0, %14 : vector<8x32xf32>
    %cst_8 = arith.constant 9.99999974E-6 : f32
    %16 = vector.broadcast %cst_8 : f32 to vector<8x1xf32>
    %17 = arith.addf %13, %16 : vector<8x1xf32>
    %18 = math.rsqrt %17 : vector<8x1xf32>
    %19 = vector.broadcast %18 : vector<8x1xf32> to vector<8x32xf32>
    %20 = arith.mulf %15, %19 : vector<8x32xf32>
    %21 = vector.broadcast %1 : vector<1x32xf32> to vector<8x32xf32>
    %22 = arith.mulf %20, %21 : vector<8x32xf32>
    %23 = vector.broadcast %2 : vector<1x32xf32> to vector<8x32xf32>
    %24 = arith.addf %22, %23 : vector<8x32xf32>
    %c0_9 = arith.constant 0 : index
    %c0_10 = arith.constant 0 : index
    %25 = vector.load %arg4[%c0_9, %c0_10] : memref<8x32xf32, #tpu.memory_space<vmem>>, vector<8x32xf32>
    tpu.vector_store %arg4[%c0_9, %c0_10], %24 {strides = array<i32>} : memref<8x32xf32, #tpu.memory_space<vmem>>, vector<8x32xf32>,
    return
  }
  func.func @transform_0(%arg0: i32) -> (i32, i32) {
    %c0_i32 = arith.constant 0 : i32
    %c0_i32_0 = arith.constant 0 : i32
    return %arg0, %c0_i32 : i32, i32
  }
  func.func @transform_1(%arg0: i32) -> (i32, i32) {
    %c0_i32 = arith.constant 0 : i32
    %c0_i32_0 = arith.constant 0 : i32
    %c0_i32_1 = arith.constant 0 : i32
    return %c0_i32, %c0_i32_0 : i32, i32
  }
  func.func @transform_2(%arg0: i32) -> (i32, i32) {
    %c0_i32 = arith.constant 0 : i32
    %c0_i32_0 = arith.constant 0 : i32
    %c0_i32_1 = arith.constant 0 : i32
    return %c0_i32, %c0_i32_0 : i32, i32
  }
  func.func @transform_3(%arg0: i32) -> (i32, i32) {
    %c0_i32 = arith.constant 0 : i32
    %c0_i32_0 = arith.constant 0 : i32
    return %arg0, %c0_i32 : i32, i32
  }
}

module attributes {stable_mosaic.version = 11 : i64} {
  func.func @_encoder_layer_kernel(%arg0: i32, %arg1: memref<8x32xf32, #tpu.memory_space<vmem>>, %arg2: memref<1x8x8xf32, #tpu.memory_space<vmem>>, %arg3: memref<32x32xf32, #tpu.memory_space<vmem>>, %arg4: memref<32x64xf32, #tpu.memory_space<vmem>>, %arg5: memref<32x32xf32, #tpu.memory_space<vmem>>, %arg6: memref<1x32xf32, #tpu.memory_space<vmem>>, %arg7: memref<1x64xf32, #tpu.memory_space<vmem>>, %arg8: memref<1x32xf32, #tpu.memory_space<vmem>>, %arg9: memref<1x32xf32, #tpu.memory_space<vmem>>, %arg10: memref<1x32xf32, #tpu.memory_space<vmem>>, %arg11: memref<32x64xf32, #tpu.memory_space<vmem>>, %arg12: memref<1x64xf32, #tpu.memory_space<vmem>>, %arg13: memref<64x32xf32, #tpu.memory_space<vmem>>, %arg14: memref<1x32xf32, #tpu.memory_space<vmem>>, %arg15: memref<1x32xf32, #tpu.memory_space<vmem>>, %arg16: memref<1x32xf32, #tpu.memory_space<vmem>>, %arg17: memref<8x32xf32, #tpu.memory_space<vmem>>, %arg18: memref<8x32xf32, #tpu.memory_space<vmem>>) attributes {dimension_semantics = [#tpu.dimension_semantics<parallel>], iteration_bounds = array<i64: 2>, scalar_prefetch = 0 : i64, scratch_operands = 1 : i64, tpu.core_type = #tpu.core_type<tc>, window_params = [{transform_indices = @transform_0, window_bounds = array<i64: 8, 32>}, {transform_indices = @transform_1, window_bounds = array<i64: 1, 8, 8>}, {pipeline_mode = #tpu.pipeline_mode<synchronous>, transform_indices = @transform_2, window_bounds = array<i64: 32, 32>}, {pipeline_mode = #tpu.pipeline_mode<synchronous>, transform_indices = @transform_3, window_bounds = array<i64: 32, 64>}, {pipeline_mode = #tpu.pipeline_mode<synchronous>, transform_indices = @transform_4, window_bounds = array<i64: 32, 32>}, {pipeline_mode = #tpu.pipeline_mode<synchronous>, transform_indices = @transform_5, window_bounds = array<i64: 1, 32>}, {pipeline_mode = #tpu.pipeline_mode<synchronous>, transform_indices = @transform_6, window_bounds = array<i64: 1, 64>}, {pipeline_mode = #tpu.pipeline_mode<synchronous>, transform_indices = @transform_7, window_bounds = array<i64: 1, 32>}, {pipeline_mode = #tpu.pipeline_mode<synchronous>, transform_indices = @transform_8, window_bounds = array<i64: 1, 32>}, {pipeline_mode = #tpu.pipeline_mode<synchronous>, transform_indices = @transform_9, window_bounds = array<i64: 1, 32>}, {pipeline_mode = #tpu.pipeline_mode<synchronous>, transform_indices = @transform_10, window_bounds = array<i64: 32, 64>}, {pipeline_mode = #tpu.pipeline_mode<synchronous>, transform_indices = @transform_11, window_bounds = array<i64: 1, 64>}, {pipeline_mode = #tpu.pipeline_mode<synchronous>, transform_indices = @transform_12, window_bounds = array<i64: 64, 32>}, {pipeline_mode = #tpu.pipeline_mode<synchronous>, transform_indices = @transform_13, window_bounds = array<i64: 1, 32>}, {pipeline_mode = #tpu.pipeline_mode<synchronous>, transform_indices = @transform_14, window_bounds = array<i64: 1, 32>}, {pipeline_mode = #tpu.pipeline_mode<synchronous>, transform_indices = @transform_15, window_bounds = array<i64: 1, 32>}, {transform_indices = @transform_16, window_bounds = array<i64: 8, 32>}]} {
    %c0 = arith.constant 0 : index
    %c0_0 = arith.constant 0 : index
    %0 = vector.load %arg1[%c0, %c0_0] : memref<8x32xf32, #tpu.memory_space<vmem>>, vector<8x32xf32>
    %c0_1 = arith.constant 0 : index
    %c0_2 = arith.constant 0 : index
    %1 = vector.load %arg3[%c0_1, %c0_2] : memref<32x32xf32, #tpu.memory_space<vmem>>, vector<32x32xf32>
    %2 = arith.truncf %0 : vector<8x32xf32> to vector<8x32xbf16>
    %3 = arith.truncf %1 : vector<32x32xf32> to vector<32x32xbf16>
    %cst = arith.constant dense<0.000000e+00> : vector<8x32xf32>
    %4 = tpu.matmul %2, %3, %cst {dimension_numbers = #tpu.dot_dimension_numbers<[1], [0], [0], [1], [0, 0, 1, 1], [], []>} : vector<8x32xbf16>, vector<32x32xbf16>, vector<8x32xf32> -> vector<8x32xf32>
    %c0_3 = arith.constant 0 : index
    %c0_4 = arith.constant 0 : index
    %5 = vector.load %arg6[%c0_3, %c0_4] : memref<1x32xf32, #tpu.memory_space<vmem>>, vector<1x32xf32>
    %6 = vector.broadcast %5 : vector<1x32xf32> to vector<8x32xf32>
    %7 = arith.addf %4, %6 : vector<8x32xf32>
    %c0_5 = arith.constant 0 : index
    %c0_6 = arith.constant 0 : index
    %8 = vector.load %arg4[%c0_5, %c0_6] : memref<32x64xf32, #tpu.memory_space<vmem>>, vector<32x64xf32>
    %9 = arith.truncf %0 : vector<8x32xf32> to vector<8x32xbf16>
    %10 = arith.truncf %8 : vector<32x64xf32> to vector<32x64xbf16>
    %cst_7 = arith.constant dense<0.000000e+00> : vector<8x64xf32>
    %11 = tpu.matmul %9, %10, %cst_7 {dimension_numbers = #tpu.dot_dimension_numbers<[1], [0], [0], [1], [0, 0, 1, 1], [], []>} : vector<8x32xbf16>, vector<32x64xbf16>, vector<8x64xf32> -> vector<8x64xf32>
    %c0_8 = arith.constant 0 : index
    %c0_9 = arith.constant 0 : index
    %12 = vector.load %arg7[%c0_8, %c0_9] : memref<1x64xf32, #tpu.memory_space<vmem>>, vector<1x64xf32>
    %13 = vector.broadcast %12 : vector<1x64xf32> to vector<8x64xf32>
    %14 = arith.addf %11, %13 : vector<8x64xf32>
    %c0_10 = arith.constant 0 : index
    %c0_11 = arith.constant 0 : index
    %c0_12 = arith.constant 0 : index
    %15 = vector.load %arg2[%c0_10, %c0_11, %c0_12] : memref<1x8x8xf32, #tpu.memory_space<vmem>>, vector<1x8x8xf32>
    %16 = vector.shape_cast %15 : vector<1x8x8xf32> to vector<8x8xf32>
    %17 = vector.extract_strided_slice %7 {offsets = [0, 0], sizes = [8, 8], strides = [1, 1]} : vector<8x32xf32> to vector<8x8xf32>
    %18 = vector.extract_strided_slice %14 {offsets = [0, 0], sizes = [8, 8], strides = [1, 1]} : vector<8x64xf32> to vector<8x8xf32>
    %19 = vector.extract_strided_slice %14 {offsets = [0, 32], sizes = [8, 8], strides = [1, 1]} : vector<8x64xf32> to vector<8x8xf32>
    %cst_13 = arith.constant dense<0.000000e+00> : vector<8x8xf32>
    %20 = tpu.matmul %17, %18, %cst_13 {dimension_numbers = #tpu.dot_dimension_numbers<[1], [1], [0], [0], [0, 0, 1, 0], [], []>} : vector<8x8xf32>, vector<8x8xf32>, vector<8x8xf32> -> vector<8x8xf32>
    %cst_14 = arith.constant 0.353553385 : f32
    %21 = vector.broadcast %cst_14 : f32 to vector<8x8xf32>
    %22 = arith.mulf %20, %21 : vector<8x8xf32>
    %23 = arith.addf %22, %16 : vector<8x8xf32>
    %cst_15 = arith.constant dense<0xFF800000> : vector<8xf32>
    %24 = vector.multi_reduction <maximumf>, %23, %cst_15 [1] : vector<8x8xf32> to vector<8xf32>
    %25 = vector.shape_cast %24 : vector<8xf32> to vector<8x1xf32>
    %26 = vector.broadcast %25 : vector<8x1xf32> to vector<8x8xf32>
    %27 = arith.subf %23, %26 : vector<8x8xf32>
    %28 = math.exp %27 : vector<8x8xf32>
    %cst_16 = arith.constant dense<0.000000e+00> : vector<8xf32>
    %29 = vector.multi_reduction <add>, %28, %cst_16 [1] : vector<8x8xf32> to vector<8xf32>
    %30 = vector.shape_cast %29 : vector<8xf32> to vector<8x1xf32>
    %cst_17 = arith.constant dense<0.000000e+00> : vector<8x8xf32>
    %31 = tpu.matmul %28, %19, %cst_17 {dimension_numbers = #tpu.dot_dimension_numbers<[1], [0], [0], [1], [0, 0, 1, 1], [], []>} : vector<8x8xf32>, vector<8x8xf32>, vector<8x8xf32> -> vector<8x8xf32>
    %32 = tpu.reciprocal %30 {approx = true} : vector<8x1xf32> -> vector<8x1xf32>
    %33 = vector.broadcast %32 : vector<8x1xf32> to vector<8x8xf32>
    %34 = arith.mulf %31, %33 : vector<8x8xf32>
    %c0_18 = arith.constant 0 : index
    %c0_19 = arith.constant 0 : index
    %35 = vector.load %arg18[%c0_18, %c0_19] : memref<8x32xf32, #tpu.memory_space<vmem>>, vector<8x8xf32>
    tpu.vector_store %arg18[%c0_18, %c0_19], %34 {strides = array<i32>} : memref<8x32xf32, #tpu.memory_space<vmem>>, vector<8x8xf32>,
    %36 = vector.extract_strided_slice %7 {offsets = [0, 8], sizes = [8, 8], strides = [1, 1]} : vector<8x32xf32> to vector<8x8xf32>
    %37 = vector.extract_strided_slice %14 {offsets = [0, 8], sizes = [8, 8], strides = [1, 1]} : vector<8x64xf32> to vector<8x8xf32>
    %38 = vector.extract_strided_slice %14 {offsets = [0, 40], sizes = [8, 8], strides = [1, 1]} : vector<8x64xf32> to vector<8x8xf32>
    %cst_20 = arith.constant dense<0.000000e+00> : vector<8x8xf32>
    %39 = tpu.matmul %36, %37, %cst_20 {dimension_numbers = #tpu.dot_dimension_numbers<[1], [1], [0], [0], [0, 0, 1, 0], [], []>} : vector<8x8xf32>, vector<8x8xf32>, vector<8x8xf32> -> vector<8x8xf32>
    %cst_21 = arith.constant 0.353553385 : f32
    %40 = vector.broadcast %cst_21 : f32 to vector<8x8xf32>
    %41 = arith.mulf %39, %40 : vector<8x8xf32>
    %42 = arith.addf %41, %16 : vector<8x8xf32>
    %cst_22 = arith.constant dense<0xFF800000> : vector<8xf32>
    %43 = vector.multi_reduction <maximumf>, %42, %cst_22 [1] : vector<8x8xf32> to vector<8xf32>
    %44 = vector.shape_cast %43 : vector<8xf32> to vector<8x1xf32>
    %45 = vector.broadcast %44 : vector<8x1xf32> to vector<8x8xf32>
    %46 = arith.subf %42, %45 : vector<8x8xf32>
    %47 = math.exp %46 : vector<8x8xf32>
    %cst_23 = arith.constant dense<0.000000e+00> : vector<8xf32>
    %48 = vector.multi_reduction <add>, %47, %cst_23 [1] : vector<8x8xf32> to vector<8xf32>
    %49 = vector.shape_cast %48 : vector<8xf32> to vector<8x1xf32>
    %cst_24 = arith.constant dense<0.000000e+00> : vector<8x8xf32>
    %50 = tpu.matmul %47, %38, %cst_24 {dimension_numbers = #tpu.dot_dimension_numbers<[1], [0], [0], [1], [0, 0, 1, 1], [], []>} : vector<8x8xf32>, vector<8x8xf32>, vector<8x8xf32> -> vector<8x8xf32>
    %51 = tpu.reciprocal %49 {approx = true} : vector<8x1xf32> -> vector<8x1xf32>
    %52 = vector.broadcast %51 : vector<8x1xf32> to vector<8x8xf32>
    %53 = arith.mulf %50, %52 : vector<8x8xf32>
    %c0_25 = arith.constant 0 : index
    %c8 = arith.constant 8 : index
    %54 = vector.load %arg18[%c0_25, %c8] : memref<8x32xf32, #tpu.memory_space<vmem>>, vector<8x8xf32>
    tpu.vector_store %arg18[%c0_25, %c8], %53 {strides = array<i32>} : memref<8x32xf32, #tpu.memory_space<vmem>>, vector<8x8xf32>,
    %55 = vector.extract_strided_slice %7 {offsets = [0, 16], sizes = [8, 8], strides = [1, 1]} : vector<8x32xf32> to vector<8x8xf32>
    %56 = vector.extract_strided_slice %14 {offsets = [0, 16], sizes = [8, 8], strides = [1, 1]} : vector<8x64xf32> to vector<8x8xf32>
    %57 = vector.extract_strided_slice %14 {offsets = [0, 48], sizes = [8, 8], strides = [1, 1]} : vector<8x64xf32> to vector<8x8xf32>
    %cst_26 = arith.constant dense<0.000000e+00> : vector<8x8xf32>
    %58 = tpu.matmul %55, %56, %cst_26 {dimension_numbers = #tpu.dot_dimension_numbers<[1], [1], [0], [0], [0, 0, 1, 0], [], []>} : vector<8x8xf32>, vector<8x8xf32>, vector<8x8xf32> -> vector<8x8xf32>
    %cst_27 = arith.constant 0.353553385 : f32
    %59 = vector.broadcast %cst_27 : f32 to vector<8x8xf32>
    %60 = arith.mulf %58, %59 : vector<8x8xf32>
    %61 = arith.addf %60, %16 : vector<8x8xf32>
    %cst_28 = arith.constant dense<0xFF800000> : vector<8xf32>
    %62 = vector.multi_reduction <maximumf>, %61, %cst_28 [1] : vector<8x8xf32> to vector<8xf32>
    %63 = vector.shape_cast %62 : vector<8xf32> to vector<8x1xf32>
    %64 = vector.broadcast %63 : vector<8x1xf32> to vector<8x8xf32>
    %65 = arith.subf %61, %64 : vector<8x8xf32>
    %66 = math.exp %65 : vector<8x8xf32>
    %cst_29 = arith.constant dense<0.000000e+00> : vector<8xf32>
    %67 = vector.multi_reduction <add>, %66, %cst_29 [1] : vector<8x8xf32> to vector<8xf32>
    %68 = vector.shape_cast %67 : vector<8xf32> to vector<8x1xf32>
    %cst_30 = arith.constant dense<0.000000e+00> : vector<8x8xf32>
    %69 = tpu.matmul %66, %57, %cst_30 {dimension_numbers = #tpu.dot_dimension_numbers<[1], [0], [0], [1], [0, 0, 1, 1], [], []>} : vector<8x8xf32>, vector<8x8xf32>, vector<8x8xf32> -> vector<8x8xf32>
    %70 = tpu.reciprocal %68 {approx = true} : vector<8x1xf32> -> vector<8x1xf32>
    %71 = vector.broadcast %70 : vector<8x1xf32> to vector<8x8xf32>
    %72 = arith.mulf %69, %71 : vector<8x8xf32>
    %c0_31 = arith.constant 0 : index
    %c16 = arith.constant 16 : index
    %73 = vector.load %arg18[%c0_31, %c16] : memref<8x32xf32, #tpu.memory_space<vmem>>, vector<8x8xf32>
    tpu.vector_store %arg18[%c0_31, %c16], %72 {strides = array<i32>} : memref<8x32xf32, #tpu.memory_space<vmem>>, vector<8x8xf32>,
    %74 = vector.extract_strided_slice %7 {offsets = [0, 24], sizes = [8, 8], strides = [1, 1]} : vector<8x32xf32> to vector<8x8xf32>
    %75 = vector.extract_strided_slice %14 {offsets = [0, 24], sizes = [8, 8], strides = [1, 1]} : vector<8x64xf32> to vector<8x8xf32>
    %76 = vector.extract_strided_slice %14 {offsets = [0, 56], sizes = [8, 8], strides = [1, 1]} : vector<8x64xf32> to vector<8x8xf32>
    %cst_32 = arith.constant dense<0.000000e+00> : vector<8x8xf32>
    %77 = tpu.matmul %74, %75, %cst_32 {dimension_numbers = #tpu.dot_dimension_numbers<[1], [1], [0], [0], [0, 0, 1, 0], [], []>} : vector<8x8xf32>, vector<8x8xf32>, vector<8x8xf32> -> vector<8x8xf32>
    %cst_33 = arith.constant 0.353553385 : f32
    %78 = vector.broadcast %cst_33 : f32 to vector<8x8xf32>
    %79 = arith.mulf %77, %78 : vector<8x8xf32>
    %80 = arith.addf %79, %16 : vector<8x8xf32>
    %cst_34 = arith.constant dense<0xFF800000> : vector<8xf32>
    %81 = vector.multi_reduction <maximumf>, %80, %cst_34 [1] : vector<8x8xf32> to vector<8xf32>
    %82 = vector.shape_cast %81 : vector<8xf32> to vector<8x1xf32>
    %83 = vector.broadcast %82 : vector<8x1xf32> to vector<8x8xf32>
    %84 = arith.subf %80, %83 : vector<8x8xf32>
    %85 = math.exp %84 : vector<8x8xf32>
    %cst_35 = arith.constant dense<0.000000e+00> : vector<8xf32>
    %86 = vector.multi_reduction <add>, %85, %cst_35 [1] : vector<8x8xf32> to vector<8xf32>
    %87 = vector.shape_cast %86 : vector<8xf32> to vector<8x1xf32>
    %cst_36 = arith.constant dense<0.000000e+00> : vector<8x8xf32>
    %88 = tpu.matmul %85, %76, %cst_36 {dimension_numbers = #tpu.dot_dimension_numbers<[1], [0], [0], [1], [0, 0, 1, 1], [], []>} : vector<8x8xf32>, vector<8x8xf32>, vector<8x8xf32> -> vector<8x8xf32>
    %89 = tpu.reciprocal %87 {approx = true} : vector<8x1xf32> -> vector<8x1xf32>
    %90 = vector.broadcast %89 : vector<8x1xf32> to vector<8x8xf32>
    %91 = arith.mulf %88, %90 : vector<8x8xf32>
    %c0_37 = arith.constant 0 : index
    %c24 = arith.constant 24 : index
    %92 = vector.load %arg18[%c0_37, %c24] : memref<8x32xf32, #tpu.memory_space<vmem>>, vector<8x8xf32>
    tpu.vector_store %arg18[%c0_37, %c24], %91 {strides = array<i32>} : memref<8x32xf32, #tpu.memory_space<vmem>>, vector<8x8xf32>,
    %c0_38 = arith.constant 0 : index
    %c0_39 = arith.constant 0 : index
    %93 = vector.load %arg18[%c0_38, %c0_39] : memref<8x32xf32, #tpu.memory_space<vmem>>, vector<8x32xf32>
    %c0_40 = arith.constant 0 : index
    %c0_41 = arith.constant 0 : index
    %94 = vector.load %arg5[%c0_40, %c0_41] : memref<32x32xf32, #tpu.memory_space<vmem>>, vector<32x32xf32>
    %95 = arith.truncf %93 : vector<8x32xf32> to vector<8x32xbf16>
    %96 = arith.truncf %94 : vector<32x32xf32> to vector<32x32xbf16>
    %cst_42 = arith.constant dense<0.000000e+00> : vector<8x32xf32>
    %97 = tpu.matmul %95, %96, %cst_42 {dimension_numbers = #tpu.dot_dimension_numbers<[1], [0], [0], [1], [0, 0, 1, 1], [], []>} : vector<8x32xbf16>, vector<32x32xbf16>, vector<8x32xf32> -> vector<8x32xf32>
    %c0_43 = arith.constant 0 : index
    %c0_44 = arith.constant 0 : index
    %98 = vector.load %arg8[%c0_43, %c0_44] : memref<1x32xf32, #tpu.memory_space<vmem>>, vector<1x32xf32>
    %99 = vector.broadcast %98 : vector<1x32xf32> to vector<8x32xf32>
    %100 = arith.addf %97, %99 : vector<8x32xf32>
    %101 = arith.addf %100, %0 : vector<8x32xf32>
    %c0_45 = arith.constant 0 : index
    %c0_46 = arith.constant 0 : index
    %102 = vector.load %arg9[%c0_45, %c0_46] : memref<1x32xf32, #tpu.memory_space<vmem>>, vector<1x32xf32>
    %c0_47 = arith.constant 0 : index
    %c0_48 = arith.constant 0 : index
    %103 = vector.load %arg10[%c0_47, %c0_48] : memref<1x32xf32, #tpu.memory_space<vmem>>, vector<1x32xf32>
    %cst_49 = arith.constant dense<0.000000e+00> : vector<8xf32>
    %104 = vector.multi_reduction <add>, %101, %cst_49 [1] : vector<8x32xf32> to vector<8xf32>
    %105 = vector.shape_cast %104 : vector<8xf32> to vector<8x1xf32>
    %cst_50 = arith.constant 3.200000e+01 : f32
    %106 = vector.broadcast %cst_50 : f32 to vector<8x1xf32>
    %107 = arith.divf %105, %106 : vector<8x1xf32>
    %108 = vector.broadcast %107 : vector<8x1xf32> to vector<8x32xf32>
    %109 = arith.subf %101, %108 : vector<8x32xf32>
    %110 = arith.mulf %109, %109 : vector<8x32xf32>
    %cst_51 = arith.constant dense<0.000000e+00> : vector<8xf32>
    %111 = vector.multi_reduction <add>, %110, %cst_51 [1] : vector<8x32xf32> to vector<8xf32>
    %112 = vector.shape_cast %111 : vector<8xf32> to vector<8x1xf32>
    %cst_52 = arith.constant 3.200000e+01 : f32
    %113 = vector.broadcast %cst_52 : f32 to vector<8x1xf32>
    %114 = arith.divf %112, %113 : vector<8x1xf32>
    %115 = vector.broadcast %107 : vector<8x1xf32> to vector<8x32xf32>
    %116 = arith.subf %101, %115 : vector<8x32xf32>
    %cst_53 = arith.constant 9.99999974E-6 : f32
    %117 = vector.broadcast %cst_53 : f32 to vector<8x1xf32>
    %118 = arith.addf %114, %117 : vector<8x1xf32>
    %119 = math.rsqrt %118 : vector<8x1xf32>
    %120 = vector.broadcast %119 : vector<8x1xf32> to vector<8x32xf32>
    %121 = arith.mulf %116, %120 : vector<8x32xf32>
    %122 = vector.broadcast %102 : vector<1x32xf32> to vector<8x32xf32>
    %123 = arith.mulf %121, %122 : vector<8x32xf32>
    %124 = vector.broadcast %103 : vector<1x32xf32> to vector<8x32xf32>
    %125 = arith.addf %123, %124 : vector<8x32xf32>
    %c0_54 = arith.constant 0 : index
    %c0_55 = arith.constant 0 : index
    %126 = vector.load %arg11[%c0_54, %c0_55] : memref<32x64xf32, #tpu.memory_space<vmem>>, vector<32x64xf32>
    %127 = arith.truncf %125 : vector<8x32xf32> to vector<8x32xbf16>
    %128 = arith.truncf %126 : vector<32x64xf32> to vector<32x64xbf16>
    %cst_56 = arith.constant dense<0.000000e+00> : vector<8x64xf32>
    %129 = tpu.matmul %127, %128, %cst_56 {dimension_numbers = #tpu.dot_dimension_numbers<[1], [0], [0], [1], [0, 0, 1, 1], [], []>} : vector<8x32xbf16>, vector<32x64xbf16>, vector<8x64xf32> -> vector<8x64xf32>
    %c0_57 = arith.constant 0 : index
    %c0_58 = arith.constant 0 : index
    %130 = vector.load %arg12[%c0_57, %c0_58] : memref<1x64xf32, #tpu.memory_space<vmem>>, vector<1x64xf32>
    %131 = vector.broadcast %130 : vector<1x64xf32> to vector<8x64xf32>
    %132 = arith.addf %129, %131 : vector<8x64xf32>
    %cst_59 = arith.constant 0.000000e+00 : f32
    %133 = vector.broadcast %cst_59 : f32 to vector<8x64xf32>
    %134 = arith.maximumf %132, %133 : vector<8x64xf32>
    %c0_60 = arith.constant 0 : index
    %c0_61 = arith.constant 0 : index
    %135 = vector.load %arg13[%c0_60, %c0_61] : memref<64x32xf32, #tpu.memory_space<vmem>>, vector<64x32xf32>
    %136 = arith.truncf %134 : vector<8x64xf32> to vector<8x64xbf16>
    %137 = arith.truncf %135 : vector<64x32xf32> to vector<64x32xbf16>
    %cst_62 = arith.constant dense<0.000000e+00> : vector<8x32xf32>
    %138 = tpu.matmul %136, %137, %cst_62 {dimension_numbers = #tpu.dot_dimension_numbers<[1], [0], [0], [1], [0, 0, 1, 1], [], []>} : vector<8x64xbf16>, vector<64x32xbf16>, vector<8x32xf32> -> vector<8x32xf32>
    %c0_63 = arith.constant 0 : index
    %c0_64 = arith.constant 0 : index
    %139 = vector.load %arg14[%c0_63, %c0_64] : memref<1x32xf32, #tpu.memory_space<vmem>>, vector<1x32xf32>
    %140 = vector.broadcast %139 : vector<1x32xf32> to vector<8x32xf32>
    %141 = arith.addf %138, %140 : vector<8x32xf32>
    %142 = arith.addf %141, %125 : vector<8x32xf32>
    %c0_65 = arith.constant 0 : index
    %c0_66 = arith.constant 0 : index
    %143 = vector.load %arg15[%c0_65, %c0_66] : memref<1x32xf32, #tpu.memory_space<vmem>>, vector<1x32xf32>
    %c0_67 = arith.constant 0 : index
    %c0_68 = arith.constant 0 : index
    %144 = vector.load %arg16[%c0_67, %c0_68] : memref<1x32xf32, #tpu.memory_space<vmem>>, vector<1x32xf32>
    %cst_69 = arith.constant dense<0.000000e+00> : vector<8xf32>
    %145 = vector.multi_reduction <add>, %142, %cst_69 [1] : vector<8x32xf32> to vector<8xf32>
    %146 = vector.shape_cast %145 : vector<8xf32> to vector<8x1xf32>
    %cst_70 = arith.constant 3.200000e+01 : f32
    %147 = vector.broadcast %cst_70 : f32 to vector<8x1xf32>
    %148 = arith.divf %146, %147 : vector<8x1xf32>
    %149 = vector.broadcast %148 : vector<8x1xf32> to vector<8x32xf32>
    %150 = arith.subf %142, %149 : vector<8x32xf32>
    %151 = arith.mulf %150, %150 : vector<8x32xf32>
    %cst_71 = arith.constant dense<0.000000e+00> : vector<8xf32>
    %152 = vector.multi_reduction <add>, %151, %cst_71 [1] : vector<8x32xf32> to vector<8xf32>
    %153 = vector.shape_cast %152 : vector<8xf32> to vector<8x1xf32>
    %cst_72 = arith.constant 3.200000e+01 : f32
    %154 = vector.broadcast %cst_72 : f32 to vector<8x1xf32>
    %155 = arith.divf %153, %154 : vector<8x1xf32>
    %156 = vector.broadcast %148 : vector<8x1xf32> to vector<8x32xf32>
    %157 = arith.subf %142, %156 : vector<8x32xf32>
    %cst_73 = arith.constant 9.99999974E-6 : f32
    %158 = vector.broadcast %cst_73 : f32 to vector<8x1xf32>
    %159 = arith.addf %155, %158 : vector<8x1xf32>
    %160 = math.rsqrt %159 : vector<8x1xf32>
    %161 = vector.broadcast %160 : vector<8x1xf32> to vector<8x32xf32>
    %162 = arith.mulf %157, %161 : vector<8x32xf32>
    %163 = vector.broadcast %143 : vector<1x32xf32> to vector<8x32xf32>
    %164 = arith.mulf %162, %163 : vector<8x32xf32>
    %165 = vector.broadcast %144 : vector<1x32xf32> to vector<8x32xf32>
    %166 = arith.addf %164, %165 : vector<8x32xf32>
    %c0_74 = arith.constant 0 : index
    %c0_75 = arith.constant 0 : index
    %167 = vector.load %arg17[%c0_74, %c0_75] : memref<8x32xf32, #tpu.memory_space<vmem>>, vector<8x32xf32>
    tpu.vector_store %arg17[%c0_74, %c0_75], %166 {strides = array<i32>} : memref<8x32xf32, #tpu.memory_space<vmem>>, vector<8x32xf32>,
    return
  }
  func.func @transform_0(%arg0: i32) -> (i32, i32) {
    %c0_i32 = arith.constant 0 : i32
    %c0_i32_0 = arith.constant 0 : i32
    return %arg0, %c0_i32 : i32, i32
  }
  func.func @transform_1(%arg0: i32) -> (i32, i32, i32) {
    %c0_i32 = arith.constant 0 : i32
    %c0_i32_0 = arith.constant 0 : i32
    %c0_i32_1 = arith.constant 0 : i32
    return %arg0, %c0_i32, %c0_i32_0 : i32, i32, i32
  }
  func.func @transform_2(%arg0: i32) -> (i32, i32) {
    %c0_i32 = arith.constant 0 : i32
    %c0_i32_0 = arith.constant 0 : i32
    %c0_i32_1 = arith.constant 0 : i32
    return %c0_i32, %c0_i32_0 : i32, i32
  }
  func.func @transform_3(%arg0: i32) -> (i32, i32) {
    %c0_i32 = arith.constant 0 : i32
    %c0_i32_0 = arith.constant 0 : i32
    %c0_i32_1 = arith.constant 0 : i32
    return %c0_i32, %c0_i32_0 : i32, i32
  }
  func.func @transform_4(%arg0: i32) -> (i32, i32) {
    %c0_i32 = arith.constant 0 : i32
    %c0_i32_0 = arith.constant 0 : i32
    %c0_i32_1 = arith.constant 0 : i32
    return %c0_i32, %c0_i32_0 : i32, i32
  }
  func.func @transform_5(%arg0: i32) -> (i32, i32) {
    %c0_i32 = arith.constant 0 : i32
    %c0_i32_0 = arith.constant 0 : i32
    %c0_i32_1 = arith.constant 0 : i32
    return %c0_i32, %c0_i32_0 : i32, i32
  }
  func.func @transform_6(%arg0: i32) -> (i32, i32) {
    %c0_i32 = arith.constant 0 : i32
    %c0_i32_0 = arith.constant 0 : i32
    %c0_i32_1 = arith.constant 0 : i32
    return %c0_i32, %c0_i32_0 : i32, i32
  }
  func.func @transform_7(%arg0: i32) -> (i32, i32) {
    %c0_i32 = arith.constant 0 : i32
    %c0_i32_0 = arith.constant 0 : i32
    %c0_i32_1 = arith.constant 0 : i32
    return %c0_i32, %c0_i32_0 : i32, i32
  }
  func.func @transform_8(%arg0: i32) -> (i32, i32) {
    %c0_i32 = arith.constant 0 : i32
    %c0_i32_0 = arith.constant 0 : i32
    %c0_i32_1 = arith.constant 0 : i32
    return %c0_i32, %c0_i32_0 : i32, i32
  }
  func.func @transform_9(%arg0: i32) -> (i32, i32) {
    %c0_i32 = arith.constant 0 : i32
    %c0_i32_0 = arith.constant 0 : i32
    %c0_i32_1 = arith.constant 0 : i32
    return %c0_i32, %c0_i32_0 : i32, i32
  }
  func.func @transform_10(%arg0: i32) -> (i32, i32) {
    %c0_i32 = arith.constant 0 : i32
    %c0_i32_0 = arith.constant 0 : i32
    %c0_i32_1 = arith.constant 0 : i32
    return %c0_i32, %c0_i32_0 : i32, i32
  }
  func.func @transform_11(%arg0: i32) -> (i32, i32) {
    %c0_i32 = arith.constant 0 : i32
    %c0_i32_0 = arith.constant 0 : i32
    %c0_i32_1 = arith.constant 0 : i32
    return %c0_i32, %c0_i32_0 : i32, i32
  }
  func.func @transform_12(%arg0: i32) -> (i32, i32) {
    %c0_i32 = arith.constant 0 : i32
    %c0_i32_0 = arith.constant 0 : i32
    %c0_i32_1 = arith.constant 0 : i32
    return %c0_i32, %c0_i32_0 : i32, i32
  }
  func.func @transform_13(%arg0: i32) -> (i32, i32) {
    %c0_i32 = arith.constant 0 : i32
    %c0_i32_0 = arith.constant 0 : i32
    %c0_i32_1 = arith.constant 0 : i32
    return %c0_i32, %c0_i32_0 : i32, i32
  }
  func.func @transform_14(%arg0: i32) -> (i32, i32) {
    %c0_i32 = arith.constant 0 : i32
    %c0_i32_0 = arith.constant 0 : i32
    %c0_i32_1 = arith.constant 0 : i32
    return %c0_i32, %c0_i32_0 : i32, i32
  }
  func.func @transform_15(%arg0: i32) -> (i32, i32) {
    %c0_i32 = arith.constant 0 : i32
    %c0_i32_0 = arith.constant 0 : i32
    %c0_i32_1 = arith.constant 0 : i32
    return %c0_i32, %c0_i32_0 : i32, i32
  }
  func.func @transform_16(%arg0: i32) -> (i32, i32) {
    %c0_i32 = arith.constant 0 : i32
    %c0_i32_0 = arith.constant 0 : i32
    return %arg0, %c0_i32 : i32, i32
  }
}

module attributes {stable_mosaic.version = 11 : i64} {
  func.func @_decoder_layer_kernel(%arg0: i32, %arg1: memref<8x32xf32, #tpu.memory_space<vmem>>, %arg2: memref<8x32xf32, #tpu.memory_space<vmem>>, %arg3: memref<1x8x8xf32, #tpu.memory_space<vmem>>, %arg4: memref<1x8x8xf32, #tpu.memory_space<vmem>>, %arg5: memref<32x32xf32, #tpu.memory_space<vmem>>, %arg6: memref<32x64xf32, #tpu.memory_space<vmem>>, %arg7: memref<32x32xf32, #tpu.memory_space<vmem>>, %arg8: memref<1x32xf32, #tpu.memory_space<vmem>>, %arg9: memref<1x64xf32, #tpu.memory_space<vmem>>, %arg10: memref<1x32xf32, #tpu.memory_space<vmem>>, %arg11: memref<1x32xf32, #tpu.memory_space<vmem>>, %arg12: memref<1x32xf32, #tpu.memory_space<vmem>>, %arg13: memref<32x32xf32, #tpu.memory_space<vmem>>, %arg14: memref<32x64xf32, #tpu.memory_space<vmem>>, %arg15: memref<32x32xf32, #tpu.memory_space<vmem>>, %arg16: memref<1x32xf32, #tpu.memory_space<vmem>>, %arg17: memref<1x64xf32, #tpu.memory_space<vmem>>, %arg18: memref<1x32xf32, #tpu.memory_space<vmem>>, %arg19: memref<1x32xf32, #tpu.memory_space<vmem>>, %arg20: memref<1x32xf32, #tpu.memory_space<vmem>>, %arg21: memref<32x64xf32, #tpu.memory_space<vmem>>, %arg22: memref<1x64xf32, #tpu.memory_space<vmem>>, %arg23: memref<64x32xf32, #tpu.memory_space<vmem>>, %arg24: memref<1x32xf32, #tpu.memory_space<vmem>>, %arg25: memref<1x32xf32, #tpu.memory_space<vmem>>, %arg26: memref<1x32xf32, #tpu.memory_space<vmem>>, %arg27: memref<8x32xf32, #tpu.memory_space<vmem>>, %arg28: memref<8x32xf32, #tpu.memory_space<vmem>>) attributes {dimension_semantics = [#tpu.dimension_semantics<parallel>], iteration_bounds = array<i64: 2>, scalar_prefetch = 0 : i64, scratch_operands = 1 : i64, tpu.core_type = #tpu.core_type<tc>, window_params = [{transform_indices = @transform_0, window_bounds = array<i64: 8, 32>}, {transform_indices = @transform_1, window_bounds = array<i64: 8, 32>}, {transform_indices = @transform_2, window_bounds = array<i64: 1, 8, 8>}, {transform_indices = @transform_3, window_bounds = array<i64: 1, 8, 8>}, {pipeline_mode = #tpu.pipeline_mode<synchronous>, transform_indices = @transform_4, window_bounds = array<i64: 32, 32>}, {pipeline_mode = #tpu.pipeline_mode<synchronous>, transform_indices = @transform_5, window_bounds = array<i64: 32, 64>}, {pipeline_mode = #tpu.pipeline_mode<synchronous>, transform_indices = @transform_6, window_bounds = array<i64: 32, 32>}, {pipeline_mode = #tpu.pipeline_mode<synchronous>, transform_indices = @transform_7, window_bounds = array<i64: 1, 32>}, {pipeline_mode = #tpu.pipeline_mode<synchronous>, transform_indices = @transform_8, window_bounds = array<i64: 1, 64>}, {pipeline_mode = #tpu.pipeline_mode<synchronous>, transform_indices = @transform_9, window_bounds = array<i64: 1, 32>}, {pipeline_mode = #tpu.pipeline_mode<synchronous>, transform_indices = @transform_10, window_bounds = array<i64: 1, 32>}, {pipeline_mode = #tpu.pipeline_mode<synchronous>, transform_indices = @transform_11, window_bounds = array<i64: 1, 32>}, {pipeline_mode = #tpu.pipeline_mode<synchronous>, transform_indices = @transform_12, window_bounds = array<i64: 32, 32>}, {pipeline_mode = #tpu.pipeline_mode<synchronous>, transform_indices = @transform_13, window_bounds = array<i64: 32, 64>}, {pipeline_mode = #tpu.pipeline_mode<synchronous>, transform_indices = @transform_14, window_bounds = array<i64: 32, 32>}, {pipeline_mode = #tpu.pipeline_mode<synchronous>, transform_indices = @transform_15, window_bounds = array<i64: 1, 32>}, {pipeline_mode = #tpu.pipeline_mode<synchronous>, transform_indices = @transform_16, window_bounds = array<i64: 1, 64>}, {pipeline_mode = #tpu.pipeline_mode<synchronous>, transform_indices = @transform_17, window_bounds = array<i64: 1, 32>}, {pipeline_mode = #tpu.pipeline_mode<synchronous>, transform_indices = @transform_18, window_bounds = array<i64: 1, 32>}, {pipeline_mode = #tpu.pipeline_mode<synchronous>, transform_indices = @transform_19, window_bounds = array<i64: 1, 32>}, {pipeline_mode = #tpu.pipeline_mode<synchronous>, transform_indices = @transform_20, window_bounds = array<i64: 32, 64>}, {pipeline_mode = #tpu.pipeline_mode<synchronous>, transform_indices = @transform_21, window_bounds = array<i64: 1, 64>}, {pipeline_mode = #tpu.pipeline_mode<synchronous>, transform_indices = @transform_22, window_bounds = array<i64: 64, 32>}, {pipeline_mode = #tpu.pipeline_mode<synchronous>, transform_indices = @transform_23, window_bounds = array<i64: 1, 32>}, {pipeline_mode = #tpu.pipeline_mode<synchronous>, transform_indices = @transform_24, window_bounds = array<i64: 1, 32>}, {pipeline_mode = #tpu.pipeline_mode<synchronous>, transform_indices = @transform_25, window_bounds = array<i64: 1, 32>}, {transform_indices = @transform_26, window_bounds = array<i64: 8, 32>}]} {
    %c0 = arith.constant 0 : index
    %c0_0 = arith.constant 0 : index
    %0 = vector.load %arg1[%c0, %c0_0] : memref<8x32xf32, #tpu.memory_space<vmem>>, vector<8x32xf32>
    %c0_1 = arith.constant 0 : index
    %c0_2 = arith.constant 0 : index
    %1 = vector.load %arg2[%c0_1, %c0_2] : memref<8x32xf32, #tpu.memory_space<vmem>>, vector<8x32xf32>
    %c0_3 = arith.constant 0 : index
    %c0_4 = arith.constant 0 : index
    %2 = vector.load %arg5[%c0_3, %c0_4] : memref<32x32xf32, #tpu.memory_space<vmem>>, vector<32x32xf32>
    %3 = arith.truncf %0 : vector<8x32xf32> to vector<8x32xbf16>
    %4 = arith.truncf %2 : vector<32x32xf32> to vector<32x32xbf16>
    %cst = arith.constant dense<0.000000e+00> : vector<8x32xf32>
    %5 = tpu.matmul %3, %4, %cst {dimension_numbers = #tpu.dot_dimension_numbers<[1], [0], [0], [1], [0, 0, 1, 1], [], []>} : vector<8x32xbf16>, vector<32x32xbf16>, vector<8x32xf32> -> vector<8x32xf32>
    %c0_5 = arith.constant 0 : index
    %c0_6 = arith.constant 0 : index
    %6 = vector.load %arg8[%c0_5, %c0_6] : memref<1x32xf32, #tpu.memory_space<vmem>>, vector<1x32xf32>
    %7 = vector.broadcast %6 : vector<1x32xf32> to vector<8x32xf32>
    %8 = arith.addf %5, %7 : vector<8x32xf32>
    %c0_7 = arith.constant 0 : index
    %c0_8 = arith.constant 0 : index
    %9 = vector.load %arg6[%c0_7, %c0_8] : memref<32x64xf32, #tpu.memory_space<vmem>>, vector<32x64xf32>
    %10 = arith.truncf %0 : vector<8x32xf32> to vector<8x32xbf16>
    %11 = arith.truncf %9 : vector<32x64xf32> to vector<32x64xbf16>
    %cst_9 = arith.constant dense<0.000000e+00> : vector<8x64xf32>
    %12 = tpu.matmul %10, %11, %cst_9 {dimension_numbers = #tpu.dot_dimension_numbers<[1], [0], [0], [1], [0, 0, 1, 1], [], []>} : vector<8x32xbf16>, vector<32x64xbf16>, vector<8x64xf32> -> vector<8x64xf32>
    %c0_10 = arith.constant 0 : index
    %c0_11 = arith.constant 0 : index
    %13 = vector.load %arg9[%c0_10, %c0_11] : memref<1x64xf32, #tpu.memory_space<vmem>>, vector<1x64xf32>
    %14 = vector.broadcast %13 : vector<1x64xf32> to vector<8x64xf32>
    %15 = arith.addf %12, %14 : vector<8x64xf32>
    %c0_12 = arith.constant 0 : index
    %c0_13 = arith.constant 0 : index
    %c0_14 = arith.constant 0 : index
    %16 = vector.load %arg3[%c0_12, %c0_13, %c0_14] : memref<1x8x8xf32, #tpu.memory_space<vmem>>, vector<1x8x8xf32>
    %17 = vector.shape_cast %16 : vector<1x8x8xf32> to vector<8x8xf32>
    %18 = vector.extract_strided_slice %8 {offsets = [0, 0], sizes = [8, 8], strides = [1, 1]} : vector<8x32xf32> to vector<8x8xf32>
    %19 = vector.extract_strided_slice %15 {offsets = [0, 0], sizes = [8, 8], strides = [1, 1]} : vector<8x64xf32> to vector<8x8xf32>
    %20 = vector.extract_strided_slice %15 {offsets = [0, 32], sizes = [8, 8], strides = [1, 1]} : vector<8x64xf32> to vector<8x8xf32>
    %cst_15 = arith.constant dense<0.000000e+00> : vector<8x8xf32>
    %21 = tpu.matmul %18, %19, %cst_15 {dimension_numbers = #tpu.dot_dimension_numbers<[1], [1], [0], [0], [0, 0, 1, 0], [], []>} : vector<8x8xf32>, vector<8x8xf32>, vector<8x8xf32> -> vector<8x8xf32>
    %cst_16 = arith.constant 0.353553385 : f32
    %22 = vector.broadcast %cst_16 : f32 to vector<8x8xf32>
    %23 = arith.mulf %21, %22 : vector<8x8xf32>
    %24 = arith.addf %23, %17 : vector<8x8xf32>
    %cst_17 = arith.constant dense<0xFF800000> : vector<8xf32>
    %25 = vector.multi_reduction <maximumf>, %24, %cst_17 [1] : vector<8x8xf32> to vector<8xf32>
    %26 = vector.shape_cast %25 : vector<8xf32> to vector<8x1xf32>
    %27 = vector.broadcast %26 : vector<8x1xf32> to vector<8x8xf32>
    %28 = arith.subf %24, %27 : vector<8x8xf32>
    %29 = math.exp %28 : vector<8x8xf32>
    %cst_18 = arith.constant dense<0.000000e+00> : vector<8xf32>
    %30 = vector.multi_reduction <add>, %29, %cst_18 [1] : vector<8x8xf32> to vector<8xf32>
    %31 = vector.shape_cast %30 : vector<8xf32> to vector<8x1xf32>
    %cst_19 = arith.constant dense<0.000000e+00> : vector<8x8xf32>
    %32 = tpu.matmul %29, %20, %cst_19 {dimension_numbers = #tpu.dot_dimension_numbers<[1], [0], [0], [1], [0, 0, 1, 1], [], []>} : vector<8x8xf32>, vector<8x8xf32>, vector<8x8xf32> -> vector<8x8xf32>
    %33 = tpu.reciprocal %31 {approx = true} : vector<8x1xf32> -> vector<8x1xf32>
    %34 = vector.broadcast %33 : vector<8x1xf32> to vector<8x8xf32>
    %35 = arith.mulf %32, %34 : vector<8x8xf32>
    %c0_20 = arith.constant 0 : index
    %c0_21 = arith.constant 0 : index
    %36 = vector.load %arg28[%c0_20, %c0_21] : memref<8x32xf32, #tpu.memory_space<vmem>>, vector<8x8xf32>
    tpu.vector_store %arg28[%c0_20, %c0_21], %35 {strides = array<i32>} : memref<8x32xf32, #tpu.memory_space<vmem>>, vector<8x8xf32>,
    %37 = vector.extract_strided_slice %8 {offsets = [0, 8], sizes = [8, 8], strides = [1, 1]} : vector<8x32xf32> to vector<8x8xf32>
    %38 = vector.extract_strided_slice %15 {offsets = [0, 8], sizes = [8, 8], strides = [1, 1]} : vector<8x64xf32> to vector<8x8xf32>
    %39 = vector.extract_strided_slice %15 {offsets = [0, 40], sizes = [8, 8], strides = [1, 1]} : vector<8x64xf32> to vector<8x8xf32>
    %cst_22 = arith.constant dense<0.000000e+00> : vector<8x8xf32>
    %40 = tpu.matmul %37, %38, %cst_22 {dimension_numbers = #tpu.dot_dimension_numbers<[1], [1], [0], [0], [0, 0, 1, 0], [], []>} : vector<8x8xf32>, vector<8x8xf32>, vector<8x8xf32> -> vector<8x8xf32>
    %cst_23 = arith.constant 0.353553385 : f32
    %41 = vector.broadcast %cst_23 : f32 to vector<8x8xf32>
    %42 = arith.mulf %40, %41 : vector<8x8xf32>
    %43 = arith.addf %42, %17 : vector<8x8xf32>
    %cst_24 = arith.constant dense<0xFF800000> : vector<8xf32>
    %44 = vector.multi_reduction <maximumf>, %43, %cst_24 [1] : vector<8x8xf32> to vector<8xf32>
    %45 = vector.shape_cast %44 : vector<8xf32> to vector<8x1xf32>
    %46 = vector.broadcast %45 : vector<8x1xf32> to vector<8x8xf32>
    %47 = arith.subf %43, %46 : vector<8x8xf32>
    %48 = math.exp %47 : vector<8x8xf32>
    %cst_25 = arith.constant dense<0.000000e+00> : vector<8xf32>
    %49 = vector.multi_reduction <add>, %48, %cst_25 [1] : vector<8x8xf32> to vector<8xf32>
    %50 = vector.shape_cast %49 : vector<8xf32> to vector<8x1xf32>
    %cst_26 = arith.constant dense<0.000000e+00> : vector<8x8xf32>
    %51 = tpu.matmul %48, %39, %cst_26 {dimension_numbers = #tpu.dot_dimension_numbers<[1], [0], [0], [1], [0, 0, 1, 1], [], []>} : vector<8x8xf32>, vector<8x8xf32>, vector<8x8xf32> -> vector<8x8xf32>
    %52 = tpu.reciprocal %50 {approx = true} : vector<8x1xf32> -> vector<8x1xf32>
    %53 = vector.broadcast %52 : vector<8x1xf32> to vector<8x8xf32>
    %54 = arith.mulf %51, %53 : vector<8x8xf32>
    %c0_27 = arith.constant 0 : index
    %c8 = arith.constant 8 : index
    %55 = vector.load %arg28[%c0_27, %c8] : memref<8x32xf32, #tpu.memory_space<vmem>>, vector<8x8xf32>
    tpu.vector_store %arg28[%c0_27, %c8], %54 {strides = array<i32>} : memref<8x32xf32, #tpu.memory_space<vmem>>, vector<8x8xf32>,
    %56 = vector.extract_strided_slice %8 {offsets = [0, 16], sizes = [8, 8], strides = [1, 1]} : vector<8x32xf32> to vector<8x8xf32>
    %57 = vector.extract_strided_slice %15 {offsets = [0, 16], sizes = [8, 8], strides = [1, 1]} : vector<8x64xf32> to vector<8x8xf32>
    %58 = vector.extract_strided_slice %15 {offsets = [0, 48], sizes = [8, 8], strides = [1, 1]} : vector<8x64xf32> to vector<8x8xf32>
    %cst_28 = arith.constant dense<0.000000e+00> : vector<8x8xf32>
    %59 = tpu.matmul %56, %57, %cst_28 {dimension_numbers = #tpu.dot_dimension_numbers<[1], [1], [0], [0], [0, 0, 1, 0], [], []>} : vector<8x8xf32>, vector<8x8xf32>, vector<8x8xf32> -> vector<8x8xf32>
    %cst_29 = arith.constant 0.353553385 : f32
    %60 = vector.broadcast %cst_29 : f32 to vector<8x8xf32>
    %61 = arith.mulf %59, %60 : vector<8x8xf32>
    %62 = arith.addf %61, %17 : vector<8x8xf32>
    %cst_30 = arith.constant dense<0xFF800000> : vector<8xf32>
    %63 = vector.multi_reduction <maximumf>, %62, %cst_30 [1] : vector<8x8xf32> to vector<8xf32>
    %64 = vector.shape_cast %63 : vector<8xf32> to vector<8x1xf32>
    %65 = vector.broadcast %64 : vector<8x1xf32> to vector<8x8xf32>
    %66 = arith.subf %62, %65 : vector<8x8xf32>
    %67 = math.exp %66 : vector<8x8xf32>
    %cst_31 = arith.constant dense<0.000000e+00> : vector<8xf32>
    %68 = vector.multi_reduction <add>, %67, %cst_31 [1] : vector<8x8xf32> to vector<8xf32>
    %69 = vector.shape_cast %68 : vector<8xf32> to vector<8x1xf32>
    %cst_32 = arith.constant dense<0.000000e+00> : vector<8x8xf32>
    %70 = tpu.matmul %67, %58, %cst_32 {dimension_numbers = #tpu.dot_dimension_numbers<[1], [0], [0], [1], [0, 0, 1, 1], [], []>} : vector<8x8xf32>, vector<8x8xf32>, vector<8x8xf32> -> vector<8x8xf32>
    %71 = tpu.reciprocal %69 {approx = true} : vector<8x1xf32> -> vector<8x1xf32>
    %72 = vector.broadcast %71 : vector<8x1xf32> to vector<8x8xf32>
    %73 = arith.mulf %70, %72 : vector<8x8xf32>
    %c0_33 = arith.constant 0 : index
    %c16 = arith.constant 16 : index
    %74 = vector.load %arg28[%c0_33, %c16] : memref<8x32xf32, #tpu.memory_space<vmem>>, vector<8x8xf32>
    tpu.vector_store %arg28[%c0_33, %c16], %73 {strides = array<i32>} : memref<8x32xf32, #tpu.memory_space<vmem>>, vector<8x8xf32>,
    %75 = vector.extract_strided_slice %8 {offsets = [0, 24], sizes = [8, 8], strides = [1, 1]} : vector<8x32xf32> to vector<8x8xf32>
    %76 = vector.extract_strided_slice %15 {offsets = [0, 24], sizes = [8, 8], strides = [1, 1]} : vector<8x64xf32> to vector<8x8xf32>
    %77 = vector.extract_strided_slice %15 {offsets = [0, 56], sizes = [8, 8], strides = [1, 1]} : vector<8x64xf32> to vector<8x8xf32>
    %cst_34 = arith.constant dense<0.000000e+00> : vector<8x8xf32>
    %78 = tpu.matmul %75, %76, %cst_34 {dimension_numbers = #tpu.dot_dimension_numbers<[1], [1], [0], [0], [0, 0, 1, 0], [], []>} : vector<8x8xf32>, vector<8x8xf32>, vector<8x8xf32> -> vector<8x8xf32>
    %cst_35 = arith.constant 0.353553385 : f32
    %79 = vector.broadcast %cst_35 : f32 to vector<8x8xf32>
    %80 = arith.mulf %78, %79 : vector<8x8xf32>
    %81 = arith.addf %80, %17 : vector<8x8xf32>
    %cst_36 = arith.constant dense<0xFF800000> : vector<8xf32>
    %82 = vector.multi_reduction <maximumf>, %81, %cst_36 [1] : vector<8x8xf32> to vector<8xf32>
    %83 = vector.shape_cast %82 : vector<8xf32> to vector<8x1xf32>
    %84 = vector.broadcast %83 : vector<8x1xf32> to vector<8x8xf32>
    %85 = arith.subf %81, %84 : vector<8x8xf32>
    %86 = math.exp %85 : vector<8x8xf32>
    %cst_37 = arith.constant dense<0.000000e+00> : vector<8xf32>
    %87 = vector.multi_reduction <add>, %86, %cst_37 [1] : vector<8x8xf32> to vector<8xf32>
    %88 = vector.shape_cast %87 : vector<8xf32> to vector<8x1xf32>
    %cst_38 = arith.constant dense<0.000000e+00> : vector<8x8xf32>
    %89 = tpu.matmul %86, %77, %cst_38 {dimension_numbers = #tpu.dot_dimension_numbers<[1], [0], [0], [1], [0, 0, 1, 1], [], []>} : vector<8x8xf32>, vector<8x8xf32>, vector<8x8xf32> -> vector<8x8xf32>
    %90 = tpu.reciprocal %88 {approx = true} : vector<8x1xf32> -> vector<8x1xf32>
    %91 = vector.broadcast %90 : vector<8x1xf32> to vector<8x8xf32>
    %92 = arith.mulf %89, %91 : vector<8x8xf32>
    %c0_39 = arith.constant 0 : index
    %c24 = arith.constant 24 : index
    %93 = vector.load %arg28[%c0_39, %c24] : memref<8x32xf32, #tpu.memory_space<vmem>>, vector<8x8xf32>
    tpu.vector_store %arg28[%c0_39, %c24], %92 {strides = array<i32>} : memref<8x32xf32, #tpu.memory_space<vmem>>, vector<8x8xf32>,
    %c0_40 = arith.constant 0 : index
    %c0_41 = arith.constant 0 : index
    %94 = vector.load %arg28[%c0_40, %c0_41] : memref<8x32xf32, #tpu.memory_space<vmem>>, vector<8x32xf32>
    %c0_42 = arith.constant 0 : index
    %c0_43 = arith.constant 0 : index
    %95 = vector.load %arg7[%c0_42, %c0_43] : memref<32x32xf32, #tpu.memory_space<vmem>>, vector<32x32xf32>
    %96 = arith.truncf %94 : vector<8x32xf32> to vector<8x32xbf16>
    %97 = arith.truncf %95 : vector<32x32xf32> to vector<32x32xbf16>
    %cst_44 = arith.constant dense<0.000000e+00> : vector<8x32xf32>
    %98 = tpu.matmul %96, %97, %cst_44 {dimension_numbers = #tpu.dot_dimension_numbers<[1], [0], [0], [1], [0, 0, 1, 1], [], []>} : vector<8x32xbf16>, vector<32x32xbf16>, vector<8x32xf32> -> vector<8x32xf32>
    %c0_45 = arith.constant 0 : index
    %c0_46 = arith.constant 0 : index
    %99 = vector.load %arg10[%c0_45, %c0_46] : memref<1x32xf32, #tpu.memory_space<vmem>>, vector<1x32xf32>
    %100 = vector.broadcast %99 : vector<1x32xf32> to vector<8x32xf32>
    %101 = arith.addf %98, %100 : vector<8x32xf32>
    %102 = arith.addf %101, %0 : vector<8x32xf32>
    %c0_47 = arith.constant 0 : index
    %c0_48 = arith.constant 0 : index
    %103 = vector.load %arg11[%c0_47, %c0_48] : memref<1x32xf32, #tpu.memory_space<vmem>>, vector<1x32xf32>
    %c0_49 = arith.constant 0 : index
    %c0_50 = arith.constant 0 : index
    %104 = vector.load %arg12[%c0_49, %c0_50] : memref<1x32xf32, #tpu.memory_space<vmem>>, vector<1x32xf32>
    %cst_51 = arith.constant dense<0.000000e+00> : vector<8xf32>
    %105 = vector.multi_reduction <add>, %102, %cst_51 [1] : vector<8x32xf32> to vector<8xf32>
    %106 = vector.shape_cast %105 : vector<8xf32> to vector<8x1xf32>
    %cst_52 = arith.constant 3.200000e+01 : f32
    %107 = vector.broadcast %cst_52 : f32 to vector<8x1xf32>
    %108 = arith.divf %106, %107 : vector<8x1xf32>
    %109 = vector.broadcast %108 : vector<8x1xf32> to vector<8x32xf32>
    %110 = arith.subf %102, %109 : vector<8x32xf32>
    %111 = arith.mulf %110, %110 : vector<8x32xf32>
    %cst_53 = arith.constant dense<0.000000e+00> : vector<8xf32>
    %112 = vector.multi_reduction <add>, %111, %cst_53 [1] : vector<8x32xf32> to vector<8xf32>
    %113 = vector.shape_cast %112 : vector<8xf32> to vector<8x1xf32>
    %cst_54 = arith.constant 3.200000e+01 : f32
    %114 = vector.broadcast %cst_54 : f32 to vector<8x1xf32>
    %115 = arith.divf %113, %114 : vector<8x1xf32>
    %116 = vector.broadcast %108 : vector<8x1xf32> to vector<8x32xf32>
    %117 = arith.subf %102, %116 : vector<8x32xf32>
    %cst_55 = arith.constant 9.99999974E-6 : f32
    %118 = vector.broadcast %cst_55 : f32 to vector<8x1xf32>
    %119 = arith.addf %115, %118 : vector<8x1xf32>
    %120 = math.rsqrt %119 : vector<8x1xf32>
    %121 = vector.broadcast %120 : vector<8x1xf32> to vector<8x32xf32>
    %122 = arith.mulf %117, %121 : vector<8x32xf32>
    %123 = vector.broadcast %103 : vector<1x32xf32> to vector<8x32xf32>
    %124 = arith.mulf %122, %123 : vector<8x32xf32>
    %125 = vector.broadcast %104 : vector<1x32xf32> to vector<8x32xf32>
    %126 = arith.addf %124, %125 : vector<8x32xf32>
    %c0_56 = arith.constant 0 : index
    %c0_57 = arith.constant 0 : index
    %127 = vector.load %arg13[%c0_56, %c0_57] : memref<32x32xf32, #tpu.memory_space<vmem>>, vector<32x32xf32>
    %128 = arith.truncf %126 : vector<8x32xf32> to vector<8x32xbf16>
    %129 = arith.truncf %127 : vector<32x32xf32> to vector<32x32xbf16>
    %cst_58 = arith.constant dense<0.000000e+00> : vector<8x32xf32>
    %130 = tpu.matmul %128, %129, %cst_58 {dimension_numbers = #tpu.dot_dimension_numbers<[1], [0], [0], [1], [0, 0, 1, 1], [], []>} : vector<8x32xbf16>, vector<32x32xbf16>, vector<8x32xf32> -> vector<8x32xf32>
    %c0_59 = arith.constant 0 : index
    %c0_60 = arith.constant 0 : index
    %131 = vector.load %arg16[%c0_59, %c0_60] : memref<1x32xf32, #tpu.memory_space<vmem>>, vector<1x32xf32>
    %132 = vector.broadcast %131 : vector<1x32xf32> to vector<8x32xf32>
    %133 = arith.addf %130, %132 : vector<8x32xf32>
    %c0_61 = arith.constant 0 : index
    %c0_62 = arith.constant 0 : index
    %134 = vector.load %arg14[%c0_61, %c0_62] : memref<32x64xf32, #tpu.memory_space<vmem>>, vector<32x64xf32>
    %135 = arith.truncf %1 : vector<8x32xf32> to vector<8x32xbf16>
    %136 = arith.truncf %134 : vector<32x64xf32> to vector<32x64xbf16>
    %cst_63 = arith.constant dense<0.000000e+00> : vector<8x64xf32>
    %137 = tpu.matmul %135, %136, %cst_63 {dimension_numbers = #tpu.dot_dimension_numbers<[1], [0], [0], [1], [0, 0, 1, 1], [], []>} : vector<8x32xbf16>, vector<32x64xbf16>, vector<8x64xf32> -> vector<8x64xf32>
    %c0_64 = arith.constant 0 : index
    %c0_65 = arith.constant 0 : index
    %138 = vector.load %arg17[%c0_64, %c0_65] : memref<1x64xf32, #tpu.memory_space<vmem>>, vector<1x64xf32>
    %139 = vector.broadcast %138 : vector<1x64xf32> to vector<8x64xf32>
    %140 = arith.addf %137, %139 : vector<8x64xf32>
    %c0_66 = arith.constant 0 : index
    %c0_67 = arith.constant 0 : index
    %c0_68 = arith.constant 0 : index
    %141 = vector.load %arg4[%c0_66, %c0_67, %c0_68] : memref<1x8x8xf32, #tpu.memory_space<vmem>>, vector<1x8x8xf32>
    %142 = vector.shape_cast %141 : vector<1x8x8xf32> to vector<8x8xf32>
    %143 = vector.extract_strided_slice %133 {offsets = [0, 0], sizes = [8, 8], strides = [1, 1]} : vector<8x32xf32> to vector<8x8xf32>
    %144 = vector.extract_strided_slice %140 {offsets = [0, 0], sizes = [8, 8], strides = [1, 1]} : vector<8x64xf32> to vector<8x8xf32>
    %145 = vector.extract_strided_slice %140 {offsets = [0, 32], sizes = [8, 8], strides = [1, 1]} : vector<8x64xf32> to vector<8x8xf32>
    %cst_69 = arith.constant dense<0.000000e+00> : vector<8x8xf32>
    %146 = tpu.matmul %143, %144, %cst_69 {dimension_numbers = #tpu.dot_dimension_numbers<[1], [1], [0], [0], [0, 0, 1, 0], [], []>} : vector<8x8xf32>, vector<8x8xf32>, vector<8x8xf32> -> vector<8x8xf32>
    %cst_70 = arith.constant 0.353553385 : f32
    %147 = vector.broadcast %cst_70 : f32 to vector<8x8xf32>
    %148 = arith.mulf %146, %147 : vector<8x8xf32>
    %149 = arith.addf %148, %142 : vector<8x8xf32>
    %cst_71 = arith.constant dense<0xFF800000> : vector<8xf32>
    %150 = vector.multi_reduction <maximumf>, %149, %cst_71 [1] : vector<8x8xf32> to vector<8xf32>
    %151 = vector.shape_cast %150 : vector<8xf32> to vector<8x1xf32>
    %152 = vector.broadcast %151 : vector<8x1xf32> to vector<8x8xf32>
    %153 = arith.subf %149, %152 : vector<8x8xf32>
    %154 = math.exp %153 : vector<8x8xf32>
    %cst_72 = arith.constant dense<0.000000e+00> : vector<8xf32>
    %155 = vector.multi_reduction <add>, %154, %cst_72 [1] : vector<8x8xf32> to vector<8xf32>
    %156 = vector.shape_cast %155 : vector<8xf32> to vector<8x1xf32>
    %cst_73 = arith.constant dense<0.000000e+00> : vector<8x8xf32>
    %157 = tpu.matmul %154, %145, %cst_73 {dimension_numbers = #tpu.dot_dimension_numbers<[1], [0], [0], [1], [0, 0, 1, 1], [], []>} : vector<8x8xf32>, vector<8x8xf32>, vector<8x8xf32> -> vector<8x8xf32>
    %158 = tpu.reciprocal %156 {approx = true} : vector<8x1xf32> -> vector<8x1xf32>
    %159 = vector.broadcast %158 : vector<8x1xf32> to vector<8x8xf32>
    %160 = arith.mulf %157, %159 : vector<8x8xf32>
    %c0_74 = arith.constant 0 : index
    %c0_75 = arith.constant 0 : index
    %161 = vector.load %arg28[%c0_74, %c0_75] : memref<8x32xf32, #tpu.memory_space<vmem>>, vector<8x8xf32>
    tpu.vector_store %arg28[%c0_74, %c0_75], %160 {strides = array<i32>} : memref<8x32xf32, #tpu.memory_space<vmem>>, vector<8x8xf32>,
    %162 = vector.extract_strided_slice %133 {offsets = [0, 8], sizes = [8, 8], strides = [1, 1]} : vector<8x32xf32> to vector<8x8xf32>
    %163 = vector.extract_strided_slice %140 {offsets = [0, 8], sizes = [8, 8], strides = [1, 1]} : vector<8x64xf32> to vector<8x8xf32>
    %164 = vector.extract_strided_slice %140 {offsets = [0, 40], sizes = [8, 8], strides = [1, 1]} : vector<8x64xf32> to vector<8x8xf32>
    %cst_76 = arith.constant dense<0.000000e+00> : vector<8x8xf32>
    %165 = tpu.matmul %162, %163, %cst_76 {dimension_numbers = #tpu.dot_dimension_numbers<[1], [1], [0], [0], [0, 0, 1, 0], [], []>} : vector<8x8xf32>, vector<8x8xf32>, vector<8x8xf32> -> vector<8x8xf32>
    %cst_77 = arith.constant 0.353553385 : f32
    %166 = vector.broadcast %cst_77 : f32 to vector<8x8xf32>
    %167 = arith.mulf %165, %166 : vector<8x8xf32>
    %168 = arith.addf %167, %142 : vector<8x8xf32>
    %cst_78 = arith.constant dense<0xFF800000> : vector<8xf32>
    %169 = vector.multi_reduction <maximumf>, %168, %cst_78 [1] : vector<8x8xf32> to vector<8xf32>
    %170 = vector.shape_cast %169 : vector<8xf32> to vector<8x1xf32>
    %171 = vector.broadcast %170 : vector<8x1xf32> to vector<8x8xf32>
    %172 = arith.subf %168, %171 : vector<8x8xf32>
    %173 = math.exp %172 : vector<8x8xf32>
    %cst_79 = arith.constant dense<0.000000e+00> : vector<8xf32>
    %174 = vector.multi_reduction <add>, %173, %cst_79 [1] : vector<8x8xf32> to vector<8xf32>
    %175 = vector.shape_cast %174 : vector<8xf32> to vector<8x1xf32>
    %cst_80 = arith.constant dense<0.000000e+00> : vector<8x8xf32>
    %176 = tpu.matmul %173, %164, %cst_80 {dimension_numbers = #tpu.dot_dimension_numbers<[1], [0], [0], [1], [0, 0, 1, 1], [], []>} : vector<8x8xf32>, vector<8x8xf32>, vector<8x8xf32> -> vector<8x8xf32>
    %177 = tpu.reciprocal %175 {approx = true} : vector<8x1xf32> -> vector<8x1xf32>
    %178 = vector.broadcast %177 : vector<8x1xf32> to vector<8x8xf32>
    %179 = arith.mulf %176, %178 : vector<8x8xf32>
    %c0_81 = arith.constant 0 : index
    %c8_82 = arith.constant 8 : index
    %180 = vector.load %arg28[%c0_81, %c8_82] : memref<8x32xf32, #tpu.memory_space<vmem>>, vector<8x8xf32>
    tpu.vector_store %arg28[%c0_81, %c8_82], %179 {strides = array<i32>} : memref<8x32xf32, #tpu.memory_space<vmem>>, vector<8x8xf32>,
    %181 = vector.extract_strided_slice %133 {offsets = [0, 16], sizes = [8, 8], strides = [1, 1]} : vector<8x32xf32> to vector<8x8xf32>
    %182 = vector.extract_strided_slice %140 {offsets = [0, 16], sizes = [8, 8], strides = [1, 1]} : vector<8x64xf32> to vector<8x8xf32>
    %183 = vector.extract_strided_slice %140 {offsets = [0, 48], sizes = [8, 8], strides = [1, 1]} : vector<8x64xf32> to vector<8x8xf32>
    %cst_83 = arith.constant dense<0.000000e+00> : vector<8x8xf32>
    %184 = tpu.matmul %181, %182, %cst_83 {dimension_numbers = #tpu.dot_dimension_numbers<[1], [1], [0], [0], [0, 0, 1, 0], [], []>} : vector<8x8xf32>, vector<8x8xf32>, vector<8x8xf32> -> vector<8x8xf32>
    %cst_84 = arith.constant 0.353553385 : f32
    %185 = vector.broadcast %cst_84 : f32 to vector<8x8xf32>
    %186 = arith.mulf %184, %185 : vector<8x8xf32>
    %187 = arith.addf %186, %142 : vector<8x8xf32>
    %cst_85 = arith.constant dense<0xFF800000> : vector<8xf32>
    %188 = vector.multi_reduction <maximumf>, %187, %cst_85 [1] : vector<8x8xf32> to vector<8xf32>
    %189 = vector.shape_cast %188 : vector<8xf32> to vector<8x1xf32>
    %190 = vector.broadcast %189 : vector<8x1xf32> to vector<8x8xf32>
    %191 = arith.subf %187, %190 : vector<8x8xf32>
    %192 = math.exp %191 : vector<8x8xf32>
    %cst_86 = arith.constant dense<0.000000e+00> : vector<8xf32>
    %193 = vector.multi_reduction <add>, %192, %cst_86 [1] : vector<8x8xf32> to vector<8xf32>
    %194 = vector.shape_cast %193 : vector<8xf32> to vector<8x1xf32>
    %cst_87 = arith.constant dense<0.000000e+00> : vector<8x8xf32>
    %195 = tpu.matmul %192, %183, %cst_87 {dimension_numbers = #tpu.dot_dimension_numbers<[1], [0], [0], [1], [0, 0, 1, 1], [], []>} : vector<8x8xf32>, vector<8x8xf32>, vector<8x8xf32> -> vector<8x8xf32>
    %196 = tpu.reciprocal %194 {approx = true} : vector<8x1xf32> -> vector<8x1xf32>
    %197 = vector.broadcast %196 : vector<8x1xf32> to vector<8x8xf32>
    %198 = arith.mulf %195, %197 : vector<8x8xf32>
    %c0_88 = arith.constant 0 : index
    %c16_89 = arith.constant 16 : index
    %199 = vector.load %arg28[%c0_88, %c16_89] : memref<8x32xf32, #tpu.memory_space<vmem>>, vector<8x8xf32>
    tpu.vector_store %arg28[%c0_88, %c16_89], %198 {strides = array<i32>} : memref<8x32xf32, #tpu.memory_space<vmem>>, vector<8x8xf32>,
    %200 = vector.extract_strided_slice %133 {offsets = [0, 24], sizes = [8, 8], strides = [1, 1]} : vector<8x32xf32> to vector<8x8xf32>
    %201 = vector.extract_strided_slice %140 {offsets = [0, 24], sizes = [8, 8], strides = [1, 1]} : vector<8x64xf32> to vector<8x8xf32>
    %202 = vector.extract_strided_slice %140 {offsets = [0, 56], sizes = [8, 8], strides = [1, 1]} : vector<8x64xf32> to vector<8x8xf32>
    %cst_90 = arith.constant dense<0.000000e+00> : vector<8x8xf32>
    %203 = tpu.matmul %200, %201, %cst_90 {dimension_numbers = #tpu.dot_dimension_numbers<[1], [1], [0], [0], [0, 0, 1, 0], [], []>} : vector<8x8xf32>, vector<8x8xf32>, vector<8x8xf32> -> vector<8x8xf32>
    %cst_91 = arith.constant 0.353553385 : f32
    %204 = vector.broadcast %cst_91 : f32 to vector<8x8xf32>
    %205 = arith.mulf %203, %204 : vector<8x8xf32>
    %206 = arith.addf %205, %142 : vector<8x8xf32>
    %cst_92 = arith.constant dense<0xFF800000> : vector<8xf32>
    %207 = vector.multi_reduction <maximumf>, %206, %cst_92 [1] : vector<8x8xf32> to vector<8xf32>
    %208 = vector.shape_cast %207 : vector<8xf32> to vector<8x1xf32>
    %209 = vector.broadcast %208 : vector<8x1xf32> to vector<8x8xf32>
    %210 = arith.subf %206, %209 : vector<8x8xf32>
    %211 = math.exp %210 : vector<8x8xf32>
    %cst_93 = arith.constant dense<0.000000e+00> : vector<8xf32>
    %212 = vector.multi_reduction <add>, %211, %cst_93 [1] : vector<8x8xf32> to vector<8xf32>
    %213 = vector.shape_cast %212 : vector<8xf32> to vector<8x1xf32>
    %cst_94 = arith.constant dense<0.000000e+00> : vector<8x8xf32>
    %214 = tpu.matmul %211, %202, %cst_94 {dimension_numbers = #tpu.dot_dimension_numbers<[1], [0], [0], [1], [0, 0, 1, 1], [], []>} : vector<8x8xf32>, vector<8x8xf32>, vector<8x8xf32> -> vector<8x8xf32>
    %215 = tpu.reciprocal %213 {approx = true} : vector<8x1xf32> -> vector<8x1xf32>
    %216 = vector.broadcast %215 : vector<8x1xf32> to vector<8x8xf32>
    %217 = arith.mulf %214, %216 : vector<8x8xf32>
    %c0_95 = arith.constant 0 : index
    %c24_96 = arith.constant 24 : index
    %218 = vector.load %arg28[%c0_95, %c24_96] : memref<8x32xf32, #tpu.memory_space<vmem>>, vector<8x8xf32>
    tpu.vector_store %arg28[%c0_95, %c24_96], %217 {strides = array<i32>} : memref<8x32xf32, #tpu.memory_space<vmem>>, vector<8x8xf32>,
    %c0_97 = arith.constant 0 : index
    %c0_98 = arith.constant 0 : index
    %219 = vector.load %arg28[%c0_97, %c0_98] : memref<8x32xf32, #tpu.memory_space<vmem>>, vector<8x32xf32>
    %c0_99 = arith.constant 0 : index
    %c0_100 = arith.constant 0 : index
    %220 = vector.load %arg15[%c0_99, %c0_100] : memref<32x32xf32, #tpu.memory_space<vmem>>, vector<32x32xf32>
    %221 = arith.truncf %219 : vector<8x32xf32> to vector<8x32xbf16>
    %222 = arith.truncf %220 : vector<32x32xf32> to vector<32x32xbf16>
    %cst_101 = arith.constant dense<0.000000e+00> : vector<8x32xf32>
    %223 = tpu.matmul %221, %222, %cst_101 {dimension_numbers = #tpu.dot_dimension_numbers<[1], [0], [0], [1], [0, 0, 1, 1], [], []>} : vector<8x32xbf16>, vector<32x32xbf16>, vector<8x32xf32> -> vector<8x32xf32>
    %c0_102 = arith.constant 0 : index
    %c0_103 = arith.constant 0 : index
    %224 = vector.load %arg18[%c0_102, %c0_103] : memref<1x32xf32, #tpu.memory_space<vmem>>, vector<1x32xf32>
    %225 = vector.broadcast %224 : vector<1x32xf32> to vector<8x32xf32>
    %226 = arith.addf %223, %225 : vector<8x32xf32>
    %227 = arith.addf %226, %126 : vector<8x32xf32>
    %c0_104 = arith.constant 0 : index
    %c0_105 = arith.constant 0 : index
    %228 = vector.load %arg19[%c0_104, %c0_105] : memref<1x32xf32, #tpu.memory_space<vmem>>, vector<1x32xf32>
    %c0_106 = arith.constant 0 : index
    %c0_107 = arith.constant 0 : index
    %229 = vector.load %arg20[%c0_106, %c0_107] : memref<1x32xf32, #tpu.memory_space<vmem>>, vector<1x32xf32>
    %cst_108 = arith.constant dense<0.000000e+00> : vector<8xf32>
    %230 = vector.multi_reduction <add>, %227, %cst_108 [1] : vector<8x32xf32> to vector<8xf32>
    %231 = vector.shape_cast %230 : vector<8xf32> to vector<8x1xf32>
    %cst_109 = arith.constant 3.200000e+01 : f32
    %232 = vector.broadcast %cst_109 : f32 to vector<8x1xf32>
    %233 = arith.divf %231, %232 : vector<8x1xf32>
    %234 = vector.broadcast %233 : vector<8x1xf32> to vector<8x32xf32>
    %235 = arith.subf %227, %234 : vector<8x32xf32>
    %236 = arith.mulf %235, %235 : vector<8x32xf32>
    %cst_110 = arith.constant dense<0.000000e+00> : vector<8xf32>
    %237 = vector.multi_reduction <add>, %236, %cst_110 [1] : vector<8x32xf32> to vector<8xf32>
    %238 = vector.shape_cast %237 : vector<8xf32> to vector<8x1xf32>
    %cst_111 = arith.constant 3.200000e+01 : f32
    %239 = vector.broadcast %cst_111 : f32 to vector<8x1xf32>
    %240 = arith.divf %238, %239 : vector<8x1xf32>
    %241 = vector.broadcast %233 : vector<8x1xf32> to vector<8x32xf32>
    %242 = arith.subf %227, %241 : vector<8x32xf32>
    %cst_112 = arith.constant 9.99999974E-6 : f32
    %243 = vector.broadcast %cst_112 : f32 to vector<8x1xf32>
    %244 = arith.addf %240, %243 : vector<8x1xf32>
    %245 = math.rsqrt %244 : vector<8x1xf32>
    %246 = vector.broadcast %245 : vector<8x1xf32> to vector<8x32xf32>
    %247 = arith.mulf %242, %246 : vector<8x32xf32>
    %248 = vector.broadcast %228 : vector<1x32xf32> to vector<8x32xf32>
    %249 = arith.mulf %247, %248 : vector<8x32xf32>
    %250 = vector.broadcast %229 : vector<1x32xf32> to vector<8x32xf32>
    %251 = arith.addf %249, %250 : vector<8x32xf32>
    %c0_113 = arith.constant 0 : index
    %c0_114 = arith.constant 0 : index
    %252 = vector.load %arg21[%c0_113, %c0_114] : memref<32x64xf32, #tpu.memory_space<vmem>>, vector<32x64xf32>
    %253 = arith.truncf %251 : vector<8x32xf32> to vector<8x32xbf16>
    %254 = arith.truncf %252 : vector<32x64xf32> to vector<32x64xbf16>
    %cst_115 = arith.constant dense<0.000000e+00> : vector<8x64xf32>
    %255 = tpu.matmul %253, %254, %cst_115 {dimension_numbers = #tpu.dot_dimension_numbers<[1], [0], [0], [1], [0, 0, 1, 1], [], []>} : vector<8x32xbf16>, vector<32x64xbf16>, vector<8x64xf32> -> vector<8x64xf32>
    %c0_116 = arith.constant 0 : index
    %c0_117 = arith.constant 0 : index
    %256 = vector.load %arg22[%c0_116, %c0_117] : memref<1x64xf32, #tpu.memory_space<vmem>>, vector<1x64xf32>
    %257 = vector.broadcast %256 : vector<1x64xf32> to vector<8x64xf32>
    %258 = arith.addf %255, %257 : vector<8x64xf32>
    %cst_118 = arith.constant 0.000000e+00 : f32
    %259 = vector.broadcast %cst_118 : f32 to vector<8x64xf32>
    %260 = arith.maximumf %258, %259 : vector<8x64xf32>
    %c0_119 = arith.constant 0 : index
    %c0_120 = arith.constant 0 : index
    %261 = vector.load %arg23[%c0_119, %c0_120] : memref<64x32xf32, #tpu.memory_space<vmem>>, vector<64x32xf32>
    %262 = arith.truncf %260 : vector<8x64xf32> to vector<8x64xbf16>
    %263 = arith.truncf %261 : vector<64x32xf32> to vector<64x32xbf16>
    %cst_121 = arith.constant dense<0.000000e+00> : vector<8x32xf32>
    %264 = tpu.matmul %262, %263, %cst_121 {dimension_numbers = #tpu.dot_dimension_numbers<[1], [0], [0], [1], [0, 0, 1, 1], [], []>} : vector<8x64xbf16>, vector<64x32xbf16>, vector<8x32xf32> -> vector<8x32xf32>
    %c0_122 = arith.constant 0 : index
    %c0_123 = arith.constant 0 : index
    %265 = vector.load %arg24[%c0_122, %c0_123] : memref<1x32xf32, #tpu.memory_space<vmem>>, vector<1x32xf32>
    %266 = vector.broadcast %265 : vector<1x32xf32> to vector<8x32xf32>
    %267 = arith.addf %264, %266 : vector<8x32xf32>
    %268 = arith.addf %267, %251 : vector<8x32xf32>
    %c0_124 = arith.constant 0 : index
    %c0_125 = arith.constant 0 : index
    %269 = vector.load %arg25[%c0_124, %c0_125] : memref<1x32xf32, #tpu.memory_space<vmem>>, vector<1x32xf32>
    %c0_126 = arith.constant 0 : index
    %c0_127 = arith.constant 0 : index
    %270 = vector.load %arg26[%c0_126, %c0_127] : memref<1x32xf32, #tpu.memory_space<vmem>>, vector<1x32xf32>
    %cst_128 = arith.constant dense<0.000000e+00> : vector<8xf32>
    %271 = vector.multi_reduction <add>, %268, %cst_128 [1] : vector<8x32xf32> to vector<8xf32>
    %272 = vector.shape_cast %271 : vector<8xf32> to vector<8x1xf32>
    %cst_129 = arith.constant 3.200000e+01 : f32
    %273 = vector.broadcast %cst_129 : f32 to vector<8x1xf32>
    %274 = arith.divf %272, %273 : vector<8x1xf32>
    %275 = vector.broadcast %274 : vector<8x1xf32> to vector<8x32xf32>
    %276 = arith.subf %268, %275 : vector<8x32xf32>
    %277 = arith.mulf %276, %276 : vector<8x32xf32>
    %cst_130 = arith.constant dense<0.000000e+00> : vector<8xf32>
    %278 = vector.multi_reduction <add>, %277, %cst_130 [1] : vector<8x32xf32> to vector<8xf32>
    %279 = vector.shape_cast %278 : vector<8xf32> to vector<8x1xf32>
    %cst_131 = arith.constant 3.200000e+01 : f32
    %280 = vector.broadcast %cst_131 : f32 to vector<8x1xf32>
    %281 = arith.divf %279, %280 : vector<8x1xf32>
    %282 = vector.broadcast %274 : vector<8x1xf32> to vector<8x32xf32>
    %283 = arith.subf %268, %282 : vector<8x32xf32>
    %cst_132 = arith.constant 9.99999974E-6 : f32
    %284 = vector.broadcast %cst_132 : f32 to vector<8x1xf32>
    %285 = arith.addf %281, %284 : vector<8x1xf32>
    %286 = math.rsqrt %285 : vector<8x1xf32>
    %287 = vector.broadcast %286 : vector<8x1xf32> to vector<8x32xf32>
    %288 = arith.mulf %283, %287 : vector<8x32xf32>
    %289 = vector.broadcast %269 : vector<1x32xf32> to vector<8x32xf32>
    %290 = arith.mulf %288, %289 : vector<8x32xf32>
    %291 = vector.broadcast %270 : vector<1x32xf32> to vector<8x32xf32>
    %292 = arith.addf %290, %291 : vector<8x32xf32>
    %c0_133 = arith.constant 0 : index
    %c0_134 = arith.constant 0 : index
    %293 = vector.load %arg27[%c0_133, %c0_134] : memref<8x32xf32, #tpu.memory_space<vmem>>, vector<8x32xf32>
    tpu.vector_store %arg27[%c0_133, %c0_134], %292 {strides = array<i32>} : memref<8x32xf32, #tpu.memory_space<vmem>>, vector<8x32xf32>,
    return
  }
  func.func @transform_0(%arg0: i32) -> (i32, i32) {
    %c0_i32 = arith.constant 0 : i32
    %c0_i32_0 = arith.constant 0 : i32
    return %arg0, %c0_i32 : i32, i32
  }
  func.func @transform_1(%arg0: i32) -> (i32, i32) {
    %c0_i32 = arith.constant 0 : i32
    %c0_i32_0 = arith.constant 0 : i32
    return %arg0, %c0_i32 : i32, i32
  }
  func.func @transform_2(%arg0: i32) -> (i32, i32, i32) {
    %c0_i32 = arith.constant 0 : i32
    %c0_i32_0 = arith.constant 0 : i32
    %c0_i32_1 = arith.constant 0 : i32
    return %arg0, %c0_i32, %c0_i32_0 : i32, i32, i32
  }
  func.func @transform_3(%arg0: i32) -> (i32, i32, i32) {
    %c0_i32 = arith.constant 0 : i32
    %c0_i32_0 = arith.constant 0 : i32
    %c0_i32_1 = arith.constant 0 : i32
    return %arg0, %c0_i32, %c0_i32_0 : i32, i32, i32
  }
  func.func @transform_4(%arg0: i32) -> (i32, i32) {
    %c0_i32 = arith.constant 0 : i32
    %c0_i32_0 = arith.constant 0 : i32
    %c0_i32_1 = arith.constant 0 : i32
    return %c0_i32, %c0_i32_0 : i32, i32
  }
  func.func @transform_5(%arg0: i32) -> (i32, i32) {
    %c0_i32 = arith.constant 0 : i32
    %c0_i32_0 = arith.constant 0 : i32
    %c0_i32_1 = arith.constant 0 : i32
    return %c0_i32, %c0_i32_0 : i32, i32
  }
  func.func @transform_6(%arg0: i32) -> (i32, i32) {
    %c0_i32 = arith.constant 0 : i32
    %c0_i32_0 = arith.constant 0 : i32
    %c0_i32_1 = arith.constant 0 : i32
    return %c0_i32, %c0_i32_0 : i32, i32
  }
  func.func @transform_7(%arg0: i32) -> (i32, i32) {
    %c0_i32 = arith.constant 0 : i32
    %c0_i32_0 = arith.constant 0 : i32
    %c0_i32_1 = arith.constant 0 : i32
    return %c0_i32, %c0_i32_0 : i32, i32
  }
  func.func @transform_8(%arg0: i32) -> (i32, i32) {
    %c0_i32 = arith.constant 0 : i32
    %c0_i32_0 = arith.constant 0 : i32
    %c0_i32_1 = arith.constant 0 : i32
    return %c0_i32, %c0_i32_0 : i32, i32
  }
  func.func @transform_9(%arg0: i32) -> (i32, i32) {
    %c0_i32 = arith.constant 0 : i32
    %c0_i32_0 = arith.constant 0 : i32
    %c0_i32_1 = arith.constant 0 : i32
    return %c0_i32, %c0_i32_0 : i32, i32
  }
  func.func @transform_10(%arg0: i32) -> (i32, i32) {
    %c0_i32 = arith.constant 0 : i32
    %c0_i32_0 = arith.constant 0 : i32
    %c0_i32_1 = arith.constant 0 : i32
    return %c0_i32, %c0_i32_0 : i32, i32
  }
  func.func @transform_11(%arg0: i32) -> (i32, i32) {
    %c0_i32 = arith.constant 0 : i32
    %c0_i32_0 = arith.constant 0 : i32
    %c0_i32_1 = arith.constant 0 : i32
    return %c0_i32, %c0_i32_0 : i32, i32
  }
  func.func @transform_12(%arg0: i32) -> (i32, i32) {
    %c0_i32 = arith.constant 0 : i32
    %c0_i32_0 = arith.constant 0 : i32
    %c0_i32_1 = arith.constant 0 : i32
    return %c0_i32, %c0_i32_0 : i32, i32
  }
  func.func @transform_13(%arg0: i32) -> (i32, i32) {
    %c0_i32 = arith.constant 0 : i32
    %c0_i32_0 = arith.constant 0 : i32
    %c0_i32_1 = arith.constant 0 : i32
    return %c0_i32, %c0_i32_0 : i32, i32
  }
  func.func @transform_14(%arg0: i32) -> (i32, i32) {
    %c0_i32 = arith.constant 0 : i32
    %c0_i32_0 = arith.constant 0 : i32
    %c0_i32_1 = arith.constant 0 : i32
    return %c0_i32, %c0_i32_0 : i32, i32
  }
  func.func @transform_15(%arg0: i32) -> (i32, i32) {
    %c0_i32 = arith.constant 0 : i32
    %c0_i32_0 = arith.constant 0 : i32
    %c0_i32_1 = arith.constant 0 : i32
    return %c0_i32, %c0_i32_0 : i32, i32
  }
  func.func @transform_16(%arg0: i32) -> (i32, i32) {
    %c0_i32 = arith.constant 0 : i32
    %c0_i32_0 = arith.constant 0 : i32
    %c0_i32_1 = arith.constant 0 : i32
    return %c0_i32, %c0_i32_0 : i32, i32
  }
  func.func @transform_17(%arg0: i32) -> (i32, i32) {
    %c0_i32 = arith.constant 0 : i32
    %c0_i32_0 = arith.constant 0 : i32
    %c0_i32_1 = arith.constant 0 : i32
    return %c0_i32, %c0_i32_0 : i32, i32
  }
  func.func @transform_18(%arg0: i32) -> (i32, i32) {
    %c0_i32 = arith.constant 0 : i32
    %c0_i32_0 = arith.constant 0 : i32
    %c0_i32_1 = arith.constant 0 : i32
    return %c0_i32, %c0_i32_0 : i32, i32
  }
  func.func @transform_19(%arg0: i32) -> (i32, i32) {
    %c0_i32 = arith.constant 0 : i32
    %c0_i32_0 = arith.constant 0 : i32
    %c0_i32_1 = arith.constant 0 : i32
    return %c0_i32, %c0_i32_0 : i32, i32
  }
  func.func @transform_20(%arg0: i32) -> (i32, i32) {
    %c0_i32 = arith.constant 0 : i32
    %c0_i32_0 = arith.constant 0 : i32
    %c0_i32_1 = arith.constant 0 : i32
    return %c0_i32, %c0_i32_0 : i32, i32
  }
  func.func @transform_21(%arg0: i32) -> (i32, i32) {
    %c0_i32 = arith.constant 0 : i32
    %c0_i32_0 = arith.constant 0 : i32
    %c0_i32_1 = arith.constant 0 : i32
    return %c0_i32, %c0_i32_0 : i32, i32
  }
  func.func @transform_22(%arg0: i32) -> (i32, i32) {
    %c0_i32 = arith.constant 0 : i32
    %c0_i32_0 = arith.constant 0 : i32
    %c0_i32_1 = arith.constant 0 : i32
    return %c0_i32, %c0_i32_0 : i32, i32
  }
  func.func @transform_23(%arg0: i32) -> (i32, i32) {
    %c0_i32 = arith.constant 0 : i32
    %c0_i32_0 = arith.constant 0 : i32
    %c0_i32_1 = arith.constant 0 : i32
    return %c0_i32, %c0_i32_0 : i32, i32
  }
  func.func @transform_24(%arg0: i32) -> (i32, i32) {
    %c0_i32 = arith.constant 0 : i32
    %c0_i32_0 = arith.constant 0 : i32
    %c0_i32_1 = arith.constant 0 : i32
    return %c0_i32, %c0_i32_0 : i32, i32
  }
  func.func @transform_25(%arg0: i32) -> (i32, i32) {
    %c0_i32 = arith.constant 0 : i32
    %c0_i32_0 = arith.constant 0 : i32
    %c0_i32_1 = arith.constant 0 : i32
    return %c0_i32, %c0_i32_0 : i32, i32
  }
  func.func @transform_26(%arg0: i32) -> (i32, i32) {
    %c0_i32 = arith.constant 0 : i32
    %c0_i32_0 = arith.constant 0 : i32
    return %arg0, %c0_i32 : i32, i32
  }
}

module attributes {stable_mosaic.version = 11 : i64} {
  func.func @_decoder_layer_kernel(%arg0: i32, %arg1: memref<8x32xf32, #tpu.memory_space<vmem>>, %arg2: memref<8x32xf32, #tpu.memory_space<vmem>>, %arg3: memref<1x8x8xf32, #tpu.memory_space<vmem>>, %arg4: memref<1x8x8xf32, #tpu.memory_space<vmem>>, %arg5: memref<32x32xf32, #tpu.memory_space<vmem>>, %arg6: memref<32x64xf32, #tpu.memory_space<vmem>>, %arg7: memref<32x32xf32, #tpu.memory_space<vmem>>, %arg8: memref<1x32xf32, #tpu.memory_space<vmem>>, %arg9: memref<1x64xf32, #tpu.memory_space<vmem>>, %arg10: memref<1x32xf32, #tpu.memory_space<vmem>>, %arg11: memref<1x32xf32, #tpu.memory_space<vmem>>, %arg12: memref<1x32xf32, #tpu.memory_space<vmem>>, %arg13: memref<32x32xf32, #tpu.memory_space<vmem>>, %arg14: memref<32x64xf32, #tpu.memory_space<vmem>>, %arg15: memref<32x32xf32, #tpu.memory_space<vmem>>, %arg16: memref<1x32xf32, #tpu.memory_space<vmem>>, %arg17: memref<1x64xf32, #tpu.memory_space<vmem>>, %arg18: memref<1x32xf32, #tpu.memory_space<vmem>>, %arg19: memref<1x32xf32, #tpu.memory_space<vmem>>, %arg20: memref<1x32xf32, #tpu.memory_space<vmem>>, %arg21: memref<32x64xf32, #tpu.memory_space<vmem>>, %arg22: memref<1x64xf32, #tpu.memory_space<vmem>>, %arg23: memref<64x32xf32, #tpu.memory_space<vmem>>, %arg24: memref<1x32xf32, #tpu.memory_space<vmem>>, %arg25: memref<1x32xf32, #tpu.memory_space<vmem>>, %arg26: memref<1x32xf32, #tpu.memory_space<vmem>>, %arg27: memref<8x32xf32, #tpu.memory_space<vmem>>, %arg28: memref<8x32xf32, #tpu.memory_space<vmem>>) attributes {dimension_semantics = [#tpu.dimension_semantics<parallel>], iteration_bounds = array<i64: 2>, scalar_prefetch = 0 : i64, scratch_operands = 1 : i64, tpu.core_type = #tpu.core_type<tc>, window_params = [{transform_indices = @transform_0, window_bounds = array<i64: 8, 32>}, {transform_indices = @transform_1, window_bounds = array<i64: 8, 32>}, {transform_indices = @transform_2, window_bounds = array<i64: 1, 8, 8>}, {transform_indices = @transform_3, window_bounds = array<i64: 1, 8, 8>}, {pipeline_mode = #tpu.pipeline_mode<synchronous>, transform_indices = @transform_4, window_bounds = array<i64: 32, 32>}, {pipeline_mode = #tpu.pipeline_mode<synchronous>, transform_indices = @transform_5, window_bounds = array<i64: 32, 64>}, {pipeline_mode = #tpu.pipeline_mode<synchronous>, transform_indices = @transform_6, window_bounds = array<i64: 32, 32>}, {pipeline_mode = #tpu.pipeline_mode<synchronous>, transform_indices = @transform_7, window_bounds = array<i64: 1, 32>}, {pipeline_mode = #tpu.pipeline_mode<synchronous>, transform_indices = @transform_8, window_bounds = array<i64: 1, 64>}, {pipeline_mode = #tpu.pipeline_mode<synchronous>, transform_indices = @transform_9, window_bounds = array<i64: 1, 32>}, {pipeline_mode = #tpu.pipeline_mode<synchronous>, transform_indices = @transform_10, window_bounds = array<i64: 1, 32>}, {pipeline_mode = #tpu.pipeline_mode<synchronous>, transform_indices = @transform_11, window_bounds = array<i64: 1, 32>}, {pipeline_mode = #tpu.pipeline_mode<synchronous>, transform_indices = @transform_12, window_bounds = array<i64: 32, 32>}, {pipeline_mode = #tpu.pipeline_mode<synchronous>, transform_indices = @transform_13, window_bounds = array<i64: 32, 64>}, {pipeline_mode = #tpu.pipeline_mode<synchronous>, transform_indices = @transform_14, window_bounds = array<i64: 32, 32>}, {pipeline_mode = #tpu.pipeline_mode<synchronous>, transform_indices = @transform_15, window_bounds = array<i64: 1, 32>}, {pipeline_mode = #tpu.pipeline_mode<synchronous>, transform_indices = @transform_16, window_bounds = array<i64: 1, 64>}, {pipeline_mode = #tpu.pipeline_mode<synchronous>, transform_indices = @transform_17, window_bounds = array<i64: 1, 32>}, {pipeline_mode = #tpu.pipeline_mode<synchronous>, transform_indices = @transform_18, window_bounds = array<i64: 1, 32>}, {pipeline_mode = #tpu.pipeline_mode<synchronous>, transform_indices = @transform_19, window_bounds = array<i64: 1, 32>}, {pipeline_mode = #tpu.pipeline_mode<synchronous>, transform_indices = @transform_20, window_bounds = array<i64: 32, 64>}, {pipeline_mode = #tpu.pipeline_mode<synchronous>, transform_indices = @transform_21, window_bounds = array<i64: 1, 64>}, {pipeline_mode = #tpu.pipeline_mode<synchronous>, transform_indices = @transform_22, window_bounds = array<i64: 64, 32>}, {pipeline_mode = #tpu.pipeline_mode<synchronous>, transform_indices = @transform_23, window_bounds = array<i64: 1, 32>}, {pipeline_mode = #tpu.pipeline_mode<synchronous>, transform_indices = @transform_24, window_bounds = array<i64: 1, 32>}, {pipeline_mode = #tpu.pipeline_mode<synchronous>, transform_indices = @transform_25, window_bounds = array<i64: 1, 32>}, {transform_indices = @transform_26, window_bounds = array<i64: 8, 32>}]} {
    %c0 = arith.constant 0 : index
    %c0_0 = arith.constant 0 : index
    %0 = vector.load %arg1[%c0, %c0_0] : memref<8x32xf32, #tpu.memory_space<vmem>>, vector<8x32xf32>
    %c0_1 = arith.constant 0 : index
    %c0_2 = arith.constant 0 : index
    %1 = vector.load %arg2[%c0_1, %c0_2] : memref<8x32xf32, #tpu.memory_space<vmem>>, vector<8x32xf32>
    %c0_3 = arith.constant 0 : index
    %c0_4 = arith.constant 0 : index
    %2 = vector.load %arg5[%c0_3, %c0_4] : memref<32x32xf32, #tpu.memory_space<vmem>>, vector<32x32xf32>
    %3 = arith.truncf %0 : vector<8x32xf32> to vector<8x32xbf16>
    %4 = arith.truncf %2 : vector<32x32xf32> to vector<32x32xbf16>
    %cst = arith.constant dense<0.000000e+00> : vector<8x32xf32>
    %5 = tpu.matmul %3, %4, %cst {dimension_numbers = #tpu.dot_dimension_numbers<[1], [0], [0], [1], [0, 0, 1, 1], [], []>} : vector<8x32xbf16>, vector<32x32xbf16>, vector<8x32xf32> -> vector<8x32xf32>
    %c0_5 = arith.constant 0 : index
    %c0_6 = arith.constant 0 : index
    %6 = vector.load %arg8[%c0_5, %c0_6] : memref<1x32xf32, #tpu.memory_space<vmem>>, vector<1x32xf32>
    %7 = vector.broadcast %6 : vector<1x32xf32> to vector<8x32xf32>
    %8 = arith.addf %5, %7 : vector<8x32xf32>
    %c0_7 = arith.constant 0 : index
    %c0_8 = arith.constant 0 : index
    %9 = vector.load %arg6[%c0_7, %c0_8] : memref<32x64xf32, #tpu.memory_space<vmem>>, vector<32x64xf32>
    %10 = arith.truncf %0 : vector<8x32xf32> to vector<8x32xbf16>
    %11 = arith.truncf %9 : vector<32x64xf32> to vector<32x64xbf16>
    %cst_9 = arith.constant dense<0.000000e+00> : vector<8x64xf32>
    %12 = tpu.matmul %10, %11, %cst_9 {dimension_numbers = #tpu.dot_dimension_numbers<[1], [0], [0], [1], [0, 0, 1, 1], [], []>} : vector<8x32xbf16>, vector<32x64xbf16>, vector<8x64xf32> -> vector<8x64xf32>
    %c0_10 = arith.constant 0 : index
    %c0_11 = arith.constant 0 : index
    %13 = vector.load %arg9[%c0_10, %c0_11] : memref<1x64xf32, #tpu.memory_space<vmem>>, vector<1x64xf32>
    %14 = vector.broadcast %13 : vector<1x64xf32> to vector<8x64xf32>
    %15 = arith.addf %12, %14 : vector<8x64xf32>
    %c0_12 = arith.constant 0 : index
    %c0_13 = arith.constant 0 : index
    %c0_14 = arith.constant 0 : index
    %16 = vector.load %arg3[%c0_12, %c0_13, %c0_14] : memref<1x8x8xf32, #tpu.memory_space<vmem>>, vector<1x8x8xf32>
    %17 = vector.shape_cast %16 : vector<1x8x8xf32> to vector<8x8xf32>
    %18 = vector.extract_strided_slice %8 {offsets = [0, 0], sizes = [8, 8], strides = [1, 1]} : vector<8x32xf32> to vector<8x8xf32>
    %19 = vector.extract_strided_slice %15 {offsets = [0, 0], sizes = [8, 8], strides = [1, 1]} : vector<8x64xf32> to vector<8x8xf32>
    %20 = vector.extract_strided_slice %15 {offsets = [0, 32], sizes = [8, 8], strides = [1, 1]} : vector<8x64xf32> to vector<8x8xf32>
    %cst_15 = arith.constant dense<0.000000e+00> : vector<8x8xf32>
    %21 = tpu.matmul %18, %19, %cst_15 {dimension_numbers = #tpu.dot_dimension_numbers<[1], [1], [0], [0], [0, 0, 1, 0], [], []>} : vector<8x8xf32>, vector<8x8xf32>, vector<8x8xf32> -> vector<8x8xf32>
    %cst_16 = arith.constant 0.353553385 : f32
    %22 = vector.broadcast %cst_16 : f32 to vector<8x8xf32>
    %23 = arith.mulf %21, %22 : vector<8x8xf32>
    %24 = arith.addf %23, %17 : vector<8x8xf32>
    %cst_17 = arith.constant dense<0xFF800000> : vector<8xf32>
    %25 = vector.multi_reduction <maximumf>, %24, %cst_17 [1] : vector<8x8xf32> to vector<8xf32>
    %26 = vector.shape_cast %25 : vector<8xf32> to vector<8x1xf32>
    %27 = vector.broadcast %26 : vector<8x1xf32> to vector<8x8xf32>
    %28 = arith.subf %24, %27 : vector<8x8xf32>
    %29 = math.exp %28 : vector<8x8xf32>
    %cst_18 = arith.constant dense<0.000000e+00> : vector<8xf32>
    %30 = vector.multi_reduction <add>, %29, %cst_18 [1] : vector<8x8xf32> to vector<8xf32>
    %31 = vector.shape_cast %30 : vector<8xf32> to vector<8x1xf32>
    %cst_19 = arith.constant dense<0.000000e+00> : vector<8x8xf32>
    %32 = tpu.matmul %29, %20, %cst_19 {dimension_numbers = #tpu.dot_dimension_numbers<[1], [0], [0], [1], [0, 0, 1, 1], [], []>} : vector<8x8xf32>, vector<8x8xf32>, vector<8x8xf32> -> vector<8x8xf32>
    %33 = tpu.reciprocal %31 {approx = true} : vector<8x1xf32> -> vector<8x1xf32>
    %34 = vector.broadcast %33 : vector<8x1xf32> to vector<8x8xf32>
    %35 = arith.mulf %32, %34 : vector<8x8xf32>
    %c0_20 = arith.constant 0 : index
    %c0_21 = arith.constant 0 : index
    %36 = vector.load %arg28[%c0_20, %c0_21] : memref<8x32xf32, #tpu.memory_space<vmem>>, vector<8x8xf32>
    tpu.vector_store %arg28[%c0_20, %c0_21], %35 {strides = array<i32>} : memref<8x32xf32, #tpu.memory_space<vmem>>, vector<8x8xf32>,
    %37 = vector.extract_strided_slice %8 {offsets = [0, 8], sizes = [8, 8], strides = [1, 1]} : vector<8x32xf32> to vector<8x8xf32>
    %38 = vector.extract_strided_slice %15 {offsets = [0, 8], sizes = [8, 8], strides = [1, 1]} : vector<8x64xf32> to vector<8x8xf32>
    %39 = vector.extract_strided_slice %15 {offsets = [0, 40], sizes = [8, 8], strides = [1, 1]} : vector<8x64xf32> to vector<8x8xf32>
    %cst_22 = arith.constant dense<0.000000e+00> : vector<8x8xf32>
    %40 = tpu.matmul %37, %38, %cst_22 {dimension_numbers = #tpu.dot_dimension_numbers<[1], [1], [0], [0], [0, 0, 1, 0], [], []>} : vector<8x8xf32>, vector<8x8xf32>, vector<8x8xf32> -> vector<8x8xf32>
    %cst_23 = arith.constant 0.353553385 : f32
    %41 = vector.broadcast %cst_23 : f32 to vector<8x8xf32>
    %42 = arith.mulf %40, %41 : vector<8x8xf32>
    %43 = arith.addf %42, %17 : vector<8x8xf32>
    %cst_24 = arith.constant dense<0xFF800000> : vector<8xf32>
    %44 = vector.multi_reduction <maximumf>, %43, %cst_24 [1] : vector<8x8xf32> to vector<8xf32>
    %45 = vector.shape_cast %44 : vector<8xf32> to vector<8x1xf32>
    %46 = vector.broadcast %45 : vector<8x1xf32> to vector<8x8xf32>
    %47 = arith.subf %43, %46 : vector<8x8xf32>
    %48 = math.exp %47 : vector<8x8xf32>
    %cst_25 = arith.constant dense<0.000000e+00> : vector<8xf32>
    %49 = vector.multi_reduction <add>, %48, %cst_25 [1] : vector<8x8xf32> to vector<8xf32>
    %50 = vector.shape_cast %49 : vector<8xf32> to vector<8x1xf32>
    %cst_26 = arith.constant dense<0.000000e+00> : vector<8x8xf32>
    %51 = tpu.matmul %48, %39, %cst_26 {dimension_numbers = #tpu.dot_dimension_numbers<[1], [0], [0], [1], [0, 0, 1, 1], [], []>} : vector<8x8xf32>, vector<8x8xf32>, vector<8x8xf32> -> vector<8x8xf32>
    %52 = tpu.reciprocal %50 {approx = true} : vector<8x1xf32> -> vector<8x1xf32>
    %53 = vector.broadcast %52 : vector<8x1xf32> to vector<8x8xf32>
    %54 = arith.mulf %51, %53 : vector<8x8xf32>
    %c0_27 = arith.constant 0 : index
    %c8 = arith.constant 8 : index
    %55 = vector.load %arg28[%c0_27, %c8] : memref<8x32xf32, #tpu.memory_space<vmem>>, vector<8x8xf32>
    tpu.vector_store %arg28[%c0_27, %c8], %54 {strides = array<i32>} : memref<8x32xf32, #tpu.memory_space<vmem>>, vector<8x8xf32>,
    %56 = vector.extract_strided_slice %8 {offsets = [0, 16], sizes = [8, 8], strides = [1, 1]} : vector<8x32xf32> to vector<8x8xf32>
    %57 = vector.extract_strided_slice %15 {offsets = [0, 16], sizes = [8, 8], strides = [1, 1]} : vector<8x64xf32> to vector<8x8xf32>
    %58 = vector.extract_strided_slice %15 {offsets = [0, 48], sizes = [8, 8], strides = [1, 1]} : vector<8x64xf32> to vector<8x8xf32>
    %cst_28 = arith.constant dense<0.000000e+00> : vector<8x8xf32>
    %59 = tpu.matmul %56, %57, %cst_28 {dimension_numbers = #tpu.dot_dimension_numbers<[1], [1], [0], [0], [0, 0, 1, 0], [], []>} : vector<8x8xf32>, vector<8x8xf32>, vector<8x8xf32> -> vector<8x8xf32>
    %cst_29 = arith.constant 0.353553385 : f32
    %60 = vector.broadcast %cst_29 : f32 to vector<8x8xf32>
    %61 = arith.mulf %59, %60 : vector<8x8xf32>
    %62 = arith.addf %61, %17 : vector<8x8xf32>
    %cst_30 = arith.constant dense<0xFF800000> : vector<8xf32>
    %63 = vector.multi_reduction <maximumf>, %62, %cst_30 [1] : vector<8x8xf32> to vector<8xf32>
    %64 = vector.shape_cast %63 : vector<8xf32> to vector<8x1xf32>
    %65 = vector.broadcast %64 : vector<8x1xf32> to vector<8x8xf32>
    %66 = arith.subf %62, %65 : vector<8x8xf32>
    %67 = math.exp %66 : vector<8x8xf32>
    %cst_31 = arith.constant dense<0.000000e+00> : vector<8xf32>
    %68 = vector.multi_reduction <add>, %67, %cst_31 [1] : vector<8x8xf32> to vector<8xf32>
    %69 = vector.shape_cast %68 : vector<8xf32> to vector<8x1xf32>
    %cst_32 = arith.constant dense<0.000000e+00> : vector<8x8xf32>
    %70 = tpu.matmul %67, %58, %cst_32 {dimension_numbers = #tpu.dot_dimension_numbers<[1], [0], [0], [1], [0, 0, 1, 1], [], []>} : vector<8x8xf32>, vector<8x8xf32>, vector<8x8xf32> -> vector<8x8xf32>
    %71 = tpu.reciprocal %69 {approx = true} : vector<8x1xf32> -> vector<8x1xf32>
    %72 = vector.broadcast %71 : vector<8x1xf32> to vector<8x8xf32>
    %73 = arith.mulf %70, %72 : vector<8x8xf32>
    %c0_33 = arith.constant 0 : index
    %c16 = arith.constant 16 : index
    %74 = vector.load %arg28[%c0_33, %c16] : memref<8x32xf32, #tpu.memory_space<vmem>>, vector<8x8xf32>
    tpu.vector_store %arg28[%c0_33, %c16], %73 {strides = array<i32>} : memref<8x32xf32, #tpu.memory_space<vmem>>, vector<8x8xf32>,
    %75 = vector.extract_strided_slice %8 {offsets = [0, 24], sizes = [8, 8], strides = [1, 1]} : vector<8x32xf32> to vector<8x8xf32>
    %76 = vector.extract_strided_slice %15 {offsets = [0, 24], sizes = [8, 8], strides = [1, 1]} : vector<8x64xf32> to vector<8x8xf32>
    %77 = vector.extract_strided_slice %15 {offsets = [0, 56], sizes = [8, 8], strides = [1, 1]} : vector<8x64xf32> to vector<8x8xf32>
    %cst_34 = arith.constant dense<0.000000e+00> : vector<8x8xf32>
    %78 = tpu.matmul %75, %76, %cst_34 {dimension_numbers = #tpu.dot_dimension_numbers<[1], [1], [0], [0], [0, 0, 1, 0], [], []>} : vector<8x8xf32>, vector<8x8xf32>, vector<8x8xf32> -> vector<8x8xf32>
    %cst_35 = arith.constant 0.353553385 : f32
    %79 = vector.broadcast %cst_35 : f32 to vector<8x8xf32>
    %80 = arith.mulf %78, %79 : vector<8x8xf32>
    %81 = arith.addf %80, %17 : vector<8x8xf32>
    %cst_36 = arith.constant dense<0xFF800000> : vector<8xf32>
    %82 = vector.multi_reduction <maximumf>, %81, %cst_36 [1] : vector<8x8xf32> to vector<8xf32>
    %83 = vector.shape_cast %82 : vector<8xf32> to vector<8x1xf32>
    %84 = vector.broadcast %83 : vector<8x1xf32> to vector<8x8xf32>
    %85 = arith.subf %81, %84 : vector<8x8xf32>
    %86 = math.exp %85 : vector<8x8xf32>
    %cst_37 = arith.constant dense<0.000000e+00> : vector<8xf32>
    %87 = vector.multi_reduction <add>, %86, %cst_37 [1] : vector<8x8xf32> to vector<8xf32>
    %88 = vector.shape_cast %87 : vector<8xf32> to vector<8x1xf32>
    %cst_38 = arith.constant dense<0.000000e+00> : vector<8x8xf32>
    %89 = tpu.matmul %86, %77, %cst_38 {dimension_numbers = #tpu.dot_dimension_numbers<[1], [0], [0], [1], [0, 0, 1, 1], [], []>} : vector<8x8xf32>, vector<8x8xf32>, vector<8x8xf32> -> vector<8x8xf32>
    %90 = tpu.reciprocal %88 {approx = true} : vector<8x1xf32> -> vector<8x1xf32>
    %91 = vector.broadcast %90 : vector<8x1xf32> to vector<8x8xf32>
    %92 = arith.mulf %89, %91 : vector<8x8xf32>
    %c0_39 = arith.constant 0 : index
    %c24 = arith.constant 24 : index
    %93 = vector.load %arg28[%c0_39, %c24] : memref<8x32xf32, #tpu.memory_space<vmem>>, vector<8x8xf32>
    tpu.vector_store %arg28[%c0_39, %c24], %92 {strides = array<i32>} : memref<8x32xf32, #tpu.memory_space<vmem>>, vector<8x8xf32>,
    %c0_40 = arith.constant 0 : index
    %c0_41 = arith.constant 0 : index
    %94 = vector.load %arg28[%c0_40, %c0_41] : memref<8x32xf32, #tpu.memory_space<vmem>>, vector<8x32xf32>
    %c0_42 = arith.constant 0 : index
    %c0_43 = arith.constant 0 : index
    %95 = vector.load %arg7[%c0_42, %c0_43] : memref<32x32xf32, #tpu.memory_space<vmem>>, vector<32x32xf32>
    %96 = arith.truncf %94 : vector<8x32xf32> to vector<8x32xbf16>
    %97 = arith.truncf %95 : vector<32x32xf32> to vector<32x32xbf16>
    %cst_44 = arith.constant dense<0.000000e+00> : vector<8x32xf32>
    %98 = tpu.matmul %96, %97, %cst_44 {dimension_numbers = #tpu.dot_dimension_numbers<[1], [0], [0], [1], [0, 0, 1, 1], [], []>} : vector<8x32xbf16>, vector<32x32xbf16>, vector<8x32xf32> -> vector<8x32xf32>
    %c0_45 = arith.constant 0 : index
    %c0_46 = arith.constant 0 : index
    %99 = vector.load %arg10[%c0_45, %c0_46] : memref<1x32xf32, #tpu.memory_space<vmem>>, vector<1x32xf32>
    %100 = vector.broadcast %99 : vector<1x32xf32> to vector<8x32xf32>
    %101 = arith.addf %98, %100 : vector<8x32xf32>
    %102 = arith.addf %101, %0 : vector<8x32xf32>
    %c0_47 = arith.constant 0 : index
    %c0_48 = arith.constant 0 : index
    %103 = vector.load %arg11[%c0_47, %c0_48] : memref<1x32xf32, #tpu.memory_space<vmem>>, vector<1x32xf32>
    %c0_49 = arith.constant 0 : index
    %c0_50 = arith.constant 0 : index
    %104 = vector.load %arg12[%c0_49, %c0_50] : memref<1x32xf32, #tpu.memory_space<vmem>>, vector<1x32xf32>
    %cst_51 = arith.constant dense<0.000000e+00> : vector<8xf32>
    %105 = vector.multi_reduction <add>, %102, %cst_51 [1] : vector<8x32xf32> to vector<8xf32>
    %106 = vector.shape_cast %105 : vector<8xf32> to vector<8x1xf32>
    %cst_52 = arith.constant 3.200000e+01 : f32
    %107 = vector.broadcast %cst_52 : f32 to vector<8x1xf32>
    %108 = arith.divf %106, %107 : vector<8x1xf32>
    %109 = vector.broadcast %108 : vector<8x1xf32> to vector<8x32xf32>
    %110 = arith.subf %102, %109 : vector<8x32xf32>
    %111 = arith.mulf %110, %110 : vector<8x32xf32>
    %cst_53 = arith.constant dense<0.000000e+00> : vector<8xf32>
    %112 = vector.multi_reduction <add>, %111, %cst_53 [1] : vector<8x32xf32> to vector<8xf32>
    %113 = vector.shape_cast %112 : vector<8xf32> to vector<8x1xf32>
    %cst_54 = arith.constant 3.200000e+01 : f32
    %114 = vector.broadcast %cst_54 : f32 to vector<8x1xf32>
    %115 = arith.divf %113, %114 : vector<8x1xf32>
    %116 = vector.broadcast %108 : vector<8x1xf32> to vector<8x32xf32>
    %117 = arith.subf %102, %116 : vector<8x32xf32>
    %cst_55 = arith.constant 9.99999974E-6 : f32
    %118 = vector.broadcast %cst_55 : f32 to vector<8x1xf32>
    %119 = arith.addf %115, %118 : vector<8x1xf32>
    %120 = math.rsqrt %119 : vector<8x1xf32>
    %121 = vector.broadcast %120 : vector<8x1xf32> to vector<8x32xf32>
    %122 = arith.mulf %117, %121 : vector<8x32xf32>
    %123 = vector.broadcast %103 : vector<1x32xf32> to vector<8x32xf32>
    %124 = arith.mulf %122, %123 : vector<8x32xf32>
    %125 = vector.broadcast %104 : vector<1x32xf32> to vector<8x32xf32>
    %126 = arith.addf %124, %125 : vector<8x32xf32>
    %c0_56 = arith.constant 0 : index
    %c0_57 = arith.constant 0 : index
    %127 = vector.load %arg13[%c0_56, %c0_57] : memref<32x32xf32, #tpu.memory_space<vmem>>, vector<32x32xf32>
    %128 = arith.truncf %126 : vector<8x32xf32> to vector<8x32xbf16>
    %129 = arith.truncf %127 : vector<32x32xf32> to vector<32x32xbf16>
    %cst_58 = arith.constant dense<0.000000e+00> : vector<8x32xf32>
    %130 = tpu.matmul %128, %129, %cst_58 {dimension_numbers = #tpu.dot_dimension_numbers<[1], [0], [0], [1], [0, 0, 1, 1], [], []>} : vector<8x32xbf16>, vector<32x32xbf16>, vector<8x32xf32> -> vector<8x32xf32>
    %c0_59 = arith.constant 0 : index
    %c0_60 = arith.constant 0 : index
    %131 = vector.load %arg16[%c0_59, %c0_60] : memref<1x32xf32, #tpu.memory_space<vmem>>, vector<1x32xf32>
    %132 = vector.broadcast %131 : vector<1x32xf32> to vector<8x32xf32>
    %133 = arith.addf %130, %132 : vector<8x32xf32>
    %c0_61 = arith.constant 0 : index
    %c0_62 = arith.constant 0 : index
    %134 = vector.load %arg14[%c0_61, %c0_62] : memref<32x64xf32, #tpu.memory_space<vmem>>, vector<32x64xf32>
    %135 = arith.truncf %1 : vector<8x32xf32> to vector<8x32xbf16>
    %136 = arith.truncf %134 : vector<32x64xf32> to vector<32x64xbf16>
    %cst_63 = arith.constant dense<0.000000e+00> : vector<8x64xf32>
    %137 = tpu.matmul %135, %136, %cst_63 {dimension_numbers = #tpu.dot_dimension_numbers<[1], [0], [0], [1], [0, 0, 1, 1], [], []>} : vector<8x32xbf16>, vector<32x64xbf16>, vector<8x64xf32> -> vector<8x64xf32>
    %c0_64 = arith.constant 0 : index
    %c0_65 = arith.constant 0 : index
    %138 = vector.load %arg17[%c0_64, %c0_65] : memref<1x64xf32, #tpu.memory_space<vmem>>, vector<1x64xf32>
    %139 = vector.broadcast %138 : vector<1x64xf32> to vector<8x64xf32>
    %140 = arith.addf %137, %139 : vector<8x64xf32>
    %c0_66 = arith.constant 0 : index
    %c0_67 = arith.constant 0 : index
    %c0_68 = arith.constant 0 : index
    %141 = vector.load %arg4[%c0_66, %c0_67, %c0_68] : memref<1x8x8xf32, #tpu.memory_space<vmem>>, vector<1x8x8xf32>
    %142 = vector.shape_cast %141 : vector<1x8x8xf32> to vector<8x8xf32>
    %143 = vector.extract_strided_slice %133 {offsets = [0, 0], sizes = [8, 8], strides = [1, 1]} : vector<8x32xf32> to vector<8x8xf32>
    %144 = vector.extract_strided_slice %140 {offsets = [0, 0], sizes = [8, 8], strides = [1, 1]} : vector<8x64xf32> to vector<8x8xf32>
    %145 = vector.extract_strided_slice %140 {offsets = [0, 32], sizes = [8, 8], strides = [1, 1]} : vector<8x64xf32> to vector<8x8xf32>
    %cst_69 = arith.constant dense<0.000000e+00> : vector<8x8xf32>
    %146 = tpu.matmul %143, %144, %cst_69 {dimension_numbers = #tpu.dot_dimension_numbers<[1], [1], [0], [0], [0, 0, 1, 0], [], []>} : vector<8x8xf32>, vector<8x8xf32>, vector<8x8xf32> -> vector<8x8xf32>
    %cst_70 = arith.constant 0.353553385 : f32
    %147 = vector.broadcast %cst_70 : f32 to vector<8x8xf32>
    %148 = arith.mulf %146, %147 : vector<8x8xf32>
    %149 = arith.addf %148, %142 : vector<8x8xf32>
    %cst_71 = arith.constant dense<0xFF800000> : vector<8xf32>
    %150 = vector.multi_reduction <maximumf>, %149, %cst_71 [1] : vector<8x8xf32> to vector<8xf32>
    %151 = vector.shape_cast %150 : vector<8xf32> to vector<8x1xf32>
    %152 = vector.broadcast %151 : vector<8x1xf32> to vector<8x8xf32>
    %153 = arith.subf %149, %152 : vector<8x8xf32>
    %154 = math.exp %153 : vector<8x8xf32>
    %cst_72 = arith.constant dense<0.000000e+00> : vector<8xf32>
    %155 = vector.multi_reduction <add>, %154, %cst_72 [1] : vector<8x8xf32> to vector<8xf32>
    %156 = vector.shape_cast %155 : vector<8xf32> to vector<8x1xf32>
    %cst_73 = arith.constant dense<0.000000e+00> : vector<8x8xf32>
    %157 = tpu.matmul %154, %145, %cst_73 {dimension_numbers = #tpu.dot_dimension_numbers<[1], [0], [0], [1], [0, 0, 1, 1], [], []>} : vector<8x8xf32>, vector<8x8xf32>, vector<8x8xf32> -> vector<8x8xf32>
    %158 = tpu.reciprocal %156 {approx = true} : vector<8x1xf32> -> vector<8x1xf32>
    %159 = vector.broadcast %158 : vector<8x1xf32> to vector<8x8xf32>
    %160 = arith.mulf %157, %159 : vector<8x8xf32>
    %c0_74 = arith.constant 0 : index
    %c0_75 = arith.constant 0 : index
    %161 = vector.load %arg28[%c0_74, %c0_75] : memref<8x32xf32, #tpu.memory_space<vmem>>, vector<8x8xf32>
    tpu.vector_store %arg28[%c0_74, %c0_75], %160 {strides = array<i32>} : memref<8x32xf32, #tpu.memory_space<vmem>>, vector<8x8xf32>,
    %162 = vector.extract_strided_slice %133 {offsets = [0, 8], sizes = [8, 8], strides = [1, 1]} : vector<8x32xf32> to vector<8x8xf32>
    %163 = vector.extract_strided_slice %140 {offsets = [0, 8], sizes = [8, 8], strides = [1, 1]} : vector<8x64xf32> to vector<8x8xf32>
    %164 = vector.extract_strided_slice %140 {offsets = [0, 40], sizes = [8, 8], strides = [1, 1]} : vector<8x64xf32> to vector<8x8xf32>
    %cst_76 = arith.constant dense<0.000000e+00> : vector<8x8xf32>
    %165 = tpu.matmul %162, %163, %cst_76 {dimension_numbers = #tpu.dot_dimension_numbers<[1], [1], [0], [0], [0, 0, 1, 0], [], []>} : vector<8x8xf32>, vector<8x8xf32>, vector<8x8xf32> -> vector<8x8xf32>
    %cst_77 = arith.constant 0.353553385 : f32
    %166 = vector.broadcast %cst_77 : f32 to vector<8x8xf32>
    %167 = arith.mulf %165, %166 : vector<8x8xf32>
    %168 = arith.addf %167, %142 : vector<8x8xf32>
    %cst_78 = arith.constant dense<0xFF800000> : vector<8xf32>
    %169 = vector.multi_reduction <maximumf>, %168, %cst_78 [1] : vector<8x8xf32> to vector<8xf32>
    %170 = vector.shape_cast %169 : vector<8xf32> to vector<8x1xf32>
    %171 = vector.broadcast %170 : vector<8x1xf32> to vector<8x8xf32>
    %172 = arith.subf %168, %171 : vector<8x8xf32>
    %173 = math.exp %172 : vector<8x8xf32>
    %cst_79 = arith.constant dense<0.000000e+00> : vector<8xf32>
    %174 = vector.multi_reduction <add>, %173, %cst_79 [1] : vector<8x8xf32> to vector<8xf32>
    %175 = vector.shape_cast %174 : vector<8xf32> to vector<8x1xf32>
    %cst_80 = arith.constant dense<0.000000e+00> : vector<8x8xf32>
    %176 = tpu.matmul %173, %164, %cst_80 {dimension_numbers = #tpu.dot_dimension_numbers<[1], [0], [0], [1], [0, 0, 1, 1], [], []>} : vector<8x8xf32>, vector<8x8xf32>, vector<8x8xf32> -> vector<8x8xf32>
    %177 = tpu.reciprocal %175 {approx = true} : vector<8x1xf32> -> vector<8x1xf32>
    %178 = vector.broadcast %177 : vector<8x1xf32> to vector<8x8xf32>
    %179 = arith.mulf %176, %178 : vector<8x8xf32>
    %c0_81 = arith.constant 0 : index
    %c8_82 = arith.constant 8 : index
    %180 = vector.load %arg28[%c0_81, %c8_82] : memref<8x32xf32, #tpu.memory_space<vmem>>, vector<8x8xf32>
    tpu.vector_store %arg28[%c0_81, %c8_82], %179 {strides = array<i32>} : memref<8x32xf32, #tpu.memory_space<vmem>>, vector<8x8xf32>,
    %181 = vector.extract_strided_slice %133 {offsets = [0, 16], sizes = [8, 8], strides = [1, 1]} : vector<8x32xf32> to vector<8x8xf32>
    %182 = vector.extract_strided_slice %140 {offsets = [0, 16], sizes = [8, 8], strides = [1, 1]} : vector<8x64xf32> to vector<8x8xf32>
    %183 = vector.extract_strided_slice %140 {offsets = [0, 48], sizes = [8, 8], strides = [1, 1]} : vector<8x64xf32> to vector<8x8xf32>
    %cst_83 = arith.constant dense<0.000000e+00> : vector<8x8xf32>
    %184 = tpu.matmul %181, %182, %cst_83 {dimension_numbers = #tpu.dot_dimension_numbers<[1], [1], [0], [0], [0, 0, 1, 0], [], []>} : vector<8x8xf32>, vector<8x8xf32>, vector<8x8xf32> -> vector<8x8xf32>
    %cst_84 = arith.constant 0.353553385 : f32
    %185 = vector.broadcast %cst_84 : f32 to vector<8x8xf32>
    %186 = arith.mulf %184, %185 : vector<8x8xf32>
    %187 = arith.addf %186, %142 : vector<8x8xf32>
    %cst_85 = arith.constant dense<0xFF800000> : vector<8xf32>
    %188 = vector.multi_reduction <maximumf>, %187, %cst_85 [1] : vector<8x8xf32> to vector<8xf32>
    %189 = vector.shape_cast %188 : vector<8xf32> to vector<8x1xf32>
    %190 = vector.broadcast %189 : vector<8x1xf32> to vector<8x8xf32>
    %191 = arith.subf %187, %190 : vector<8x8xf32>
    %192 = math.exp %191 : vector<8x8xf32>
    %cst_86 = arith.constant dense<0.000000e+00> : vector<8xf32>
    %193 = vector.multi_reduction <add>, %192, %cst_86 [1] : vector<8x8xf32> to vector<8xf32>
    %194 = vector.shape_cast %193 : vector<8xf32> to vector<8x1xf32>
    %cst_87 = arith.constant dense<0.000000e+00> : vector<8x8xf32>
    %195 = tpu.matmul %192, %183, %cst_87 {dimension_numbers = #tpu.dot_dimension_numbers<[1], [0], [0], [1], [0, 0, 1, 1], [], []>} : vector<8x8xf32>, vector<8x8xf32>, vector<8x8xf32> -> vector<8x8xf32>
    %196 = tpu.reciprocal %194 {approx = true} : vector<8x1xf32> -> vector<8x1xf32>
    %197 = vector.broadcast %196 : vector<8x1xf32> to vector<8x8xf32>
    %198 = arith.mulf %195, %197 : vector<8x8xf32>
    %c0_88 = arith.constant 0 : index
    %c16_89 = arith.constant 16 : index
    %199 = vector.load %arg28[%c0_88, %c16_89] : memref<8x32xf32, #tpu.memory_space<vmem>>, vector<8x8xf32>
    tpu.vector_store %arg28[%c0_88, %c16_89], %198 {strides = array<i32>} : memref<8x32xf32, #tpu.memory_space<vmem>>, vector<8x8xf32>,
    %200 = vector.extract_strided_slice %133 {offsets = [0, 24], sizes = [8, 8], strides = [1, 1]} : vector<8x32xf32> to vector<8x8xf32>
    %201 = vector.extract_strided_slice %140 {offsets = [0, 24], sizes = [8, 8], strides = [1, 1]} : vector<8x64xf32> to vector<8x8xf32>
    %202 = vector.extract_strided_slice %140 {offsets = [0, 56], sizes = [8, 8], strides = [1, 1]} : vector<8x64xf32> to vector<8x8xf32>
    %cst_90 = arith.constant dense<0.000000e+00> : vector<8x8xf32>
    %203 = tpu.matmul %200, %201, %cst_90 {dimension_numbers = #tpu.dot_dimension_numbers<[1], [1], [0], [0], [0, 0, 1, 0], [], []>} : vector<8x8xf32>, vector<8x8xf32>, vector<8x8xf32> -> vector<8x8xf32>
    %cst_91 = arith.constant 0.353553385 : f32
    %204 = vector.broadcast %cst_91 : f32 to vector<8x8xf32>
    %205 = arith.mulf %203, %204 : vector<8x8xf32>
    %206 = arith.addf %205, %142 : vector<8x8xf32>
    %cst_92 = arith.constant dense<0xFF800000> : vector<8xf32>
    %207 = vector.multi_reduction <maximumf>, %206, %cst_92 [1] : vector<8x8xf32> to vector<8xf32>
    %208 = vector.shape_cast %207 : vector<8xf32> to vector<8x1xf32>
    %209 = vector.broadcast %208 : vector<8x1xf32> to vector<8x8xf32>
    %210 = arith.subf %206, %209 : vector<8x8xf32>
    %211 = math.exp %210 : vector<8x8xf32>
    %cst_93 = arith.constant dense<0.000000e+00> : vector<8xf32>
    %212 = vector.multi_reduction <add>, %211, %cst_93 [1] : vector<8x8xf32> to vector<8xf32>
    %213 = vector.shape_cast %212 : vector<8xf32> to vector<8x1xf32>
    %cst_94 = arith.constant dense<0.000000e+00> : vector<8x8xf32>
    %214 = tpu.matmul %211, %202, %cst_94 {dimension_numbers = #tpu.dot_dimension_numbers<[1], [0], [0], [1], [0, 0, 1, 1], [], []>} : vector<8x8xf32>, vector<8x8xf32>, vector<8x8xf32> -> vector<8x8xf32>
    %215 = tpu.reciprocal %213 {approx = true} : vector<8x1xf32> -> vector<8x1xf32>
    %216 = vector.broadcast %215 : vector<8x1xf32> to vector<8x8xf32>
    %217 = arith.mulf %214, %216 : vector<8x8xf32>
    %c0_95 = arith.constant 0 : index
    %c24_96 = arith.constant 24 : index
    %218 = vector.load %arg28[%c0_95, %c24_96] : memref<8x32xf32, #tpu.memory_space<vmem>>, vector<8x8xf32>
    tpu.vector_store %arg28[%c0_95, %c24_96], %217 {strides = array<i32>} : memref<8x32xf32, #tpu.memory_space<vmem>>, vector<8x8xf32>,
    %c0_97 = arith.constant 0 : index
    %c0_98 = arith.constant 0 : index
    %219 = vector.load %arg28[%c0_97, %c0_98] : memref<8x32xf32, #tpu.memory_space<vmem>>, vector<8x32xf32>
    %c0_99 = arith.constant 0 : index
    %c0_100 = arith.constant 0 : index
    %220 = vector.load %arg15[%c0_99, %c0_100] : memref<32x32xf32, #tpu.memory_space<vmem>>, vector<32x32xf32>
    %221 = arith.truncf %219 : vector<8x32xf32> to vector<8x32xbf16>
    %222 = arith.truncf %220 : vector<32x32xf32> to vector<32x32xbf16>
    %cst_101 = arith.constant dense<0.000000e+00> : vector<8x32xf32>
    %223 = tpu.matmul %221, %222, %cst_101 {dimension_numbers = #tpu.dot_dimension_numbers<[1], [0], [0], [1], [0, 0, 1, 1], [], []>} : vector<8x32xbf16>, vector<32x32xbf16>, vector<8x32xf32> -> vector<8x32xf32>
    %c0_102 = arith.constant 0 : index
    %c0_103 = arith.constant 0 : index
    %224 = vector.load %arg18[%c0_102, %c0_103] : memref<1x32xf32, #tpu.memory_space<vmem>>, vector<1x32xf32>
    %225 = vector.broadcast %224 : vector<1x32xf32> to vector<8x32xf32>
    %226 = arith.addf %223, %225 : vector<8x32xf32>
    %227 = arith.addf %226, %126 : vector<8x32xf32>
    %c0_104 = arith.constant 0 : index
    %c0_105 = arith.constant 0 : index
    %228 = vector.load %arg19[%c0_104, %c0_105] : memref<1x32xf32, #tpu.memory_space<vmem>>, vector<1x32xf32>
    %c0_106 = arith.constant 0 : index
    %c0_107 = arith.constant 0 : index
    %229 = vector.load %arg20[%c0_106, %c0_107] : memref<1x32xf32, #tpu.memory_space<vmem>>, vector<1x32xf32>
    %cst_108 = arith.constant dense<0.000000e+00> : vector<8xf32>
    %230 = vector.multi_reduction <add>, %227, %cst_108 [1] : vector<8x32xf32> to vector<8xf32>
    %231 = vector.shape_cast %230 : vector<8xf32> to vector<8x1xf32>
    %cst_109 = arith.constant 3.200000e+01 : f32
    %232 = vector.broadcast %cst_109 : f32 to vector<8x1xf32>
    %233 = arith.divf %231, %232 : vector<8x1xf32>
    %234 = vector.broadcast %233 : vector<8x1xf32> to vector<8x32xf32>
    %235 = arith.subf %227, %234 : vector<8x32xf32>
    %236 = arith.mulf %235, %235 : vector<8x32xf32>
    %cst_110 = arith.constant dense<0.000000e+00> : vector<8xf32>
    %237 = vector.multi_reduction <add>, %236, %cst_110 [1] : vector<8x32xf32> to vector<8xf32>
    %238 = vector.shape_cast %237 : vector<8xf32> to vector<8x1xf32>
    %cst_111 = arith.constant 3.200000e+01 : f32
    %239 = vector.broadcast %cst_111 : f32 to vector<8x1xf32>
    %240 = arith.divf %238, %239 : vector<8x1xf32>
    %241 = vector.broadcast %233 : vector<8x1xf32> to vector<8x32xf32>
    %242 = arith.subf %227, %241 : vector<8x32xf32>
    %cst_112 = arith.constant 9.99999974E-6 : f32
    %243 = vector.broadcast %cst_112 : f32 to vector<8x1xf32>
    %244 = arith.addf %240, %243 : vector<8x1xf32>
    %245 = math.rsqrt %244 : vector<8x1xf32>
    %246 = vector.broadcast %245 : vector<8x1xf32> to vector<8x32xf32>
    %247 = arith.mulf %242, %246 : vector<8x32xf32>
    %248 = vector.broadcast %228 : vector<1x32xf32> to vector<8x32xf32>
    %249 = arith.mulf %247, %248 : vector<8x32xf32>
    %250 = vector.broadcast %229 : vector<1x32xf32> to vector<8x32xf32>
    %251 = arith.addf %249, %250 : vector<8x32xf32>
    %c0_113 = arith.constant 0 : index
    %c0_114 = arith.constant 0 : index
    %252 = vector.load %arg21[%c0_113, %c0_114] : memref<32x64xf32, #tpu.memory_space<vmem>>, vector<32x64xf32>
    %253 = arith.truncf %251 : vector<8x32xf32> to vector<8x32xbf16>
    %254 = arith.truncf %252 : vector<32x64xf32> to vector<32x64xbf16>
    %cst_115 = arith.constant dense<0.000000e+00> : vector<8x64xf32>
    %255 = tpu.matmul %253, %254, %cst_115 {dimension_numbers = #tpu.dot_dimension_numbers<[1], [0], [0], [1], [0, 0, 1, 1], [], []>} : vector<8x32xbf16>, vector<32x64xbf16>, vector<8x64xf32> -> vector<8x64xf32>
    %c0_116 = arith.constant 0 : index
    %c0_117 = arith.constant 0 : index
    %256 = vector.load %arg22[%c0_116, %c0_117] : memref<1x64xf32, #tpu.memory_space<vmem>>, vector<1x64xf32>
    %257 = vector.broadcast %256 : vector<1x64xf32> to vector<8x64xf32>
    %258 = arith.addf %255, %257 : vector<8x64xf32>
    %cst_118 = arith.constant 0.000000e+00 : f32
    %259 = vector.broadcast %cst_118 : f32 to vector<8x64xf32>
    %260 = arith.maximumf %258, %259 : vector<8x64xf32>
    %c0_119 = arith.constant 0 : index
    %c0_120 = arith.constant 0 : index
    %261 = vector.load %arg23[%c0_119, %c0_120] : memref<64x32xf32, #tpu.memory_space<vmem>>, vector<64x32xf32>
    %262 = arith.truncf %260 : vector<8x64xf32> to vector<8x64xbf16>
    %263 = arith.truncf %261 : vector<64x32xf32> to vector<64x32xbf16>
    %cst_121 = arith.constant dense<0.000000e+00> : vector<8x32xf32>
    %264 = tpu.matmul %262, %263, %cst_121 {dimension_numbers = #tpu.dot_dimension_numbers<[1], [0], [0], [1], [0, 0, 1, 1], [], []>} : vector<8x64xbf16>, vector<64x32xbf16>, vector<8x32xf32> -> vector<8x32xf32>
    %c0_122 = arith.constant 0 : index
    %c0_123 = arith.constant 0 : index
    %265 = vector.load %arg24[%c0_122, %c0_123] : memref<1x32xf32, #tpu.memory_space<vmem>>, vector<1x32xf32>
    %266 = vector.broadcast %265 : vector<1x32xf32> to vector<8x32xf32>
    %267 = arith.addf %264, %266 : vector<8x32xf32>
    %268 = arith.addf %267, %251 : vector<8x32xf32>
    %c0_124 = arith.constant 0 : index
    %c0_125 = arith.constant 0 : index
    %269 = vector.load %arg25[%c0_124, %c0_125] : memref<1x32xf32, #tpu.memory_space<vmem>>, vector<1x32xf32>
    %c0_126 = arith.constant 0 : index
    %c0_127 = arith.constant 0 : index
    %270 = vector.load %arg26[%c0_126, %c0_127] : memref<1x32xf32, #tpu.memory_space<vmem>>, vector<1x32xf32>
    %cst_128 = arith.constant dense<0.000000e+00> : vector<8xf32>
    %271 = vector.multi_reduction <add>, %268, %cst_128 [1] : vector<8x32xf32> to vector<8xf32>
    %272 = vector.shape_cast %271 : vector<8xf32> to vector<8x1xf32>
    %cst_129 = arith.constant 3.200000e+01 : f32
    %273 = vector.broadcast %cst_129 : f32 to vector<8x1xf32>
    %274 = arith.divf %272, %273 : vector<8x1xf32>
    %275 = vector.broadcast %274 : vector<8x1xf32> to vector<8x32xf32>
    %276 = arith.subf %268, %275 : vector<8x32xf32>
    %277 = arith.mulf %276, %276 : vector<8x32xf32>
    %cst_130 = arith.constant dense<0.000000e+00> : vector<8xf32>
    %278 = vector.multi_reduction <add>, %277, %cst_130 [1] : vector<8x32xf32> to vector<8xf32>
    %279 = vector.shape_cast %278 : vector<8xf32> to vector<8x1xf32>
    %cst_131 = arith.constant 3.200000e+01 : f32
    %280 = vector.broadcast %cst_131 : f32 to vector<8x1xf32>
    %281 = arith.divf %279, %280 : vector<8x1xf32>
    %282 = vector.broadcast %274 : vector<8x1xf32> to vector<8x32xf32>
    %283 = arith.subf %268, %282 : vector<8x32xf32>
    %cst_132 = arith.constant 9.99999974E-6 : f32
    %284 = vector.broadcast %cst_132 : f32 to vector<8x1xf32>
    %285 = arith.addf %281, %284 : vector<8x1xf32>
    %286 = math.rsqrt %285 : vector<8x1xf32>
    %287 = vector.broadcast %286 : vector<8x1xf32> to vector<8x32xf32>
    %288 = arith.mulf %283, %287 : vector<8x32xf32>
    %289 = vector.broadcast %269 : vector<1x32xf32> to vector<8x32xf32>
    %290 = arith.mulf %288, %289 : vector<8x32xf32>
    %291 = vector.broadcast %270 : vector<1x32xf32> to vector<8x32xf32>
    %292 = arith.addf %290, %291 : vector<8x32xf32>
    %c0_133 = arith.constant 0 : index
    %c0_134 = arith.constant 0 : index
    %293 = vector.load %arg27[%c0_133, %c0_134] : memref<8x32xf32, #tpu.memory_space<vmem>>, vector<8x32xf32>
    tpu.vector_store %arg27[%c0_133, %c0_134], %292 {strides = array<i32>} : memref<8x32xf32, #tpu.memory_space<vmem>>, vector<8x32xf32>,
    return
  }
  func.func @transform_0(%arg0: i32) -> (i32, i32) {
    %c0_i32 = arith.constant 0 : i32
    %c0_i32_0 = arith.constant 0 : i32
    return %arg0, %c0_i32 : i32, i32
  }
  func.func @transform_1(%arg0: i32) -> (i32, i32) {
    %c0_i32 = arith.constant 0 : i32
    %c0_i32_0 = arith.constant 0 : i32
    return %arg0, %c0_i32 : i32, i32
  }
  func.func @transform_2(%arg0: i32) -> (i32, i32, i32) {
    %c0_i32 = arith.constant 0 : i32
    %c0_i32_0 = arith.constant 0 : i32
    %c0_i32_1 = arith.constant 0 : i32
    return %arg0, %c0_i32, %c0_i32_0 : i32, i32, i32
  }
  func.func @transform_3(%arg0: i32) -> (i32, i32, i32) {
    %c0_i32 = arith.constant 0 : i32
    %c0_i32_0 = arith.constant 0 : i32
    %c0_i32_1 = arith.constant 0 : i32
    return %arg0, %c0_i32, %c0_i32_0 : i32, i32, i32
  }
  func.func @transform_4(%arg0: i32) -> (i32, i32) {
    %c0_i32 = arith.constant 0 : i32
    %c0_i32_0 = arith.constant 0 : i32
    %c0_i32_1 = arith.constant 0 : i32
    return %c0_i32, %c0_i32_0 : i32, i32
  }
  func.func @transform_5(%arg0: i32) -> (i32, i32) {
    %c0_i32 = arith.constant 0 : i32
    %c0_i32_0 = arith.constant 0 : i32
    %c0_i32_1 = arith.constant 0 : i32
    return %c0_i32, %c0_i32_0 : i32, i32
  }
  func.func @transform_6(%arg0: i32) -> (i32, i32) {
    %c0_i32 = arith.constant 0 : i32
    %c0_i32_0 = arith.constant 0 : i32
    %c0_i32_1 = arith.constant 0 : i32
    return %c0_i32, %c0_i32_0 : i32, i32
  }
  func.func @transform_7(%arg0: i32) -> (i32, i32) {
    %c0_i32 = arith.constant 0 : i32
    %c0_i32_0 = arith.constant 0 : i32
    %c0_i32_1 = arith.constant 0 : i32
    return %c0_i32, %c0_i32_0 : i32, i32
  }
  func.func @transform_8(%arg0: i32) -> (i32, i32) {
    %c0_i32 = arith.constant 0 : i32
    %c0_i32_0 = arith.constant 0 : i32
    %c0_i32_1 = arith.constant 0 : i32
    return %c0_i32, %c0_i32_0 : i32, i32
  }
  func.func @transform_9(%arg0: i32) -> (i32, i32) {
    %c0_i32 = arith.constant 0 : i32
    %c0_i32_0 = arith.constant 0 : i32
    %c0_i32_1 = arith.constant 0 : i32
    return %c0_i32, %c0_i32_0 : i32, i32
  }
  func.func @transform_10(%arg0: i32) -> (i32, i32) {
    %c0_i32 = arith.constant 0 : i32
    %c0_i32_0 = arith.constant 0 : i32
    %c0_i32_1 = arith.constant 0 : i32
    return %c0_i32, %c0_i32_0 : i32, i32
  }
  func.func @transform_11(%arg0: i32) -> (i32, i32) {
    %c0_i32 = arith.constant 0 : i32
    %c0_i32_0 = arith.constant 0 : i32
    %c0_i32_1 = arith.constant 0 : i32
    return %c0_i32, %c0_i32_0 : i32, i32
  }
  func.func @transform_12(%arg0: i32) -> (i32, i32) {
    %c0_i32 = arith.constant 0 : i32
    %c0_i32_0 = arith.constant 0 : i32
    %c0_i32_1 = arith.constant 0 : i32
    return %c0_i32, %c0_i32_0 : i32, i32
  }
  func.func @transform_13(%arg0: i32) -> (i32, i32) {
    %c0_i32 = arith.constant 0 : i32
    %c0_i32_0 = arith.constant 0 : i32
    %c0_i32_1 = arith.constant 0 : i32
    return %c0_i32, %c0_i32_0 : i32, i32
  }
  func.func @transform_14(%arg0: i32) -> (i32, i32) {
    %c0_i32 = arith.constant 0 : i32
    %c0_i32_0 = arith.constant 0 : i32
    %c0_i32_1 = arith.constant 0 : i32
    return %c0_i32, %c0_i32_0 : i32, i32
  }
  func.func @transform_15(%arg0: i32) -> (i32, i32) {
    %c0_i32 = arith.constant 0 : i32
    %c0_i32_0 = arith.constant 0 : i32
    %c0_i32_1 = arith.constant 0 : i32
    return %c0_i32, %c0_i32_0 : i32, i32
  }
  func.func @transform_16(%arg0: i32) -> (i32, i32) {
    %c0_i32 = arith.constant 0 : i32
    %c0_i32_0 = arith.constant 0 : i32
    %c0_i32_1 = arith.constant 0 : i32
    return %c0_i32, %c0_i32_0 : i32, i32
  }
  func.func @transform_17(%arg0: i32) -> (i32, i32) {
    %c0_i32 = arith.constant 0 : i32
    %c0_i32_0 = arith.constant 0 : i32
    %c0_i32_1 = arith.constant 0 : i32
    return %c0_i32, %c0_i32_0 : i32, i32
  }
  func.func @transform_18(%arg0: i32) -> (i32, i32) {
    %c0_i32 = arith.constant 0 : i32
    %c0_i32_0 = arith.constant 0 : i32
    %c0_i32_1 = arith.constant 0 : i32
    return %c0_i32, %c0_i32_0 : i32, i32
  }
  func.func @transform_19(%arg0: i32) -> (i32, i32) {
    %c0_i32 = arith.constant 0 : i32
    %c0_i32_0 = arith.constant 0 : i32
    %c0_i32_1 = arith.constant 0 : i32
    return %c0_i32, %c0_i32_0 : i32, i32
  }
  func.func @transform_20(%arg0: i32) -> (i32, i32) {
    %c0_i32 = arith.constant 0 : i32
    %c0_i32_0 = arith.constant 0 : i32
    %c0_i32_1 = arith.constant 0 : i32
    return %c0_i32, %c0_i32_0 : i32, i32
  }
  func.func @transform_21(%arg0: i32) -> (i32, i32) {
    %c0_i32 = arith.constant 0 : i32
    %c0_i32_0 = arith.constant 0 : i32
    %c0_i32_1 = arith.constant 0 : i32
    return %c0_i32, %c0_i32_0 : i32, i32
  }
  func.func @transform_22(%arg0: i32) -> (i32, i32) {
    %c0_i32 = arith.constant 0 : i32
    %c0_i32_0 = arith.constant 0 : i32
    %c0_i32_1 = arith.constant 0 : i32
    return %c0_i32, %c0_i32_0 : i32, i32
  }
  func.func @transform_23(%arg0: i32) -> (i32, i32) {
    %c0_i32 = arith.constant 0 : i32
    %c0_i32_0 = arith.constant 0 : i32
    %c0_i32_1 = arith.constant 0 : i32
    return %c0_i32, %c0_i32_0 : i32, i32
  }
  func.func @transform_24(%arg0: i32) -> (i32, i32) {
    %c0_i32 = arith.constant 0 : i32
    %c0_i32_0 = arith.constant 0 : i32
    %c0_i32_1 = arith.constant 0 : i32
    return %c0_i32, %c0_i32_0 : i32, i32
  }
  func.func @transform_25(%arg0: i32) -> (i32, i32) {
    %c0_i32 = arith.constant 0 : i32
    %c0_i32_0 = arith.constant 0 : i32
    %c0_i32_1 = arith.constant 0 : i32
    return %c0_i32, %c0_i32_0 : i32, i32
  }
  func.func @transform_26(%arg0: i32) -> (i32, i32) {
    %c0_i32 = arith.constant 0 : i32
    %c0_i32_0 = arith.constant 0 : i32
    return %arg0, %c0_i32 : i32, i32
  }
}

module attributes {stable_mosaic.version = 11 : i64} {
  func.func @_norm_generator_kernel(%arg0: i32, %arg1: memref<8x32xf32, #tpu.memory_space<vmem>>, %arg2: memref<1x32xf32, #tpu.memory_space<vmem>>, %arg3: memref<1x32xf32, #tpu.memory_space<vmem>>, %arg4: memref<32x128xf32, #tpu.memory_space<vmem>>, %arg5: memref<1x128xf32, #tpu.memory_space<vmem>>, %arg6: memref<8x128xf32, #tpu.memory_space<vmem>>) attributes {dimension_semantics = [#tpu.dimension_semantics<parallel>], iteration_bounds = array<i64: 2>, scalar_prefetch = 0 : i64, scratch_operands = 0 : i64, tpu.core_type = #tpu.core_type<tc>, window_params = [{transform_indices = @transform_0, window_bounds = array<i64: 8, 32>}, {pipeline_mode = #tpu.pipeline_mode<synchronous>, transform_indices = @transform_1, window_bounds = array<i64: 1, 32>}, {pipeline_mode = #tpu.pipeline_mode<synchronous>, transform_indices = @transform_2, window_bounds = array<i64: 1, 32>}, {pipeline_mode = #tpu.pipeline_mode<synchronous>, transform_indices = @transform_3, window_bounds = array<i64: 32, 128>}, {pipeline_mode = #tpu.pipeline_mode<synchronous>, transform_indices = @transform_4, window_bounds = array<i64: 1, 128>}, {transform_indices = @transform_5, window_bounds = array<i64: 8, 128>}]} {
    %c0 = arith.constant 0 : index
    %c0_0 = arith.constant 0 : index
    %0 = vector.load %arg1[%c0, %c0_0] : memref<8x32xf32, #tpu.memory_space<vmem>>, vector<8x32xf32>
    %c0_1 = arith.constant 0 : index
    %c0_2 = arith.constant 0 : index
    %1 = vector.load %arg2[%c0_1, %c0_2] : memref<1x32xf32, #tpu.memory_space<vmem>>, vector<1x32xf32>
    %c0_3 = arith.constant 0 : index
    %c0_4 = arith.constant 0 : index
    %2 = vector.load %arg3[%c0_3, %c0_4] : memref<1x32xf32, #tpu.memory_space<vmem>>, vector<1x32xf32>
    %cst = arith.constant dense<0.000000e+00> : vector<8xf32>
    %3 = vector.multi_reduction <add>, %0, %cst [1] : vector<8x32xf32> to vector<8xf32>
    %4 = vector.shape_cast %3 : vector<8xf32> to vector<8x1xf32>
    %cst_5 = arith.constant 3.200000e+01 : f32
    %5 = vector.broadcast %cst_5 : f32 to vector<8x1xf32>
    %6 = arith.divf %4, %5 : vector<8x1xf32>
    %7 = vector.broadcast %6 : vector<8x1xf32> to vector<8x32xf32>
    %8 = arith.subf %0, %7 : vector<8x32xf32>
    %9 = arith.mulf %8, %8 : vector<8x32xf32>
    %cst_6 = arith.constant dense<0.000000e+00> : vector<8xf32>
    %10 = vector.multi_reduction <add>, %9, %cst_6 [1] : vector<8x32xf32> to vector<8xf32>
    %11 = vector.shape_cast %10 : vector<8xf32> to vector<8x1xf32>
    %cst_7 = arith.constant 3.200000e+01 : f32
    %12 = vector.broadcast %cst_7 : f32 to vector<8x1xf32>
    %13 = arith.divf %11, %12 : vector<8x1xf32>
    %14 = vector.broadcast %6 : vector<8x1xf32> to vector<8x32xf32>
    %15 = arith.subf %0, %14 : vector<8x32xf32>
    %cst_8 = arith.constant 9.99999974E-6 : f32
    %16 = vector.broadcast %cst_8 : f32 to vector<8x1xf32>
    %17 = arith.addf %13, %16 : vector<8x1xf32>
    %18 = math.rsqrt %17 : vector<8x1xf32>
    %19 = vector.broadcast %18 : vector<8x1xf32> to vector<8x32xf32>
    %20 = arith.mulf %15, %19 : vector<8x32xf32>
    %21 = vector.broadcast %1 : vector<1x32xf32> to vector<8x32xf32>
    %22 = arith.mulf %20, %21 : vector<8x32xf32>
    %23 = vector.broadcast %2 : vector<1x32xf32> to vector<8x32xf32>
    %24 = arith.addf %22, %23 : vector<8x32xf32>
    %c0_9 = arith.constant 0 : index
    %c0_10 = arith.constant 0 : index
    %25 = vector.load %arg4[%c0_9, %c0_10] : memref<32x128xf32, #tpu.memory_space<vmem>>, vector<32x128xf32>
    %26 = arith.truncf %24 : vector<8x32xf32> to vector<8x32xbf16>
    %27 = arith.truncf %25 : vector<32x128xf32> to vector<32x128xbf16>
    %cst_11 = arith.constant dense<0.000000e+00> : vector<8x128xf32>
    %28 = tpu.matmul %26, %27, %cst_11 {dimension_numbers = #tpu.dot_dimension_numbers<[1], [0], [0], [1], [0, 0, 1, 1], [], []>} : vector<8x32xbf16>, vector<32x128xbf16>, vector<8x128xf32> -> vector<8x128xf32>
    %c0_12 = arith.constant 0 : index
    %c0_13 = arith.constant 0 : index
    %29 = vector.load %arg5[%c0_12, %c0_13] : memref<1x128xf32, #tpu.memory_space<vmem>>, vector<1x128xf32>
    %30 = vector.broadcast %29 : vector<1x128xf32> to vector<8x128xf32>
    %31 = arith.addf %28, %30 : vector<8x128xf32>
    %c0_14 = arith.constant 0 : index
    %c0_15 = arith.constant 0 : index
    %32 = vector.load %arg6[%c0_14, %c0_15] : memref<8x128xf32, #tpu.memory_space<vmem>>, vector<8x128xf32>
    tpu.vector_store %arg6[%c0_14, %c0_15], %31 {strides = array<i32>} : memref<8x128xf32, #tpu.memory_space<vmem>>, vector<8x128xf32>,
    return
  }
  func.func @transform_0(%arg0: i32) -> (i32, i32) {
    %c0_i32 = arith.constant 0 : i32
    %c0_i32_0 = arith.constant 0 : i32
    return %arg0, %c0_i32 : i32, i32
  }
  func.func @transform_1(%arg0: i32) -> (i32, i32) {
    %c0_i32 = arith.constant 0 : i32
    %c0_i32_0 = arith.constant 0 : i32
    %c0_i32_1 = arith.constant 0 : i32
    return %c0_i32, %c0_i32_0 : i32, i32
  }
  func.func @transform_2(%arg0: i32) -> (i32, i32) {
    %c0_i32 = arith.constant 0 : i32
    %c0_i32_0 = arith.constant 0 : i32
    %c0_i32_1 = arith.constant 0 : i32
    return %c0_i32, %c0_i32_0 : i32, i32
  }
  func.func @transform_3(%arg0: i32) -> (i32, i32) {
    %c0_i32 = arith.constant 0 : i32
    %c0_i32_0 = arith.constant 0 : i32
    %c0_i32_1 = arith.constant 0 : i32
    return %c0_i32, %c0_i32_0 : i32, i32
  }
  func.func @transform_4(%arg0: i32) -> (i32, i32) {
    %c0_i32 = arith.constant 0 : i32
    %c0_i32_0 = arith.constant 0 : i32
    %c0_i32_1 = arith.constant 0 : i32
    return %c0_i32, %c0_i32_0 : i32, i32
  }
  func.func @transform_5(%arg0: i32) -> (i32, i32) {
    %c0_i32 = arith.constant 0 : i32
    %c0_i32_0 = arith.constant 0 : i32
    return %arg0, %c0_i32 : i32, i32
  }
}

</mosaic_0001>

<llo_original>
// kernel: seq2seq_transformer_forward.8
$region0: #{seq2seq_transformer_forward.8}
  #allocation0 [shape = 'u32[]', space=smem, size = 0x4, offset = 0x4, fixed_abs, tag = 'smem constant byte address 0x4 - core index']
  #allocation1 [shape = 'u32[144,128]{1,0:T(1,128)}', space=vmem, size = 0x12000, scoped, tag = 'internal scratch']
  %s0 = inlined_call_operand.vmem [shape: f32[16,32], index: 0, kind: input, shape index: {}]
  %s1 = inlined_call_operand.vmem [shape: f32[1,32], index: 1, kind: input, shape index: {}]
  %s2 = inlined_call_operand.vmem [shape: f32[1,32], index: 2, kind: input, shape index: {}]
  %s3 = inlined_call_operand.vmem [shape: f32[16,32], index: 3, kind: output, shape index: {}]
  %s4 = sld [smem:[#allocation0]]
  $region45: #{seq2seq_transformer_forward.8} parent=0
    _
  %s6 = ssub.s32 1, %s4
  %s7 = scalar_select 0, %s6, %s4
  loop: start=0, step=1, limit=4
  $region2: #{seq2seq_transformer_forward.8} parent=0 // loop_pre_header
    _
  $region3: #{seq2seq_transformer_forward.8} parent=0 // loop_header
    %s9 = sphi 0, %s13
    %p10 = scmp.ge.s32.totalorder %s9, 4
    %s19 = sphi 0, %s21
    %s22 = sphi 0, %s19
    %s23 = sphi 0, %s22
    %s39 = sphi 0, %s23
    %s43 = sphi 0, %s43
    %s45 = sphi 0, %s43
    %s46 = sphi 0, %s45
    %s60 = sphi 0, %s46
    %s64 = sphi 0, %s64
    %s66 = sphi 0, %s64
    %s67 = sphi 0, %s66
    %s81 = sphi 0, %s67
    %s87 = sphi 0, %s89
    %s90 = sphi 0, %s87
    %s91 = sphi 0, %s90
    %s107 = sphi 0, %s91
  $region4: #{seq2seq_transformer_forward.8} parent=0 // loop_header_branch
    %12 = sbr.rel (%p10) target = $region8
  $region5: #{seq2seq_transformer_forward.8} parent=0 // loop_body
    %s14 = ssub.s32 %s9, 1
    %s15 = ssub.s32 %s9, 2
    %s16 = sadd.s32 %s9, 1
    %s17 = ssub.s32 %s9, %s16
    %p18 = scmp.eq.s32.totalorder %s17, 0
    %s20 = sadd.s32 %s19, 1
    %s21 = scalar_select %p18, %s19, %s20
    %p24 = pneg %p18
    %p25 = scmp.eq.s32.totalorder %s9, 1
    %p26 = por %p24, %p25
    %p27 = scmp.ne.s32.totalorder %s19, %s22
    %p28 = scmp.eq.s32.totalorder %s9, 0
    %p29 = por %p27, %p28
    %p30 = scmp.ne.s32.totalorder %s19, %s22
    %p31 = scmp.eq.s32.totalorder %s14, 1
    %p32 = por %p30, %p31
    %p33 = scmp.ne.s32.totalorder %s22, %s23
    %p34 = scmp.eq.s32.totalorder %s14, 0
    %p35 = por %p33, %p34
    %p36 = scmp.ne.s32.totalorder %s22, %s23
    %p37 = scmp.eq.s32.totalorder %s15, 1
    %p38 = por %p36, %p37
    %p40 = scmp.ne.s32.totalorder %s23, %s39
    %p41 = scmp.eq.s32.totalorder %s15, 0
    %p42 = por %p40, %p41
    %s44 = sadd.s32 %s43, 1
    %p47 = scmp.eq.s32.totalorder %s9, 1
    %p48 = scmp.ne.s32.totalorder %s43, %s45
    %p49 = scmp.eq.s32.totalorder %s9, 0
    %p50 = por %p48, %p49
    %p51 = scmp.ne.s32.totalorder %s43, %s45
    %p52 = scmp.eq.s32.totalorder %s14, 1
    %p53 = por %p51, %p52
    %p54 = scmp.ne.s32.totalorder %s45, %s46
    %p55 = scmp.eq.s32.totalorder %s14, 0
    %p56 = por %p54, %p55
    %p57 = scmp.ne.s32.totalorder %s45, %s46
    %p58 = scmp.eq.s32.totalorder %s15, 1
    %p59 = por %p57, %p58
    %p61 = scmp.ne.s32.totalorder %s46, %s60
    %p62 = scmp.eq.s32.totalorder %s15, 0
    %p63 = por %p61, %p62
    %s65 = sadd.s32 %s64, 1
    %p68 = scmp.eq.s32.totalorder %s9, 1
    %p69 = scmp.ne.s32.totalorder %s64, %s66
    %p70 = scmp.eq.s32.totalorder %s9, 0
    %p71 = por %p69, %p70
    %p72 = scmp.ne.s32.totalorder %s64, %s66
    %p73 = scmp.eq.s32.totalorder %s14, 1
    %p74 = por %p72, %p73
    %p75 = scmp.ne.s32.totalorder %s66, %s67
    %p76 = scmp.eq.s32.totalorder %s14, 0
    %p77 = por %p75, %p76
    %p78 = scmp.ne.s32.totalorder %s66, %s67
    %p79 = scmp.eq.s32.totalorder %s15, 1
    %p80 = por %p78, %p79
    %p82 = scmp.ne.s32.totalorder %s67, %s81
    %p83 = scmp.eq.s32.totalorder %s15, 0
    %p84 = por %p82, %p83
    %s85 = ssub.s32 %s9, %s16
    %p86 = scmp.eq.s32.totalorder %s85, 0
    %s88 = sadd.s32 %s87, 1
    %s89 = scalar_select %p86, %s87, %s88
    %p92 = pneg %p86
    %p93 = scmp.eq.s32.totalorder %s9, 1
    %p94 = por %p92, %p93
    %p95 = scmp.ne.s32.totalorder %s87, %s90
    %p96 = scmp.eq.s32.totalorder %s9, 0
    %p97 = por %p95, %p96
    %p98 = scmp.ne.s32.totalorder %s87, %s90
    %p99 = scmp.eq.s32.totalorder %s14, 1
    %p100 = por %p98, %p99
    %p101 = scmp.ne.s32.totalorder %s90, %s91
    %p102 = scmp.eq.s32.totalorder %s14, 0
    %p103 = por %p101, %p102
    %p104 = scmp.ne.s32.totalorder %s90, %s91
    %p105 = scmp.eq.s32.totalorder %s15, 1
    %p106 = por %p104, %p105
    %p108 = scmp.ne.s32.totalorder %s91, %s107
    %p109 = scmp.eq.s32.totalorder %s15, 0
    %p110 = por %p108, %p109
    %p111 = scmp.le.s32.totalorder 1, %s9
    %p112 = scmp.lt.s32.totalorder %s9, 3
    %p113 = pnand %p111, %p112
    %p114 = pneg %p113
    // Predicated region
    $region9: #{seq2seq_transformer_forward.8} parent=5 // pred_check
      _
    $region10: #{seq2seq_transformer_forward.8} parent=5 // pred_check_branch
      %116 = sbr.rel (%p113) target = $region12
    $region11: #{seq2seq_transformer_forward.8} parent=5 // pred_region
      %s117 = ssub.s32 %s9, 1
      // Predicated region
      $region13: #{seq2seq_transformer_forward.8} parent=11 // pred_check
        %p118 = pneg %p56
      $region14: #{seq2seq_transformer_forward.8} parent=11 // pred_check_branch
        %120 = sbr.rel (%p118) target = $region16
      $region15: #{seq2seq_transformer_forward.8} parent=11 // pred_region
        _
      $region16: #{seq2seq_transformer_forward.8} parent=11 // pred_fallthru
        _
      // Predicated region
      $region17: #{seq2seq_transformer_forward.8} parent=11 // pred_check
        %p121 = pneg %p77
      $region18: #{seq2seq_transformer_forward.8} parent=11 // pred_check_branch
        %123 = sbr.rel (%p121) target = $region20
      $region19: #{seq2seq_transformer_forward.8} parent=11 // pred_region
        _
      $region20: #{seq2seq_transformer_forward.8} parent=11 // pred_fallthru
        _
    $region12: #{seq2seq_transformer_forward.8} parent=5 // pred_fallthru
      _
    %p124 = scmp.lt.s32.totalorder %s9, 2
    // Predicated region
    $region21: #{seq2seq_transformer_forward.8} parent=5 // pred_check
      %p125 = pneg %p124
    $region22: #{seq2seq_transformer_forward.8} parent=5 // pred_check_branch
      %127 = sbr.rel (%p125) target = $region24
    $region23: #{seq2seq_transformer_forward.8} parent=5 // pred_region
      // Predicated region
      $region25: #{seq2seq_transformer_forward.8} parent=23 // pred_check
        %p128 = pneg %p29
      $region26: #{seq2seq_transformer_forward.8} parent=23 // pred_check_branch
        %130 = sbr.rel (%p128) target = $region28
      $region27: #{seq2seq_transformer_forward.8} parent=23 // pred_region
        %p131 = scmp.lt.s32.totalorder %s9, 1
        %s132 = scalar_select %p131, %s9, 1
        %s133 = smul.addr %s132, 8
        %s134 = scalar_lea.vmem %s0, %s133
      $region28: #{seq2seq_transformer_forward.8} parent=23 // pred_fallthru
        _
    $region24: #{seq2seq_transformer_forward.8} parent=5 // pred_fallthru
      _
    %p135 = scmp.le.s32.totalorder 1, %s9
    %p136 = scmp.lt.s32.totalorder %s9, 3
    %p137 = pnand %p135, %p136
    %p138 = pneg %p137
    // Predicated region
    $region29: #{seq2seq_transformer_forward.8} parent=5 // pred_check
      _
    $region30: #{seq2seq_transformer_forward.8} parent=5 // pred_check_branch
      %140 = sbr.rel (%p137) target = $region32
    $region31: #{seq2seq_transformer_forward.8} parent=5 // pred_region
      %s141 = ssub.s32 %s9, 1
      %p142 = scmp.lt.s32.totalorder %s14, 1
      %s143 = scalar_select %p142, %s14, 1
      %s144 = smul.addr %s143, 8
      %s145 = scalar_lea.vmem %s0, %s144
      %p146 = pneg %p35
      %p147 = pneg %p32
      %p148 = pneg %p56
      %p149 = pneg %p53
      %p150 = pneg %p77
      %p151 = pneg %p74
      %p152 = pneg %p103
      %p153 = pneg %p100
      %p154 = scmp.lt.s32.totalorder %s14, 1
      %s155 = scalar_select %p154, %s14, 1
      %s156 = smul.addr %s155, 8
      %s157 = scalar_lea.vmem %s3, %s156
      %p158 = scmp.lt.s32.totalorder %s14, 1
      %s159 = scalar_select %p158, %s14, 1
      %s160 = smul.addr %s159, 8
      %s161 = scalar_lea.vmem %s0, %s160
      %p162 = scmp.lt.s32.totalorder %s14, 1
      %s163 = scalar_select %p162, %s14, 1
      %s164 = smul.addr %s163, 8
      %s165 = scalar_lea.vmem %s3, %s164
      %v166 = vld [vmem:[%s161] sm:$0xff]
      %v167 = vld [vmem:[%s1] sm:$0x1]
      %v168 = vld [vmem:[%s2] sm:$0x1]
      %vm169 = vcmask 261120
      %v170 = vsel %vm169, %v166, 0.0
      %171 = vadd.xlane.f32.xlu0 %v170
      %v172 = vpop.xlane.xlu0 %171
      %v173 = vrcp.pop 32.0
      %v174 = vmul.f32 %v172, %v173
      %v175 = vsub.f32 %v166, %v174
      %v176 = vmul.f32 %v175, %v175
      %v177 = vsel %vm169, %v176, 0.0
      %178 = vadd.xlane.f32.xlu0 %v177
      %v179 = vpop.xlane.xlu0 %178
      %v180 = vmul.f32 %v179, %v173
      %v181 = vadd.f32 %v180, 1e-05
      %v182 = vrsqrt.pop %v181
      %v183 = vmul.f32 %v175, %v182
      %v185 = vlaneseq
      %v186 = vshrl.u32 %v185, 7
      %v187 = vsub.s32 0, %v186
      %v188 = vrot.slane %v167, %v187
      %v190 = vmul.f32 %v183, %v188
      %v192 = vlaneseq
      %v193 = vshrl.u32 %v192, 7
      %v194 = vsub.s32 0, %v193
      %v195 = vrot.slane %v168, %v194
      %v197 = vadd.f32 %v190, %v195
      %198 = vst.msk [vmem:[%s165] sm:$0xff] %vm169, %v197
      %p199 = scmp.lt.s32.totalorder %s14, 1
      %s200 = scalar_select %p199, %s14, 1
      %s201 = smul.addr %s200, 8
      %s202 = scalar_lea.vmem %s3, %s201
      // Predicated region
      $region33: #{seq2seq_transformer_forward.8} parent=31 // pred_check
        %p203 = pneg %p100
      $region34: #{seq2seq_transformer_forward.8} parent=31 // pred_check_branch
        %205 = sbr.rel (%p203) target = $region36
      $region35: #{seq2seq_transformer_forward.8} parent=31 // pred_region
        _
      $region36: #{seq2seq_transformer_forward.8} parent=31 // pred_fallthru
        _
    $region32: #{seq2seq_transformer_forward.8} parent=5 // pred_fallthru
      _
    %p206 = scmp.le.s32.totalorder 2, %s9
    // Predicated region
    $region37: #{seq2seq_transformer_forward.8} parent=5 // pred_check
      %p207 = pneg %p206
    $region38: #{seq2seq_transformer_forward.8} parent=5 // pred_check_branch
      %209 = sbr.rel (%p207) target = $region40
    $region39: #{seq2seq_transformer_forward.8} parent=5 // pred_region
      %s210 = ssub.s32 %s9, 2
      // Predicated region
      $region41: #{seq2seq_transformer_forward.8} parent=39 // pred_check
        %p211 = pneg %p106
      $region42: #{seq2seq_transformer_forward.8} parent=39 // pred_check_branch
        %213 = sbr.rel (%p211) target = $region44
      $region43: #{seq2seq_transformer_forward.8} parent=39 // pred_region
        %p214 = scmp.lt.s32.totalorder %s15, 1
        %s215 = scalar_select %p214, %s15, 1
        %s216 = smul.addr %s215, 8
        %s217 = scalar_lea.vmem %s3, %s216
      $region44: #{seq2seq_transformer_forward.8} parent=39 // pred_fallthru
        _
    $region40: #{seq2seq_transformer_forward.8} parent=5 // pred_fallthru
      _
  $region6: #{seq2seq_transformer_forward.8} parent=0 // loop_footer
    %s13 = sadd.s32 1, %s9
  $region7: #{seq2seq_transformer_forward.8} parent=0 // loop_footer_branch
    %8 = sbr.rel target = $region3
  $region8: #{seq2seq_transformer_forward.8} parent=0 // loop_exit
    _

// kernel: seq2seq_transformer_forward.11
$region0: #{seq2seq_transformer_forward.11}
  #allocation0 [shape = 'u32[]', space=smem, size = 0x4, offset = 0x4, fixed_abs, tag = 'smem constant byte address 0x4 - core index']
  #allocation1 [shape = 'u32[144,128]{1,0:T(1,128)}', space=vmem, size = 0x12000, scoped, tag = 'internal scratch']
  %s0 = inlined_call_operand.vmem [shape: f32[16,32], index: 0, kind: input, shape index: {}]
  %s1 = inlined_call_operand.vmem [shape: f32[1,32], index: 1, kind: input, shape index: {}]
  %s2 = inlined_call_operand.vmem [shape: f32[1,32], index: 2, kind: input, shape index: {}]
  %s3 = inlined_call_operand.vmem [shape: f32[32,128], index: 3, kind: input, shape index: {}]
  %s4 = inlined_call_operand.vmem [shape: f32[1,128], index: 4, kind: input, shape index: {}]
  %s5 = inlined_call_operand.vmem [shape: f32[16,128], index: 5, kind: output, shape index: {}]
  %s6 = sld [smem:[#allocation0]]
  $region53: #{seq2seq_transformer_forward.11} parent=0
    _
  %s8 = ssub.s32 1, %s6
  %s9 = scalar_select 0, %s8, %s6
  loop: start=0, step=1, limit=4
  $region2: #{seq2seq_transformer_forward.11} parent=0 // loop_pre_header
    _
  $region3: #{seq2seq_transformer_forward.11} parent=0 // loop_header
    %s11 = sphi 0, %s15
    %p12 = scmp.ge.s32.totalorder %s11, 4
    %s21 = sphi 0, %s23
    %s24 = sphi 0, %s21
    %s25 = sphi 0, %s24
    %s41 = sphi 0, %s25
    %s45 = sphi 0, %s45
    %s47 = sphi 0, %s45
    %s48 = sphi 0, %s47
    %s62 = sphi 0, %s48
    %s66 = sphi 0, %s66
    %s68 = sphi 0, %s66
    %s69 = sphi 0, %s68
    %s83 = sphi 0, %s69
    %s87 = sphi 0, %s87
    %s89 = sphi 0, %s87
    %s90 = sphi 0, %s89
    %s104 = sphi 0, %s90
    %s108 = sphi 0, %s108
    %s110 = sphi 0, %s108
    %s111 = sphi 0, %s110
    %s125 = sphi 0, %s111
    %s131 = sphi 0, %s133
    %s134 = sphi 0, %s131
    %s135 = sphi 0, %s134
    %s151 = sphi 0, %s135
  $region4: #{seq2seq_transformer_forward.11} parent=0 // loop_header_branch
    %14 = sbr.rel (%p12) target = $region8
  $region5: #{seq2seq_transformer_forward.11} parent=0 // loop_body
    %s16 = ssub.s32 %s11, 1
    %s17 = ssub.s32 %s11, 2
    %s18 = sadd.s32 %s11, 1
    %s19 = ssub.s32 %s11, %s18
    %p20 = scmp.eq.s32.totalorder %s19, 0
    %s22 = sadd.s32 %s21, 1
    %s23 = scalar_select %p20, %s21, %s22
    %p26 = pneg %p20
    %p27 = scmp.eq.s32.totalorder %s11, 1
    %p28 = por %p26, %p27
    %p29 = scmp.ne.s32.totalorder %s21, %s24
    %p30 = scmp.eq.s32.totalorder %s11, 0
    %p31 = por %p29, %p30
    %p32 = scmp.ne.s32.totalorder %s21, %s24
    %p33 = scmp.eq.s32.totalorder %s16, 1
    %p34 = por %p32, %p33
    %p35 = scmp.ne.s32.totalorder %s24, %s25
    %p36 = scmp.eq.s32.totalorder %s16, 0
    %p37 = por %p35, %p36
    %p38 = scmp.ne.s32.totalorder %s24, %s25
    %p39 = scmp.eq.s32.totalorder %s17, 1
    %p40 = por %p38, %p39
    %p42 = scmp.ne.s32.totalorder %s25, %s41
    %p43 = scmp.eq.s32.totalorder %s17, 0
    %p44 = por %p42, %p43
    %s46 = sadd.s32 %s45, 1
    %p49 = scmp.eq.s32.totalorder %s11, 1
    %p50 = scmp.ne.s32.totalorder %s45, %s47
    %p51 = scmp.eq.s32.totalorder %s11, 0
    %p52 = por %p50, %p51
    %p53 = scmp.ne.s32.totalorder %s45, %s47
    %p54 = scmp.eq.s32.totalorder %s16, 1
    %p55 = por %p53, %p54
    %p56 = scmp.ne.s32.totalorder %s47, %s48
    %p57 = scmp.eq.s32.totalorder %s16, 0
    %p58 = por %p56, %p57
    %p59 = scmp.ne.s32.totalorder %s47, %s48
    %p60 = scmp.eq.s32.totalorder %s17, 1
    %p61 = por %p59, %p60
    %p63 = scmp.ne.s32.totalorder %s48, %s62
    %p64 = scmp.eq.s32.totalorder %s17, 0
    %p65 = por %p63, %p64
    %s67 = sadd.s32 %s66, 1
    %p70 = scmp.eq.s32.totalorder %s11, 1
    %p71 = scmp.ne.s32.totalorder %s66, %s68
    %p72 = scmp.eq.s32.totalorder %s11, 0
    %p73 = por %p71, %p72
    %p74 = scmp.ne.s32.totalorder %s66, %s68
    %p75 = scmp.eq.s32.totalorder %s16, 1
    %p76 = por %p74, %p75
    %p77 = scmp.ne.s32.totalorder %s68, %s69
    %p78 = scmp.eq.s32.totalorder %s16, 0
    %p79 = por %p77, %p78
    %p80 = scmp.ne.s32.totalorder %s68, %s69
    %p81 = scmp.eq.s32.totalorder %s17, 1
    %p82 = por %p80, %p81
    %p84 = scmp.ne.s32.totalorder %s69, %s83
    %p85 = scmp.eq.s32.totalorder %s17, 0
    %p86 = por %p84, %p85
    %s88 = sadd.s32 %s87, 1
    %p91 = scmp.eq.s32.totalorder %s11, 1
    %p92 = scmp.ne.s32.totalorder %s87, %s89
    %p93 = scmp.eq.s32.totalorder %s11, 0
    %p94 = por %p92, %p93
    %p95 = scmp.ne.s32.totalorder %s87, %s89
    %p96 = scmp.eq.s32.totalorder %s16, 1
    %p97 = por %p95, %p96
    %p98 = scmp.ne.s32.totalorder %s89, %s90
    %p99 = scmp.eq.s32.totalorder %s16, 0
    %p100 = por %p98, %p99
    %p101 = scmp.ne.s32.totalorder %s89, %s90
    %p102 = scmp.eq.s32.totalorder %s17, 1
    %p103 = por %p101, %p102
    %p105 = scmp.ne.s32.totalorder %s90, %s104
    %p106 = scmp.eq.s32.totalorder %s17, 0
    %p107 = por %p105, %p106
    %s109 = sadd.s32 %s108, 1
    %p112 = scmp.eq.s32.totalorder %s11, 1
    %p113 = scmp.ne.s32.totalorder %s108, %s110
    %p114 = scmp.eq.s32.totalorder %s11, 0
    %p115 = por %p113, %p114
    %p116 = scmp.ne.s32.totalorder %s108, %s110
    %p117 = scmp.eq.s32.totalorder %s16, 1
    %p118 = por %p116, %p117
    %p119 = scmp.ne.s32.totalorder %s110, %s111
    %p120 = scmp.eq.s32.totalorder %s16, 0
    %p121 = por %p119, %p120
    %p122 = scmp.ne.s32.totalorder %s110, %s111
    %p123 = scmp.eq.s32.totalorder %s17, 1
    %p124 = por %p122, %p123
    %p126 = scmp.ne.s32.totalorder %s111, %s125
    %p127 = scmp.eq.s32.totalorder %s17, 0
    %p128 = por %p126, %p127
    %s129 = ssub.s32 %s11, %s18
    %p130 = scmp.eq.s32.totalorder %s129, 0
    %s132 = sadd.s32 %s131, 1
    %s133 = scalar_select %p130, %s131, %s132
    %p136 = pneg %p130
    %p137 = scmp.eq.s32.totalorder %s11, 1
    %p138 = por %p136, %p137
    %p139 = scmp.ne.s32.totalorder %s131, %s134
    %p140 = scmp.eq.s32.totalorder %s11, 0
    %p141 = por %p139, %p140
    %p142 = scmp.ne.s32.totalorder %s131, %s134
    %p143 = scmp.eq.s32.totalorder %s16, 1
    %p144 = por %p142, %p143
    %p145 = scmp.ne.s32.totalorder %s134, %s135
    %p146 = scmp.eq.s32.totalorder %s16, 0
    %p147 = por %p145, %p146
    %p148 = scmp.ne.s32.totalorder %s134, %s135
    %p149 = scmp.eq.s32.totalorder %s17, 1
    %p150 = por %p148, %p149
    %p152 = scmp.ne.s32.totalorder %s135, %s151
    %p153 = scmp.eq.s32.totalorder %s17, 0
    %p154 = por %p152, %p153
    %p155 = scmp.le.s32.totalorder 1, %s11
    %p156 = scmp.lt.s32.totalorder %s11, 3
    %p157 = pnand %p155, %p156
    %p158 = pneg %p157
    // Predicated region
    $region9: #{seq2seq_transformer_forward.11} parent=5 // pred_check
      _
    $region10: #{seq2seq_transformer_forward.11} parent=5 // pred_check_branch
      %160 = sbr.rel (%p157) target = $region12
    $region11: #{seq2seq_transformer_forward.11} parent=5 // pred_region
      %s161 = ssub.s32 %s11, 1
      // Predicated region
      $region13: #{seq2seq_transformer_forward.11} parent=11 // pred_check
        %p162 = pneg %p58
      $region14: #{seq2seq_transformer_forward.11} parent=11 // pred_check_branch
        %164 = sbr.rel (%p162) target = $region16
      $region15: #{seq2seq_transformer_forward.11} parent=11 // pred_region
        _
      $region16: #{seq2seq_transformer_forward.11} parent=11 // pred_fallthru
        _
      // Predicated region
      $region17: #{seq2seq_transformer_forward.11} parent=11 // pred_check
        %p165 = pneg %p79
      $region18: #{seq2seq_transformer_forward.11} parent=11 // pred_check_branch
        %167 = sbr.rel (%p165) target = $region20
      $region19: #{seq2seq_transformer_forward.11} parent=11 // pred_region
        _
      $region20: #{seq2seq_transformer_forward.11} parent=11 // pred_fallthru
        _
      // Predicated region
      $region21: #{seq2seq_transformer_forward.11} parent=11 // pred_check
        %p168 = pneg %p100
      $region22: #{seq2seq_transformer_forward.11} parent=11 // pred_check_branch
        %170 = sbr.rel (%p168) target = $region24
      $region23: #{seq2seq_transformer_forward.11} parent=11 // pred_region
        _
      $region24: #{seq2seq_transformer_forward.11} parent=11 // pred_fallthru
        _
      // Predicated region
      $region25: #{seq2seq_transformer_forward.11} parent=11 // pred_check
        %p171 = pneg %p121
      $region26: #{seq2seq_transformer_forward.11} parent=11 // pred_check_branch
        %173 = sbr.rel (%p171) target = $region28
      $region27: #{seq2seq_transformer_forward.11} parent=11 // pred_region
        _
      $region28: #{seq2seq_transformer_forward.11} parent=11 // pred_fallthru
        _
    $region12: #{seq2seq_transformer_forward.11} parent=5 // pred_fallthru
      _
    %p174 = scmp.lt.s32.totalorder %s11, 2
    // Predicated region
    $region29: #{seq2seq_transformer_forward.11} parent=5 // pred_check
      %p175 = pneg %p174
    $region30: #{seq2seq_transformer_forward.11} parent=5 // pred_check_branch
      %177 = sbr.rel (%p175) target = $region32
    $region31: #{seq2seq_transformer_forward.11} parent=5 // pred_region
      // Predicated region
      $region33: #{seq2seq_transformer_forward.11} parent=31 // pred_check
        %p178 = pneg %p31
      $region34: #{seq2seq_transformer_forward.11} parent=31 // pred_check_branch
        %180 = sbr.rel (%p178) target = $region36
      $region35: #{seq2seq_transformer_forward.11} parent=31 // pred_region
        %p181 = scmp.lt.s32.totalorder %s11, 1
        %s182 = scalar_select %p181, %s11, 1
        %s183 = smul.addr %s182, 8
        %s184 = scalar_lea.vmem %s0, %s183
      $region36: #{seq2seq_transformer_forward.11} parent=31 // pred_fallthru
        _
    $region32: #{seq2seq_transformer_forward.11} parent=5 // pred_fallthru
      _
    %p185 = scmp.le.s32.totalorder 1, %s11
    %p186 = scmp.lt.s32.totalorder %s11, 3
    %p187 = pnand %p185, %p186
    %p188 = pneg %p187
    // Predicated region
    $region37: #{seq2seq_transformer_forward.11} parent=5 // pred_check
      _
    $region38: #{seq2seq_transformer_forward.11} parent=5 // pred_check_branch
      %190 = sbr.rel (%p187) target = $region40
    $region39: #{seq2seq_transformer_forward.11} parent=5 // pred_region
      %s191 = ssub.s32 %s11, 1
      %p192 = scmp.lt.s32.totalorder %s16, 1
      %s193 = scalar_select %p192, %s16, 1
      %s194 = smul.addr %s193, 8
      %s195 = scalar_lea.vmem %s0, %s194
      %p196 = pneg %p37
      %p197 = pneg %p34
      %p198 = pneg %p58
      %p199 = pneg %p55
      %p200 = pneg %p79
      %p201 = pneg %p76
      %p202 = pneg %p100
      %p203 = pneg %p97
      %p204 = pneg %p121
      %p205 = pneg %p118
      %p206 = pneg %p147
      %p207 = pneg %p144
      %p208 = scmp.lt.s32.totalorder %s16, 1
      %s209 = scalar_select %p208, %s16, 1
      %s210 = smul.addr %s209, 8
      %s211 = scalar_lea.vmem %s5, %s210
      %p212 = scmp.lt.s32.totalorder %s16, 1
      %s213 = scalar_select %p212, %s16, 1
      %s214 = smul.addr %s213, 8
      %s215 = scalar_lea.vmem %s0, %s214
      %p216 = scmp.lt.s32.totalorder %s16, 1
      %s217 = scalar_select %p216, %s16, 1
      %s218 = smul.addr %s217, 8
      %s219 = scalar_lea.vmem %s5, %s218
      %v221 = vld [vmem:[%s215] sm:$0xff]
      %v222 = vld [vmem:[%s1] sm:$0x1]
      %v223 = vld [vmem:[%s2] sm:$0x1]
      %vm224 = vcmask 261120
      %v225 = vsel %vm224, %v221, 0.0
      %226 = vadd.xlane.f32.xlu0 %v225
      %v227 = vpop.xlane.xlu0 %226
      %v228 = vrcp.pop 32.0
      %v229 = vmul.f32 %v227, %v228
      %v230 = vsub.f32 %v221, %v229
      %v231 = vmul.f32 %v230, %v230
      %v232 = vsel %vm224, %v231, 0.0
      %233 = vadd.xlane.f32.xlu0 %v232
      %v234 = vpop.xlane.xlu0 %233
      %v235 = vmul.f32 %v234, %v228
      %v236 = vadd.f32 %v235, 1e-05
      %v237 = vrsqrt.pop %v236
      %v238 = vmul.f32 %v230, %v237
      %v240 = vlaneseq
      %v241 = vshrl.u32 %v240, 7
      %v242 = vsub.s32 0, %v241
      %v243 = vrot.slane %v222, %v242
      %v245 = vmul.f32 %v238, %v243
      %v247 = vlaneseq
      %v248 = vshrl.u32 %v247, 7
      %v249 = vsub.s32 0, %v248
      %v250 = vrot.slane %v223, %v249
      %v252 = vadd.f32 %v245, %v250
      %v253 = vld [vmem:[%s3] sm:$0xff]
      %v254 = vld [vmem:[%s3 + $0x8] sm:$0xff]
      %v255 = vld [vmem:[%s3 + $0x10] sm:$0xff]
      %v256 = vld [vmem:[%s3 + $0x18] sm:$0xff]
      %v257 = vpack.c.bf16 %v252, %v252
      %v258 = vpack.c.bf16 %v254, %v253
      %v259 = vpack.c.bf16 %v256, %v255
      %v260 = vld [vmem:[%s4] sm:$0x1]
      %v262 = vlaneseq
      %v263 = vshrl.u32 %v262, 7
      %v264 = vsub.s32 0, %v263
      %v265 = vrot.slane %v260, %v264
      %v268 = vsel %vm224, %v257, 0
      %270 = vmatprep.subr.bf16.mxu0 0
      %271 = vmatpush1.bf16.msra.mxu0 %v258
      %272 = vmatprep.subr.bf16.mxu0 0
      %273 = vmatpush1.bf16.msra.mxu0 %v259
      %274 = vmatprep.subr.bf16.mxu0 0
      %275 = vmatpush1.bf16.msra.mxu0 0
      %276 = vmatprep.subr.bf16.mxu0 0
      %277 = vmatpush1.bf16.msra.mxu0 0
      %278 = vmatprep.subr.bf16.mxu0 0
      %279 = vmatpush1.bf16.msra.mxu0 0
      %280 = vmatprep.subr.bf16.mxu0 0
      %281 = vmatpush1.bf16.msra.mxu0 0
      %282 = vmatprep.subr.bf16.mxu0 0
      %283 = vmatpush1.bf16.msra.mxu0 0
      %284 = vmatprep.subr.bf16.mxu0 0
      %285 = vmatpush1.bf16.msra.mxu0 0
      %286 = vmatprep.subr.bf16.mxu0 0
      %287 = vmatpush1.bf16.msra.mxu0 0
      %288 = vmatprep.subr.bf16.mxu0 0
      %289 = vmatpush1.bf16.msra.mxu0 0
      %290 = vmatprep.subr.bf16.mxu0 0
      %291 = vmatpush1.bf16.msra.mxu0 0
      %292 = vmatprep.subr.bf16.mxu0 0
      %293 = vmatpush1.bf16.msra.mxu0 0
      %294 = vmatprep.subr.bf16.mxu0 0
      %295 = vmatpush1.bf16.msra.mxu0 0
      %296 = vmatprep.subr.bf16.mxu0 0
      %297 = vmatpush1.bf16.msra.mxu0 0
      %298 = vmatprep.subr.bf16.mxu0 0
      %299 = vmatpush1.bf16.msra.mxu0 0
      %300 = vmatprep.subr.bf16.mxu0 0
      %301 = vmatpush1.bf16.msra.mxu0 0
      %302 = vmatprep.mubr.bf16.mxu0 0
      %303 = vmatmul.mubr.bf16.gmra.mrb[0].mxu0 %v268
      %v304 = vpop.f32.mrb[0].mxu0
      %v305 = vadd.f32 %v265, %v304
      %v306 = vpop.f32.mrb[0].mxu0
      %v307 = vpop.f32.mrb[0].mxu0
      %v308 = vpop.f32.mrb[0].mxu0
      %309 = vdwg.mxu0
      %310 = vst [vmem:[%s219] sm:$0xff] %v305
      %p311 = scmp.lt.s32.totalorder %s16, 1
      %s312 = scalar_select %p311, %s16, 1
      %s313 = smul.addr %s312, 8
      %s314 = scalar_lea.vmem %s5, %s313
      // Predicated region
      $region41: #{seq2seq_transformer_forward.11} parent=39 // pred_check
        %p315 = pneg %p144
      $region42: #{seq2seq_transformer_forward.11} parent=39 // pred_check_branch
        %317 = sbr.rel (%p315) target = $region44
      $region43: #{seq2seq_transformer_forward.11} parent=39 // pred_region
        _
      $region44: #{seq2seq_transformer_forward.11} parent=39 // pred_fallthru
        _
    $region40: #{seq2seq_transformer_forward.11} parent=5 // pred_fallthru
      _
    %p318 = scmp.le.s32.totalorder 2, %s11
    // Predicated region
    $region45: #{seq2seq_transformer_forward.11} parent=5 // pred_check
      %p319 = pneg %p318
    $region46: #{seq2seq_transformer_forward.11} parent=5 // pred_check_branch
      %321 = sbr.rel (%p319) target = $region48
    $region47: #{seq2seq_transformer_forward.11} parent=5 // pred_region
      %s322 = ssub.s32 %s11, 2
      // Predicated region
      $region49: #{seq2seq_transformer_forward.11} parent=47 // pred_check
        %p323 = pneg %p150
      $region50: #{seq2seq_transformer_forward.11} parent=47 // pred_check_branch
        %325 = sbr.rel (%p323) target = $region52
      $region51: #{seq2seq_transformer_forward.11} parent=47 // pred_region
        %p326 = scmp.lt.s32.totalorder %s17, 1
        %s327 = scalar_select %p326, %s17, 1
        %s328 = smul.addr %s327, 8
        %s329 = scalar_lea.vmem %s5, %s328
      $region52: #{seq2seq_transformer_forward.11} parent=47 // pred_fallthru
        _
    $region48: #{seq2seq_transformer_forward.11} parent=5 // pred_fallthru
      _
  $region6: #{seq2seq_transformer_forward.11} parent=0 // loop_footer
    %s15 = sadd.s32 1, %s11
  $region7: #{seq2seq_transformer_forward.11} parent=0 // loop_footer_branch
    %10 = sbr.rel target = $region3
  $region8: #{seq2seq_transformer_forward.11} parent=0 // loop_exit
    _

// kernel: seq2seq_transformer_forward.6
$region0: #{seq2seq_transformer_forward.6}
  #allocation0 [shape = 'u32[]', space=smem, size = 0x4, offset = 0x4, fixed_abs, tag = 'smem constant byte address 0x4 - core index']
  #allocation1 [shape = 'u32[144,128]{1,0:T(1,128)}', space=vmem, size = 0x12000, scoped, tag = 'internal scratch']
  #allocation2 [shape = 'f32[8,32]{1,0:T(8,128)}', space=vmem, size = 0x1000, scoped, tag = 'scratch operand']
  %s0 = inlined_call_operand.vmem [shape: f32[16,32], index: 0, kind: input, shape index: {}]
  %s1 = inlined_call_operand.vmem [shape: f32[2,8,8], index: 1, kind: input, shape index: {}]
  %s2 = inlined_call_operand.vmem [shape: f32[32,32], index: 2, kind: input, shape index: {}]
  %s3 = inlined_call_operand.vmem [shape: f32[32,64], index: 3, kind: input, shape index: {}]
  %s4 = inlined_call_operand.vmem [shape: f32[32,32], index: 4, kind: input, shape index: {}]
  %s5 = inlined_call_operand.vmem [shape: f32[1,32], index: 5, kind: input, shape index: {}]
  %s6 = inlined_call_operand.vmem [shape: f32[1,64], index: 6, kind: input, shape index: {}]
  %s7 = inlined_call_operand.vmem [shape: f32[1,32], index: 7, kind: input, shape index: {}]
  %s8 = inlined_call_operand.vmem [shape: f32[1,32], index: 8, kind: input, shape index: {}]
  %s9 = inlined_call_operand.vmem [shape: f32[1,32], index: 9, kind: input, shape index: {}]
  %s10 = inlined_call_operand.vmem [shape: f32[32,64], index: 10, kind: input, shape index: {}]
  %s11 = inlined_call_operand.vmem [shape: f32[1,64], index: 11, kind: input, shape index: {}]
  %s12 = inlined_call_operand.vmem [shape: f32[64,32], index: 12, kind: input, shape index: {}]
  %s13 = inlined_call_operand.vmem [shape: f32[1,32], index: 13, kind: input, shape index: {}]
  %s14 = inlined_call_operand.vmem [shape: f32[1,32], index: 14, kind: input, shape index: {}]
  %s15 = inlined_call_operand.vmem [shape: f32[1,32], index: 15, kind: input, shape index: {}]
  %s16 = inlined_call_operand.vmem [shape: f32[16,32], index: 16, kind: output, shape index: {}]
  %s17 = sld [smem:[#allocation0]]
  $region97: #{seq2seq_transformer_forward.6} parent=0
    _
  %s19 = ssub.s32 1, %s17
  %s20 = scalar_select 0, %s19, %s17
  loop: start=0, step=1, limit=4
  $region2: #{seq2seq_transformer_forward.6} parent=0 // loop_pre_header
    _
  $region3: #{seq2seq_transformer_forward.6} parent=0 // loop_header
    %s22 = sphi 0, %s26
    %p23 = scmp.ge.s32.totalorder %s22, 4
    %s32 = sphi 0, %s34
    %s35 = sphi 0, %s32
    %s36 = sphi 0, %s35
    %s52 = sphi 0, %s36
    %s58 = sphi 0, %s60
    %s61 = sphi 0, %s58
    %s62 = sphi 0, %s61
    %s78 = sphi 0, %s62
    %s82 = sphi 0, %s82
    %s84 = sphi 0, %s82
    %s85 = sphi 0, %s84
    %s99 = sphi 0, %s85
    %s103 = sphi 0, %s103
    %s105 = sphi 0, %s103
    %s106 = sphi 0, %s105
    %s120 = sphi 0, %s106
    %s124 = sphi 0, %s124
    %s126 = sphi 0, %s124
    %s127 = sphi 0, %s126
    %s141 = sphi 0, %s127
    %s145 = sphi 0, %s145
    %s147 = sphi 0, %s145
    %s148 = sphi 0, %s147
    %s162 = sphi 0, %s148
    %s166 = sphi 0, %s166
    %s168 = sphi 0, %s166
    %s169 = sphi 0, %s168
    %s183 = sphi 0, %s169
    %s187 = sphi 0, %s187
    %s189 = sphi 0, %s187
    %s190 = sphi 0, %s189
    %s204 = sphi 0, %s190
    %s208 = sphi 0, %s208
    %s210 = sphi 0, %s208
    %s211 = sphi 0, %s210
    %s225 = sphi 0, %s211
    %s229 = sphi 0, %s229
    %s231 = sphi 0, %s229
    %s232 = sphi 0, %s231
    %s246 = sphi 0, %s232
    %s250 = sphi 0, %s250
    %s252 = sphi 0, %s250
    %s253 = sphi 0, %s252
    %s267 = sphi 0, %s253
    %s271 = sphi 0, %s271
    %s273 = sphi 0, %s271
    %s274 = sphi 0, %s273
    %s288 = sphi 0, %s274
    %s292 = sphi 0, %s292
    %s294 = sphi 0, %s292
    %s295 = sphi 0, %s294
    %s309 = sphi 0, %s295
    %s313 = sphi 0, %s313
    %s315 = sphi 0, %s313
    %s316 = sphi 0, %s315
    %s330 = sphi 0, %s316
    %s334 = sphi 0, %s334
    %s336 = sphi 0, %s334
    %s337 = sphi 0, %s336
    %s351 = sphi 0, %s337
    %s355 = sphi 0, %s355
    %s357 = sphi 0, %s355
    %s358 = sphi 0, %s357
    %s372 = sphi 0, %s358
    %s378 = sphi 0, %s380
    %s381 = sphi 0, %s378
    %s382 = sphi 0, %s381
    %s398 = sphi 0, %s382
  $region4: #{seq2seq_transformer_forward.6} parent=0 // loop_header_branch
    %25 = sbr.rel (%p23) target = $region8
  $region5: #{seq2seq_transformer_forward.6} parent=0 // loop_body
    %s27 = ssub.s32 %s22, 1
    %s28 = ssub.s32 %s22, 2
    %s29 = sadd.s32 %s22, 1
    %s30 = ssub.s32 %s22, %s29
    %p31 = scmp.eq.s32.totalorder %s30, 0
    %s33 = sadd.s32 %s32, 1
    %s34 = scalar_select %p31, %s32, %s33
    %p37 = pneg %p31
    %p38 = scmp.eq.s32.totalorder %s22, 1
    %p39 = por %p37, %p38
    %p40 = scmp.ne.s32.totalorder %s32, %s35
    %p41 = scmp.eq.s32.totalorder %s22, 0
    %p42 = por %p40, %p41
    %p43 = scmp.ne.s32.totalorder %s32, %s35
    %p44 = scmp.eq.s32.totalorder %s27, 1
    %p45 = por %p43, %p44
    %p46 = scmp.ne.s32.totalorder %s35, %s36
    %p47 = scmp.eq.s32.totalorder %s27, 0
    %p48 = por %p46, %p47
    %p49 = scmp.ne.s32.totalorder %s35, %s36
    %p50 = scmp.eq.s32.totalorder %s28, 1
    %p51 = por %p49, %p50
    %p53 = scmp.ne.s32.totalorder %s36, %s52
    %p54 = scmp.eq.s32.totalorder %s28, 0
    %p55 = por %p53, %p54
    %s56 = ssub.s32 %s22, %s29
    %p57 = scmp.eq.s32.totalorder %s56, 0
    %s59 = sadd.s32 %s58, 1
    %s60 = scalar_select %p57, %s58, %s59
    %p63 = pneg %p57
    %p64 = scmp.eq.s32.totalorder %s22, 1
    %p65 = por %p63, %p64
    %p66 = scmp.ne.s32.totalorder %s58, %s61
    %p67 = scmp.eq.s32.totalorder %s22, 0
    %p68 = por %p66, %p67
    %p69 = scmp.ne.s32.totalorder %s58, %s61
    %p70 = scmp.eq.s32.totalorder %s27, 1
    %p71 = por %p69, %p70
    %p72 = scmp.ne.s32.totalorder %s61, %s62
    %p73 = scmp.eq.s32.totalorder %s27, 0
    %p74 = por %p72, %p73
    %p75 = scmp.ne.s32.totalorder %s61, %s62
    %p76 = scmp.eq.s32.totalorder %s28, 1
    %p77 = por %p75, %p76
    %p79 = scmp.ne.s32.totalorder %s62, %s78
    %p80 = scmp.eq.s32.totalorder %s28, 0
    %p81 = por %p79, %p80
    %s83 = sadd.s32 %s82, 1
    %p86 = scmp.eq.s32.totalorder %s22, 1
    %p87 = scmp.ne.s32.totalorder %s82, %s84
    %p88 = scmp.eq.s32.totalorder %s22, 0
    %p89 = por %p87, %p88
    %p90 = scmp.ne.s32.totalorder %s82, %s84
    %p91 = scmp.eq.s32.totalorder %s27, 1
    %p92 = por %p90, %p91
    %p93 = scmp.ne.s32.totalorder %s84, %s85
    %p94 = scmp.eq.s32.totalorder %s27, 0
    %p95 = por %p93, %p94
    %p96 = scmp.ne.s32.totalorder %s84, %s85
    %p97 = scmp.eq.s32.totalorder %s28, 1
    %p98 = por %p96, %p97
    %p100 = scmp.ne.s32.totalorder %s85, %s99
    %p101 = scmp.eq.s32.totalorder %s28, 0
    %p102 = por %p100, %p101
    %s104 = sadd.s32 %s103, 1
    %p107 = scmp.eq.s32.totalorder %s22, 1
    %p108 = scmp.ne.s32.totalorder %s103, %s105
    %p109 = scmp.eq.s32.totalorder %s22, 0
    %p110 = por %p108, %p109
    %p111 = scmp.ne.s32.totalorder %s103, %s105
    %p112 = scmp.eq.s32.totalorder %s27, 1
    %p113 = por %p111, %p112
    %p114 = scmp.ne.s32.totalorder %s105, %s106
    %p115 = scmp.eq.s32.totalorder %s27, 0
    %p116 = por %p114, %p115
    %p117 = scmp.ne.s32.totalorder %s105, %s106
    %p118 = scmp.eq.s32.totalorder %s28, 1
    %p119 = por %p117, %p118
    %p121 = scmp.ne.s32.totalorder %s106, %s120
    %p122 = scmp.eq.s32.totalorder %s28, 0
    %p123 = por %p121, %p122
    %s125 = sadd.s32 %s124, 1
    %p128 = scmp.eq.s32.totalorder %s22, 1
    %p129 = scmp.ne.s32.totalorder %s124, %s126
    %p130 = scmp.eq.s32.totalorder %s22, 0
    %p131 = por %p129, %p130
    %p132 = scmp.ne.s32.totalorder %s124, %s126
    %p133 = scmp.eq.s32.totalorder %s27, 1
    %p134 = por %p132, %p133
    %p135 = scmp.ne.s32.totalorder %s126, %s127
    %p136 = scmp.eq.s32.totalorder %s27, 0
    %p137 = por %p135, %p136
    %p138 = scmp.ne.s32.totalorder %s126, %s127
    %p139 = scmp.eq.s32.totalorder %s28, 1
    %p140 = por %p138, %p139
    %p142 = scmp.ne.s32.totalorder %s127, %s141
    %p143 = scmp.eq.s32.totalorder %s28, 0
    %p144 = por %p142, %p143
    %s146 = sadd.s32 %s145, 1
    %p149 = scmp.eq.s32.totalorder %s22, 1
    %p150 = scmp.ne.s32.totalorder %s145, %s147
    %p151 = scmp.eq.s32.totalorder %s22, 0
    %p152 = por %p150, %p151
    %p153 = scmp.ne.s32.totalorder %s145, %s147
    %p154 = scmp.eq.s32.totalorder %s27, 1
    %p155 = por %p153, %p154
    %p156 = scmp.ne.s32.totalorder %s147, %s148
    %p157 = scmp.eq.s32.totalorder %s27, 0
    %p158 = por %p156, %p157
    %p159 = scmp.ne.s32.totalorder %s147, %s148
    %p160 = scmp.eq.s32.totalorder %s28, 1
    %p161 = por %p159, %p160
    %p163 = scmp.ne.s32.totalorder %s148, %s162
    %p164 = scmp.eq.s32.totalorder %s28, 0
    %p165 = por %p163, %p164
    %s167 = sadd.s32 %s166, 1
    %p170 = scmp.eq.s32.totalorder %s22, 1
    %p171 = scmp.ne.s32.totalorder %s166, %s168
    %p172 = scmp.eq.s32.totalorder %s22, 0
    %p173 = por %p171, %p172
    %p174 = scmp.ne.s32.totalorder %s166, %s168
    %p175 = scmp.eq.s32.totalorder %s27, 1
    %p176 = por %p174, %p175
    %p177 = scmp.ne.s32.totalorder %s168, %s169
    %p178 = scmp.eq.s32.totalorder %s27, 0
    %p179 = por %p177, %p178
    %p180 = scmp.ne.s32.totalorder %s168, %s169
    %p181 = scmp.eq.s32.totalorder %s28, 1
    %p182 = por %p180, %p181
    %p184 = scmp.ne.s32.totalorder %s169, %s183
    %p185 = scmp.eq.s32.totalorder %s28, 0
    %p186 = por %p184, %p185
    %s188 = sadd.s32 %s187, 1
    %p191 = scmp.eq.s32.totalorder %s22, 1
    %p192 = scmp.ne.s32.totalorder %s187, %s189
    %p193 = scmp.eq.s32.totalorder %s22, 0
    %p194 = por %p192, %p193
    %p195 = scmp.ne.s32.totalorder %s187, %s189
    %p196 = scmp.eq.s32.totalorder %s27, 1
    %p197 = por %p195, %p196
    %p198 = scmp.ne.s32.totalorder %s189, %s190
    %p199 = scmp.eq.s32.totalorder %s27, 0
    %p200 = por %p198, %p199
    %p201 = scmp.ne.s32.totalorder %s189, %s190
    %p202 = scmp.eq.s32.totalorder %s28, 1
    %p203 = por %p201, %p202
    %p205 = scmp.ne.s32.totalorder %s190, %s204
    %p206 = scmp.eq.s32.totalorder %s28, 0
    %p207 = por %p205, %p206
    %s209 = sadd.s32 %s208, 1
    %p212 = scmp.eq.s32.totalorder %s22, 1
    %p213 = scmp.ne.s32.totalorder %s208, %s210
    %p214 = scmp.eq.s32.totalorder %s22, 0
    %p215 = por %p213, %p214
    %p216 = scmp.ne.s32.totalorder %s208, %s210
    %p217 = scmp.eq.s32.totalorder %s27, 1
    %p218 = por %p216, %p217
    %p219 = scmp.ne.s32.totalorder %s210, %s211
    %p220 = scmp.eq.s32.totalorder %s27, 0
    %p221 = por %p219, %p220
    %p222 = scmp.ne.s32.totalorder %s210, %s211
    %p223 = scmp.eq.s32.totalorder %s28, 1
    %p224 = por %p222, %p223
    %p226 = scmp.ne.s32.totalorder %s211, %s225
    %p227 = scmp.eq.s32.totalorder %s28, 0
    %p228 = por %p226, %p227
    %s230 = sadd.s32 %s229, 1
    %p233 = scmp.eq.s32.totalorder %s22, 1
    %p234 = scmp.ne.s32.totalorder %s229, %s231
    %p235 = scmp.eq.s32.totalorder %s22, 0
    %p236 = por %p234, %p235
    %p237 = scmp.ne.s32.totalorder %s229, %s231
    %p238 = scmp.eq.s32.totalorder %s27, 1
    %p239 = por %p237, %p238
    %p240 = scmp.ne.s32.totalorder %s231, %s232
    %p241 = scmp.eq.s32.totalorder %s27, 0
    %p242 = por %p240, %p241
    %p243 = scmp.ne.s32.totalorder %s231, %s232
    %p244 = scmp.eq.s32.totalorder %s28, 1
    %p245 = por %p243, %p244
    %p247 = scmp.ne.s32.totalorder %s232, %s246
    %p248 = scmp.eq.s32.totalorder %s28, 0
    %p249 = por %p247, %p248
    %s251 = sadd.s32 %s250, 1
    %p254 = scmp.eq.s32.totalorder %s22, 1
    %p255 = scmp.ne.s32.totalorder %s250, %s252
    %p256 = scmp.eq.s32.totalorder %s22, 0
    %p257 = por %p255, %p256
    %p258 = scmp.ne.s32.totalorder %s250, %s252
    %p259 = scmp.eq.s32.totalorder %s27, 1
    %p260 = por %p258, %p259
    %p261 = scmp.ne.s32.totalorder %s252, %s253
    %p262 = scmp.eq.s32.totalorder %s27, 0
    %p263 = por %p261, %p262
    %p264 = scmp.ne.s32.totalorder %s252, %s253
    %p265 = scmp.eq.s32.totalorder %s28, 1
    %p266 = por %p264, %p265
    %p268 = scmp.ne.s32.totalorder %s253, %s267
    %p269 = scmp.eq.s32.totalorder %s28, 0
    %p270 = por %p268, %p269
    %s272 = sadd.s32 %s271, 1
    %p275 = scmp.eq.s32.totalorder %s22, 1
    %p276 = scmp.ne.s32.totalorder %s271, %s273
    %p277 = scmp.eq.s32.totalorder %s22, 0
    %p278 = por %p276, %p277
    %p279 = scmp.ne.s32.totalorder %s271, %s273
    %p280 = scmp.eq.s32.totalorder %s27, 1
    %p281 = por %p279, %p280
    %p282 = scmp.ne.s32.totalorder %s273, %s274
    %p283 = scmp.eq.s32.totalorder %s27, 0
    %p284 = por %p282, %p283
    %p285 = scmp.ne.s32.totalorder %s273, %s274
    %p286 = scmp.eq.s32.totalorder %s28, 1
    %p287 = por %p285, %p286
    %p289 = scmp.ne.s32.totalorder %s274, %s288
    %p290 = scmp.eq.s32.totalorder %s28, 0
    %p291 = por %p289, %p290
    %s293 = sadd.s32 %s292, 1
    %p296 = scmp.eq.s32.totalorder %s22, 1
    %p297 = scmp.ne.s32.totalorder %s292, %s294
    %p298 = scmp.eq.s32.totalorder %s22, 0
    %p299 = por %p297, %p298
    %p300 = scmp.ne.s32.totalorder %s292, %s294
    %p301 = scmp.eq.s32.totalorder %s27, 1
    %p302 = por %p300, %p301
    %p303 = scmp.ne.s32.totalorder %s294, %s295
    %p304 = scmp.eq.s32.totalorder %s27, 0
    %p305 = por %p303, %p304
    %p306 = scmp.ne.s32.totalorder %s294, %s295
    %p307 = scmp.eq.s32.totalorder %s28, 1
    %p308 = por %p306, %p307
    %p310 = scmp.ne.s32.totalorder %s295, %s309
    %p311 = scmp.eq.s32.totalorder %s28, 0
    %p312 = por %p310, %p311
    %s314 = sadd.s32 %s313, 1
    %p317 = scmp.eq.s32.totalorder %s22, 1
    %p318 = scmp.ne.s32.totalorder %s313, %s315
    %p319 = scmp.eq.s32.totalorder %s22, 0
    %p320 = por %p318, %p319
    %p321 = scmp.ne.s32.totalorder %s313, %s315
    %p322 = scmp.eq.s32.totalorder %s27, 1
    %p323 = por %p321, %p322
    %p324 = scmp.ne.s32.totalorder %s315, %s316
    %p325 = scmp.eq.s32.totalorder %s27, 0
    %p326 = por %p324, %p325
    %p327 = scmp.ne.s32.totalorder %s315, %s316
    %p328 = scmp.eq.s32.totalorder %s28, 1
    %p329 = por %p327, %p328
    %p331 = scmp.ne.s32.totalorder %s316, %s330
    %p332 = scmp.eq.s32.totalorder %s28, 0
    %p333 = por %p331, %p332
    %s335 = sadd.s32 %s334, 1
    %p338 = scmp.eq.s32.totalorder %s22, 1
    %p339 = scmp.ne.s32.totalorder %s334, %s336
    %p340 = scmp.eq.s32.totalorder %s22, 0
    %p341 = por %p339, %p340
    %p342 = scmp.ne.s32.totalorder %s334, %s336
    %p343 = scmp.eq.s32.totalorder %s27, 1
    %p344 = por %p342, %p343
    %p345 = scmp.ne.s32.totalorder %s336, %s337
    %p346 = scmp.eq.s32.totalorder %s27, 0
    %p347 = por %p345, %p346
    %p348 = scmp.ne.s32.totalorder %s336, %s337
    %p349 = scmp.eq.s32.totalorder %s28, 1
    %p350 = por %p348, %p349
    %p352 = scmp.ne.s32.totalorder %s337, %s351
    %p353 = scmp.eq.s32.totalorder %s28, 0
    %p354 = por %p352, %p353
    %s356 = sadd.s32 %s355, 1
    %p359 = scmp.eq.s32.totalorder %s22, 1
    %p360 = scmp.ne.s32.totalorder %s355, %s357
    %p361 = scmp.eq.s32.totalorder %s22, 0
    %p362 = por %p360, %p361
    %p363 = scmp.ne.s32.totalorder %s355, %s357
    %p364 = scmp.eq.s32.totalorder %s27, 1
    %p365 = por %p363, %p364
    %p366 = scmp.ne.s32.totalorder %s357, %s358
    %p367 = scmp.eq.s32.totalorder %s27, 0
    %p368 = por %p366, %p367
    %p369 = scmp.ne.s32.totalorder %s357, %s358
    %p370 = scmp.eq.s32.totalorder %s28, 1
    %p371 = por %p369, %p370
    %p373 = scmp.ne.s32.totalorder %s358, %s372
    %p374 = scmp.eq.s32.totalorder %s28, 0
    %p375 = por %p373, %p374
    %s376 = ssub.s32 %s22, %s29
    %p377 = scmp.eq.s32.totalorder %s376, 0
    %s379 = sadd.s32 %s378, 1
    %s380 = scalar_select %p377, %s378, %s379
    %p383 = pneg %p377
    %p384 = scmp.eq.s32.totalorder %s22, 1
    %p385 = por %p383, %p384
    %p386 = scmp.ne.s32.totalorder %s378, %s381
    %p387 = scmp.eq.s32.totalorder %s22, 0
    %p388 = por %p386, %p387
    %p389 = scmp.ne.s32.totalorder %s378, %s381
    %p390 = scmp.eq.s32.totalorder %s27, 1
    %p391 = por %p389, %p390
    %p392 = scmp.ne.s32.totalorder %s381, %s382
    %p393 = scmp.eq.s32.totalorder %s27, 0
    %p394 = por %p392, %p393
    %p395 = scmp.ne.s32.totalorder %s381, %s382
    %p396 = scmp.eq.s32.totalorder %s28, 1
    %p397 = por %p395, %p396
    %p399 = scmp.ne.s32.totalorder %s382, %s398
    %p400 = scmp.eq.s32.totalorder %s28, 0
    %p401 = por %p399, %p400
    %p402 = scmp.le.s32.totalorder 1, %s22
    %p403 = scmp.lt.s32.totalorder %s22, 3
    %p404 = pnand %p402, %p403
    %p405 = pneg %p404
    // Predicated region
    $region9: #{seq2seq_transformer_forward.6} parent=5 // pred_check
      _
    $region10: #{seq2seq_transformer_forward.6} parent=5 // pred_check_branch
      %407 = sbr.rel (%p404) target = $region12
    $region11: #{seq2seq_transformer_forward.6} parent=5 // pred_region
      %s408 = ssub.s32 %s22, 1
      // Predicated region
      $region13: #{seq2seq_transformer_forward.6} parent=11 // pred_check
        %p409 = pneg %p95
      $region14: #{seq2seq_transformer_forward.6} parent=11 // pred_check_branch
        %411 = sbr.rel (%p409) target = $region16
      $region15: #{seq2seq_transformer_forward.6} parent=11 // pred_region
        _
      $region16: #{seq2seq_transformer_forward.6} parent=11 // pred_fallthru
        _
      // Predicated region
      $region17: #{seq2seq_transformer_forward.6} parent=11 // pred_check
        %p412 = pneg %p116
      $region18: #{seq2seq_transformer_forward.6} parent=11 // pred_check_branch
        %414 = sbr.rel (%p412) target = $region20
      $region19: #{seq2seq_transformer_forward.6} parent=11 // pred_region
        _
      $region20: #{seq2seq_transformer_forward.6} parent=11 // pred_fallthru
        _
      // Predicated region
      $region21: #{seq2seq_transformer_forward.6} parent=11 // pred_check
        %p415 = pneg %p137
      $region22: #{seq2seq_transformer_forward.6} parent=11 // pred_check_branch
        %417 = sbr.rel (%p415) target = $region24
      $region23: #{seq2seq_transformer_forward.6} parent=11 // pred_region
        _
      $region24: #{seq2seq_transformer_forward.6} parent=11 // pred_fallthru
        _
      // Predicated region
      $region25: #{seq2seq_transformer_forward.6} parent=11 // pred_check
        %p418 = pneg %p158
      $region26: #{seq2seq_transformer_forward.6} parent=11 // pred_check_branch
        %420 = sbr.rel (%p418) target = $region28
      $region27: #{seq2seq_transformer_forward.6} parent=11 // pred_region
        _
      $region28: #{seq2seq_transformer_forward.6} parent=11 // pred_fallthru
        _
      // Predicated region
      $region29: #{seq2seq_transformer_forward.6} parent=11 // pred_check
        %p421 = pneg %p179
      $region30: #{seq2seq_transformer_forward.6} parent=11 // pred_check_branch
        %423 = sbr.rel (%p421) target = $region32
      $region31: #{seq2seq_transformer_forward.6} parent=11 // pred_region
        _
      $region32: #{seq2seq_transformer_forward.6} parent=11 // pred_fallthru
        _
      // Predicated region
      $region33: #{seq2seq_transformer_forward.6} parent=11 // pred_check
        %p424 = pneg %p200
      $region34: #{seq2seq_transformer_forward.6} parent=11 // pred_check_branch
        %426 = sbr.rel (%p424) target = $region36
      $region35: #{seq2seq_transformer_forward.6} parent=11 // pred_region
        _
      $region36: #{seq2seq_transformer_forward.6} parent=11 // pred_fallthru
        _
      // Predicated region
      $region37: #{seq2seq_transformer_forward.6} parent=11 // pred_check
        %p427 = pneg %p221
      $region38: #{seq2seq_transformer_forward.6} parent=11 // pred_check_branch
        %429 = sbr.rel (%p427) target = $region40
      $region39: #{seq2seq_transformer_forward.6} parent=11 // pred_region
        _
      $region40: #{seq2seq_transformer_forward.6} parent=11 // pred_fallthru
        _
      // Predicated region
      $region41: #{seq2seq_transformer_forward.6} parent=11 // pred_check
        %p430 = pneg %p242
      $region42: #{seq2seq_transformer_forward.6} parent=11 // pred_check_branch
        %432 = sbr.rel (%p430) target = $region44
      $region43: #{seq2seq_transformer_forward.6} parent=11 // pred_region
        _
      $region44: #{seq2seq_transformer_forward.6} parent=11 // pred_fallthru
        _
      // Predicated region
      $region45: #{seq2seq_transformer_forward.6} parent=11 // pred_check
        %p433 = pneg %p263
      $region46: #{seq2seq_transformer_forward.6} parent=11 // pred_check_branch
        %435 = sbr.rel (%p433) target = $region48
      $region47: #{seq2seq_transformer_forward.6} parent=11 // pred_region
        _
      $region48: #{seq2seq_transformer_forward.6} parent=11 // pred_fallthru
        _
      // Predicated region
      $region49: #{seq2seq_transformer_forward.6} parent=11 // pred_check
        %p436 = pneg %p284
      $region50: #{seq2seq_transformer_forward.6} parent=11 // pred_check_branch
        %438 = sbr.rel (%p436) target = $region52
      $region51: #{seq2seq_transformer_forward.6} parent=11 // pred_region
        _
      $region52: #{seq2seq_transformer_forward.6} parent=11 // pred_fallthru
        _
      // Predicated region
      $region53: #{seq2seq_transformer_forward.6} parent=11 // pred_check
        %p439 = pneg %p305
      $region54: #{seq2seq_transformer_forward.6} parent=11 // pred_check_branch
        %441 = sbr.rel (%p439) target = $region56
      $region55: #{seq2seq_transformer_forward.6} parent=11 // pred_region
        _
      $region56: #{seq2seq_transformer_forward.6} parent=11 // pred_fallthru
        _
      // Predicated region
      $region57: #{seq2seq_transformer_forward.6} parent=11 // pred_check
        %p442 = pneg %p326
      $region58: #{seq2seq_transformer_forward.6} parent=11 // pred_check_branch
        %444 = sbr.rel (%p442) target = $region60
      $region59: #{seq2seq_transformer_forward.6} parent=11 // pred_region
        _
      $region60: #{seq2seq_transformer_forward.6} parent=11 // pred_fallthru
        _
      // Predicated region
      $region61: #{seq2seq_transformer_forward.6} parent=11 // pred_check
        %p445 = pneg %p347
      $region62: #{seq2seq_transformer_forward.6} parent=11 // pred_check_branch
        %447 = sbr.rel (%p445) target = $region64
      $region63: #{seq2seq_transformer_forward.6} parent=11 // pred_region
        _
      $region64: #{seq2seq_transformer_forward.6} parent=11 // pred_fallthru
        _
      // Predicated region
      $region65: #{seq2seq_transformer_forward.6} parent=11 // pred_check
        %p448 = pneg %p368
      $region66: #{seq2seq_transformer_forward.6} parent=11 // pred_check_branch
        %450 = sbr.rel (%p448) target = $region68
      $region67: #{seq2seq_transformer_forward.6} parent=11 // pred_region
        _
      $region68: #{seq2seq_transformer_forward.6} parent=11 // pred_fallthru
        _
    $region12: #{seq2seq_transformer_forward.6} parent=5 // pred_fallthru
      _
    %p451 = scmp.lt.s32.totalorder %s22, 2
    // Predicated region
    $region69: #{seq2seq_transformer_forward.6} parent=5 // pred_check
      %p452 = pneg %p451
    $region70: #{seq2seq_transformer_forward.6} parent=5 // pred_check_branch
      %454 = sbr.rel (%p452) target = $region72
    $region71: #{seq2seq_transformer_forward.6} parent=5 // pred_region
      // Predicated region
      $region73: #{seq2seq_transformer_forward.6} parent=71 // pred_check
        %p455 = pneg %p42
      $region74: #{seq2seq_transformer_forward.6} parent=71 // pred_check_branch
        %457 = sbr.rel (%p455) target = $region76
      $region75: #{seq2seq_transformer_forward.6} parent=71 // pred_region
        %p458 = scmp.lt.s32.totalorder %s22, 1
        %s459 = scalar_select %p458, %s22, 1
        %s460 = smul.addr %s459, 8
        %s461 = scalar_lea.vmem %s0, %s460
      $region76: #{seq2seq_transformer_forward.6} parent=71 // pred_fallthru
        _
      // Predicated region
      $region77: #{seq2seq_transformer_forward.6} parent=71 // pred_check
        %p462 = pneg %p68
      $region78: #{seq2seq_transformer_forward.6} parent=71 // pred_check_branch
        %464 = sbr.rel (%p462) target = $region80
      $region79: #{seq2seq_transformer_forward.6} parent=71 // pred_region
        %p465 = scmp.lt.s32.totalorder %s22, 1
        %s466 = scalar_select %p465, %s22, 1
        %s467 = smul.addr %s466, 8
        %s468 = scalar_lea.vmem %s1, %s467
      $region80: #{seq2seq_transformer_forward.6} parent=71 // pred_fallthru
        _
    $region72: #{seq2seq_transformer_forward.6} parent=5 // pred_fallthru
      _
    %p469 = scmp.le.s32.totalorder 1, %s22
    %p470 = scmp.lt.s32.totalorder %s22, 3
    %p471 = pnand %p469, %p470
    %p472 = pneg %p471
    // Predicated region
    $region81: #{seq2seq_transformer_forward.6} parent=5 // pred_check
      _
    $region82: #{seq2seq_transformer_forward.6} parent=5 // pred_check_branch
      %474 = sbr.rel (%p471) target = $region84
    $region83: #{seq2seq_transformer_forward.6} parent=5 // pred_region
      %s475 = ssub.s32 %s22, 1
      %p476 = scmp.lt.s32.totalorder %s27, 1
      %s477 = scalar_select %p476, %s27, 1
      %s478 = smul.addr %s477, 8
      %s479 = scalar_lea.vmem %s0, %s478
      %p480 = pneg %p48
      %p481 = pneg %p45
      %p482 = scmp.lt.s32.totalorder %s27, 1
      %s483 = scalar_select %p482, %s27, 1
      %s484 = smul.addr %s483, 8
      %s485 = scalar_lea.vmem %s1, %s484
      %p486 = pneg %p74
      %p487 = pneg %p71
      %p488 = pneg %p95
      %p489 = pneg %p92
      %p490 = pneg %p116
      %p491 = pneg %p113
      %p492 = pneg %p137
      %p493 = pneg %p134
      %p494 = pneg %p158
      %p495 = pneg %p155
      %p496 = pneg %p179
      %p497 = pneg %p176
      %p498 = pneg %p200
      %p499 = pneg %p197
      %p500 = pneg %p221
      %p501 = pneg %p218
      %p502 = pneg %p242
      %p503 = pneg %p239
      %p504 = pneg %p263
      %p505 = pneg %p260
      %p506 = pneg %p284
      %p507 = pneg %p281
      %p508 = pneg %p305
      %p509 = pneg %p302
      %p510 = pneg %p326
      %p511 = pneg %p323
      %p512 = pneg %p347
      %p513 = pneg %p344
      %p514 = pneg %p368
      %p515 = pneg %p365
      %p516 = pneg %p394
      %p517 = pneg %p391
      %p518 = scmp.lt.s32.totalorder %s27, 1
      %s519 = scalar_select %p518, %s27, 1
      %s520 = smul.addr %s519, 8
      %s521 = scalar_lea.vmem %s16, %s520
      %p522 = scmp.lt.s32.totalorder %s27, 1
      %s523 = scalar_select %p522, %s27, 1
      %s524 = smul.addr %s523, 8
      %s525 = scalar_lea.vmem %s0, %s524
      %p526 = scmp.lt.s32.totalorder %s27, 1
      %s527 = scalar_select %p526, %s27, 1
      %s528 = smul.addr %s527, 8
      %s529 = scalar_lea.vmem %s1, %s528
      %p530 = scmp.lt.s32.totalorder %s27, 1
      %s531 = scalar_select %p530, %s27, 1
      %s532 = smul.addr %s531, 8
      %s533 = scalar_lea.vmem %s16, %s532
      %v535 = vld [vmem:[%s525] sm:$0xff]
      %v536 = vld [vmem:[%s2] sm:$0xff]
      %v537 = vld [vmem:[%s2 + $0x8] sm:$0xff]
      %v538 = vld [vmem:[%s2 + $0x10] sm:$0xff]
      %v539 = vld [vmem:[%s2 + $0x18] sm:$0xff]
      %v540 = vpack.c.bf16 %v535, %v535
      %v541 = vpack.c.bf16 %v537, %v536
      %v542 = vpack.c.bf16 %v539, %v538
      %v543 = vld [vmem:[%s5] sm:$0x1]
      %v545 = vlaneseq
      %v546 = vshrl.u32 %v545, 7
      %v547 = vsub.s32 0, %v546
      %v548 = vrot.slane %v543, %v547
      %vm550 = vcmask 261120
      %v552 = vsel %vm550, %v540, 0
      %554 = vmatprep.subr.bf16.mxu0 0
      %555 = vmatpush1.bf16.msra.mxu0 %v541
      %556 = vmatprep.subr.bf16.mxu0 0
      %557 = vmatpush1.bf16.msra.mxu0 %v542
      %558 = vmatprep.subr.bf16.mxu0 0
      %559 = vmatpush1.bf16.msra.mxu0 0
      %560 = vmatprep.subr.bf16.mxu0 0
      %561 = vmatpush1.bf16.msra.mxu0 0
      %562 = vmatprep.subr.bf16.mxu0 0
      %563 = vmatpush1.bf16.msra.mxu0 0
      %564 = vmatprep.subr.bf16.mxu0 0
      %565 = vmatpush1.bf16.msra.mxu0 0
      %566 = vmatprep.subr.bf16.mxu0 0
      %567 = vmatpush1.bf16.msra.mxu0 0
      %568 = vmatprep.subr.bf16.mxu0 0
      %569 = vmatpush1.bf16.msra.mxu0 0
      %570 = vmatprep.subr.bf16.mxu0 0
      %571 = vmatpush1.bf16.msra.mxu0 0
      %572 = vmatprep.subr.bf16.mxu0 0
      %573 = vmatpush1.bf16.msra.mxu0 0
      %574 = vmatprep.subr.bf16.mxu0 0
      %575 = vmatpush1.bf16.msra.mxu0 0
      %576 = vmatprep.subr.bf16.mxu0 0
      %577 = vmatpush1.bf16.msra.mxu0 0
      %578 = vmatprep.subr.bf16.mxu0 0
      %579 = vmatpush1.bf16.msra.mxu0 0
      %580 = vmatprep.subr.bf16.mxu0 0
      %581 = vmatpush1.bf16.msra.mxu0 0
      %582 = vmatprep.subr.bf16.mxu0 0
      %583 = vmatpush1.bf16.msra.mxu0 0
      %584 = vmatprep.subr.bf16.mxu0 0
      %585 = vmatpush1.bf16.msra.mxu0 0
      %586 = vmatprep.mubr.bf16.mxu0 0
      %587 = vmatmul.mubr.bf16.gmra.mrb[0].mxu0 %v552
      %v588 = vpop.f32.mrb[0].mxu0
      %v589 = vadd.f32 %v548, %v588
      %v590 = vpop.f32.mrb[0].mxu0
      %v591 = vpop.f32.mrb[0].mxu0
      %v592 = vpop.f32.mrb[0].mxu0
      %593 = vdwg.mxu0
      %v594 = vld [vmem:[%s3] sm:$0xff]
      %v595 = vld [vmem:[%s3 + $0x8] sm:$0xff]
      %v596 = vld [vmem:[%s3 + $0x10] sm:$0xff]
      %v597 = vld [vmem:[%s3 + $0x18] sm:$0xff]
      %v598 = vpack.c.bf16 %v595, %v594
      %v599 = vpack.c.bf16 %v597, %v596
      %v600 = vld [vmem:[%s6] sm:$0x1]
      %v602 = vlaneseq
      %v603 = vshrl.u32 %v602, 7
      %v604 = vsub.s32 0, %v603
      %v605 = vrot.slane %v600, %v604
      %607 = vmatprep.subr.bf16.mxu0 0
      %608 = vmatpush1.bf16.msra.mxu0 %v598
      %609 = vmatprep.subr.bf16.mxu0 0
      %610 = vmatpush1.bf16.msra.mxu0 %v599
      %611 = vmatprep.subr.bf16.mxu0 0
      %612 = vmatpush1.bf16.msra.mxu0 0
      %613 = vmatprep.subr.bf16.mxu0 0
      %614 = vmatpush1.bf16.msra.mxu0 0
      %615 = vmatprep.subr.bf16.mxu0 0
      %616 = vmatpush1.bf16.msra.mxu0 0
      %617 = vmatprep.subr.bf16.mxu0 0
      %618 = vmatpush1.bf16.msra.mxu0 0
      %619 = vmatprep.subr.bf16.mxu0 0
      %620 = vmatpush1.bf16.msra.mxu0 0
      %621 = vmatprep.subr.bf16.mxu0 0
      %622 = vmatpush1.bf16.msra.mxu0 0
      %623 = vmatprep.subr.bf16.mxu0 0
      %624 = vmatpush1.bf16.msra.mxu0 0
      %625 = vmatprep.subr.bf16.mxu0 0
      %626 = vmatpush1.bf16.msra.mxu0 0
      %627 = vmatprep.subr.bf16.mxu0 0
      %628 = vmatpush1.bf16.msra.mxu0 0
      %629 = vmatprep.subr.bf16.mxu0 0
      %630 = vmatpush1.bf16.msra.mxu0 0
      %631 = vmatprep.subr.bf16.mxu0 0
      %632 = vmatpush1.bf16.msra.mxu0 0
      %633 = vmatprep.subr.bf16.mxu0 0
      %634 = vmatpush1.bf16.msra.mxu0 0
      %635 = vmatprep.subr.bf16.mxu0 0
      %636 = vmatpush1.bf16.msra.mxu0 0
      %637 = vmatprep.subr.bf16.mxu0 0
      %638 = vmatpush1.bf16.msra.mxu0 0
      %639 = vmatprep.mubr.bf16.mxu0 0
      %640 = vmatmul.mubr.bf16.gmra.mrb[0].mxu0 %v552
      %v641 = vpop.f32.mrb[0].mxu0
      %v642 = vadd.f32 %v605, %v641
      %v643 = vpop.f32.mrb[0].mxu0
      %v644 = vpop.f32.mrb[0].mxu0
      %v645 = vpop.f32.mrb[0].mxu0
      %646 = vdwg.mxu0
      %v647 = vld [vmem:[%s529] sm:$0xff]
      %vm648 = vcmask 64512
      %v650 = vsel %vm648, %v589, 0
      %v653 = vsel %vm648, %v642, 0
      %655 = vmatprep.subr.mxu0 0.0
      %656 = vmatpush1.xpose.msra.mxu0 %v653
      %657 = vmatprep.subr.mxu0 0.0
      %658 = vmatpush1.xpose.msra.mxu0 0.0
      %659 = vmatprep.subr.mxu0 0.0
      %660 = vmatpush1.xpose.msra.mxu0 0.0
      %661 = vmatprep.subr.mxu0 0.0
      %662 = vmatpush1.xpose.msra.mxu0 0.0
      %663 = vmatprep.subr.mxu0 0.0
      %664 = vmatpush1.xpose.msra.mxu0 0.0
      %665 = vmatprep.subr.mxu0 0.0
      %666 = vmatpush1.xpose.msra.mxu0 0.0
      %667 = vmatprep.subr.mxu0 0.0
      %668 = vmatpush1.xpose.msra.mxu0 0.0
      %669 = vmatprep.subr.mxu0 0.0
      %670 = vmatpush1.xpose.msra.mxu0 0.0
      %671 = vmatprep.subr.mxu0 0.0
      %672 = vmatpush1.xpose.msra.mxu0 0.0
      %673 = vmatprep.subr.mxu0 0.0
      %674 = vmatpush1.xpose.msra.mxu0 0.0
      %675 = vmatprep.subr.mxu0 0.0
      %676 = vmatpush1.xpose.msra.mxu0 0.0
      %677 = vmatprep.subr.mxu0 0.0
      %678 = vmatpush1.xpose.msra.mxu0 0.0
      %679 = vmatprep.subr.mxu0 0.0
      %680 = vmatpush1.xpose.msra.mxu0 0.0
      %681 = vmatprep.subr.mxu0 0.0
      %682 = vmatpush1.xpose.msra.mxu0 0.0
      %683 = vmatprep.subr.mxu0 0.0
      %684 = vmatpush1.xpose.msra.mxu0 0.0
      %685 = vmatprep.subr.mxu0 0.0
      %686 = vmatpush1.xpose.msra.mxu0 0.0
      %687 = vmatprep.subr.mxu0 0.0
      %688 = vmatpush1.xpose.msra.mxu0 0.0
      %689 = vmatprep.subr.mxu0 0.0
      %690 = vmatpush1.xpose.msra.mxu0 0.0
      %691 = vmatprep.subr.mxu0 0.0
      %692 = vmatpush1.xpose.msra.mxu0 0.0
      %693 = vmatprep.subr.mxu0 0.0
      %694 = vmatpush1.xpose.msra.mxu0 0.0
      %695 = vmatprep.subr.mxu0 0.0
      %696 = vmatpush1.xpose.msra.mxu0 0.0
      %697 = vmatprep.subr.mxu0 0.0
      %698 = vmatpush1.xpose.msra.mxu0 0.0
      %699 = vmatprep.subr.mxu0 0.0
      %700 = vmatpush1.xpose.msra.mxu0 0.0
      %701 = vmatprep.subr.mxu0 0.0
      %702 = vmatpush1.xpose.msra.mxu0 0.0
      %703 = vmatprep.subr.mxu0 0.0
      %704 = vmatpush1.xpose.msra.mxu0 0.0
      %705 = vmatprep.subr.mxu0 0.0
      %706 = vmatpush1.xpose.msra.mxu0 0.0
      %707 = vmatprep.subr.mxu0 0.0
      %708 = vmatpush1.xpose.msra.mxu0 0.0
      %709 = vmatprep.subr.mxu0 0.0
      %710 = vmatpush1.xpose.msra.mxu0 0.0
      %711 = vmatprep.subr.mxu0 0.0
      %712 = vmatpush1.xpose.msra.mxu0 0.0
      %713 = vmatprep.subr.mxu0 0.0
      %714 = vmatpush1.xpose.msra.mxu0 0.0
      %715 = vmatprep.subr.mxu0 0.0
      %716 = vmatpush1.xpose.msra.mxu0 0.0
      %717 = vmatprep.subr.mxu0 0.0
      %718 = vmatpush1.xpose.msra.mxu0 0.0
      %719 = vmatprep.mubr.f32.mxu0 0.0
      %720 = vmatmul.mubr.f32.gmra.mrb[0].mxu0 %v650
      %v721 = vpop.f32.mrb[0].mxu0
      %v722 = vadd.f32 0.0, %v721
      %v723 = vpop.f32.mrb[0].mxu0
      %724 = vdwg.mxu0
      %v725 = vmul.f32 %v722, 0.35355338
      %v726 = vadd.f32 %v725, %v647
      %v727 = vsel %vm648, %v726, -inf
      %728 = vmax.xlane.f32.xlu0 %v727
      %v729 = vpop.xlane.xlu0 %728
      %v730 = vsub.f32 %v726, %v729
      %v731 = vmul.f32 %v730, 1.442695
      %v732 = vpow.pop %v731
      %v733 = vsel %vm648, %v732, 0.0
      %734 = vadd.xlane.f32.xlu0 %v733
      %v735 = vpop.xlane.xlu0 %734
      %736 = vrot.lane.b32.xlu0 %v642, 96
      %v737 = vpop.permute.xlu0 %736
      %v740 = vsel %vm648, %v732, 0
      %742 = vmatprep.subr.mxu0 0.0
      %743 = vmatpush1.msra.mxu0 %v737
      %744 = vmatprep.subr.mxu0 0.0
      %745 = vmatpush1.msra.mxu0 0.0
      %746 = vmatprep.subr.mxu0 0.0
      %747 = vmatpush1.msra.mxu0 0.0
      %748 = vmatprep.subr.mxu0 0.0
      %749 = vmatpush1.msra.mxu0 0.0
      %750 = vmatprep.subr.mxu0 0.0
      %751 = vmatpush1.msra.mxu0 0.0
      %752 = vmatprep.subr.mxu0 0.0
      %753 = vmatpush1.msra.mxu0 0.0
      %754 = vmatprep.subr.mxu0 0.0
      %755 = vmatpush1.msra.mxu0 0.0
      %756 = vmatprep.subr.mxu0 0.0
      %757 = vmatpush1.msra.mxu0 0.0
      %758 = vmatprep.subr.mxu0 0.0
      %759 = vmatpush1.msra.mxu0 0.0
      %760 = vmatprep.subr.mxu0 0.0
      %761 = vmatpush1.msra.mxu0 0.0
      %762 = vmatprep.subr.mxu0 0.0
      %763 = vmatpush1.msra.mxu0 0.0
      %764 = vmatprep.subr.mxu0 0.0
      %765 = vmatpush1.msra.mxu0 0.0
      %766 = vmatprep.subr.mxu0 0.0
      %767 = vmatpush1.msra.mxu0 0.0
      %768 = vmatprep.subr.mxu0 0.0
      %769 = vmatpush1.msra.mxu0 0.0
      %770 = vmatprep.subr.mxu0 0.0
      %771 = vmatpush1.msra.mxu0 0.0
      %772 = vmatprep.subr.mxu0 0.0
      %773 = vmatpush1.msra.mxu0 0.0
      %774 = vmatprep.subr.mxu0 0.0
      %775 = vmatpush1.msra.mxu0 0.0
      %776 = vmatprep.subr.mxu0 0.0
      %777 = vmatpush1.msra.mxu0 0.0
      %778 = vmatprep.subr.mxu0 0.0
      %779 = vmatpush1.msra.mxu0 0.0
      %780 = vmatprep.subr.mxu0 0.0
      %781 = vmatpush1.msra.mxu0 0.0
      %782 = vmatprep.subr.mxu0 0.0
      %783 = vmatpush1.msra.mxu0 0.0
      %784 = vmatprep.subr.mxu0 0.0
      %785 = vmatpush1.msra.mxu0 0.0
      %786 = vmatprep.subr.mxu0 0.0
      %787 = vmatpush1.msra.mxu0 0.0
      %788 = vmatprep.subr.mxu0 0.0
      %789 = vmatpush1.msra.mxu0 0.0
      %790 = vmatprep.subr.mxu0 0.0
      %791 = vmatpush1.msra.mxu0 0.0
      %792 = vmatprep.subr.mxu0 0.0
      %793 = vmatpush1.msra.mxu0 0.0
      %794 = vmatprep.subr.mxu0 0.0
      %795 = vmatpush1.msra.mxu0 0.0
      %796 = vmatprep.subr.mxu0 0.0
      %797 = vmatpush1.msra.mxu0 0.0
      %798 = vmatprep.subr.mxu0 0.0
      %799 = vmatpush1.msra.mxu0 0.0
      %800 = vmatprep.subr.mxu0 0.0
      %801 = vmatpush1.msra.mxu0 0.0
      %802 = vmatprep.subr.mxu0 0.0
      %803 = vmatpush1.msra.mxu0 0.0
      %804 = vmatprep.subr.mxu0 0.0
      %805 = vmatpush1.msra.mxu0 0.0
      %806 = vmatprep.mubr.f32.mxu0 0.0
      %807 = vmatmul.mubr.f32.gmra.mrb[0].mxu0 %v740
      %v808 = vpop.f32.mrb[0].mxu0
      %v809 = vadd.f32 0.0, %v808
      %v810 = vpop.f32.mrb[0].mxu0
      %811 = vdwg.mxu0
      %v812 = vrcp.pop %v735
      %v813 = vmul.f32 %v809, %v812
      %814 = vst.msk [vmem:[#allocation2] sm:$0xff] %vm648, %v813
      %815 = vrot.lane.b32.xlu0 %v589, 120
      %v816 = vpop.permute.xlu0 %815
      %817 = vrot.lane.b32.xlu0 %v642, 120
      %v818 = vpop.permute.xlu0 %817
      %v819 = vsel %vm648, %v816, 0
      %v821 = vsel %vm648, %v818, 0
      %823 = vmatprep.subr.mxu0 0.0
      %824 = vmatpush1.xpose.msra.mxu0 %v821
      %825 = vmatprep.subr.mxu0 0.0
      %826 = vmatpush1.xpose.msra.mxu0 0.0
      %827 = vmatprep.subr.mxu0 0.0
      %828 = vmatpush1.xpose.msra.mxu0 0.0
      %829 = vmatprep.subr.mxu0 0.0
      %830 = vmatpush1.xpose.msra.mxu0 0.0
      %831 = vmatprep.subr.mxu0 0.0
      %832 = vmatpush1.xpose.msra.mxu0 0.0
      %833 = vmatprep.subr.mxu0 0.0
      %834 = vmatpush1.xpose.msra.mxu0 0.0
      %835 = vmatprep.subr.mxu0 0.0
      %836 = vmatpush1.xpose.msra.mxu0 0.0
      %837 = vmatprep.subr.mxu0 0.0
      %838 = vmatpush1.xpose.msra.mxu0 0.0
      %839 = vmatprep.subr.mxu0 0.0
      %840 = vmatpush1.xpose.msra.mxu0 0.0
      %841 = vmatprep.subr.mxu0 0.0
      %842 = vmatpush1.xpose.msra.mxu0 0.0
      %843 = vmatprep.subr.mxu0 0.0
      %844 = vmatpush1.xpose.msra.mxu0 0.0
      %845 = vmatprep.subr.mxu0 0.0
      %846 = vmatpush1.xpose.msra.mxu0 0.0
      %847 = vmatprep.subr.mxu0 0.0
      %848 = vmatpush1.xpose.msra.mxu0 0.0
      %849 = vmatprep.subr.mxu0 0.0
      %850 = vmatpush1.xpose.msra.mxu0 0.0
      %851 = vmatprep.subr.mxu0 0.0
      %852 = vmatpush1.xpose.msra.mxu0 0.0
      %853 = vmatprep.subr.mxu0 0.0
      %854 = vmatpush1.xpose.msra.mxu0 0.0
      %855 = vmatprep.subr.mxu0 0.0
      %856 = vmatpush1.xpose.msra.mxu0 0.0
      %857 = vmatprep.subr.mxu0 0.0
      %858 = vmatpush1.xpose.msra.mxu0 0.0
      %859 = vmatprep.subr.mxu0 0.0
      %860 = vmatpush1.xpose.msra.mxu0 0.0
      %861 = vmatprep.subr.mxu0 0.0
      %862 = vmatpush1.xpose.msra.mxu0 0.0
      %863 = vmatprep.subr.mxu0 0.0
      %864 = vmatpush1.xpose.msra.mxu0 0.0
      %865 = vmatprep.subr.mxu0 0.0
      %866 = vmatpush1.xpose.msra.mxu0 0.0
      %867 = vmatprep.subr.mxu0 0.0
      %868 = vmatpush1.xpose.msra.mxu0 0.0
      %869 = vmatprep.subr.mxu0 0.0
      %870 = vmatpush1.xpose.msra.mxu0 0.0
      %871 = vmatprep.subr.mxu0 0.0
      %872 = vmatpush1.xpose.msra.mxu0 0.0
      %873 = vmatprep.subr.mxu0 0.0
      %874 = vmatpush1.xpose.msra.mxu0 0.0
      %875 = vmatprep.subr.mxu0 0.0
      %876 = vmatpush1.xpose.msra.mxu0 0.0
      %877 = vmatprep.subr.mxu0 0.0
      %878 = vmatpush1.xpose.msra.mxu0 0.0
      %879 = vmatprep.subr.mxu0 0.0
      %880 = vmatpush1.xpose.msra.mxu0 0.0
      %881 = vmatprep.subr.mxu0 0.0
      %882 = vmatpush1.xpose.msra.mxu0 0.0
      %883 = vmatprep.subr.mxu0 0.0
      %884 = vmatpush1.xpose.msra.mxu0 0.0
      %885 = vmatprep.subr.mxu0 0.0
      %886 = vmatpush1.xpose.msra.mxu0 0.0
      %887 = vmatprep.mubr.f32.mxu0 0.0
      %888 = vmatmul.mubr.f32.gmra.mrb[0].mxu0 %v819
      %v889 = vpop.f32.mrb[0].mxu0
      %v890 = vadd.f32 0.0, %v889
      %v891 = vpop.f32.mrb[0].mxu0
      %892 = vdwg.mxu0
      %v893 = vmul.f32 %v890, 0.35355338
      %v894 = vadd.f32 %v893, %v647
      %v895 = vsel %vm648, %v894, -inf
      %896 = vmax.xlane.f32.xlu0 %v895
      %v897 = vpop.xlane.xlu0 %896
      %v898 = vsub.f32 %v894, %v897
      %v899 = vmul.f32 %v898, 1.442695
      %v900 = vpow.pop %v899
      %v901 = vsel %vm648, %v900, 0.0
      %902 = vadd.xlane.f32.xlu0 %v901
      %v903 = vpop.xlane.xlu0 %902
      %904 = vrot.lane.b32.xlu0 %v642, 88
      %v905 = vpop.permute.xlu0 %904
      %v908 = vsel %vm648, %v900, 0
      %910 = vmatprep.subr.mxu0 0.0
      %911 = vmatpush1.msra.mxu0 %v905
      %912 = vmatprep.subr.mxu0 0.0
      %913 = vmatpush1.msra.mxu0 0.0
      %914 = vmatprep.subr.mxu0 0.0
      %915 = vmatpush1.msra.mxu0 0.0
      %916 = vmatprep.subr.mxu0 0.0
      %917 = vmatpush1.msra.mxu0 0.0
      %918 = vmatprep.subr.mxu0 0.0
      %919 = vmatpush1.msra.mxu0 0.0
      %920 = vmatprep.subr.mxu0 0.0
      %921 = vmatpush1.msra.mxu0 0.0
      %922 = vmatprep.subr.mxu0 0.0
      %923 = vmatpush1.msra.mxu0 0.0
      %924 = vmatprep.subr.mxu0 0.0
      %925 = vmatpush1.msra.mxu0 0.0
      %926 = vmatprep.subr.mxu0 0.0
      %927 = vmatpush1.msra.mxu0 0.0
      %928 = vmatprep.subr.mxu0 0.0
      %929 = vmatpush1.msra.mxu0 0.0
      %930 = vmatprep.subr.mxu0 0.0
      %931 = vmatpush1.msra.mxu0 0.0
      %932 = vmatprep.subr.mxu0 0.0
      %933 = vmatpush1.msra.mxu0 0.0
      %934 = vmatprep.subr.mxu0 0.0
      %935 = vmatpush1.msra.mxu0 0.0
      %936 = vmatprep.subr.mxu0 0.0
      %937 = vmatpush1.msra.mxu0 0.0
      %938 = vmatprep.subr.mxu0 0.0
      %939 = vmatpush1.msra.mxu0 0.0
      %940 = vmatprep.subr.mxu0 0.0
      %941 = vmatpush1.msra.mxu0 0.0
      %942 = vmatprep.subr.mxu0 0.0
      %943 = vmatpush1.msra.mxu0 0.0
      %944 = vmatprep.subr.mxu0 0.0
      %945 = vmatpush1.msra.mxu0 0.0
      %946 = vmatprep.subr.mxu0 0.0
      %947 = vmatpush1.msra.mxu0 0.0
      %948 = vmatprep.subr.mxu0 0.0
      %949 = vmatpush1.msra.mxu0 0.0
      %950 = vmatprep.subr.mxu0 0.0
      %951 = vmatpush1.msra.mxu0 0.0
      %952 = vmatprep.subr.mxu0 0.0
      %953 = vmatpush1.msra.mxu0 0.0
      %954 = vmatprep.subr.mxu0 0.0
      %955 = vmatpush1.msra.mxu0 0.0
      %956 = vmatprep.subr.mxu0 0.0
      %957 = vmatpush1.msra.mxu0 0.0
      %958 = vmatprep.subr.mxu0 0.0
      %959 = vmatpush1.msra.mxu0 0.0
      %960 = vmatprep.subr.mxu0 0.0
      %961 = vmatpush1.msra.mxu0 0.0
      %962 = vmatprep.subr.mxu0 0.0
      %963 = vmatpush1.msra.mxu0 0.0
      %964 = vmatprep.subr.mxu0 0.0
      %965 = vmatpush1.msra.mxu0 0.0
      %966 = vmatprep.subr.mxu0 0.0
      %967 = vmatpush1.msra.mxu0 0.0
      %968 = vmatprep.subr.mxu0 0.0
      %969 = vmatpush1.msra.mxu0 0.0
      %970 = vmatprep.subr.mxu0 0.0
      %971 = vmatpush1.msra.mxu0 0.0
      %972 = vmatprep.subr.mxu0 0.0
      %973 = vmatpush1.msra.mxu0 0.0
      %974 = vmatprep.mubr.f32.mxu0 0.0
      %975 = vmatmul.mubr.f32.gmra.mrb[0].mxu0 %v908
      %v976 = vpop.f32.mrb[0].mxu0
      %v977 = vadd.f32 0.0, %v976
      %v978 = vpop.f32.mrb[0].mxu0
      %979 = vdwg.mxu0
      %v980 = vrcp.pop %v903
      %v981 = vmul.f32 %v977, %v980
      %983 = vrot.lane.b32.xlu0 %v981, 8
      %v984 = vpop.permute.xlu0 %983
      %vm986 = vcmask 130112
      %987 = vst.msk [vmem:[#allocation2] sm:$0xff] %vm986, %v984
      %988 = vrot.lane.b32.xlu0 %v589, 112
      %v989 = vpop.permute.xlu0 %988
      %990 = vrot.lane.b32.xlu0 %v642, 112
      %v991 = vpop.permute.xlu0 %990
      %v992 = vsel %vm648, %v989, 0
      %v994 = vsel %vm648, %v991, 0
      %996 = vmatprep.subr.mxu0 0.0
      %997 = vmatpush1.xpose.msra.mxu0 %v994
      %998 = vmatprep.subr.mxu0 0.0
      %999 = vmatpush1.xpose.msra.mxu0 0.0
      %1000 = vmatprep.subr.mxu0 0.0
      %1001 = vmatpush1.xpose.msra.mxu0 0.0
      %1002 = vmatprep.subr.mxu0 0.0
      %1003 = vmatpush1.xpose.msra.mxu0 0.0
      %1004 = vmatprep.subr.mxu0 0.0
      %1005 = vmatpush1.xpose.msra.mxu0 0.0
      %1006 = vmatprep.subr.mxu0 0.0
      %1007 = vmatpush1.xpose.msra.mxu0 0.0
      %1008 = vmatprep.subr.mxu0 0.0
      %1009 = vmatpush1.xpose.msra.mxu0 0.0
      %1010 = vmatprep.subr.mxu0 0.0
      %1011 = vmatpush1.xpose.msra.mxu0 0.0
      %1012 = vmatprep.subr.mxu0 0.0
      %1013 = vmatpush1.xpose.msra.mxu0 0.0
      %1014 = vmatprep.subr.mxu0 0.0
      %1015 = vmatpush1.xpose.msra.mxu0 0.0
      %1016 = vmatprep.subr.mxu0 0.0
      %1017 = vmatpush1.xpose.msra.mxu0 0.0
      %1018 = vmatprep.subr.mxu0 0.0
      %1019 = vmatpush1.xpose.msra.mxu0 0.0
      %1020 = vmatprep.subr.mxu0 0.0
      %1021 = vmatpush1.xpose.msra.mxu0 0.0
      %1022 = vmatprep.subr.mxu0 0.0
      %1023 = vmatpush1.xpose.msra.mxu0 0.0
      %1024 = vmatprep.subr.mxu0 0.0
      %1025 = vmatpush1.xpose.msra.mxu0 0.0
      %1026 = vmatprep.subr.mxu0 0.0
      %1027 = vmatpush1.xpose.msra.mxu0 0.0
      %1028 = vmatprep.subr.mxu0 0.0
      %1029 = vmatpush1.xpose.msra.mxu0 0.0
      %1030 = vmatprep.subr.mxu0 0.0
      %1031 = vmatpush1.xpose.msra.mxu0 0.0
      %1032 = vmatprep.subr.mxu0 0.0
      %1033 = vmatpush1.xpose.msra.mxu0 0.0
      %1034 = vmatprep.subr.mxu0 0.0
      %1035 = vmatpush1.xpose.msra.mxu0 0.0
      %1036 = vmatprep.subr.mxu0 0.0
      %1037 = vmatpush1.xpose.msra.mxu0 0.0
      %1038 = vmatprep.subr.mxu0 0.0
      %1039 = vmatpush1.xpose.msra.mxu0 0.0
      %1040 = vmatprep.subr.mxu0 0.0
      %1041 = vmatpush1.xpose.msra.mxu0 0.0
      %1042 = vmatprep.subr.mxu0 0.0
      %1043 = vmatpush1.xpose.msra.mxu0 0.0
      %1044 = vmatprep.subr.mxu0 0.0
      %1045 = vmatpush1.xpose.msra.mxu0 0.0
      %1046 = vmatprep.subr.mxu0 0.0
      %1047 = vmatpush1.xpose.msra.mxu0 0.0
      %1048 = vmatprep.subr.mxu0 0.0
      %1049 = vmatpush1.xpose.msra.mxu0 0.0
      %1050 = vmatprep.subr.mxu0 0.0
      %1051 = vmatpush1.xpose.msra.mxu0 0.0
      %1052 = vmatprep.subr.mxu0 0.0
      %1053 = vmatpush1.xpose.msra.mxu0 0.0
      %1054 = vmatprep.subr.mxu0 0.0
      %1055 = vmatpush1.xpose.msra.mxu0 0.0
      %1056 = vmatprep.subr.mxu0 0.0
      %1057 = vmatpush1.xpose.msra.mxu0 0.0
      %1058 = vmatprep.subr.mxu0 0.0
      %1059 = vmatpush1.xpose.msra.mxu0 0.0
      %1060 = vmatprep.mubr.f32.mxu0 0.0
      %1061 = vmatmul.mubr.f32.gmra.mrb[0].mxu0 %v992
      %v1062 = vpop.f32.mrb[0].mxu0
      %v1063 = vadd.f32 0.0, %v1062
      %v1064 = vpop.f32.mrb[0].mxu0
      %1065 = vdwg.mxu0
      %v1066 = vmul.f32 %v1063, 0.35355338
      %v1067 = vadd.f32 %v1066, %v647
      %v1068 = vsel %vm648, %v1067, -inf
      %1069 = vmax.xlane.f32.xlu0 %v1068
      %v1070 = vpop.xlane.xlu0 %1069
      %v1071 = vsub.f32 %v1067, %v1070
      %v1072 = vmul.f32 %v1071, 1.442695
      %v1073 = vpow.pop %v1072
      %v1074 = vsel %vm648, %v1073, 0.0
      %1075 = vadd.xlane.f32.xlu0 %v1074
      %v1076 = vpop.xlane.xlu0 %1075
      %1077 = vrot.lane.b32.xlu0 %v642, 80
      %v1078 = vpop.permute.xlu0 %1077
      %v1081 = vsel %vm648, %v1073, 0
      %1083 = vmatprep.subr.mxu0 0.0
      %1084 = vmatpush1.msra.mxu0 %v1078
      %1085 = vmatprep.subr.mxu0 0.0
      %1086 = vmatpush1.msra.mxu0 0.0
      %1087 = vmatprep.subr.mxu0 0.0
      %1088 = vmatpush1.msra.mxu0 0.0
      %1089 = vmatprep.subr.mxu0 0.0
      %1090 = vmatpush1.msra.mxu0 0.0
      %1091 = vmatprep.subr.mxu0 0.0
      %1092 = vmatpush1.msra.mxu0 0.0
      %1093 = vmatprep.subr.mxu0 0.0
      %1094 = vmatpush1.msra.mxu0 0.0
      %1095 = vmatprep.subr.mxu0 0.0
      %1096 = vmatpush1.msra.mxu0 0.0
      %1097 = vmatprep.subr.mxu0 0.0
      %1098 = vmatpush1.msra.mxu0 0.0
      %1099 = vmatprep.subr.mxu0 0.0
      %1100 = vmatpush1.msra.mxu0 0.0
      %1101 = vmatprep.subr.mxu0 0.0
      %1102 = vmatpush1.msra.mxu0 0.0
      %1103 = vmatprep.subr.mxu0 0.0
      %1104 = vmatpush1.msra.mxu0 0.0
      %1105 = vmatprep.subr.mxu0 0.0
      %1106 = vmatpush1.msra.mxu0 0.0
      %1107 = vmatprep.subr.mxu0 0.0
      %1108 = vmatpush1.msra.mxu0 0.0
      %1109 = vmatprep.subr.mxu0 0.0
      %1110 = vmatpush1.msra.mxu0 0.0
      %1111 = vmatprep.subr.mxu0 0.0
      %1112 = vmatpush1.msra.mxu0 0.0
      %1113 = vmatprep.subr.mxu0 0.0
      %1114 = vmatpush1.msra.mxu0 0.0
      %1115 = vmatprep.subr.mxu0 0.0
      %1116 = vmatpush1.msra.mxu0 0.0
      %1117 = vmatprep.subr.mxu0 0.0
      %1118 = vmatpush1.msra.mxu0 0.0
      %1119 = vmatprep.subr.mxu0 0.0
      %1120 = vmatpush1.msra.mxu0 0.0
      %1121 = vmatprep.subr.mxu0 0.0
      %1122 = vmatpush1.msra.mxu0 0.0
      %1123 = vmatprep.subr.mxu0 0.0
      %1124 = vmatpush1.msra.mxu0 0.0
      %1125 = vmatprep.subr.mxu0 0.0
      %1126 = vmatpush1.msra.mxu0 0.0
      %1127 = vmatprep.subr.mxu0 0.0
      %1128 = vmatpush1.msra.mxu0 0.0
      %1129 = vmatprep.subr.mxu0 0.0
      %1130 = vmatpush1.msra.mxu0 0.0
      %1131 = vmatprep.subr.mxu0 0.0
      %1132 = vmatpush1.msra.mxu0 0.0
      %1133 = vmatprep.subr.mxu0 0.0
      %1134 = vmatpush1.msra.mxu0 0.0
      %1135 = vmatprep.subr.mxu0 0.0
      %1136 = vmatpush1.msra.mxu0 0.0
      %1137 = vmatprep.subr.mxu0 0.0
      %1138 = vmatpush1.msra.mxu0 0.0
      %1139 = vmatprep.subr.mxu0 0.0
      %1140 = vmatpush1.msra.mxu0 0.0
      %1141 = vmatprep.subr.mxu0 0.0
      %1142 = vmatpush1.msra.mxu0 0.0
      %1143 = vmatprep.subr.mxu0 0.0
      %1144 = vmatpush1.msra.mxu0 0.0
      %1145 = vmatprep.subr.mxu0 0.0
      %1146 = vmatpush1.msra.mxu0 0.0
      %1147 = vmatprep.mubr.f32.mxu0 0.0
      %1148 = vmatmul.mubr.f32.gmra.mrb[0].mxu0 %v1081
      %v1149 = vpop.f32.mrb[0].mxu0
      %v1150 = vadd.f32 0.0, %v1149
      %v1151 = vpop.f32.mrb[0].mxu0
      %1152 = vdwg.mxu0
      %v1153 = vrcp.pop %v1076
      %v1154 = vmul.f32 %v1150, %v1153
      %1156 = vrot.lane.b32.xlu0 %v1154, 16
      %v1157 = vpop.permute.xlu0 %1156
      %vm1159 = vcmask 195712
      %1160 = vst.msk [vmem:[#allocation2] sm:$0xff] %vm1159, %v1157
      %1161 = vrot.lane.b32.xlu0 %v589, 104
      %v1162 = vpop.permute.xlu0 %1161
      %1163 = vrot.lane.b32.xlu0 %v642, 104
      %v1164 = vpop.permute.xlu0 %1163
      %v1165 = vsel %vm648, %v1162, 0
      %v1167 = vsel %vm648, %v1164, 0
      %1169 = vmatprep.subr.mxu0 0.0
      %1170 = vmatpush1.xpose.msra.mxu0 %v1167
      %1171 = vmatprep.subr.mxu0 0.0
      %1172 = vmatpush1.xpose.msra.mxu0 0.0
      %1173 = vmatprep.subr.mxu0 0.0
      %1174 = vmatpush1.xpose.msra.mxu0 0.0
      %1175 = vmatprep.subr.mxu0 0.0
      %1176 = vmatpush1.xpose.msra.mxu0 0.0
      %1177 = vmatprep.subr.mxu0 0.0
      %1178 = vmatpush1.xpose.msra.mxu0 0.0
      %1179 = vmatprep.subr.mxu0 0.0
      %1180 = vmatpush1.xpose.msra.mxu0 0.0
      %1181 = vmatprep.subr.mxu0 0.0
      %1182 = vmatpush1.xpose.msra.mxu0 0.0
      %1183 = vmatprep.subr.mxu0 0.0
      %1184 = vmatpush1.xpose.msra.mxu0 0.0
      %1185 = vmatprep.subr.mxu0 0.0
      %1186 = vmatpush1.xpose.msra.mxu0 0.0
      %1187 = vmatprep.subr.mxu0 0.0
      %1188 = vmatpush1.xpose.msra.mxu0 0.0
      %1189 = vmatprep.subr.mxu0 0.0
      %1190 = vmatpush1.xpose.msra.mxu0 0.0
      %1191 = vmatprep.subr.mxu0 0.0
      %1192 = vmatpush1.xpose.msra.mxu0 0.0
      %1193 = vmatprep.subr.mxu0 0.0
      %1194 = vmatpush1.xpose.msra.mxu0 0.0
      %1195 = vmatprep.subr.mxu0 0.0
      %1196 = vmatpush1.xpose.msra.mxu0 0.0
      %1197 = vmatprep.subr.mxu0 0.0
      %1198 = vmatpush1.xpose.msra.mxu0 0.0
      %1199 = vmatprep.subr.mxu0 0.0
      %1200 = vmatpush1.xpose.msra.mxu0 0.0
      %1201 = vmatprep.subr.mxu0 0.0
      %1202 = vmatpush1.xpose.msra.mxu0 0.0
      %1203 = vmatprep.subr.mxu0 0.0
      %1204 = vmatpush1.xpose.msra.mxu0 0.0
      %1205 = vmatprep.subr.mxu0 0.0
      %1206 = vmatpush1.xpose.msra.mxu0 0.0
      %1207 = vmatprep.subr.mxu0 0.0
      %1208 = vmatpush1.xpose.msra.mxu0 0.0
      %1209 = vmatprep.subr.mxu0 0.0
      %1210 = vmatpush1.xpose.msra.mxu0 0.0
      %1211 = vmatprep.subr.mxu0 0.0
      %1212 = vmatpush1.xpose.msra.mxu0 0.0
      %1213 = vmatprep.subr.mxu0 0.0
      %1214 = vmatpush1.xpose.msra.mxu0 0.0
      %1215 = vmatprep.subr.mxu0 0.0
      %1216 = vmatpush1.xpose.msra.mxu0 0.0
      %1217 = vmatprep.subr.mxu0 0.0
      %1218 = vmatpush1.xpose.msra.mxu0 0.0
      %1219 = vmatprep.subr.mxu0 0.0
      %1220 = vmatpush1.xpose.msra.mxu0 0.0
      %1221 = vmatprep.subr.mxu0 0.0
      %1222 = vmatpush1.xpose.msra.mxu0 0.0
      %1223 = vmatprep.subr.mxu0 0.0
      %1224 = vmatpush1.xpose.msra.mxu0 0.0
      %1225 = vmatprep.subr.mxu0 0.0
      %1226 = vmatpush1.xpose.msra.mxu0 0.0
      %1227 = vmatprep.subr.mxu0 0.0
      %1228 = vmatpush1.xpose.msra.mxu0 0.0
      %1229 = vmatprep.subr.mxu0 0.0
      %1230 = vmatpush1.xpose.msra.mxu0 0.0
      %1231 = vmatprep.subr.mxu0 0.0
      %1232 = vmatpush1.xpose.msra.mxu0 0.0
      %1233 = vmatprep.mubr.f32.mxu0 0.0
      %1234 = vmatmul.mubr.f32.gmra.mrb[0].mxu0 %v1165
      %v1235 = vpop.f32.mrb[0].mxu0
      %v1236 = vadd.f32 0.0, %v1235
      %v1237 = vpop.f32.mrb[0].mxu0
      %1238 = vdwg.mxu0
      %v1239 = vmul.f32 %v1236, 0.35355338
      %v1240 = vadd.f32 %v1239, %v647
      %v1241 = vsel %vm648, %v1240, -inf
      %1242 = vmax.xlane.f32.xlu0 %v1241
      %v1243 = vpop.xlane.xlu0 %1242
      %v1244 = vsub.f32 %v1240, %v1243
      %v1245 = vmul.f32 %v1244, 1.442695
      %v1246 = vpow.pop %v1245
      %v1247 = vsel %vm648, %v1246, 0.0
      %1248 = vadd.xlane.f32.xlu0 %v1247
      %v1249 = vpop.xlane.xlu0 %1248
      %1250 = vrot.lane.b32.xlu0 %v642, 72
      %v1251 = vpop.permute.xlu0 %1250
      %v1254 = vsel %vm648, %v1246, 0
      %1256 = vmatprep.subr.mxu0 0.0
      %1257 = vmatpush1.msra.mxu0 %v1251
      %1258 = vmatprep.subr.mxu0 0.0
      %1259 = vmatpush1.msra.mxu0 0.0
      %1260 = vmatprep.subr.mxu0 0.0
      %1261 = vmatpush1.msra.mxu0 0.0
      %1262 = vmatprep.subr.mxu0 0.0
      %1263 = vmatpush1.msra.mxu0 0.0
      %1264 = vmatprep.subr.mxu0 0.0
      %1265 = vmatpush1.msra.mxu0 0.0
      %1266 = vmatprep.subr.mxu0 0.0
      %1267 = vmatpush1.msra.mxu0 0.0
      %1268 = vmatprep.subr.mxu0 0.0
      %1269 = vmatpush1.msra.mxu0 0.0
      %1270 = vmatprep.subr.mxu0 0.0
      %1271 = vmatpush1.msra.mxu0 0.0
      %1272 = vmatprep.subr.mxu0 0.0
      %1273 = vmatpush1.msra.mxu0 0.0
      %1274 = vmatprep.subr.mxu0 0.0
      %1275 = vmatpush1.msra.mxu0 0.0
      %1276 = vmatprep.subr.mxu0 0.0
      %1277 = vmatpush1.msra.mxu0 0.0
      %1278 = vmatprep.subr.mxu0 0.0
      %1279 = vmatpush1.msra.mxu0 0.0
      %1280 = vmatprep.subr.mxu0 0.0
      %1281 = vmatpush1.msra.mxu0 0.0
      %1282 = vmatprep.subr.mxu0 0.0
      %1283 = vmatpush1.msra.mxu0 0.0
      %1284 = vmatprep.subr.mxu0 0.0
      %1285 = vmatpush1.msra.mxu0 0.0
      %1286 = vmatprep.subr.mxu0 0.0
      %1287 = vmatpush1.msra.mxu0 0.0
      %1288 = vmatprep.subr.mxu0 0.0
      %1289 = vmatpush1.msra.mxu0 0.0
      %1290 = vmatprep.subr.mxu0 0.0
      %1291 = vmatpush1.msra.mxu0 0.0
      %1292 = vmatprep.subr.mxu0 0.0
      %1293 = vmatpush1.msra.mxu0 0.0
      %1294 = vmatprep.subr.mxu0 0.0
      %1295 = vmatpush1.msra.mxu0 0.0
      %1296 = vmatprep.subr.mxu0 0.0
      %1297 = vmatpush1.msra.mxu0 0.0
      %1298 = vmatprep.subr.mxu0 0.0
      %1299 = vmatpush1.msra.mxu0 0.0
      %1300 = vmatprep.subr.mxu0 0.0
      %1301 = vmatpush1.msra.mxu0 0.0
      %1302 = vmatprep.subr.mxu0 0.0
      %1303 = vmatpush1.msra.mxu0 0.0
      %1304 = vmatprep.subr.mxu0 0.0
      %1305 = vmatpush1.msra.mxu0 0.0
      %1306 = vmatprep.subr.mxu0 0.0
      %1307 = vmatpush1.msra.mxu0 0.0
      %1308 = vmatprep.subr.mxu0 0.0
      %1309 = vmatpush1.msra.mxu0 0.0
      %1310 = vmatprep.subr.mxu0 0.0
      %1311 = vmatpush1.msra.mxu0 0.0
      %1312 = vmatprep.subr.mxu0 0.0
      %1313 = vmatpush1.msra.mxu0 0.0
      %1314 = vmatprep.subr.mxu0 0.0
      %1315 = vmatpush1.msra.mxu0 0.0
      %1316 = vmatprep.subr.mxu0 0.0
      %1317 = vmatpush1.msra.mxu0 0.0
      %1318 = vmatprep.subr.mxu0 0.0
      %1319 = vmatpush1.msra.mxu0 0.0
      %1320 = vmatprep.mubr.f32.mxu0 0.0
      %1321 = vmatmul.mubr.f32.gmra.mrb[0].mxu0 %v1254
      %v1322 = vpop.f32.mrb[0].mxu0
      %v1323 = vadd.f32 0.0, %v1322
      %v1324 = vpop.f32.mrb[0].mxu0
      %1325 = vdwg.mxu0
      %v1326 = vrcp.pop %v1249
      %v1327 = vmul.f32 %v1323, %v1326
      %1329 = vrot.lane.b32.xlu0 %v1327, 24
      %v1330 = vpop.permute.xlu0 %1329
      %vm1332 = vcmask 261312
      %1333 = vst.msk [vmem:[#allocation2] sm:$0xff] %vm1332, %v1330
      %v1334 = vld [vmem:[#allocation2] sm:$0xff]
      %v1335 = vld [vmem:[%s4] sm:$0xff]
      %v1336 = vld [vmem:[%s4 + $0x8] sm:$0xff]
      %v1337 = vld [vmem:[%s4 + $0x10] sm:$0xff]
      %v1338 = vld [vmem:[%s4 + $0x18] sm:$0xff]
      %v1339 = vpack.c.bf16 %v1334, %v1334
      %v1340 = vpack.c.bf16 %v1336, %v1335
      %v1341 = vpack.c.bf16 %v1338, %v1337
      %v1342 = vld [vmem:[%s7] sm:$0x1]
      %v1344 = vlaneseq
      %v1345 = vshrl.u32 %v1344, 7
      %v1346 = vsub.s32 0, %v1345
      %v1347 = vrot.slane %v1342, %v1346
      %v1350 = vsel %vm550, %v1339, 0
      %1352 = vmatprep.subr.bf16.mxu0 0
      %1353 = vmatpush1.bf16.msra.mxu0 %v1340
      %1354 = vmatprep.subr.bf16.mxu0 0
      %1355 = vmatpush1.bf16.msra.mxu0 %v1341
      %1356 = vmatprep.subr.bf16.mxu0 0
      %1357 = vmatpush1.bf16.msra.mxu0 0
      %1358 = vmatprep.subr.bf16.mxu0 0
      %1359 = vmatpush1.bf16.msra.mxu0 0
      %1360 = vmatprep.subr.bf16.mxu0 0
      %1361 = vmatpush1.bf16.msra.mxu0 0
      %1362 = vmatprep.subr.bf16.mxu0 0
      %1363 = vmatpush1.bf16.msra.mxu0 0
      %1364 = vmatprep.subr.bf16.mxu0 0
      %1365 = vmatpush1.bf16.msra.mxu0 0
      %1366 = vmatprep.subr.bf16.mxu0 0
      %1367 = vmatpush1.bf16.msra.mxu0 0
      %1368 = vmatprep.subr.bf16.mxu0 0
      %1369 = vmatpush1.bf16.msra.mxu0 0
      %1370 = vmatprep.subr.bf16.mxu0 0
      %1371 = vmatpush1.bf16.msra.mxu0 0
      %1372 = vmatprep.subr.bf16.mxu0 0
      %1373 = vmatpush1.bf16.msra.mxu0 0
      %1374 = vmatprep.subr.bf16.mxu0 0
      %1375 = vmatpush1.bf16.msra.mxu0 0
      %1376 = vmatprep.subr.bf16.mxu0 0
      %1377 = vmatpush1.bf16.msra.mxu0 0
      %1378 = vmatprep.subr.bf16.mxu0 0
      %1379 = vmatpush1.bf16.msra.mxu0 0
      %1380 = vmatprep.subr.bf16.mxu0 0
      %1381 = vmatpush1.bf16.msra.mxu0 0
      %1382 = vmatprep.subr.bf16.mxu0 0
      %1383 = vmatpush1.bf16.msra.mxu0 0
      %1384 = vmatprep.mubr.bf16.mxu0 0
      %1385 = vmatmul.mubr.bf16.gmra.mrb[0].mxu0 %v1350
      %v1386 = vpop.f32.mrb[0].mxu0
      %v1387 = vadd.f32 %v1347, %v1386
      %v1388 = vpop.f32.mrb[0].mxu0
      %v1389 = vpop.f32.mrb[0].mxu0
      %v1390 = vpop.f32.mrb[0].mxu0
      %1391 = vdwg.mxu0
      %v1392 = vadd.f32 %v1387, %v535
      %v1393 = vld [vmem:[%s8] sm:$0x1]
      %v1394 = vld [vmem:[%s9] sm:$0x1]
      %v1395 = vsel %vm550, %v1392, 0.0
      %1396 = vadd.xlane.f32.xlu0 %v1395
      %v1397 = vpop.xlane.xlu0 %1396
      %v1398 = vrcp.pop 32.0
      %v1399 = vmul.f32 %v1397, %v1398
      %v1400 = vsub.f32 %v1392, %v1399
      %v1401 = vmul.f32 %v1400, %v1400
      %v1402 = vsel %vm550, %v1401, 0.0
      %1403 = vadd.xlane.f32.xlu0 %v1402
      %v1404 = vpop.xlane.xlu0 %1403
      %v1405 = vmul.f32 %v1404, %v1398
      %v1406 = vadd.f32 %v1405, 1e-05
      %v1407 = vrsqrt.pop %v1406
      %v1408 = vmul.f32 %v1400, %v1407
      %v1410 = vlaneseq
      %v1411 = vshrl.u32 %v1410, 7
      %v1412 = vsub.s32 0, %v1411
      %v1413 = vrot.slane %v1393, %v1412
      %v1415 = vmul.f32 %v1408, %v1413
      %v1417 = vlaneseq
      %v1418 = vshrl.u32 %v1417, 7
      %v1419 = vsub.s32 0, %v1418
      %v1420 = vrot.slane %v1394, %v1419
      %v1422 = vadd.f32 %v1415, %v1420
      %v1423 = vld [vmem:[%s10] sm:$0xff]
      %v1424 = vld [vmem:[%s10 + $0x8] sm:$0xff]
      %v1425 = vld [vmem:[%s10 + $0x10] sm:$0xff]
      %v1426 = vld [vmem:[%s10 + $0x18] sm:$0xff]
      %v1427 = vpack.c.bf16 %v1422, %v1422
      %v1428 = vpack.c.bf16 %v1424, %v1423
      %v1429 = vpack.c.bf16 %v1426, %v1425
      %v1430 = vld [vmem:[%s11] sm:$0x1]
      %v1432 = vlaneseq
      %v1433 = vshrl.u32 %v1432, 7
      %v1434 = vsub.s32 0, %v1433
      %v1435 = vrot.slane %v1430, %v1434
      %v1438 = vsel %vm550, %v1427, 0
      %1440 = vmatprep.subr.bf16.mxu0 0
      %1441 = vmatpush1.bf16.msra.mxu0 %v1428
      %1442 = vmatprep.subr.bf16.mxu0 0
      %1443 = vmatpush1.bf16.msra.mxu0 %v1429
      %1444 = vmatprep.subr.bf16.mxu0 0
      %1445 = vmatpush1.bf16.msra.mxu0 0
      %1446 = vmatprep.subr.bf16.mxu0 0
      %1447 = vmatpush1.bf16.msra.mxu0 0
      %1448 = vmatprep.subr.bf16.mxu0 0
      %1449 = vmatpush1.bf16.msra.mxu0 0
      %1450 = vmatprep.subr.bf16.mxu0 0
      %1451 = vmatpush1.bf16.msra.mxu0 0
      %1452 = vmatprep.subr.bf16.mxu0 0
      %1453 = vmatpush1.bf16.msra.mxu0 0
      %1454 = vmatprep.subr.bf16.mxu0 0
      %1455 = vmatpush1.bf16.msra.mxu0 0
      %1456 = vmatprep.subr.bf16.mxu0 0
      %1457 = vmatpush1.bf16.msra.mxu0 0
      %1458 = vmatprep.subr.bf16.mxu0 0
      %1459 = vmatpush1.bf16.msra.mxu0 0
      %1460 = vmatprep.subr.bf16.mxu0 0
      %1461 = vmatpush1.bf16.msra.mxu0 0
      %1462 = vmatprep.subr.bf16.mxu0 0
      %1463 = vmatpush1.bf16.msra.mxu0 0
      %1464 = vmatprep.subr.bf16.mxu0 0
      %1465 = vmatpush1.bf16.msra.mxu0 0
      %1466 = vmatprep.subr.bf16.mxu0 0
      %1467 = vmatpush1.bf16.msra.mxu0 0
      %1468 = vmatprep.subr.bf16.mxu0 0
      %1469 = vmatpush1.bf16.msra.mxu0 0
      %1470 = vmatprep.subr.bf16.mxu0 0
      %1471 = vmatpush1.bf16.msra.mxu0 0
      %1472 = vmatprep.mubr.bf16.mxu0 0
      %1473 = vmatmul.mubr.bf16.gmra.mrb[0].mxu0 %v1438
      %v1474 = vpop.f32.mrb[0].mxu0
      %v1475 = vadd.f32 %v1435, %v1474
      %v1476 = vpop.f32.mrb[0].mxu0
      %v1477 = vpop.f32.mrb[0].mxu0
      %v1478 = vpop.f32.mrb[0].mxu0
      %1479 = vdwg.mxu0
      %v1480 = vmax.f32 %v1475, 0.0
      %v1481 = vld [vmem:[%s12] sm:$0xff]
      %v1482 = vld [vmem:[%s12 + $0x8] sm:$0xff]
      %v1483 = vld [vmem:[%s12 + $0x10] sm:$0xff]
      %v1484 = vld [vmem:[%s12 + $0x18] sm:$0xff]
      %v1485 = vld [vmem:[%s12 + $0x20] sm:$0xff]
      %v1486 = vld [vmem:[%s12 + $0x28] sm:$0xff]
      %v1487 = vld [vmem:[%s12 + $0x30] sm:$0xff]
      %v1488 = vld [vmem:[%s12 + $0x38] sm:$0xff]
      %v1489 = vpack.c.bf16 %v1480, %v1480
      %v1490 = vpack.c.bf16 %v1482, %v1481
      %v1491 = vpack.c.bf16 %v1484, %v1483
      %v1492 = vpack.c.bf16 %v1486, %v1485
      %v1493 = vpack.c.bf16 %v1488, %v1487
      %v1494 = vld [vmem:[%s13] sm:$0x1]
      %v1496 = vlaneseq
      %v1497 = vshrl.u32 %v1496, 7
      %v1498 = vsub.s32 0, %v1497
      %v1499 = vrot.slane %v1494, %v1498
      %vm1501 = vcmask 523264
      %v1503 = vsel %vm1501, %v1489, 0
      %1505 = vmatprep.subr.bf16.mxu0 0
      %1506 = vmatpush1.bf16.msra.mxu0 %v1490
      %1507 = vmatprep.subr.bf16.mxu0 0
      %1508 = vmatpush1.bf16.msra.mxu0 %v1491
      %1509 = vmatprep.subr.bf16.mxu0 0
      %1510 = vmatpush1.bf16.msra.mxu0 %v1492
      %1511 = vmatprep.subr.bf16.mxu0 0
      %1512 = vmatpush1.bf16.msra.mxu0 %v1493
      %1513 = vmatprep.subr.bf16.mxu0 0
      %1514 = vmatpush1.bf16.msra.mxu0 0
      %1515 = vmatprep.subr.bf16.mxu0 0
      %1516 = vmatpush1.bf16.msra.mxu0 0
      %1517 = vmatprep.subr.bf16.mxu0 0
      %1518 = vmatpush1.bf16.msra.mxu0 0
      %1519 = vmatprep.subr.bf16.mxu0 0
      %1520 = vmatpush1.bf16.msra.mxu0 0
      %1521 = vmatprep.subr.bf16.mxu0 0
      %1522 = vmatpush1.bf16.msra.mxu0 0
      %1523 = vmatprep.subr.bf16.mxu0 0
      %1524 = vmatpush1.bf16.msra.mxu0 0
      %1525 = vmatprep.subr.bf16.mxu0 0
      %1526 = vmatpush1.bf16.msra.mxu0 0
      %1527 = vmatprep.subr.bf16.mxu0 0
      %1528 = vmatpush1.bf16.msra.mxu0 0
      %1529 = vmatprep.subr.bf16.mxu0 0
      %1530 = vmatpush1.bf16.msra.mxu0 0
      %1531 = vmatprep.subr.bf16.mxu0 0
      %1532 = vmatpush1.bf16.msra.mxu0 0
      %1533 = vmatprep.subr.bf16.mxu0 0
      %1534 = vmatpush1.bf16.msra.mxu0 0
      %1535 = vmatprep.subr.bf16.mxu0 0
      %1536 = vmatpush1.bf16.msra.mxu0 0
      %1537 = vmatprep.mubr.bf16.mxu0 0
      %1538 = vmatmul.mubr.bf16.gmra.mrb[0].mxu0 %v1503
      %v1539 = vpop.f32.mrb[0].mxu0
      %v1540 = vadd.f32 %v1499, %v1539
      %v1541 = vpop.f32.mrb[0].mxu0
      %v1542 = vpop.f32.mrb[0].mxu0
      %v1543 = vpop.f32.mrb[0].mxu0
      %1544 = vdwg.mxu0
      %v1545 = vadd.f32 %v1540, %v1422
      %v1546 = vld [vmem:[%s14] sm:$0x1]
      %v1547 = vld [vmem:[%s15] sm:$0x1]
      %v1548 = vsel %vm550, %v1545, 0.0
      %1549 = vadd.xlane.f32.xlu0 %v1548
      %v1550 = vpop.xlane.xlu0 %1549
      %v1551 = vmul.f32 %v1550, %v1398
      %v1552 = vsub.f32 %v1545, %v1551
      %v1553 = vmul.f32 %v1552, %v1552
      %v1554 = vsel %vm550, %v1553, 0.0
      %1555 = vadd.xlane.f32.xlu0 %v1554
      %v1556 = vpop.xlane.xlu0 %1555
      %v1557 = vmul.f32 %v1556, %v1398
      %v1558 = vadd.f32 %v1557, 1e-05
      %v1559 = vrsqrt.pop %v1558
      %v1560 = vmul.f32 %v1552, %v1559
      %v1562 = vlaneseq
      %v1563 = vshrl.u32 %v1562, 7
      %v1564 = vsub.s32 0, %v1563
      %v1565 = vrot.slane %v1546, %v1564
      %v1567 = vmul.f32 %v1560, %v1565
      %v1569 = vlaneseq
      %v1570 = vshrl.u32 %v1569, 7
      %v1571 = vsub.s32 0, %v1570
      %v1572 = vrot.slane %v1547, %v1571
      %v1574 = vadd.f32 %v1567, %v1572
      %1575 = vst.msk [vmem:[%s533] sm:$0xff] %vm550, %v1574
      %p1576 = scmp.lt.s32.totalorder %s27, 1
      %s1577 = scalar_select %p1576, %s27, 1
      %s1578 = smul.addr %s1577, 8
      %s1579 = scalar_lea.vmem %s16, %s1578
      // Predicated region
      $region85: #{seq2seq_transformer_forward.6} parent=83 // pred_check
        %p1580 = pneg %p391
      $region86: #{seq2seq_transformer_forward.6} parent=83 // pred_check_branch
        %1582 = sbr.rel (%p1580) target = $region88
      $region87: #{seq2seq_transformer_forward.6} parent=83 // pred_region
        _
      $region88: #{seq2seq_transformer_forward.6} parent=83 // pred_fallthru
        _
    $region84: #{seq2seq_transformer_forward.6} parent=5 // pred_fallthru
      _
    %p1583 = scmp.le.s32.totalorder 2, %s22
    // Predicated region
    $region89: #{seq2seq_transformer_forward.6} parent=5 // pred_check
      %p1584 = pneg %p1583
    $region90: #{seq2seq_transformer_forward.6} parent=5 // pred_check_branch
      %1586 = sbr.rel (%p1584) target = $region92
    $region91: #{seq2seq_transformer_forward.6} parent=5 // pred_region
      %s1587 = ssub.s32 %s22, 2
      // Predicated region
      $region93: #{seq2seq_transformer_forward.6} parent=91 // pred_check
        %p1588 = pneg %p397
      $region94: #{seq2seq_transformer_forward.6} parent=91 // pred_check_branch
        %1590 = sbr.rel (%p1588) target = $region96
      $region95: #{seq2seq_transformer_forward.6} parent=91 // pred_region
        %p1591 = scmp.lt.s32.totalorder %s28, 1
        %s1592 = scalar_select %p1591, %s28, 1
        %s1593 = smul.addr %s1592, 8
        %s1594 = scalar_lea.vmem %s16, %s1593
      $region96: #{seq2seq_transformer_forward.6} parent=91 // pred_fallthru
        _
    $region92: #{seq2seq_transformer_forward.6} parent=5 // pred_fallthru
      _
  $region6: #{seq2seq_transformer_forward.6} parent=0 // loop_footer
    %s26 = sadd.s32 1, %s22
  $region7: #{seq2seq_transformer_forward.6} parent=0 // loop_footer_branch
    %21 = sbr.rel target = $region3
  $region8: #{seq2seq_transformer_forward.6} parent=0 // loop_exit
    _

// kernel: seq2seq_transformer_forward.10
$region0: #{seq2seq_transformer_forward.10}
  #allocation0 [shape = 'u32[]', space=smem, size = 0x4, offset = 0x4, fixed_abs, tag = 'smem constant byte address 0x4 - core index']
  #allocation1 [shape = 'u32[144,128]{1,0:T(1,128)}', space=vmem, size = 0x12000, scoped, tag = 'internal scratch']
  #allocation2 [shape = 'f32[8,32]{1,0:T(8,128)}', space=vmem, size = 0x1000, scoped, tag = 'scratch operand']
  %s0 = inlined_call_operand.vmem [shape: f32[16,32], index: 0, kind: input, shape index: {}]
  %s1 = inlined_call_operand.vmem [shape: f32[16,32], index: 1, kind: input, shape index: {}]
  %s2 = inlined_call_operand.vmem [shape: f32[2,8,8], index: 2, kind: input, shape index: {}]
  %s3 = inlined_call_operand.vmem [shape: f32[2,8,8], index: 3, kind: input, shape index: {}]
  %s4 = inlined_call_operand.vmem [shape: f32[32,32], index: 4, kind: input, shape index: {}]
  %s5 = inlined_call_operand.vmem [shape: f32[32,64], index: 5, kind: input, shape index: {}]
  %s6 = inlined_call_operand.vmem [shape: f32[32,32], index: 6, kind: input, shape index: {}]
  %s7 = inlined_call_operand.vmem [shape: f32[1,32], index: 7, kind: input, shape index: {}]
  %s8 = inlined_call_operand.vmem [shape: f32[1,64], index: 8, kind: input, shape index: {}]
  %s9 = inlined_call_operand.vmem [shape: f32[1,32], index: 9, kind: input, shape index: {}]
  %s10 = inlined_call_operand.vmem [shape: f32[1,32], index: 10, kind: input, shape index: {}]
  %s11 = inlined_call_operand.vmem [shape: f32[1,32], index: 11, kind: input, shape index: {}]
  %s12 = inlined_call_operand.vmem [shape: f32[32,32], index: 12, kind: input, shape index: {}]
  %s13 = inlined_call_operand.vmem [shape: f32[32,64], index: 13, kind: input, shape index: {}]
  %s14 = inlined_call_operand.vmem [shape: f32[32,32], index: 14, kind: input, shape index: {}]
  %s15 = inlined_call_operand.vmem [shape: f32[1,32], index: 15, kind: input, shape index: {}]
  %s16 = inlined_call_operand.vmem [shape: f32[1,64], index: 16, kind: input, shape index: {}]
  %s17 = inlined_call_operand.vmem [shape: f32[1,32], index: 17, kind: input, shape index: {}]
  %s18 = inlined_call_operand.vmem [shape: f32[1,32], index: 18, kind: input, shape index: {}]
  %s19 = inlined_call_operand.hbm [shape: f32[1,32], index: 19, kind: input, shape index: {}]
  %s20 = inlined_call_operand.vmem [shape: f32[32,64], index: 20, kind: input, shape index: {}]
  %s21 = inlined_call_operand.hbm [shape: f32[1,64], index: 21, kind: input, shape index: {}]
  %s22 = inlined_call_operand.vmem [shape: f32[64,32], index: 22, kind: input, shape index: {}]
  %s23 = inlined_call_operand.hbm [shape: f32[1,32], index: 23, kind: input, shape index: {}]
  %s24 = inlined_call_operand.hbm [shape: f32[1,32], index: 24, kind: input, shape index: {}]
  %s25 = inlined_call_operand.hbm [shape: f32[1,32], index: 25, kind: input, shape index: {}]
  %s26 = inlined_call_operand.vmem [shape: f32[16,32], index: 26, kind: output, shape index: {}]
  %s27 = sld [smem:[#allocation0]]
  $region157: #{seq2seq_transformer_forward.10} parent=0
    _
  %s29 = ssub.s32 1, %s27
  %s30 = scalar_select 0, %s29, %s27
  $region1: #{seq2seq_transformer_forward.10} parent=0
    #allocation3 [shape = 'u8[512]{0}', space=vmem, size = 0x400, scoped, tag = 'input window, operand 19, single buffered']
    #allocation4 [shape = 's32[2]{0}', space=sflag, size = 0x8, scoped, tag = 'scoped memory for seq2seq_transformer_forward.10']
    #allocation5 [shape = 'u8[512]{0}', space=vmem, size = 0x400, scoped, tag = 'input window, operand 21, single buffered']
    #allocation6 [shape = 's32[1]{0}', space=sflag, size = 0x4, scoped, tag = 'scoped memory for seq2seq_transformer_forward.10']
    #allocation7 [shape = 'u8[512]{0}', space=vmem, size = 0x400, scoped, tag = 'input window, operand 23, single buffered']
    #allocation8 [shape = 'u8[512]{0}', space=vmem, size = 0x400, scoped, tag = 'input window, operand 24, single buffered']
    #allocation9 [shape = 's32[1]{0}', space=sflag, size = 0x4, scoped, tag = 'scoped memory for seq2seq_transformer_forward.10']
    #allocation10 [shape = 'u8[512]{0}', space=vmem, size = 0x400, scoped, tag = 'input window, operand 25, single buffered']
    %31 = vsyncpa [#allocation4], 0
    %32 = vsyncpa [#allocation6], 0
    %33 = vsyncpa [#allocation9], 0
    loop: start=0, step=1, limit=4
    $region2: #{seq2seq_transformer_forward.10} parent=1 // loop_pre_header
      _
    $region3: #{seq2seq_transformer_forward.10} parent=1 // loop_header
      %s35 = sphi 0, %s39
      %p36 = scmp.ge.s32.totalorder %s35, 4
      %s45 = sphi 0, %s47
      %s48 = sphi 0, %s45
      %s49 = sphi 0, %s48
      %s65 = sphi 0, %s49
      %s71 = sphi 0, %s73
      %s74 = sphi 0, %s71
      %s75 = sphi 0, %s74
      %s91 = sphi 0, %s75
      %s97 = sphi 0, %s99
      %s100 = sphi 0, %s97
      %s101 = sphi 0, %s100
      %s117 = sphi 0, %s101
      %s123 = sphi 0, %s125
      %s126 = sphi 0, %s123
      %s127 = sphi 0, %s126
      %s143 = sphi 0, %s127
      %s147 = sphi 0, %s147
      %s149 = sphi 0, %s147
      %s150 = sphi 0, %s149
      %s164 = sphi 0, %s150
      %s168 = sphi 0, %s168
      %s170 = sphi 0, %s168
      %s171 = sphi 0, %s170
      %s185 = sphi 0, %s171
      %s189 = sphi 0, %s189
      %s191 = sphi 0, %s189
      %s192 = sphi 0, %s191
      %s206 = sphi 0, %s192
      %s210 = sphi 0, %s210
      %s212 = sphi 0, %s210
      %s213 = sphi 0, %s212
      %s227 = sphi 0, %s213
      %s231 = sphi 0, %s231
      %s233 = sphi 0, %s231
      %s234 = sphi 0, %s233
      %s248 = sphi 0, %s234
      %s252 = sphi 0, %s252
      %s254 = sphi 0, %s252
      %s255 = sphi 0, %s254
      %s269 = sphi 0, %s255
      %s273 = sphi 0, %s273
      %s275 = sphi 0, %s273
      %s276 = sphi 0, %s275
      %s290 = sphi 0, %s276
      %s294 = sphi 0, %s294
      %s296 = sphi 0, %s294
      %s297 = sphi 0, %s296
      %s311 = sphi 0, %s297
      %s315 = sphi 0, %s315
      %s317 = sphi 0, %s315
      %s318 = sphi 0, %s317
      %s332 = sphi 0, %s318
      %s336 = sphi 0, %s336
      %s338 = sphi 0, %s336
      %s339 = sphi 0, %s338
      %s353 = sphi 0, %s339
      %s357 = sphi 0, %s357
      %s359 = sphi 0, %s357
      %s360 = sphi 0, %s359
      %s374 = sphi 0, %s360
      %s378 = sphi 0, %s378
      %s380 = sphi 0, %s378
      %s381 = sphi 0, %s380
      %s395 = sphi 0, %s381
      %s399 = sphi 0, %s399
      %s401 = sphi 0, %s399
      %s402 = sphi 0, %s401
      %s416 = sphi 0, %s402
      %s420 = sphi 0, %s420
      %s422 = sphi 0, %s420
      %s423 = sphi 0, %s422
      %s437 = sphi 0, %s423
      %s441 = sphi 0, %s441
      %s443 = sphi 0, %s441
      %s444 = sphi 0, %s443
      %s458 = sphi 0, %s444
      %s462 = sphi 0, %s462
      %s464 = sphi 0, %s462
      %s465 = sphi 0, %s464
      %s479 = sphi 0, %s465
      %s483 = sphi 0, %s483
      %s485 = sphi 0, %s483
      %s486 = sphi 0, %s485
      %s500 = sphi 0, %s486
      %s504 = sphi 0, %s504
      %s506 = sphi 0, %s504
      %s507 = sphi 0, %s506
      %s521 = sphi 0, %s507
      %s525 = sphi 0, %s525
      %s527 = sphi 0, %s525
      %s528 = sphi 0, %s527
      %s542 = sphi 0, %s528
      %s546 = sphi 0, %s546
      %s548 = sphi 0, %s546
      %s549 = sphi 0, %s548
      %s563 = sphi 0, %s549
      %s567 = sphi 0, %s567
      %s569 = sphi 0, %s567
      %s570 = sphi 0, %s569
      %s584 = sphi 0, %s570
      %s588 = sphi 0, %s588
      %s590 = sphi 0, %s588
      %s591 = sphi 0, %s590
      %s605 = sphi 0, %s591
      %s611 = sphi 0, %s613
      %s614 = sphi 0, %s611
      %s615 = sphi 0, %s614
      %s631 = sphi 0, %s615
    $region4: #{seq2seq_transformer_forward.10} parent=1 // loop_header_branch
      %38 = sbr.rel (%p36) target = $region8
    $region5: #{seq2seq_transformer_forward.10} parent=1 // loop_body
      %s40 = ssub.s32 %s35, 1
      %s41 = ssub.s32 %s35, 2
      %s42 = sadd.s32 %s35, 1
      %s43 = ssub.s32 %s35, %s42
      %p44 = scmp.eq.s32.totalorder %s43, 0
      %s46 = sadd.s32 %s45, 1
      %s47 = scalar_select %p44, %s45, %s46
      %p50 = pneg %p44
      %p51 = scmp.eq.s32.totalorder %s35, 1
      %p52 = por %p50, %p51
      %p53 = scmp.ne.s32.totalorder %s45, %s48
      %p54 = scmp.eq.s32.totalorder %s35, 0
      %p55 = por %p53, %p54
      %p56 = scmp.ne.s32.totalorder %s45, %s48
      %p57 = scmp.eq.s32.totalorder %s40, 1
      %p58 = por %p56, %p57
      %p59 = scmp.ne.s32.totalorder %s48, %s49
      %p60 = scmp.eq.s32.totalorder %s40, 0
      %p61 = por %p59, %p60
      %p62 = scmp.ne.s32.totalorder %s48, %s49
      %p63 = scmp.eq.s32.totalorder %s41, 1
      %p64 = por %p62, %p63
      %p66 = scmp.ne.s32.totalorder %s49, %s65
      %p67 = scmp.eq.s32.totalorder %s41, 0
      %p68 = por %p66, %p67
      %s69 = ssub.s32 %s35, %s42
      %p70 = scmp.eq.s32.totalorder %s69, 0
      %s72 = sadd.s32 %s71, 1
      %s73 = scalar_select %p70, %s71, %s72
      %p76 = pneg %p70
      %p77 = scmp.eq.s32.totalorder %s35, 1
      %p78 = por %p76, %p77
      %p79 = scmp.ne.s32.totalorder %s71, %s74
      %p80 = scmp.eq.s32.totalorder %s35, 0
      %p81 = por %p79, %p80
      %p82 = scmp.ne.s32.totalorder %s71, %s74
      %p83 = scmp.eq.s32.totalorder %s40, 1
      %p84 = por %p82, %p83
      %p85 = scmp.ne.s32.totalorder %s74, %s75
      %p86 = scmp.eq.s32.totalorder %s40, 0
      %p87 = por %p85, %p86
      %p88 = scmp.ne.s32.totalorder %s74, %s75
      %p89 = scmp.eq.s32.totalorder %s41, 1
      %p90 = por %p88, %p89
      %p92 = scmp.ne.s32.totalorder %s75, %s91
      %p93 = scmp.eq.s32.totalorder %s41, 0
      %p94 = por %p92, %p93
      %s95 = ssub.s32 %s35, %s42
      %p96 = scmp.eq.s32.totalorder %s95, 0
      %s98 = sadd.s32 %s97, 1
      %s99 = scalar_select %p96, %s97, %s98
      %p102 = pneg %p96
      %p103 = scmp.eq.s32.totalorder %s35, 1
      %p104 = por %p102, %p103
      %p105 = scmp.ne.s32.totalorder %s97, %s100
      %p106 = scmp.eq.s32.totalorder %s35, 0
      %p107 = por %p105, %p106
      %p108 = scmp.ne.s32.totalorder %s97, %s100
      %p109 = scmp.eq.s32.totalorder %s40, 1
      %p110 = por %p108, %p109
      %p111 = scmp.ne.s32.totalorder %s100, %s101
      %p112 = scmp.eq.s32.totalorder %s40, 0
      %p113 = por %p111, %p112
      %p114 = scmp.ne.s32.totalorder %s100, %s101
      %p115 = scmp.eq.s32.totalorder %s41, 1
      %p116 = por %p114, %p115
      %p118 = scmp.ne.s32.totalorder %s101, %s117
      %p119 = scmp.eq.s32.totalorder %s41, 0
      %p120 = por %p118, %p119
      %s121 = ssub.s32 %s35, %s42
      %p122 = scmp.eq.s32.totalorder %s121, 0
      %s124 = sadd.s32 %s123, 1
      %s125 = scalar_select %p122, %s123, %s124
      %p128 = pneg %p122
      %p129 = scmp.eq.s32.totalorder %s35, 1
      %p130 = por %p128, %p129
      %p131 = scmp.ne.s32.totalorder %s123, %s126
      %p132 = scmp.eq.s32.totalorder %s35, 0
      %p133 = por %p131, %p132
      %p134 = scmp.ne.s32.totalorder %s123, %s126
      %p135 = scmp.eq.s32.totalorder %s40, 1
      %p136 = por %p134, %p135
      %p137 = scmp.ne.s32.totalorder %s126, %s127
      %p138 = scmp.eq.s32.totalorder %s40, 0
      %p139 = por %p137, %p138
      %p140 = scmp.ne.s32.totalorder %s126, %s127
      %p141 = scmp.eq.s32.totalorder %s41, 1
      %p142 = por %p140, %p141
      %p144 = scmp.ne.s32.totalorder %s127, %s143
      %p145 = scmp.eq.s32.totalorder %s41, 0
      %p146 = por %p144, %p145
      %s148 = sadd.s32 %s147, 1
      %p151 = scmp.eq.s32.totalorder %s35, 1
      %p152 = scmp.ne.s32.totalorder %s147, %s149
      %p153 = scmp.eq.s32.totalorder %s35, 0
      %p154 = por %p152, %p153
      %p155 = scmp.ne.s32.totalorder %s147, %s149
      %p156 = scmp.eq.s32.totalorder %s40, 1
      %p157 = por %p155, %p156
      %p158 = scmp.ne.s32.totalorder %s149, %s150
      %p159 = scmp.eq.s32.totalorder %s40, 0
      %p160 = por %p158, %p159
      %p161 = scmp.ne.s32.totalorder %s149, %s150
      %p162 = scmp.eq.s32.totalorder %s41, 1
      %p163 = por %p161, %p162
      %p165 = scmp.ne.s32.totalorder %s150, %s164
      %p166 = scmp.eq.s32.totalorder %s41, 0
      %p167 = por %p165, %p166
      %s169 = sadd.s32 %s168, 1
      %p172 = scmp.eq.s32.totalorder %s35, 1
      %p173 = scmp.ne.s32.totalorder %s168, %s170
      %p174 = scmp.eq.s32.totalorder %s35, 0
      %p175 = por %p173, %p174
      %p176 = scmp.ne.s32.totalorder %s168, %s170
      %p177 = scmp.eq.s32.totalorder %s40, 1
      %p178 = por %p176, %p177
      %p179 = scmp.ne.s32.totalorder %s170, %s171
      %p180 = scmp.eq.s32.totalorder %s40, 0
      %p181 = por %p179, %p180
      %p182 = scmp.ne.s32.totalorder %s170, %s171
      %p183 = scmp.eq.s32.totalorder %s41, 1
      %p184 = por %p182, %p183
      %p186 = scmp.ne.s32.totalorder %s171, %s185
      %p187 = scmp.eq.s32.totalorder %s41, 0
      %p188 = por %p186, %p187
      %s190 = sadd.s32 %s189, 1
      %p193 = scmp.eq.s32.totalorder %s35, 1
      %p194 = scmp.ne.s32.totalorder %s189, %s191
      %p195 = scmp.eq.s32.totalorder %s35, 0
      %p196 = por %p194, %p195
      %p197 = scmp.ne.s32.totalorder %s189, %s191
      %p198 = scmp.eq.s32.totalorder %s40, 1
      %p199 = por %p197, %p198
      %p200 = scmp.ne.s32.totalorder %s191, %s192
      %p201 = scmp.eq.s32.totalorder %s40, 0
      %p202 = por %p200, %p201
      %p203 = scmp.ne.s32.totalorder %s191, %s192
      %p204 = scmp.eq.s32.totalorder %s41, 1
      %p205 = por %p203, %p204
      %p207 = scmp.ne.s32.totalorder %s192, %s206
      %p208 = scmp.eq.s32.totalorder %s41, 0
      %p209 = por %p207, %p208
      %s211 = sadd.s32 %s210, 1
      %p214 = scmp.eq.s32.totalorder %s35, 1
      %p215 = scmp.ne.s32.totalorder %s210, %s212
      %p216 = scmp.eq.s32.totalorder %s35, 0
      %p217 = por %p215, %p216
      %p218 = scmp.ne.s32.totalorder %s210, %s212
      %p219 = scmp.eq.s32.totalorder %s40, 1
      %p220 = por %p218, %p219
      %p221 = scmp.ne.s32.totalorder %s212, %s213
      %p222 = scmp.eq.s32.totalorder %s40, 0
      %p223 = por %p221, %p222
      %p224 = scmp.ne.s32.totalorder %s212, %s213
      %p225 = scmp.eq.s32.totalorder %s41, 1
      %p226 = por %p224, %p225
      %p228 = scmp.ne.s32.totalorder %s213, %s227
      %p229 = scmp.eq.s32.totalorder %s41, 0
      %p230 = por %p228, %p229
      %s232 = sadd.s32 %s231, 1
      %p235 = scmp.eq.s32.totalorder %s35, 1
      %p236 = scmp.ne.s32.totalorder %s231, %s233
      %p237 = scmp.eq.s32.totalorder %s35, 0
      %p238 = por %p236, %p237
      %p239 = scmp.ne.s32.totalorder %s231, %s233
      %p240 = scmp.eq.s32.totalorder %s40, 1
      %p241 = por %p239, %p240
      %p242 = scmp.ne.s32.totalorder %s233, %s234
      %p243 = scmp.eq.s32.totalorder %s40, 0
      %p244 = por %p242, %p243
      %p245 = scmp.ne.s32.totalorder %s233, %s234
      %p246 = scmp.eq.s32.totalorder %s41, 1
      %p247 = por %p245, %p246
      %p249 = scmp.ne.s32.totalorder %s234, %s248
      %p250 = scmp.eq.s32.totalorder %s41, 0
      %p251 = por %p249, %p250
      %s253 = sadd.s32 %s252, 1
      %p256 = scmp.eq.s32.totalorder %s35, 1
      %p257 = scmp.ne.s32.totalorder %s252, %s254
      %p258 = scmp.eq.s32.totalorder %s35, 0
      %p259 = por %p257, %p258
      %p260 = scmp.ne.s32.totalorder %s252, %s254
      %p261 = scmp.eq.s32.totalorder %s40, 1
      %p262 = por %p260, %p261
      %p263 = scmp.ne.s32.totalorder %s254, %s255
      %p264 = scmp.eq.s32.totalorder %s40, 0
      %p265 = por %p263, %p264
      %p266 = scmp.ne.s32.totalorder %s254, %s255
      %p267 = scmp.eq.s32.totalorder %s41, 1
      %p268 = por %p266, %p267
      %p270 = scmp.ne.s32.totalorder %s255, %s269
      %p271 = scmp.eq.s32.totalorder %s41, 0
      %p272 = por %p270, %p271
      %s274 = sadd.s32 %s273, 1
      %p277 = scmp.eq.s32.totalorder %s35, 1
      %p278 = scmp.ne.s32.totalorder %s273, %s275
      %p279 = scmp.eq.s32.totalorder %s35, 0
      %p280 = por %p278, %p279
      %p281 = scmp.ne.s32.totalorder %s273, %s275
      %p282 = scmp.eq.s32.totalorder %s40, 1
      %p283 = por %p281, %p282
      %p284 = scmp.ne.s32.totalorder %s275, %s276
      %p285 = scmp.eq.s32.totalorder %s40, 0
      %p286 = por %p284, %p285
      %p287 = scmp.ne.s32.totalorder %s275, %s276
      %p288 = scmp.eq.s32.totalorder %s41, 1
      %p289 = por %p287, %p288
      %p291 = scmp.ne.s32.totalorder %s276, %s290
      %p292 = scmp.eq.s32.totalorder %s41, 0
      %p293 = por %p291, %p292
      %s295 = sadd.s32 %s294, 1
      %p298 = scmp.eq.s32.totalorder %s35, 1
      %p299 = scmp.ne.s32.totalorder %s294, %s296
      %p300 = scmp.eq.s32.totalorder %s35, 0
      %p301 = por %p299, %p300
      %p302 = scmp.ne.s32.totalorder %s294, %s296
      %p303 = scmp.eq.s32.totalorder %s40, 1
      %p304 = por %p302, %p303
      %p305 = scmp.ne.s32.totalorder %s296, %s297
      %p306 = scmp.eq.s32.totalorder %s40, 0
      %p307 = por %p305, %p306
      %p308 = scmp.ne.s32.totalorder %s296, %s297
      %p309 = scmp.eq.s32.totalorder %s41, 1
      %p310 = por %p308, %p309
      %p312 = scmp.ne.s32.totalorder %s297, %s311
      %p313 = scmp.eq.s32.totalorder %s41, 0
      %p314 = por %p312, %p313
      %s316 = sadd.s32 %s315, 1
      %p319 = scmp.eq.s32.totalorder %s35, 1
      %p320 = scmp.ne.s32.totalorder %s315, %s317
      %p321 = scmp.eq.s32.totalorder %s35, 0
      %p322 = por %p320, %p321
      %p323 = scmp.ne.s32.totalorder %s315, %s317
      %p324 = scmp.eq.s32.totalorder %s40, 1
      %p325 = por %p323, %p324
      %p326 = scmp.ne.s32.totalorder %s317, %s318
      %p327 = scmp.eq.s32.totalorder %s40, 0
      %p328 = por %p326, %p327
      %p329 = scmp.ne.s32.totalorder %s317, %s318
      %p330 = scmp.eq.s32.totalorder %s41, 1
      %p331 = por %p329, %p330
      %p333 = scmp.ne.s32.totalorder %s318, %s332
      %p334 = scmp.eq.s32.totalorder %s41, 0
      %p335 = por %p333, %p334
      %s337 = sadd.s32 %s336, 1
      %p340 = scmp.eq.s32.totalorder %s35, 1
      %p341 = scmp.ne.s32.totalorder %s336, %s338
      %p342 = scmp.eq.s32.totalorder %s35, 0
      %p343 = por %p341, %p342
      %p344 = scmp.ne.s32.totalorder %s336, %s338
      %p345 = scmp.eq.s32.totalorder %s40, 1
      %p346 = por %p344, %p345
      %p347 = scmp.ne.s32.totalorder %s338, %s339
      %p348 = scmp.eq.s32.totalorder %s40, 0
      %p349 = por %p347, %p348
      %p350 = scmp.ne.s32.totalorder %s338, %s339
      %p351 = scmp.eq.s32.totalorder %s41, 1
      %p352 = por %p350, %p351
      %p354 = scmp.ne.s32.totalorder %s339, %s353
      %p355 = scmp.eq.s32.totalorder %s41, 0
      %p356 = por %p354, %p355
      %s358 = sadd.s32 %s357, 1
      %p361 = scmp.eq.s32.totalorder %s35, 1
      %p362 = scmp.ne.s32.totalorder %s357, %s359
      %p363 = scmp.eq.s32.totalorder %s35, 0
      %p364 = por %p362, %p363
      %p365 = scmp.ne.s32.totalorder %s357, %s359
      %p366 = scmp.eq.s32.totalorder %s40, 1
      %p367 = por %p365, %p366
      %p368 = scmp.ne.s32.totalorder %s359, %s360
      %p369 = scmp.eq.s32.totalorder %s40, 0
      %p370 = por %p368, %p369
      %p371 = scmp.ne.s32.totalorder %s359, %s360
      %p372 = scmp.eq.s32.totalorder %s41, 1
      %p373 = por %p371, %p372
      %p375 = scmp.ne.s32.totalorder %s360, %s374
      %p376 = scmp.eq.s32.totalorder %s41, 0
      %p377 = por %p375, %p376
      %s379 = sadd.s32 %s378, 1
      %p382 = scmp.eq.s32.totalorder %s35, 1
      %p383 = scmp.ne.s32.totalorder %s378, %s380
      %p384 = scmp.eq.s32.totalorder %s35, 0
      %p385 = por %p383, %p384
      %p386 = scmp.ne.s32.totalorder %s378, %s380
      %p387 = scmp.eq.s32.totalorder %s40, 1
      %p388 = por %p386, %p387
      %p389 = scmp.ne.s32.totalorder %s380, %s381
      %p390 = scmp.eq.s32.totalorder %s40, 0
      %p391 = por %p389, %p390
      %p392 = scmp.ne.s32.totalorder %s380, %s381
      %p393 = scmp.eq.s32.totalorder %s41, 1
      %p394 = por %p392, %p393
      %p396 = scmp.ne.s32.totalorder %s381, %s395
      %p397 = scmp.eq.s32.totalorder %s41, 0
      %p398 = por %p396, %p397
      %s400 = sadd.s32 %s399, 1
      %p403 = scmp.eq.s32.totalorder %s35, 1
      %p404 = scmp.ne.s32.totalorder %s399, %s401
      %p405 = scmp.eq.s32.totalorder %s35, 0
      %p406 = por %p404, %p405
      %p407 = scmp.ne.s32.totalorder %s399, %s401
      %p408 = scmp.eq.s32.totalorder %s40, 1
      %p409 = por %p407, %p408
      %p410 = scmp.ne.s32.totalorder %s401, %s402
      %p411 = scmp.eq.s32.totalorder %s40, 0
      %p412 = por %p410, %p411
      %p413 = scmp.ne.s32.totalorder %s401, %s402
      %p414 = scmp.eq.s32.totalorder %s41, 1
      %p415 = por %p413, %p414
      %p417 = scmp.ne.s32.totalorder %s402, %s416
      %p418 = scmp.eq.s32.totalorder %s41, 0
      %p419 = por %p417, %p418
      %s421 = sadd.s32 %s420, 1
      %p424 = scmp.eq.s32.totalorder %s35, 1
      %p425 = scmp.ne.s32.totalorder %s420, %s422
      %p426 = scmp.eq.s32.totalorder %s35, 0
      %p427 = por %p425, %p426
      %p428 = scmp.ne.s32.totalorder %s420, %s422
      %p429 = scmp.eq.s32.totalorder %s40, 1
      %p430 = por %p428, %p429
      %p431 = scmp.ne.s32.totalorder %s422, %s423
      %p432 = scmp.eq.s32.totalorder %s40, 0
      %p433 = por %p431, %p432
      %p434 = scmp.ne.s32.totalorder %s422, %s423
      %p435 = scmp.eq.s32.totalorder %s41, 1
      %p436 = por %p434, %p435
      %p438 = scmp.ne.s32.totalorder %s423, %s437
      %p439 = scmp.eq.s32.totalorder %s41, 0
      %p440 = por %p438, %p439
      %s442 = sadd.s32 %s441, 1
      %p445 = scmp.eq.s32.totalorder %s35, 1
      %p446 = scmp.ne.s32.totalorder %s441, %s443
      %p447 = scmp.eq.s32.totalorder %s35, 0
      %p448 = por %p446, %p447
      %p449 = scmp.ne.s32.totalorder %s441, %s443
      %p450 = scmp.eq.s32.totalorder %s40, 1
      %p451 = por %p449, %p450
      %p452 = scmp.ne.s32.totalorder %s443, %s444
      %p453 = scmp.eq.s32.totalorder %s40, 0
      %p454 = por %p452, %p453
      %p455 = scmp.ne.s32.totalorder %s443, %s444
      %p456 = scmp.eq.s32.totalorder %s41, 1
      %p457 = por %p455, %p456
      %p459 = scmp.ne.s32.totalorder %s444, %s458
      %p460 = scmp.eq.s32.totalorder %s41, 0
      %p461 = por %p459, %p460
      %s463 = sadd.s32 %s462, 1
      %p466 = scmp.eq.s32.totalorder %s35, 1
      %p467 = scmp.ne.s32.totalorder %s462, %s464
      %p468 = scmp.eq.s32.totalorder %s35, 0
      %p469 = por %p467, %p468
      %p470 = scmp.ne.s32.totalorder %s462, %s464
      %p471 = scmp.eq.s32.totalorder %s40, 1
      %p472 = por %p470, %p471
      %p473 = scmp.ne.s32.totalorder %s464, %s465
      %p474 = scmp.eq.s32.totalorder %s40, 0
      %p475 = por %p473, %p474
      %p476 = scmp.ne.s32.totalorder %s464, %s465
      %p477 = scmp.eq.s32.totalorder %s41, 1
      %p478 = por %p476, %p477
      %p480 = scmp.ne.s32.totalorder %s465, %s479
      %p481 = scmp.eq.s32.totalorder %s41, 0
      %p482 = por %p480, %p481
      %s484 = sadd.s32 %s483, 1
      %p487 = scmp.eq.s32.totalorder %s35, 1
      %p488 = scmp.ne.s32.totalorder %s483, %s485
      %p489 = scmp.eq.s32.totalorder %s35, 0
      %p490 = por %p488, %p489
      %p491 = scmp.ne.s32.totalorder %s483, %s485
      %p492 = scmp.eq.s32.totalorder %s40, 1
      %p493 = por %p491, %p492
      %p494 = scmp.ne.s32.totalorder %s485, %s486
      %p495 = scmp.eq.s32.totalorder %s40, 0
      %p496 = por %p494, %p495
      %p497 = scmp.ne.s32.totalorder %s485, %s486
      %p498 = scmp.eq.s32.totalorder %s41, 1
      %p499 = por %p497, %p498
      %p501 = scmp.ne.s32.totalorder %s486, %s500
      %p502 = scmp.eq.s32.totalorder %s41, 0
      %p503 = por %p501, %p502
      %s505 = sadd.s32 %s504, 1
      %p508 = scmp.eq.s32.totalorder %s35, 1
      %p509 = scmp.ne.s32.totalorder %s504, %s506
      %p510 = scmp.eq.s32.totalorder %s35, 0
      %p511 = por %p509, %p510
      %p512 = scmp.ne.s32.totalorder %s504, %s506
      %p513 = scmp.eq.s32.totalorder %s40, 1
      %p514 = por %p512, %p513
      %p515 = scmp.ne.s32.totalorder %s506, %s507
      %p516 = scmp.eq.s32.totalorder %s40, 0
      %p517 = por %p515, %p516
      %p518 = scmp.ne.s32.totalorder %s506, %s507
      %p519 = scmp.eq.s32.totalorder %s41, 1
      %p520 = por %p518, %p519
      %p522 = scmp.ne.s32.totalorder %s507, %s521
      %p523 = scmp.eq.s32.totalorder %s41, 0
      %p524 = por %p522, %p523
      %s526 = sadd.s32 %s525, 1
      %p529 = scmp.eq.s32.totalorder %s35, 1
      %p530 = scmp.ne.s32.totalorder %s525, %s527
      %p531 = scmp.eq.s32.totalorder %s35, 0
      %p532 = por %p530, %p531
      %p533 = scmp.ne.s32.totalorder %s525, %s527
      %p534 = scmp.eq.s32.totalorder %s40, 1
      %p535 = por %p533, %p534
      %p536 = scmp.ne.s32.totalorder %s527, %s528
      %p537 = scmp.eq.s32.totalorder %s40, 0
      %p538 = por %p536, %p537
      %p539 = scmp.ne.s32.totalorder %s527, %s528
      %p540 = scmp.eq.s32.totalorder %s41, 1
      %p541 = por %p539, %p540
      %p543 = scmp.ne.s32.totalorder %s528, %s542
      %p544 = scmp.eq.s32.totalorder %s41, 0
      %p545 = por %p543, %p544
      %s547 = sadd.s32 %s546, 1
      %p550 = scmp.eq.s32.totalorder %s35, 1
      %p551 = scmp.ne.s32.totalorder %s546, %s548
      %p552 = scmp.eq.s32.totalorder %s35, 0
      %p553 = por %p551, %p552
      %p554 = scmp.ne.s32.totalorder %s546, %s548
      %p555 = scmp.eq.s32.totalorder %s40, 1
      %p556 = por %p554, %p555
      %p557 = scmp.ne.s32.totalorder %s548, %s549
      %p558 = scmp.eq.s32.totalorder %s40, 0
      %p559 = por %p557, %p558
      %p560 = scmp.ne.s32.totalorder %s548, %s549
      %p561 = scmp.eq.s32.totalorder %s41, 1
      %p562 = por %p560, %p561
      %p564 = scmp.ne.s32.totalorder %s549, %s563
      %p565 = scmp.eq.s32.totalorder %s41, 0
      %p566 = por %p564, %p565
      %s568 = sadd.s32 %s567, 1
      %p571 = scmp.eq.s32.totalorder %s35, 1
      %p572 = scmp.ne.s32.totalorder %s567, %s569
      %p573 = scmp.eq.s32.totalorder %s35, 0
      %p574 = por %p572, %p573
      %p575 = scmp.ne.s32.totalorder %s567, %s569
      %p576 = scmp.eq.s32.totalorder %s40, 1
      %p577 = por %p575, %p576
      %p578 = scmp.ne.s32.totalorder %s569, %s570
      %p579 = scmp.eq.s32.totalorder %s40, 0
      %p580 = por %p578, %p579
      %p581 = scmp.ne.s32.totalorder %s569, %s570
      %p582 = scmp.eq.s32.totalorder %s41, 1
      %p583 = por %p581, %p582
      %p585 = scmp.ne.s32.totalorder %s570, %s584
      %p586 = scmp.eq.s32.totalorder %s41, 0
      %p587 = por %p585, %p586
      %s589 = sadd.s32 %s588, 1
      %p592 = scmp.eq.s32.totalorder %s35, 1
      %p593 = scmp.ne.s32.totalorder %s588, %s590
      %p594 = scmp.eq.s32.totalorder %s35, 0
      %p595 = por %p593, %p594
      %p596 = scmp.ne.s32.totalorder %s588, %s590
      %p597 = scmp.eq.s32.totalorder %s40, 1
      %p598 = por %p596, %p597
      %p599 = scmp.ne.s32.totalorder %s590, %s591
      %p600 = scmp.eq.s32.totalorder %s40, 0
      %p601 = por %p599, %p600
      %p602 = scmp.ne.s32.totalorder %s590, %s591
      %p603 = scmp.eq.s32.totalorder %s41, 1
      %p604 = por %p602, %p603
      %p606 = scmp.ne.s32.totalorder %s591, %s605
      %p607 = scmp.eq.s32.totalorder %s41, 0
      %p608 = por %p606, %p607
      %s609 = ssub.s32 %s35, %s42
      %p610 = scmp.eq.s32.totalorder %s609, 0
      %s612 = sadd.s32 %s611, 1
      %s613 = scalar_select %p610, %s611, %s612
      %p616 = pneg %p610
      %p617 = scmp.eq.s32.totalorder %s35, 1
      %p618 = por %p616, %p617
      %p619 = scmp.ne.s32.totalorder %s611, %s614
      %p620 = scmp.eq.s32.totalorder %s35, 0
      %p621 = por %p619, %p620
      %p622 = scmp.ne.s32.totalorder %s611, %s614
      %p623 = scmp.eq.s32.totalorder %s40, 1
      %p624 = por %p622, %p623
      %p625 = scmp.ne.s32.totalorder %s614, %s615
      %p626 = scmp.eq.s32.totalorder %s40, 0
      %p627 = por %p625, %p626
      %p628 = scmp.ne.s32.totalorder %s614, %s615
      %p629 = scmp.eq.s32.totalorder %s41, 1
      %p630 = por %p628, %p629
      %p632 = scmp.ne.s32.totalorder %s615, %s631
      %p633 = scmp.eq.s32.totalorder %s41, 0
      %p634 = por %p632, %p633
      %p635 = scmp.le.s32.totalorder 1, %s35
      %p636 = scmp.lt.s32.totalorder %s35, 3
      %p637 = pnand %p635, %p636
      %p638 = pneg %p637
      // Predicated region
      $region9: #{seq2seq_transformer_forward.10} parent=5 // pred_check
        _
      $region10: #{seq2seq_transformer_forward.10} parent=5 // pred_check_branch
        %640 = sbr.rel (%p637) target = $region12
      $region11: #{seq2seq_transformer_forward.10} parent=5 // pred_region
        %s641 = ssub.s32 %s35, 1
        // Predicated region
        $region13: #{seq2seq_transformer_forward.10} parent=11 // pred_check
          %p642 = pneg %p160
        $region14: #{seq2seq_transformer_forward.10} parent=11 // pred_check_branch
          %644 = sbr.rel (%p642) target = $region16
        $region15: #{seq2seq_transformer_forward.10} parent=11 // pred_region
          _
        $region16: #{seq2seq_transformer_forward.10} parent=11 // pred_fallthru
          _
        // Predicated region
        $region17: #{seq2seq_transformer_forward.10} parent=11 // pred_check
          %p645 = pneg %p181
        $region18: #{seq2seq_transformer_forward.10} parent=11 // pred_check_branch
          %647 = sbr.rel (%p645) target = $region20
        $region19: #{seq2seq_transformer_forward.10} parent=11 // pred_region
          _
        $region20: #{seq2seq_transformer_forward.10} parent=11 // pred_fallthru
          _
        // Predicated region
        $region21: #{seq2seq_transformer_forward.10} parent=11 // pred_check
          %p648 = pneg %p202
        $region22: #{seq2seq_transformer_forward.10} parent=11 // pred_check_branch
          %650 = sbr.rel (%p648) target = $region24
        $region23: #{seq2seq_transformer_forward.10} parent=11 // pred_region
          _
        $region24: #{seq2seq_transformer_forward.10} parent=11 // pred_fallthru
          _
        // Predicated region
        $region25: #{seq2seq_transformer_forward.10} parent=11 // pred_check
          %p651 = pneg %p223
        $region26: #{seq2seq_transformer_forward.10} parent=11 // pred_check_branch
          %653 = sbr.rel (%p651) target = $region28
        $region27: #{seq2seq_transformer_forward.10} parent=11 // pred_region
          _
        $region28: #{seq2seq_transformer_forward.10} parent=11 // pred_fallthru
          _
        // Predicated region
        $region29: #{seq2seq_transformer_forward.10} parent=11 // pred_check
          %p654 = pneg %p244
        $region30: #{seq2seq_transformer_forward.10} parent=11 // pred_check_branch
          %656 = sbr.rel (%p654) target = $region32
        $region31: #{seq2seq_transformer_forward.10} parent=11 // pred_region
          _
        $region32: #{seq2seq_transformer_forward.10} parent=11 // pred_fallthru
          _
        // Predicated region
        $region33: #{seq2seq_transformer_forward.10} parent=11 // pred_check
          %p657 = pneg %p265
        $region34: #{seq2seq_transformer_forward.10} parent=11 // pred_check_branch
          %659 = sbr.rel (%p657) target = $region36
        $region35: #{seq2seq_transformer_forward.10} parent=11 // pred_region
          _
        $region36: #{seq2seq_transformer_forward.10} parent=11 // pred_fallthru
          _
        // Predicated region
        $region37: #{seq2seq_transformer_forward.10} parent=11 // pred_check
          %p660 = pneg %p286
        $region38: #{seq2seq_transformer_forward.10} parent=11 // pred_check_branch
          %662 = sbr.rel (%p660) target = $region40
        $region39: #{seq2seq_transformer_forward.10} parent=11 // pred_region
          _
        $region40: #{seq2seq_transformer_forward.10} parent=11 // pred_fallthru
          _
        // Predicated region
        $region41: #{seq2seq_transformer_forward.10} parent=11 // pred_check
          %p663 = pneg %p307
        $region42: #{seq2seq_transformer_forward.10} parent=11 // pred_check_branch
          %665 = sbr.rel (%p663) target = $region44
        $region43: #{seq2seq_transformer_forward.10} parent=11 // pred_region
          _
        $region44: #{seq2seq_transformer_forward.10} parent=11 // pred_fallthru
          _
        // Predicated region
        $region45: #{seq2seq_transformer_forward.10} parent=11 // pred_check
          %p666 = pneg %p328
        $region46: #{seq2seq_transformer_forward.10} parent=11 // pred_check_branch
          %668 = sbr.rel (%p666) target = $region48
        $region47: #{seq2seq_transformer_forward.10} parent=11 // pred_region
          _
        $region48: #{seq2seq_transformer_forward.10} parent=11 // pred_fallthru
          _
        // Predicated region
        $region49: #{seq2seq_transformer_forward.10} parent=11 // pred_check
          %p669 = pneg %p349
        $region50: #{seq2seq_transformer_forward.10} parent=11 // pred_check_branch
          %671 = sbr.rel (%p669) target = $region52
        $region51: #{seq2seq_transformer_forward.10} parent=11 // pred_region
          _
        $region52: #{seq2seq_transformer_forward.10} parent=11 // pred_fallthru
          _
        // Predicated region
        $region53: #{seq2seq_transformer_forward.10} parent=11 // pred_check
          %p672 = pneg %p370
        $region54: #{seq2seq_transformer_forward.10} parent=11 // pred_check_branch
          %674 = sbr.rel (%p672) target = $region56
        $region55: #{seq2seq_transformer_forward.10} parent=11 // pred_region
          _
        $region56: #{seq2seq_transformer_forward.10} parent=11 // pred_fallthru
          _
        // Predicated region
        $region57: #{seq2seq_transformer_forward.10} parent=11 // pred_check
          %p675 = pneg %p391
        $region58: #{seq2seq_transformer_forward.10} parent=11 // pred_check_branch
          %677 = sbr.rel (%p675) target = $region60
        $region59: #{seq2seq_transformer_forward.10} parent=11 // pred_region
          _
        $region60: #{seq2seq_transformer_forward.10} parent=11 // pred_fallthru
          _
        // Predicated region
        $region61: #{seq2seq_transformer_forward.10} parent=11 // pred_check
          %p678 = pneg %p412
        $region62: #{seq2seq_transformer_forward.10} parent=11 // pred_check_branch
          %680 = sbr.rel (%p678) target = $region64
        $region63: #{seq2seq_transformer_forward.10} parent=11 // pred_region
          _
        $region64: #{seq2seq_transformer_forward.10} parent=11 // pred_fallthru
          _
        // Predicated region
        $region65: #{seq2seq_transformer_forward.10} parent=11 // pred_check
          %p681 = pneg %p433
        $region66: #{seq2seq_transformer_forward.10} parent=11 // pred_check_branch
          %683 = sbr.rel (%p681) target = $region68
        $region67: #{seq2seq_transformer_forward.10} parent=11 // pred_region
          _
        $region68: #{seq2seq_transformer_forward.10} parent=11 // pred_fallthru
          _
        // Predicated region
        $region69: #{seq2seq_transformer_forward.10} parent=11 // pred_check
          %p684 = pneg %p454
        $region70: #{seq2seq_transformer_forward.10} parent=11 // pred_check_branch
          %686 = sbr.rel (%p684) target = $region72
        $region71: #{seq2seq_transformer_forward.10} parent=11 // pred_region
          _
        $region72: #{seq2seq_transformer_forward.10} parent=11 // pred_fallthru
          _
        // Predicated region
        $region73: #{seq2seq_transformer_forward.10} parent=11 // pred_check
          %p687 = pneg %p475
        $region74: #{seq2seq_transformer_forward.10} parent=11 // pred_check_branch
          %689 = sbr.rel (%p687) target = $region76
        $region75: #{seq2seq_transformer_forward.10} parent=11 // pred_region
          %s691 = ssub.s32 16, 16
          %692 = vsyncadd [#allocation4], %s691
          %s694 = sshll.u32 [#allocation3], 4
          %s695 = int_to_ptr.vmem [resolvable:$true] %s694
          %697 = dma.hbm_to_vmem [thread:$0]  %s19, 16, %s695, [#allocation4]
        $region76: #{seq2seq_transformer_forward.10} parent=11 // pred_fallthru
          _
        // Predicated region
        $region77: #{seq2seq_transformer_forward.10} parent=11 // pred_check
          %p698 = pneg %p496
        $region78: #{seq2seq_transformer_forward.10} parent=11 // pred_check_branch
          %700 = sbr.rel (%p698) target = $region80
        $region79: #{seq2seq_transformer_forward.10} parent=11 // pred_region
          _
        $region80: #{seq2seq_transformer_forward.10} parent=11 // pred_fallthru
          _
        // Predicated region
        $region81: #{seq2seq_transformer_forward.10} parent=11 // pred_check
          %p701 = pneg %p517
        $region82: #{seq2seq_transformer_forward.10} parent=11 // pred_check_branch
          %703 = sbr.rel (%p701) target = $region84
        $region83: #{seq2seq_transformer_forward.10} parent=11 // pred_region
          %s705 = ssub.s32 16, 16
          %706 = vsyncadd [#allocation6], %s705
          %s708 = sshll.u32 [#allocation5], 4
          %s709 = int_to_ptr.vmem [resolvable:$true] %s708
          %711 = dma.hbm_to_vmem [thread:$0]  %s21, 16, %s709, [#allocation6]
        $region84: #{seq2seq_transformer_forward.10} parent=11 // pred_fallthru
          _
        // Predicated region
        $region85: #{seq2seq_transformer_forward.10} parent=11 // pred_check
          %p712 = pneg %p538
        $region86: #{seq2seq_transformer_forward.10} parent=11 // pred_check_branch
          %714 = sbr.rel (%p712) target = $region88
        $region87: #{seq2seq_transformer_forward.10} parent=11 // pred_region
          _
        $region88: #{seq2seq_transformer_forward.10} parent=11 // pred_fallthru
          _
        // Predicated region
        $region89: #{seq2seq_transformer_forward.10} parent=11 // pred_check
          %p715 = pneg %p559
        $region90: #{seq2seq_transformer_forward.10} parent=11 // pred_check_branch
          %717 = sbr.rel (%p715) target = $region92
        $region91: #{seq2seq_transformer_forward.10} parent=11 // pred_region
          %s719 = ssub.s32 16, 16
          %720 = vsyncadd [#allocation6], %s719
          %s722 = sshll.u32 [#allocation7], 4
          %s723 = int_to_ptr.vmem [resolvable:$true] %s722
          %725 = dma.hbm_to_vmem [thread:$0]  %s23, 16, %s723, [#allocation6]
        $region92: #{seq2seq_transformer_forward.10} parent=11 // pred_fallthru
          _
        // Predicated region
        $region93: #{seq2seq_transformer_forward.10} parent=11 // pred_check
          %p726 = pneg %p580
        $region94: #{seq2seq_transformer_forward.10} parent=11 // pred_check_branch
          %728 = sbr.rel (%p726) target = $region96
        $region95: #{seq2seq_transformer_forward.10} parent=11 // pred_region
          %s730 = ssub.s32 16, 16
          %731 = vsyncadd [#allocation9], %s730
          %s733 = sshll.u32 [#allocation8], 4
          %s734 = int_to_ptr.vmem [resolvable:$true] %s733
          %736 = dma.hbm_to_vmem [thread:$0]  %s24, 16, %s734, [#allocation9]
        $region96: #{seq2seq_transformer_forward.10} parent=11 // pred_fallthru
          _
        // Predicated region
        $region97: #{seq2seq_transformer_forward.10} parent=11 // pred_check
          %p737 = pneg %p601
        $region98: #{seq2seq_transformer_forward.10} parent=11 // pred_check_branch
          %739 = sbr.rel (%p737) target = $region100
        $region99: #{seq2seq_transformer_forward.10} parent=11 // pred_region
          %s741 = ssub.s32 16, 16
          %742 = vsyncadd [#allocation9], %s741
          %s744 = sshll.u32 [#allocation10], 4
          %s745 = int_to_ptr.vmem [resolvable:$true] %s744
          %747 = dma.hbm_to_vmem [thread:$0]  %s25, 16, %s745, [#allocation9]
        $region100: #{seq2seq_transformer_forward.10} parent=11 // pred_fallthru
          _
      $region12: #{seq2seq_transformer_forward.10} parent=5 // pred_fallthru
        _
      %p748 = scmp.lt.s32.totalorder %s35, 2
      // Predicated region
      $region101: #{seq2seq_transformer_forward.10} parent=5 // pred_check
        %p749 = pneg %p748
      $region102: #{seq2seq_transformer_forward.10} parent=5 // pred_check_branch
        %751 = sbr.rel (%p749) target = $region104
      $region103: #{seq2seq_transformer_forward.10} parent=5 // pred_region
        // Predicated region
        $region105: #{seq2seq_transformer_forward.10} parent=103 // pred_check
          %p752 = pneg %p55
        $region106: #{seq2seq_transformer_forward.10} parent=103 // pred_check_branch
          %754 = sbr.rel (%p752) target = $region108
        $region107: #{seq2seq_transformer_forward.10} parent=103 // pred_region
          %p755 = scmp.lt.s32.totalorder %s35, 1
          %s756 = scalar_select %p755, %s35, 1
          %s757 = smul.addr %s756, 8
          %s758 = scalar_lea.vmem %s0, %s757
        $region108: #{seq2seq_transformer_forward.10} parent=103 // pred_fallthru
          _
        // Predicated region
        $region109: #{seq2seq_transformer_forward.10} parent=103 // pred_check
          %p759 = pneg %p81
        $region110: #{seq2seq_transformer_forward.10} parent=103 // pred_check_branch
          %761 = sbr.rel (%p759) target = $region112
        $region111: #{seq2seq_transformer_forward.10} parent=103 // pred_region
          %p762 = scmp.lt.s32.totalorder %s35, 1
          %s763 = scalar_select %p762, %s35, 1
          %s764 = smul.addr %s763, 8
          %s765 = scalar_lea.vmem %s1, %s764
        $region112: #{seq2seq_transformer_forward.10} parent=103 // pred_fallthru
          _
        // Predicated region
        $region113: #{seq2seq_transformer_forward.10} parent=103 // pred_check
          %p766 = pneg %p107
        $region114: #{seq2seq_transformer_forward.10} parent=103 // pred_check_branch
          %768 = sbr.rel (%p766) target = $region116
        $region115: #{seq2seq_transformer_forward.10} parent=103 // pred_region
          %p769 = scmp.lt.s32.totalorder %s35, 1
          %s770 = scalar_select %p769, %s35, 1
          %s771 = smul.addr %s770, 8
          %s772 = scalar_lea.vmem %s2, %s771
        $region116: #{seq2seq_transformer_forward.10} parent=103 // pred_fallthru
          _
        // Predicated region
        $region117: #{seq2seq_transformer_forward.10} parent=103 // pred_check
          %p773 = pneg %p133
        $region118: #{seq2seq_transformer_forward.10} parent=103 // pred_check_branch
          %775 = sbr.rel (%p773) target = $region120
        $region119: #{seq2seq_transformer_forward.10} parent=103 // pred_region
          %p776 = scmp.lt.s32.totalorder %s35, 1
          %s777 = scalar_select %p776, %s35, 1
          %s778 = smul.addr %s777, 8
          %s779 = scalar_lea.vmem %s3, %s778
        $region120: #{seq2seq_transformer_forward.10} parent=103 // pred_fallthru
          _
      $region104: #{seq2seq_transformer_forward.10} parent=5 // pred_fallthru
        _
      %p780 = scmp.le.s32.totalorder 1, %s35
      %p781 = scmp.lt.s32.totalorder %s35, 3
      %p782 = pnand %p780, %p781
      %p783 = pneg %p782
      // Predicated region
      $region121: #{seq2seq_transformer_forward.10} parent=5 // pred_check
        _
      $region122: #{seq2seq_transformer_forward.10} parent=5 // pred_check_branch
        %785 = sbr.rel (%p782) target = $region124
      $region123: #{seq2seq_transformer_forward.10} parent=5 // pred_region
        %s786 = ssub.s32 %s35, 1
        // Predicated region
        $region125: #{seq2seq_transformer_forward.10} parent=123 // pred_check
          %p787 = pneg %p475
        $region126: #{seq2seq_transformer_forward.10} parent=123 // pred_check_branch
          %789 = sbr.rel (%p787) target = $region128
        $region127: #{seq2seq_transformer_forward.10} parent=123 // pred_region
          %790 = dma.done [#allocation4], 16
        $region128: #{seq2seq_transformer_forward.10} parent=123 // pred_fallthru
          _
        // Predicated region
        $region129: #{seq2seq_transformer_forward.10} parent=123 // pred_check
          %p791 = pneg %p517
        $region130: #{seq2seq_transformer_forward.10} parent=123 // pred_check_branch
          %793 = sbr.rel (%p791) target = $region132
        $region131: #{seq2seq_transformer_forward.10} parent=123 // pred_region
          %794 = dma.done [#allocation6], 16
        $region132: #{seq2seq_transformer_forward.10} parent=123 // pred_fallthru
          _
        // Predicated region
        $region133: #{seq2seq_transformer_forward.10} parent=123 // pred_check
          %p795 = pneg %p559
        $region134: #{seq2seq_transformer_forward.10} parent=123 // pred_check_branch
          %797 = sbr.rel (%p795) target = $region136
        $region135: #{seq2seq_transformer_forward.10} parent=123 // pred_region
          %798 = dma.done [#allocation6], 16
        $region136: #{seq2seq_transformer_forward.10} parent=123 // pred_fallthru
          _
        // Predicated region
        $region137: #{seq2seq_transformer_forward.10} parent=123 // pred_check
          %p799 = pneg %p580
        $region138: #{seq2seq_transformer_forward.10} parent=123 // pred_check_branch
          %801 = sbr.rel (%p799) target = $region140
        $region139: #{seq2seq_transformer_forward.10} parent=123 // pred_region
          %802 = dma.done [#allocation9], 16
        $region140: #{seq2seq_transformer_forward.10} parent=123 // pred_fallthru
          _
        // Predicated region
        $region141: #{seq2seq_transformer_forward.10} parent=123 // pred_check
          %p803 = pneg %p601
        $region142: #{seq2seq_transformer_forward.10} parent=123 // pred_check_branch
          %805 = sbr.rel (%p803) target = $region144
        $region143: #{seq2seq_transformer_forward.10} parent=123 // pred_region
          %806 = dma.done [#allocation9], 16
        $region144: #{seq2seq_transformer_forward.10} parent=123 // pred_fallthru
          _
        %p807 = scmp.lt.s32.totalorder %s40, 1
        %s808 = scalar_select %p807, %s40, 1
        %s809 = smul.addr %s808, 8
        %s810 = scalar_lea.vmem %s0, %s809
        %p811 = pneg %p61
        %p812 = pneg %p58
        %p813 = scmp.lt.s32.totalorder %s40, 1
        %s814 = scalar_select %p813, %s40, 1
        %s815 = smul.addr %s814, 8
        %s816 = scalar_lea.vmem %s1, %s815
        %p817 = pneg %p87
        %p818 = pneg %p84
        %p819 = scmp.lt.s32.totalorder %s40, 1
        %s820 = scalar_select %p819, %s40, 1
        %s821 = smul.addr %s820, 8
        %s822 = scalar_lea.vmem %s2, %s821
        %p823 = pneg %p113
        %p824 = pneg %p110
        %p825 = scmp.lt.s32.totalorder %s40, 1
        %s826 = scalar_select %p825, %s40, 1
        %s827 = smul.addr %s826, 8
        %s828 = scalar_lea.vmem %s3, %s827
        %p829 = pneg %p139
        %p830 = pneg %p136
        %p831 = pneg %p160
        %p832 = pneg %p157
        %p833 = pneg %p181
        %p834 = pneg %p178
        %p835 = pneg %p202
        %p836 = pneg %p199
        %p837 = pneg %p223
        %p838 = pneg %p220
        %p839 = pneg %p244
        %p840 = pneg %p241
        %p841 = pneg %p265
        %p842 = pneg %p262
        %p843 = pneg %p286
        %p844 = pneg %p283
        %p845 = pneg %p307
        %p846 = pneg %p304
        %p847 = pneg %p328
        %p848 = pneg %p325
        %p849 = pneg %p349
        %p850 = pneg %p346
        %p851 = pneg %p370
        %p852 = pneg %p367
        %p853 = pneg %p391
        %p854 = pneg %p388
        %p855 = pneg %p412
        %p856 = pneg %p409
        %p857 = pneg %p433
        %p858 = pneg %p430
        %p859 = pneg %p454
        %p860 = pneg %p451
        %p861 = pneg %p475
        %p862 = pneg %p472
        %p863 = pneg %p496
        %p864 = pneg %p493
        %p865 = pneg %p517
        %p866 = pneg %p514
        %p867 = pneg %p538
        %p868 = pneg %p535
        %p869 = pneg %p559
        %p870 = pneg %p556
        %p871 = pneg %p580
        %p872 = pneg %p577
        %p873 = pneg %p601
        %p874 = pneg %p598
        %p875 = pneg %p627
        %p876 = pneg %p624
        %p877 = scmp.lt.s32.totalorder %s40, 1
        %s878 = scalar_select %p877, %s40, 1
        %s879 = smul.addr %s878, 8
        %s880 = scalar_lea.vmem %s26, %s879
        %p881 = scmp.lt.s32.totalorder %s40, 1
        %s882 = scalar_select %p881, %s40, 1
        %s883 = smul.addr %s882, 8
        %s884 = scalar_lea.vmem %s0, %s883
        %p885 = scmp.lt.s32.totalorder %s40, 1
        %s886 = scalar_select %p885, %s40, 1
        %s887 = smul.addr %s886, 8
        %s888 = scalar_lea.vmem %s1, %s887
        %p889 = scmp.lt.s32.totalorder %s40, 1
        %s890 = scalar_select %p889, %s40, 1
        %s891 = smul.addr %s890, 8
        %s892 = scalar_lea.vmem %s2, %s891
        %p893 = scmp.lt.s32.totalorder %s40, 1
        %s894 = scalar_select %p893, %s40, 1
        %s895 = smul.addr %s894, 8
        %s896 = scalar_lea.vmem %s3, %s895
        %p897 = scmp.lt.s32.totalorder %s40, 1
        %s898 = scalar_select %p897, %s40, 1
        %s899 = smul.addr %s898, 8
        %s900 = scalar_lea.vmem %s26, %s899
        %v902 = vld [vmem:[%s884] sm:$0xff]
        %v903 = vld [vmem:[%s888] sm:$0xff]
        %v904 = vld [vmem:[%s4] sm:$0xff]
        %v905 = vld [vmem:[%s4 + $0x8] sm:$0xff]
        %v906 = vld [vmem:[%s4 + $0x10] sm:$0xff]
        %v907 = vld [vmem:[%s4 + $0x18] sm:$0xff]
        %v908 = vpack.c.bf16 %v902, %v902
        %v909 = vpack.c.bf16 %v905, %v904
        %v910 = vpack.c.bf16 %v907, %v906
        %v911 = vld [vmem:[%s7] sm:$0x1]
        %v913 = vlaneseq
        %v914 = vshrl.u32 %v913, 7
        %v915 = vsub.s32 0, %v914
        %v916 = vrot.slane %v911, %v915
        %vm918 = vcmask 261120
        %v920 = vsel %vm918, %v908, 0
        %922 = vmatprep.subr.bf16.mxu0 0
        %923 = vmatpush1.bf16.msra.mxu0 %v909
        %924 = vmatprep.subr.bf16.mxu0 0
        %925 = vmatpush1.bf16.msra.mxu0 %v910
        %926 = vmatprep.subr.bf16.mxu0 0
        %927 = vmatpush1.bf16.msra.mxu0 0
        %928 = vmatprep.subr.bf16.mxu0 0
        %929 = vmatpush1.bf16.msra.mxu0 0
        %930 = vmatprep.subr.bf16.mxu0 0
        %931 = vmatpush1.bf16.msra.mxu0 0
        %932 = vmatprep.subr.bf16.mxu0 0
        %933 = vmatpush1.bf16.msra.mxu0 0
        %934 = vmatprep.subr.bf16.mxu0 0
        %935 = vmatpush1.bf16.msra.mxu0 0
        %936 = vmatprep.subr.bf16.mxu0 0
        %937 = vmatpush1.bf16.msra.mxu0 0
        %938 = vmatprep.subr.bf16.mxu0 0
        %939 = vmatpush1.bf16.msra.mxu0 0
        %940 = vmatprep.subr.bf16.mxu0 0
        %941 = vmatpush1.bf16.msra.mxu0 0
        %942 = vmatprep.subr.bf16.mxu0 0
        %943 = vmatpush1.bf16.msra.mxu0 0
        %944 = vmatprep.subr.bf16.mxu0 0
        %945 = vmatpush1.bf16.msra.mxu0 0
        %946 = vmatprep.subr.bf16.mxu0 0
        %947 = vmatpush1.bf16.msra.mxu0 0
        %948 = vmatprep.subr.bf16.mxu0 0
        %949 = vmatpush1.bf16.msra.mxu0 0
        %950 = vmatprep.subr.bf16.mxu0 0
        %951 = vmatpush1.bf16.msra.mxu0 0
        %952 = vmatprep.subr.bf16.mxu0 0
        %953 = vmatpush1.bf16.msra.mxu0 0
        %954 = vmatprep.mubr.bf16.mxu0 0
        %955 = vmatmul.mubr.bf16.gmra.mrb[0].mxu0 %v920
        %v956 = vpop.f32.mrb[0].mxu0
        %v957 = vadd.f32 %v916, %v956
        %v958 = vpop.f32.mrb[0].mxu0
        %v959 = vpop.f32.mrb[0].mxu0
        %v960 = vpop.f32.mrb[0].mxu0
        %961 = vdwg.mxu0
        %v962 = vld [vmem:[%s5] sm:$0xff]
        %v963 = vld [vmem:[%s5 + $0x8] sm:$0xff]
        %v964 = vld [vmem:[%s5 + $0x10] sm:$0xff]
        %v965 = vld [vmem:[%s5 + $0x18] sm:$0xff]
        %v966 = vpack.c.bf16 %v963, %v962
        %v967 = vpack.c.bf16 %v965, %v964
        %v968 = vld [vmem:[%s8] sm:$0x1]
        %v970 = vlaneseq
        %v971 = vshrl.u32 %v970, 7
        %v972 = vsub.s32 0, %v971
        %v973 = vrot.slane %v968, %v972
        %975 = vmatprep.subr.bf16.mxu0 0
        %976 = vmatpush1.bf16.msra.mxu0 %v966
        %977 = vmatprep.subr.bf16.mxu0 0
        %978 = vmatpush1.bf16.msra.mxu0 %v967
        %979 = vmatprep.subr.bf16.mxu0 0
        %980 = vmatpush1.bf16.msra.mxu0 0
        %981 = vmatprep.subr.bf16.mxu0 0
        %982 = vmatpush1.bf16.msra.mxu0 0
        %983 = vmatprep.subr.bf16.mxu0 0
        %984 = vmatpush1.bf16.msra.mxu0 0
        %985 = vmatprep.subr.bf16.mxu0 0
        %986 = vmatpush1.bf16.msra.mxu0 0
        %987 = vmatprep.subr.bf16.mxu0 0
        %988 = vmatpush1.bf16.msra.mxu0 0
        %989 = vmatprep.subr.bf16.mxu0 0
        %990 = vmatpush1.bf16.msra.mxu0 0
        %991 = vmatprep.subr.bf16.mxu0 0
        %992 = vmatpush1.bf16.msra.mxu0 0
        %993 = vmatprep.subr.bf16.mxu0 0
        %994 = vmatpush1.bf16.msra.mxu0 0
        %995 = vmatprep.subr.bf16.mxu0 0
        %996 = vmatpush1.bf16.msra.mxu0 0
        %997 = vmatprep.subr.bf16.mxu0 0
        %998 = vmatpush1.bf16.msra.mxu0 0
        %999 = vmatprep.subr.bf16.mxu0 0
        %1000 = vmatpush1.bf16.msra.mxu0 0
        %1001 = vmatprep.subr.bf16.mxu0 0
        %1002 = vmatpush1.bf16.msra.mxu0 0
        %1003 = vmatprep.subr.bf16.mxu0 0
        %1004 = vmatpush1.bf16.msra.mxu0 0
        %1005 = vmatprep.subr.bf16.mxu0 0
        %1006 = vmatpush1.bf16.msra.mxu0 0
        %1007 = vmatprep.mubr.bf16.mxu0 0
        %1008 = vmatmul.mubr.bf16.gmra.mrb[0].mxu0 %v920
        %v1009 = vpop.f32.mrb[0].mxu0
        %v1010 = vadd.f32 %v973, %v1009
        %v1011 = vpop.f32.mrb[0].mxu0
        %v1012 = vpop.f32.mrb[0].mxu0
        %v1013 = vpop.f32.mrb[0].mxu0
        %1014 = vdwg.mxu0
        %v1015 = vld [vmem:[%s892] sm:$0xff]
        %vm1016 = vcmask 64512
        %v1018 = vsel %vm1016, %v957, 0
        %v1021 = vsel %vm1016, %v1010, 0
        %1023 = vmatprep.subr.mxu0 0.0
        %1024 = vmatpush1.xpose.msra.mxu0 %v1021
        %1025 = vmatprep.subr.mxu0 0.0
        %1026 = vmatpush1.xpose.msra.mxu0 0.0
        %1027 = vmatprep.subr.mxu0 0.0
        %1028 = vmatpush1.xpose.msra.mxu0 0.0
        %1029 = vmatprep.subr.mxu0 0.0
        %1030 = vmatpush1.xpose.msra.mxu0 0.0
        %1031 = vmatprep.subr.mxu0 0.0
        %1032 = vmatpush1.xpose.msra.mxu0 0.0
        %1033 = vmatprep.subr.mxu0 0.0
        %1034 = vmatpush1.xpose.msra.mxu0 0.0
        %1035 = vmatprep.subr.mxu0 0.0
        %1036 = vmatpush1.xpose.msra.mxu0 0.0
        %1037 = vmatprep.subr.mxu0 0.0
        %1038 = vmatpush1.xpose.msra.mxu0 0.0
        %1039 = vmatprep.subr.mxu0 0.0
        %1040 = vmatpush1.xpose.msra.mxu0 0.0
        %1041 = vmatprep.subr.mxu0 0.0
        %1042 = vmatpush1.xpose.msra.mxu0 0.0
        %1043 = vmatprep.subr.mxu0 0.0
        %1044 = vmatpush1.xpose.msra.mxu0 0.0
        %1045 = vmatprep.subr.mxu0 0.0
        %1046 = vmatpush1.xpose.msra.mxu0 0.0
        %1047 = vmatprep.subr.mxu0 0.0
        %1048 = vmatpush1.xpose.msra.mxu0 0.0
        %1049 = vmatprep.subr.mxu0 0.0
        %1050 = vmatpush1.xpose.msra.mxu0 0.0
        %1051 = vmatprep.subr.mxu0 0.0
        %1052 = vmatpush1.xpose.msra.mxu0 0.0
        %1053 = vmatprep.subr.mxu0 0.0
        %1054 = vmatpush1.xpose.msra.mxu0 0.0
        %1055 = vmatprep.subr.mxu0 0.0
        %1056 = vmatpush1.xpose.msra.mxu0 0.0
        %1057 = vmatprep.subr.mxu0 0.0
        %1058 = vmatpush1.xpose.msra.mxu0 0.0
        %1059 = vmatprep.subr.mxu0 0.0
        %1060 = vmatpush1.xpose.msra.mxu0 0.0
        %1061 = vmatprep.subr.mxu0 0.0
        %1062 = vmatpush1.xpose.msra.mxu0 0.0
        %1063 = vmatprep.subr.mxu0 0.0
        %1064 = vmatpush1.xpose.msra.mxu0 0.0
        %1065 = vmatprep.subr.mxu0 0.0
        %1066 = vmatpush1.xpose.msra.mxu0 0.0
        %1067 = vmatprep.subr.mxu0 0.0
        %1068 = vmatpush1.xpose.msra.mxu0 0.0
        %1069 = vmatprep.subr.mxu0 0.0
        %1070 = vmatpush1.xpose.msra.mxu0 0.0
        %1071 = vmatprep.subr.mxu0 0.0
        %1072 = vmatpush1.xpose.msra.mxu0 0.0
        %1073 = vmatprep.subr.mxu0 0.0
        %1074 = vmatpush1.xpose.msra.mxu0 0.0
        %1075 = vmatprep.subr.mxu0 0.0
        %1076 = vmatpush1.xpose.msra.mxu0 0.0
        %1077 = vmatprep.subr.mxu0 0.0
        %1078 = vmatpush1.xpose.msra.mxu0 0.0
        %1079 = vmatprep.subr.mxu0 0.0
        %1080 = vmatpush1.xpose.msra.mxu0 0.0
        %1081 = vmatprep.subr.mxu0 0.0
        %1082 = vmatpush1.xpose.msra.mxu0 0.0
        %1083 = vmatprep.subr.mxu0 0.0
        %1084 = vmatpush1.xpose.msra.mxu0 0.0
        %1085 = vmatprep.subr.mxu0 0.0
        %1086 = vmatpush1.xpose.msra.mxu0 0.0
        %1087 = vmatprep.mubr.f32.mxu0 0.0
        %1088 = vmatmul.mubr.f32.gmra.mrb[0].mxu0 %v1018
        %v1089 = vpop.f32.mrb[0].mxu0
        %v1090 = vadd.f32 0.0, %v1089
        %v1091 = vpop.f32.mrb[0].mxu0
        %1092 = vdwg.mxu0
        %v1093 = vmul.f32 %v1090, 0.35355338
        %v1094 = vadd.f32 %v1093, %v1015
        %v1095 = vsel %vm1016, %v1094, -inf
        %1096 = vmax.xlane.f32.xlu0 %v1095
        %v1097 = vpop.xlane.xlu0 %1096
        %v1098 = vsub.f32 %v1094, %v1097
        %v1099 = vmul.f32 %v1098, 1.442695
        %v1100 = vpow.pop %v1099
        %v1101 = vsel %vm1016, %v1100, 0.0
        %1102 = vadd.xlane.f32.xlu0 %v1101
        %v1103 = vpop.xlane.xlu0 %1102
        %1104 = vrot.lane.b32.xlu0 %v1010, 96
        %v1105 = vpop.permute.xlu0 %1104
        %v1108 = vsel %vm1016, %v1100, 0
        %1110 = vmatprep.subr.mxu0 0.0
        %1111 = vmatpush1.msra.mxu0 %v1105
        %1112 = vmatprep.subr.mxu0 0.0
        %1113 = vmatpush1.msra.mxu0 0.0
        %1114 = vmatprep.subr.mxu0 0.0
        %1115 = vmatpush1.msra.mxu0 0.0
        %1116 = vmatprep.subr.mxu0 0.0
        %1117 = vmatpush1.msra.mxu0 0.0
        %1118 = vmatprep.subr.mxu0 0.0
        %1119 = vmatpush1.msra.mxu0 0.0
        %1120 = vmatprep.subr.mxu0 0.0
        %1121 = vmatpush1.msra.mxu0 0.0
        %1122 = vmatprep.subr.mxu0 0.0
        %1123 = vmatpush1.msra.mxu0 0.0
        %1124 = vmatprep.subr.mxu0 0.0
        %1125 = vmatpush1.msra.mxu0 0.0
        %1126 = vmatprep.subr.mxu0 0.0
        %1127 = vmatpush1.msra.mxu0 0.0
        %1128 = vmatprep.subr.mxu0 0.0
        %1129 = vmatpush1.msra.mxu0 0.0
        %1130 = vmatprep.subr.mxu0 0.0
        %1131 = vmatpush1.msra.mxu0 0.0
        %1132 = vmatprep.subr.mxu0 0.0
        %1133 = vmatpush1.msra.mxu0 0.0
        %1134 = vmatprep.subr.mxu0 0.0
        %1135 = vmatpush1.msra.mxu0 0.0
        %1136 = vmatprep.subr.mxu0 0.0
        %1137 = vmatpush1.msra.mxu0 0.0
        %1138 = vmatprep.subr.mxu0 0.0
        %1139 = vmatpush1.msra.mxu0 0.0
        %1140 = vmatprep.subr.mxu0 0.0
        %1141 = vmatpush1.msra.mxu0 0.0
        %1142 = vmatprep.subr.mxu0 0.0
        %1143 = vmatpush1.msra.mxu0 0.0
        %1144 = vmatprep.subr.mxu0 0.0
        %1145 = vmatpush1.msra.mxu0 0.0
        %1146 = vmatprep.subr.mxu0 0.0
        %1147 = vmatpush1.msra.mxu0 0.0
        %1148 = vmatprep.subr.mxu0 0.0
        %1149 = vmatpush1.msra.mxu0 0.0
        %1150 = vmatprep.subr.mxu0 0.0
        %1151 = vmatpush1.msra.mxu0 0.0
        %1152 = vmatprep.subr.mxu0 0.0
        %1153 = vmatpush1.msra.mxu0 0.0
        %1154 = vmatprep.subr.mxu0 0.0
        %1155 = vmatpush1.msra.mxu0 0.0
        %1156 = vmatprep.subr.mxu0 0.0
        %1157 = vmatpush1.msra.mxu0 0.0
        %1158 = vmatprep.subr.mxu0 0.0
        %1159 = vmatpush1.msra.mxu0 0.0
        %1160 = vmatprep.subr.mxu0 0.0
        %1161 = vmatpush1.msra.mxu0 0.0
        %1162 = vmatprep.subr.mxu0 0.0
        %1163 = vmatpush1.msra.mxu0 0.0
        %1164 = vmatprep.subr.mxu0 0.0
        %1165 = vmatpush1.msra.mxu0 0.0
        %1166 = vmatprep.subr.mxu0 0.0
        %1167 = vmatpush1.msra.mxu0 0.0
        %1168 = vmatprep.subr.mxu0 0.0
        %1169 = vmatpush1.msra.mxu0 0.0
        %1170 = vmatprep.subr.mxu0 0.0
        %1171 = vmatpush1.msra.mxu0 0.0
        %1172 = vmatprep.subr.mxu0 0.0
        %1173 = vmatpush1.msra.mxu0 0.0
        %1174 = vmatprep.mubr.f32.mxu0 0.0
        %1175 = vmatmul.mubr.f32.gmra.mrb[0].mxu0 %v1108
        %v1176 = vpop.f32.mrb[0].mxu0
        %v1177 = vadd.f32 0.0, %v1176
        %v1178 = vpop.f32.mrb[0].mxu0
        %1179 = vdwg.mxu0
        %v1180 = vrcp.pop %v1103
        %v1181 = vmul.f32 %v1177, %v1180
        %1182 = vst.msk [vmem:[#allocation2] sm:$0xff] %vm1016, %v1181
        %1183 = vrot.lane.b32.xlu0 %v957, 120
        %v1184 = vpop.permute.xlu0 %1183
        %1185 = vrot.lane.b32.xlu0 %v1010, 120
        %v1186 = vpop.permute.xlu0 %1185
        %v1187 = vsel %vm1016, %v1184, 0
        %v1189 = vsel %vm1016, %v1186, 0
        %1191 = vmatprep.subr.mxu0 0.0
        %1192 = vmatpush1.xpose.msra.mxu0 %v1189
        %1193 = vmatprep.subr.mxu0 0.0
        %1194 = vmatpush1.xpose.msra.mxu0 0.0
        %1195 = vmatprep.subr.mxu0 0.0
        %1196 = vmatpush1.xpose.msra.mxu0 0.0
        %1197 = vmatprep.subr.mxu0 0.0
        %1198 = vmatpush1.xpose.msra.mxu0 0.0
        %1199 = vmatprep.subr.mxu0 0.0
        %1200 = vmatpush1.xpose.msra.mxu0 0.0
        %1201 = vmatprep.subr.mxu0 0.0
        %1202 = vmatpush1.xpose.msra.mxu0 0.0
        %1203 = vmatprep.subr.mxu0 0.0
        %1204 = vmatpush1.xpose.msra.mxu0 0.0
        %1205 = vmatprep.subr.mxu0 0.0
        %1206 = vmatpush1.xpose.msra.mxu0 0.0
        %1207 = vmatprep.subr.mxu0 0.0
        %1208 = vmatpush1.xpose.msra.mxu0 0.0
        %1209 = vmatprep.subr.mxu0 0.0
        %1210 = vmatpush1.xpose.msra.mxu0 0.0
        %1211 = vmatprep.subr.mxu0 0.0
        %1212 = vmatpush1.xpose.msra.mxu0 0.0
        %1213 = vmatprep.subr.mxu0 0.0
        %1214 = vmatpush1.xpose.msra.mxu0 0.0
        %1215 = vmatprep.subr.mxu0 0.0
        %1216 = vmatpush1.xpose.msra.mxu0 0.0
        %1217 = vmatprep.subr.mxu0 0.0
        %1218 = vmatpush1.xpose.msra.mxu0 0.0
        %1219 = vmatprep.subr.mxu0 0.0
        %1220 = vmatpush1.xpose.msra.mxu0 0.0
        %1221 = vmatprep.subr.mxu0 0.0
        %1222 = vmatpush1.xpose.msra.mxu0 0.0
        %1223 = vmatprep.subr.mxu0 0.0
        %1224 = vmatpush1.xpose.msra.mxu0 0.0
        %1225 = vmatprep.subr.mxu0 0.0
        %1226 = vmatpush1.xpose.msra.mxu0 0.0
        %1227 = vmatprep.subr.mxu0 0.0
        %1228 = vmatpush1.xpose.msra.mxu0 0.0
        %1229 = vmatprep.subr.mxu0 0.0
        %1230 = vmatpush1.xpose.msra.mxu0 0.0
        %1231 = vmatprep.subr.mxu0 0.0
        %1232 = vmatpush1.xpose.msra.mxu0 0.0
        %1233 = vmatprep.subr.mxu0 0.0
        %1234 = vmatpush1.xpose.msra.mxu0 0.0
        %1235 = vmatprep.subr.mxu0 0.0
        %1236 = vmatpush1.xpose.msra.mxu0 0.0
        %1237 = vmatprep.subr.mxu0 0.0
        %1238 = vmatpush1.xpose.msra.mxu0 0.0
        %1239 = vmatprep.subr.mxu0 0.0
        %1240 = vmatpush1.xpose.msra.mxu0 0.0
        %1241 = vmatprep.subr.mxu0 0.0
        %1242 = vmatpush1.xpose.msra.mxu0 0.0
        %1243 = vmatprep.subr.mxu0 0.0
        %1244 = vmatpush1.xpose.msra.mxu0 0.0
        %1245 = vmatprep.subr.mxu0 0.0
        %1246 = vmatpush1.xpose.msra.mxu0 0.0
        %1247 = vmatprep.subr.mxu0 0.0
        %1248 = vmatpush1.xpose.msra.mxu0 0.0
        %1249 = vmatprep.subr.mxu0 0.0
        %1250 = vmatpush1.xpose.msra.mxu0 0.0
        %1251 = vmatprep.subr.mxu0 0.0
        %1252 = vmatpush1.xpose.msra.mxu0 0.0
        %1253 = vmatprep.subr.mxu0 0.0
        %1254 = vmatpush1.xpose.msra.mxu0 0.0
        %1255 = vmatprep.mubr.f32.mxu0 0.0
        %1256 = vmatmul.mubr.f32.gmra.mrb[0].mxu0 %v1187
        %v1257 = vpop.f32.mrb[0].mxu0
        %v1258 = vadd.f32 0.0, %v1257
        %v1259 = vpop.f32.mrb[0].mxu0
        %1260 = vdwg.mxu0
        %v1261 = vmul.f32 %v1258, 0.35355338
        %v1262 = vadd.f32 %v1261, %v1015
        %v1263 = vsel %vm1016, %v1262, -inf
        %1264 = vmax.xlane.f32.xlu0 %v1263
        %v1265 = vpop.xlane.xlu0 %1264
        %v1266 = vsub.f32 %v1262, %v1265
        %v1267 = vmul.f32 %v1266, 1.442695
        %v1268 = vpow.pop %v1267
        %v1269 = vsel %vm1016, %v1268, 0.0
        %1270 = vadd.xlane.f32.xlu0 %v1269
        %v1271 = vpop.xlane.xlu0 %1270
        %1272 = vrot.lane.b32.xlu0 %v1010, 88
        %v1273 = vpop.permute.xlu0 %1272
        %v1276 = vsel %vm1016, %v1268, 0
        %1278 = vmatprep.subr.mxu0 0.0
        %1279 = vmatpush1.msra.mxu0 %v1273
        %1280 = vmatprep.subr.mxu0 0.0
        %1281 = vmatpush1.msra.mxu0 0.0
        %1282 = vmatprep.subr.mxu0 0.0
        %1283 = vmatpush1.msra.mxu0 0.0
        %1284 = vmatprep.subr.mxu0 0.0
        %1285 = vmatpush1.msra.mxu0 0.0
        %1286 = vmatprep.subr.mxu0 0.0
        %1287 = vmatpush1.msra.mxu0 0.0
        %1288 = vmatprep.subr.mxu0 0.0
        %1289 = vmatpush1.msra.mxu0 0.0
        %1290 = vmatprep.subr.mxu0 0.0
        %1291 = vmatpush1.msra.mxu0 0.0
        %1292 = vmatprep.subr.mxu0 0.0
        %1293 = vmatpush1.msra.mxu0 0.0
        %1294 = vmatprep.subr.mxu0 0.0
        %1295 = vmatpush1.msra.mxu0 0.0
        %1296 = vmatprep.subr.mxu0 0.0
        %1297 = vmatpush1.msra.mxu0 0.0
        %1298 = vmatprep.subr.mxu0 0.0
        %1299 = vmatpush1.msra.mxu0 0.0
        %1300 = vmatprep.subr.mxu0 0.0
        %1301 = vmatpush1.msra.mxu0 0.0
        %1302 = vmatprep.subr.mxu0 0.0
        %1303 = vmatpush1.msra.mxu0 0.0
        %1304 = vmatprep.subr.mxu0 0.0
        %1305 = vmatpush1.msra.mxu0 0.0
        %1306 = vmatprep.subr.mxu0 0.0
        %1307 = vmatpush1.msra.mxu0 0.0
        %1308 = vmatprep.subr.mxu0 0.0
        %1309 = vmatpush1.msra.mxu0 0.0
        %1310 = vmatprep.subr.mxu0 0.0
        %1311 = vmatpush1.msra.mxu0 0.0
        %1312 = vmatprep.subr.mxu0 0.0
        %1313 = vmatpush1.msra.mxu0 0.0
        %1314 = vmatprep.subr.mxu0 0.0
        %1315 = vmatpush1.msra.mxu0 0.0
        %1316 = vmatprep.subr.mxu0 0.0
        %1317 = vmatpush1.msra.mxu0 0.0
        %1318 = vmatprep.subr.mxu0 0.0
        %1319 = vmatpush1.msra.mxu0 0.0
        %1320 = vmatprep.subr.mxu0 0.0
        %1321 = vmatpush1.msra.mxu0 0.0
        %1322 = vmatprep.subr.mxu0 0.0
        %1323 = vmatpush1.msra.mxu0 0.0
        %1324 = vmatprep.subr.mxu0 0.0
        %1325 = vmatpush1.msra.mxu0 0.0
        %1326 = vmatprep.subr.mxu0 0.0
        %1327 = vmatpush1.msra.mxu0 0.0
        %1328 = vmatprep.subr.mxu0 0.0
        %1329 = vmatpush1.msra.mxu0 0.0
        %1330 = vmatprep.subr.mxu0 0.0
        %1331 = vmatpush1.msra.mxu0 0.0
        %1332 = vmatprep.subr.mxu0 0.0
        %1333 = vmatpush1.msra.mxu0 0.0
        %1334 = vmatprep.subr.mxu0 0.0
        %1335 = vmatpush1.msra.mxu0 0.0
        %1336 = vmatprep.subr.mxu0 0.0
        %1337 = vmatpush1.msra.mxu0 0.0
        %1338 = vmatprep.subr.mxu0 0.0
        %1339 = vmatpush1.msra.mxu0 0.0
        %1340 = vmatprep.subr.mxu0 0.0
        %1341 = vmatpush1.msra.mxu0 0.0
        %1342 = vmatprep.mubr.f32.mxu0 0.0
        %1343 = vmatmul.mubr.f32.gmra.mrb[0].mxu0 %v1276
        %v1344 = vpop.f32.mrb[0].mxu0
        %v1345 = vadd.f32 0.0, %v1344
        %v1346 = vpop.f32.mrb[0].mxu0
        %1347 = vdwg.mxu0
        %v1348 = vrcp.pop %v1271
        %v1349 = vmul.f32 %v1345, %v1348
        %1351 = vrot.lane.b32.xlu0 %v1349, 8
        %v1352 = vpop.permute.xlu0 %1351
        %vm1354 = vcmask 130112
        %1355 = vst.msk [vmem:[#allocation2] sm:$0xff] %vm1354, %v1352
        %1356 = vrot.lane.b32.xlu0 %v957, 112
        %v1357 = vpop.permute.xlu0 %1356
        %1358 = vrot.lane.b32.xlu0 %v1010, 112
        %v1359 = vpop.permute.xlu0 %1358
        %v1360 = vsel %vm1016, %v1357, 0
        %v1362 = vsel %vm1016, %v1359, 0
        %1364 = vmatprep.subr.mxu0 0.0
        %1365 = vmatpush1.xpose.msra.mxu0 %v1362
        %1366 = vmatprep.subr.mxu0 0.0
        %1367 = vmatpush1.xpose.msra.mxu0 0.0
        %1368 = vmatprep.subr.mxu0 0.0
        %1369 = vmatpush1.xpose.msra.mxu0 0.0
        %1370 = vmatprep.subr.mxu0 0.0
        %1371 = vmatpush1.xpose.msra.mxu0 0.0
        %1372 = vmatprep.subr.mxu0 0.0
        %1373 = vmatpush1.xpose.msra.mxu0 0.0
        %1374 = vmatprep.subr.mxu0 0.0
        %1375 = vmatpush1.xpose.msra.mxu0 0.0
        %1376 = vmatprep.subr.mxu0 0.0
        %1377 = vmatpush1.xpose.msra.mxu0 0.0
        %1378 = vmatprep.subr.mxu0 0.0
        %1379 = vmatpush1.xpose.msra.mxu0 0.0
        %1380 = vmatprep.subr.mxu0 0.0
        %1381 = vmatpush1.xpose.msra.mxu0 0.0
        %1382 = vmatprep.subr.mxu0 0.0
        %1383 = vmatpush1.xpose.msra.mxu0 0.0
        %1384 = vmatprep.subr.mxu0 0.0
        %1385 = vmatpush1.xpose.msra.mxu0 0.0
        %1386 = vmatprep.subr.mxu0 0.0
        %1387 = vmatpush1.xpose.msra.mxu0 0.0
        %1388 = vmatprep.subr.mxu0 0.0
        %1389 = vmatpush1.xpose.msra.mxu0 0.0
        %1390 = vmatprep.subr.mxu0 0.0
        %1391 = vmatpush1.xpose.msra.mxu0 0.0
        %1392 = vmatprep.subr.mxu0 0.0
        %1393 = vmatpush1.xpose.msra.mxu0 0.0
        %1394 = vmatprep.subr.mxu0 0.0
        %1395 = vmatpush1.xpose.msra.mxu0 0.0
        %1396 = vmatprep.subr.mxu0 0.0
        %1397 = vmatpush1.xpose.msra.mxu0 0.0
        %1398 = vmatprep.subr.mxu0 0.0
        %1399 = vmatpush1.xpose.msra.mxu0 0.0
        %1400 = vmatprep.subr.mxu0 0.0
        %1401 = vmatpush1.xpose.msra.mxu0 0.0
        %1402 = vmatprep.subr.mxu0 0.0
        %1403 = vmatpush1.xpose.msra.mxu0 0.0
        %1404 = vmatprep.subr.mxu0 0.0
        %1405 = vmatpush1.xpose.msra.mxu0 0.0
        %1406 = vmatprep.subr.mxu0 0.0
        %1407 = vmatpush1.xpose.msra.mxu0 0.0
        %1408 = vmatprep.subr.mxu0 0.0
        %1409 = vmatpush1.xpose.msra.mxu0 0.0
        %1410 = vmatprep.subr.mxu0 0.0
        %1411 = vmatpush1.xpose.msra.mxu0 0.0
        %1412 = vmatprep.subr.mxu0 0.0
        %1413 = vmatpush1.xpose.msra.mxu0 0.0
        %1414 = vmatprep.subr.mxu0 0.0
        %1415 = vmatpush1.xpose.msra.mxu0 0.0
        %1416 = vmatprep.subr.mxu0 0.0
        %1417 = vmatpush1.xpose.msra.mxu0 0.0
        %1418 = vmatprep.subr.mxu0 0.0
        %1419 = vmatpush1.xpose.msra.mxu0 0.0
        %1420 = vmatprep.subr.mxu0 0.0
        %1421 = vmatpush1.xpose.msra.mxu0 0.0
        %1422 = vmatprep.subr.mxu0 0.0
        %1423 = vmatpush1.xpose.msra.mxu0 0.0
        %1424 = vmatprep.subr.mxu0 0.0
        %1425 = vmatpush1.xpose.msra.mxu0 0.0
        %1426 = vmatprep.subr.mxu0 0.0
        %1427 = vmatpush1.xpose.msra.mxu0 0.0
        %1428 = vmatprep.mubr.f32.mxu0 0.0
        %1429 = vmatmul.mubr.f32.gmra.mrb[0].mxu0 %v1360
        %v1430 = vpop.f32.mrb[0].mxu0
        %v1431 = vadd.f32 0.0, %v1430
        %v1432 = vpop.f32.mrb[0].mxu0
        %1433 = vdwg.mxu0
        %v1434 = vmul.f32 %v1431, 0.35355338
        %v1435 = vadd.f32 %v1434, %v1015
        %v1436 = vsel %vm1016, %v1435, -inf
        %1437 = vmax.xlane.f32.xlu0 %v1436
        %v1438 = vpop.xlane.xlu0 %1437
        %v1439 = vsub.f32 %v1435, %v1438
        %v1440 = vmul.f32 %v1439, 1.442695
        %v1441 = vpow.pop %v1440
        %v1442 = vsel %vm1016, %v1441, 0.0
        %1443 = vadd.xlane.f32.xlu0 %v1442
        %v1444 = vpop.xlane.xlu0 %1443
        %1445 = vrot.lane.b32.xlu0 %v1010, 80
        %v1446 = vpop.permute.xlu0 %1445
        %v1449 = vsel %vm1016, %v1441, 0
        %1451 = vmatprep.subr.mxu0 0.0
        %1452 = vmatpush1.msra.mxu0 %v1446
        %1453 = vmatprep.subr.mxu0 0.0
        %1454 = vmatpush1.msra.mxu0 0.0
        %1455 = vmatprep.subr.mxu0 0.0
        %1456 = vmatpush1.msra.mxu0 0.0
        %1457 = vmatprep.subr.mxu0 0.0
        %1458 = vmatpush1.msra.mxu0 0.0
        %1459 = vmatprep.subr.mxu0 0.0
        %1460 = vmatpush1.msra.mxu0 0.0
        %1461 = vmatprep.subr.mxu0 0.0
        %1462 = vmatpush1.msra.mxu0 0.0
        %1463 = vmatprep.subr.mxu0 0.0
        %1464 = vmatpush1.msra.mxu0 0.0
        %1465 = vmatprep.subr.mxu0 0.0
        %1466 = vmatpush1.msra.mxu0 0.0
        %1467 = vmatprep.subr.mxu0 0.0
        %1468 = vmatpush1.msra.mxu0 0.0
        %1469 = vmatprep.subr.mxu0 0.0
        %1470 = vmatpush1.msra.mxu0 0.0
        %1471 = vmatprep.subr.mxu0 0.0
        %1472 = vmatpush1.msra.mxu0 0.0
        %1473 = vmatprep.subr.mxu0 0.0
        %1474 = vmatpush1.msra.mxu0 0.0
        %1475 = vmatprep.subr.mxu0 0.0
        %1476 = vmatpush1.msra.mxu0 0.0
        %1477 = vmatprep.subr.mxu0 0.0
        %1478 = vmatpush1.msra.mxu0 0.0
        %1479 = vmatprep.subr.mxu0 0.0
        %1480 = vmatpush1.msra.mxu0 0.0
        %1481 = vmatprep.subr.mxu0 0.0
        %1482 = vmatpush1.msra.mxu0 0.0
        %1483 = vmatprep.subr.mxu0 0.0
        %1484 = vmatpush1.msra.mxu0 0.0
        %1485 = vmatprep.subr.mxu0 0.0
        %1486 = vmatpush1.msra.mxu0 0.0
        %1487 = vmatprep.subr.mxu0 0.0
        %1488 = vmatpush1.msra.mxu0 0.0
        %1489 = vmatprep.subr.mxu0 0.0
        %1490 = vmatpush1.msra.mxu0 0.0
        %1491 = vmatprep.subr.mxu0 0.0
        %1492 = vmatpush1.msra.mxu0 0.0
        %1493 = vmatprep.subr.mxu0 0.0
        %1494 = vmatpush1.msra.mxu0 0.0
        %1495 = vmatprep.subr.mxu0 0.0
        %1496 = vmatpush1.msra.mxu0 0.0
        %1497 = vmatprep.subr.mxu0 0.0
        %1498 = vmatpush1.msra.mxu0 0.0
        %1499 = vmatprep.subr.mxu0 0.0
        %1500 = vmatpush1.msra.mxu0 0.0
        %1501 = vmatprep.subr.mxu0 0.0
        %1502 = vmatpush1.msra.mxu0 0.0
        %1503 = vmatprep.subr.mxu0 0.0
        %1504 = vmatpush1.msra.mxu0 0.0
        %1505 = vmatprep.subr.mxu0 0.0
        %1506 = vmatpush1.msra.mxu0 0.0
        %1507 = vmatprep.subr.mxu0 0.0
        %1508 = vmatpush1.msra.mxu0 0.0
        %1509 = vmatprep.subr.mxu0 0.0
        %1510 = vmatpush1.msra.mxu0 0.0
        %1511 = vmatprep.subr.mxu0 0.0
        %1512 = vmatpush1.msra.mxu0 0.0
        %1513 = vmatprep.subr.mxu0 0.0
        %1514 = vmatpush1.msra.mxu0 0.0
        %1515 = vmatprep.mubr.f32.mxu0 0.0
        %1516 = vmatmul.mubr.f32.gmra.mrb[0].mxu0 %v1449
        %v1517 = vpop.f32.mrb[0].mxu0
        %v1518 = vadd.f32 0.0, %v1517
        %v1519 = vpop.f32.mrb[0].mxu0
        %1520 = vdwg.mxu0
        %v1521 = vrcp.pop %v1444
        %v1522 = vmul.f32 %v1518, %v1521
        %1524 = vrot.lane.b32.xlu0 %v1522, 16
        %v1525 = vpop.permute.xlu0 %1524
        %vm1527 = vcmask 195712
        %1528 = vst.msk [vmem:[#allocation2] sm:$0xff] %vm1527, %v1525
        %1529 = vrot.lane.b32.xlu0 %v957, 104
        %v1530 = vpop.permute.xlu0 %1529
        %1531 = vrot.lane.b32.xlu0 %v1010, 104
        %v1532 = vpop.permute.xlu0 %1531
        %v1533 = vsel %vm1016, %v1530, 0
        %v1535 = vsel %vm1016, %v1532, 0
        %1537 = vmatprep.subr.mxu0 0.0
        %1538 = vmatpush1.xpose.msra.mxu0 %v1535
        %1539 = vmatprep.subr.mxu0 0.0
        %1540 = vmatpush1.xpose.msra.mxu0 0.0
        %1541 = vmatprep.subr.mxu0 0.0
        %1542 = vmatpush1.xpose.msra.mxu0 0.0
        %1543 = vmatprep.subr.mxu0 0.0
        %1544 = vmatpush1.xpose.msra.mxu0 0.0
        %1545 = vmatprep.subr.mxu0 0.0
        %1546 = vmatpush1.xpose.msra.mxu0 0.0
        %1547 = vmatprep.subr.mxu0 0.0
        %1548 = vmatpush1.xpose.msra.mxu0 0.0
        %1549 = vmatprep.subr.mxu0 0.0
        %1550 = vmatpush1.xpose.msra.mxu0 0.0
        %1551 = vmatprep.subr.mxu0 0.0
        %1552 = vmatpush1.xpose.msra.mxu0 0.0
        %1553 = vmatprep.subr.mxu0 0.0
        %1554 = vmatpush1.xpose.msra.mxu0 0.0
        %1555 = vmatprep.subr.mxu0 0.0
        %1556 = vmatpush1.xpose.msra.mxu0 0.0
        %1557 = vmatprep.subr.mxu0 0.0
        %1558 = vmatpush1.xpose.msra.mxu0 0.0
        %1559 = vmatprep.subr.mxu0 0.0
        %1560 = vmatpush1.xpose.msra.mxu0 0.0
        %1561 = vmatprep.subr.mxu0 0.0
        %1562 = vmatpush1.xpose.msra.mxu0 0.0
        %1563 = vmatprep.subr.mxu0 0.0
        %1564 = vmatpush1.xpose.msra.mxu0 0.0
        %1565 = vmatprep.subr.mxu0 0.0
        %1566 = vmatpush1.xpose.msra.mxu0 0.0
        %1567 = vmatprep.subr.mxu0 0.0
        %1568 = vmatpush1.xpose.msra.mxu0 0.0
        %1569 = vmatprep.subr.mxu0 0.0
        %1570 = vmatpush1.xpose.msra.mxu0 0.0
        %1571 = vmatprep.subr.mxu0 0.0
        %1572 = vmatpush1.xpose.msra.mxu0 0.0
        %1573 = vmatprep.subr.mxu0 0.0
        %1574 = vmatpush1.xpose.msra.mxu0 0.0
        %1575 = vmatprep.subr.mxu0 0.0
        %1576 = vmatpush1.xpose.msra.mxu0 0.0
        %1577 = vmatprep.subr.mxu0 0.0
        %1578 = vmatpush1.xpose.msra.mxu0 0.0
        %1579 = vmatprep.subr.mxu0 0.0
        %1580 = vmatpush1.xpose.msra.mxu0 0.0
        %1581 = vmatprep.subr.mxu0 0.0
        %1582 = vmatpush1.xpose.msra.mxu0 0.0
        %1583 = vmatprep.subr.mxu0 0.0
        %1584 = vmatpush1.xpose.msra.mxu0 0.0
        %1585 = vmatprep.subr.mxu0 0.0
        %1586 = vmatpush1.xpose.msra.mxu0 0.0
        %1587 = vmatprep.subr.mxu0 0.0
        %1588 = vmatpush1.xpose.msra.mxu0 0.0
        %1589 = vmatprep.subr.mxu0 0.0
        %1590 = vmatpush1.xpose.msra.mxu0 0.0
        %1591 = vmatprep.subr.mxu0 0.0
        %1592 = vmatpush1.xpose.msra.mxu0 0.0
        %1593 = vmatprep.subr.mxu0 0.0
        %1594 = vmatpush1.xpose.msra.mxu0 0.0
        %1595 = vmatprep.subr.mxu0 0.0
        %1596 = vmatpush1.xpose.msra.mxu0 0.0
        %1597 = vmatprep.subr.mxu0 0.0
        %1598 = vmatpush1.xpose.msra.mxu0 0.0
        %1599 = vmatprep.subr.mxu0 0.0
        %1600 = vmatpush1.xpose.msra.mxu0 0.0
        %1601 = vmatprep.mubr.f32.mxu0 0.0
        %1602 = vmatmul.mubr.f32.gmra.mrb[0].mxu0 %v1533
        %v1603 = vpop.f32.mrb[0].mxu0
        %v1604 = vadd.f32 0.0, %v1603
        %v1605 = vpop.f32.mrb[0].mxu0
        %1606 = vdwg.mxu0
        %v1607 = vmul.f32 %v1604, 0.35355338
        %v1608 = vadd.f32 %v1607, %v1015
        %v1609 = vsel %vm1016, %v1608, -inf
        %1610 = vmax.xlane.f32.xlu0 %v1609
        %v1611 = vpop.xlane.xlu0 %1610
        %v1612 = vsub.f32 %v1608, %v1611
        %v1613 = vmul.f32 %v1612, 1.442695
        %v1614 = vpow.pop %v1613
        %v1615 = vsel %vm1016, %v1614, 0.0
        %1616 = vadd.xlane.f32.xlu0 %v1615
        %v1617 = vpop.xlane.xlu0 %1616
        %1618 = vrot.lane.b32.xlu0 %v1010, 72
        %v1619 = vpop.permute.xlu0 %1618
        %v1622 = vsel %vm1016, %v1614, 0
        %1624 = vmatprep.subr.mxu0 0.0
        %1625 = vmatpush1.msra.mxu0 %v1619
        %1626 = vmatprep.subr.mxu0 0.0
        %1627 = vmatpush1.msra.mxu0 0.0
        %1628 = vmatprep.subr.mxu0 0.0
        %1629 = vmatpush1.msra.mxu0 0.0
        %1630 = vmatprep.subr.mxu0 0.0
        %1631 = vmatpush1.msra.mxu0 0.0
        %1632 = vmatprep.subr.mxu0 0.0
        %1633 = vmatpush1.msra.mxu0 0.0
        %1634 = vmatprep.subr.mxu0 0.0
        %1635 = vmatpush1.msra.mxu0 0.0
        %1636 = vmatprep.subr.mxu0 0.0
        %1637 = vmatpush1.msra.mxu0 0.0
        %1638 = vmatprep.subr.mxu0 0.0
        %1639 = vmatpush1.msra.mxu0 0.0
        %1640 = vmatprep.subr.mxu0 0.0
        %1641 = vmatpush1.msra.mxu0 0.0
        %1642 = vmatprep.subr.mxu0 0.0
        %1643 = vmatpush1.msra.mxu0 0.0
        %1644 = vmatprep.subr.mxu0 0.0
        %1645 = vmatpush1.msra.mxu0 0.0
        %1646 = vmatprep.subr.mxu0 0.0
        %1647 = vmatpush1.msra.mxu0 0.0
        %1648 = vmatprep.subr.mxu0 0.0
        %1649 = vmatpush1.msra.mxu0 0.0
        %1650 = vmatprep.subr.mxu0 0.0
        %1651 = vmatpush1.msra.mxu0 0.0
        %1652 = vmatprep.subr.mxu0 0.0
        %1653 = vmatpush1.msra.mxu0 0.0
        %1654 = vmatprep.subr.mxu0 0.0
        %1655 = vmatpush1.msra.mxu0 0.0
        %1656 = vmatprep.subr.mxu0 0.0
        %1657 = vmatpush1.msra.mxu0 0.0
        %1658 = vmatprep.subr.mxu0 0.0
        %1659 = vmatpush1.msra.mxu0 0.0
        %1660 = vmatprep.subr.mxu0 0.0
        %1661 = vmatpush1.msra.mxu0 0.0
        %1662 = vmatprep.subr.mxu0 0.0
        %1663 = vmatpush1.msra.mxu0 0.0
        %1664 = vmatprep.subr.mxu0 0.0
        %1665 = vmatpush1.msra.mxu0 0.0
        %1666 = vmatprep.subr.mxu0 0.0
        %1667 = vmatpush1.msra.mxu0 0.0
        %1668 = vmatprep.subr.mxu0 0.0
        %1669 = vmatpush1.msra.mxu0 0.0
        %1670 = vmatprep.subr.mxu0 0.0
        %1671 = vmatpush1.msra.mxu0 0.0
        %1672 = vmatprep.subr.mxu0 0.0
        %1673 = vmatpush1.msra.mxu0 0.0
        %1674 = vmatprep.subr.mxu0 0.0
        %1675 = vmatpush1.msra.mxu0 0.0
        %1676 = vmatprep.subr.mxu0 0.0
        %1677 = vmatpush1.msra.mxu0 0.0
        %1678 = vmatprep.subr.mxu0 0.0
        %1679 = vmatpush1.msra.mxu0 0.0
        %1680 = vmatprep.subr.mxu0 0.0
        %1681 = vmatpush1.msra.mxu0 0.0
        %1682 = vmatprep.subr.mxu0 0.0
        %1683 = vmatpush1.msra.mxu0 0.0
        %1684 = vmatprep.subr.mxu0 0.0
        %1685 = vmatpush1.msra.mxu0 0.0
        %1686 = vmatprep.subr.mxu0 0.0
        %1687 = vmatpush1.msra.mxu0 0.0
        %1688 = vmatprep.mubr.f32.mxu0 0.0
        %1689 = vmatmul.mubr.f32.gmra.mrb[0].mxu0 %v1622
        %v1690 = vpop.f32.mrb[0].mxu0
        %v1691 = vadd.f32 0.0, %v1690
        %v1692 = vpop.f32.mrb[0].mxu0
        %1693 = vdwg.mxu0
        %v1694 = vrcp.pop %v1617
        %v1695 = vmul.f32 %v1691, %v1694
        %1697 = vrot.lane.b32.xlu0 %v1695, 24
        %v1698 = vpop.permute.xlu0 %1697
        %vm1700 = vcmask 261312
        %1701 = vst.msk [vmem:[#allocation2] sm:$0xff] %vm1700, %v1698
        %v1702 = vld [vmem:[#allocation2] sm:$0xff]
        %v1703 = vld [vmem:[%s6] sm:$0xff]
        %v1704 = vld [vmem:[%s6 + $0x8] sm:$0xff]
        %v1705 = vld [vmem:[%s6 + $0x10] sm:$0xff]
        %v1706 = vld [vmem:[%s6 + $0x18] sm:$0xff]
        %v1707 = vpack.c.bf16 %v1702, %v1702
        %v1708 = vpack.c.bf16 %v1704, %v1703
        %v1709 = vpack.c.bf16 %v1706, %v1705
        %v1710 = vld [vmem:[%s9] sm:$0x1]
        %v1712 = vlaneseq
        %v1713 = vshrl.u32 %v1712, 7
        %v1714 = vsub.s32 0, %v1713
        %v1715 = vrot.slane %v1710, %v1714
        %v1718 = vsel %vm918, %v1707, 0
        %1720 = vmatprep.subr.bf16.mxu0 0
        %1721 = vmatpush1.bf16.msra.mxu0 %v1708
        %1722 = vmatprep.subr.bf16.mxu0 0
        %1723 = vmatpush1.bf16.msra.mxu0 %v1709
        %1724 = vmatprep.subr.bf16.mxu0 0
        %1725 = vmatpush1.bf16.msra.mxu0 0
        %1726 = vmatprep.subr.bf16.mxu0 0
        %1727 = vmatpush1.bf16.msra.mxu0 0
        %1728 = vmatprep.subr.bf16.mxu0 0
        %1729 = vmatpush1.bf16.msra.mxu0 0
        %1730 = vmatprep.subr.bf16.mxu0 0
        %1731 = vmatpush1.bf16.msra.mxu0 0
        %1732 = vmatprep.subr.bf16.mxu0 0
        %1733 = vmatpush1.bf16.msra.mxu0 0
        %1734 = vmatprep.subr.bf16.mxu0 0
        %1735 = vmatpush1.bf16.msra.mxu0 0
        %1736 = vmatprep.subr.bf16.mxu0 0
        %1737 = vmatpush1.bf16.msra.mxu0 0
        %1738 = vmatprep.subr.bf16.mxu0 0
        %1739 = vmatpush1.bf16.msra.mxu0 0
        %1740 = vmatprep.subr.bf16.mxu0 0
        %1741 = vmatpush1.bf16.msra.mxu0 0
        %1742 = vmatprep.subr.bf16.mxu0 0
        %1743 = vmatpush1.bf16.msra.mxu0 0
        %1744 = vmatprep.subr.bf16.mxu0 0
        %1745 = vmatpush1.bf16.msra.mxu0 0
        %1746 = vmatprep.subr.bf16.mxu0 0
        %1747 = vmatpush1.bf16.msra.mxu0 0
        %1748 = vmatprep.subr.bf16.mxu0 0
        %1749 = vmatpush1.bf16.msra.mxu0 0
        %1750 = vmatprep.subr.bf16.mxu0 0
        %1751 = vmatpush1.bf16.msra.mxu0 0
        %1752 = vmatprep.mubr.bf16.mxu0 0
        %1753 = vmatmul.mubr.bf16.gmra.mrb[0].mxu0 %v1718
        %v1754 = vpop.f32.mrb[0].mxu0
        %v1755 = vadd.f32 %v1715, %v1754
        %v1756 = vpop.f32.mrb[0].mxu0
        %v1757 = vpop.f32.mrb[0].mxu0
        %v1758 = vpop.f32.mrb[0].mxu0
        %1759 = vdwg.mxu0
        %v1760 = vadd.f32 %v1755, %v902
        %v1761 = vld [vmem:[%s10] sm:$0x1]
        %v1762 = vld [vmem:[%s11] sm:$0x1]
        %v1763 = vsel %vm918, %v1760, 0.0
        %1764 = vadd.xlane.f32.xlu0 %v1763
        %v1765 = vpop.xlane.xlu0 %1764
        %v1766 = vrcp.pop 32.0
        %v1767 = vmul.f32 %v1765, %v1766
        %v1768 = vsub.f32 %v1760, %v1767
        %v1769 = vmul.f32 %v1768, %v1768
        %v1770 = vsel %vm918, %v1769, 0.0
        %1771 = vadd.xlane.f32.xlu0 %v1770
        %v1772 = vpop.xlane.xlu0 %1771
        %v1773 = vmul.f32 %v1772, %v1766
        %v1774 = vadd.f32 %v1773, 1e-05
        %v1775 = vrsqrt.pop %v1774
        %v1776 = vmul.f32 %v1768, %v1775
        %v1778 = vlaneseq
        %v1779 = vshrl.u32 %v1778, 7
        %v1780 = vsub.s32 0, %v1779
        %v1781 = vrot.slane %v1761, %v1780
        %v1783 = vmul.f32 %v1776, %v1781
        %v1785 = vlaneseq
        %v1786 = vshrl.u32 %v1785, 7
        %v1787 = vsub.s32 0, %v1786
        %v1788 = vrot.slane %v1762, %v1787
        %v1790 = vadd.f32 %v1783, %v1788
        %v1791 = vld [vmem:[%s12] sm:$0xff]
        %v1792 = vld [vmem:[%s12 + $0x8] sm:$0xff]
        %v1793 = vld [vmem:[%s12 + $0x10] sm:$0xff]
        %v1794 = vld [vmem:[%s12 + $0x18] sm:$0xff]
        %v1795 = vpack.c.bf16 %v1790, %v1790
        %v1796 = vpack.c.bf16 %v1792, %v1791
        %v1797 = vpack.c.bf16 %v1794, %v1793
        %v1798 = vld [vmem:[%s15] sm:$0x1]
        %v1800 = vlaneseq
        %v1801 = vshrl.u32 %v1800, 7
        %v1802 = vsub.s32 0, %v1801
        %v1803 = vrot.slane %v1798, %v1802
        %v1806 = vsel %vm918, %v1795, 0
        %1808 = vmatprep.subr.bf16.mxu0 0
        %1809 = vmatpush1.bf16.msra.mxu0 %v1796
        %1810 = vmatprep.subr.bf16.mxu0 0
        %1811 = vmatpush1.bf16.msra.mxu0 %v1797
        %1812 = vmatprep.subr.bf16.mxu0 0
        %1813 = vmatpush1.bf16.msra.mxu0 0
        %1814 = vmatprep.subr.bf16.mxu0 0
        %1815 = vmatpush1.bf16.msra.mxu0 0
        %1816 = vmatprep.subr.bf16.mxu0 0
        %1817 = vmatpush1.bf16.msra.mxu0 0
        %1818 = vmatprep.subr.bf16.mxu0 0
        %1819 = vmatpush1.bf16.msra.mxu0 0
        %1820 = vmatprep.subr.bf16.mxu0 0
        %1821 = vmatpush1.bf16.msra.mxu0 0
        %1822 = vmatprep.subr.bf16.mxu0 0
        %1823 = vmatpush1.bf16.msra.mxu0 0
        %1824 = vmatprep.subr.bf16.mxu0 0
        %1825 = vmatpush1.bf16.msra.mxu0 0
        %1826 = vmatprep.subr.bf16.mxu0 0
        %1827 = vmatpush1.bf16.msra.mxu0 0
        %1828 = vmatprep.subr.bf16.mxu0 0
        %1829 = vmatpush1.bf16.msra.mxu0 0
        %1830 = vmatprep.subr.bf16.mxu0 0
        %1831 = vmatpush1.bf16.msra.mxu0 0
        %1832 = vmatprep.subr.bf16.mxu0 0
        %1833 = vmatpush1.bf16.msra.mxu0 0
        %1834 = vmatprep.subr.bf16.mxu0 0
        %1835 = vmatpush1.bf16.msra.mxu0 0
        %1836 = vmatprep.subr.bf16.mxu0 0
        %1837 = vmatpush1.bf16.msra.mxu0 0
        %1838 = vmatprep.subr.bf16.mxu0 0
        %1839 = vmatpush1.bf16.msra.mxu0 0
        %1840 = vmatprep.mubr.bf16.mxu0 0
        %1841 = vmatmul.mubr.bf16.gmra.mrb[0].mxu0 %v1806
        %v1842 = vpop.f32.mrb[0].mxu0
        %v1843 = vadd.f32 %v1803, %v1842
        %v1844 = vpop.f32.mrb[0].mxu0
        %v1845 = vpop.f32.mrb[0].mxu0
        %v1846 = vpop.f32.mrb[0].mxu0
        %1847 = vdwg.mxu0
        %v1848 = vld [vmem:[%s13] sm:$0xff]
        %v1849 = vld [vmem:[%s13 + $0x8] sm:$0xff]
        %v1850 = vld [vmem:[%s13 + $0x10] sm:$0xff]
        %v1851 = vld [vmem:[%s13 + $0x18] sm:$0xff]
        %v1852 = vpack.c.bf16 %v903, %v903
        %v1853 = vpack.c.bf16 %v1849, %v1848
        %v1854 = vpack.c.bf16 %v1851, %v1850
        %v1855 = vld [vmem:[%s16] sm:$0x1]
        %v1857 = vlaneseq
        %v1858 = vshrl.u32 %v1857, 7
        %v1859 = vsub.s32 0, %v1858
        %v1860 = vrot.slane %v1855, %v1859
        %v1863 = vsel %vm918, %v1852, 0
        %1865 = vmatprep.subr.bf16.mxu0 0
        %1866 = vmatpush1.bf16.msra.mxu0 %v1853
        %1867 = vmatprep.subr.bf16.mxu0 0
        %1868 = vmatpush1.bf16.msra.mxu0 %v1854
        %1869 = vmatprep.subr.bf16.mxu0 0
        %1870 = vmatpush1.bf16.msra.mxu0 0
        %1871 = vmatprep.subr.bf16.mxu0 0
        %1872 = vmatpush1.bf16.msra.mxu0 0
        %1873 = vmatprep.subr.bf16.mxu0 0
        %1874 = vmatpush1.bf16.msra.mxu0 0
        %1875 = vmatprep.subr.bf16.mxu0 0
        %1876 = vmatpush1.bf16.msra.mxu0 0
        %1877 = vmatprep.subr.bf16.mxu0 0
        %1878 = vmatpush1.bf16.msra.mxu0 0
        %1879 = vmatprep.subr.bf16.mxu0 0
        %1880 = vmatpush1.bf16.msra.mxu0 0
        %1881 = vmatprep.subr.bf16.mxu0 0
        %1882 = vmatpush1.bf16.msra.mxu0 0
        %1883 = vmatprep.subr.bf16.mxu0 0
        %1884 = vmatpush1.bf16.msra.mxu0 0
        %1885 = vmatprep.subr.bf16.mxu0 0
        %1886 = vmatpush1.bf16.msra.mxu0 0
        %1887 = vmatprep.subr.bf16.mxu0 0
        %1888 = vmatpush1.bf16.msra.mxu0 0
        %1889 = vmatprep.subr.bf16.mxu0 0
        %1890 = vmatpush1.bf16.msra.mxu0 0
        %1891 = vmatprep.subr.bf16.mxu0 0
        %1892 = vmatpush1.bf16.msra.mxu0 0
        %1893 = vmatprep.subr.bf16.mxu0 0
        %1894 = vmatpush1.bf16.msra.mxu0 0
        %1895 = vmatprep.subr.bf16.mxu0 0
        %1896 = vmatpush1.bf16.msra.mxu0 0
        %1897 = vmatprep.mubr.bf16.mxu0 0
        %1898 = vmatmul.mubr.bf16.gmra.mrb[0].mxu0 %v1863
        %v1899 = vpop.f32.mrb[0].mxu0
        %v1900 = vadd.f32 %v1860, %v1899
        %v1901 = vpop.f32.mrb[0].mxu0
        %v1902 = vpop.f32.mrb[0].mxu0
        %v1903 = vpop.f32.mrb[0].mxu0
        %1904 = vdwg.mxu0
        %v1905 = vld [vmem:[%s896] sm:$0xff]
        %v1907 = vsel %vm1016, %v1843, 0
        %v1910 = vsel %vm1016, %v1900, 0
        %1912 = vmatprep.subr.mxu0 0.0
        %1913 = vmatpush1.xpose.msra.mxu0 %v1910
        %1914 = vmatprep.subr.mxu0 0.0
        %1915 = vmatpush1.xpose.msra.mxu0 0.0
        %1916 = vmatprep.subr.mxu0 0.0
        %1917 = vmatpush1.xpose.msra.mxu0 0.0
        %1918 = vmatprep.subr.mxu0 0.0
        %1919 = vmatpush1.xpose.msra.mxu0 0.0
        %1920 = vmatprep.subr.mxu0 0.0
        %1921 = vmatpush1.xpose.msra.mxu0 0.0
        %1922 = vmatprep.subr.mxu0 0.0
        %1923 = vmatpush1.xpose.msra.mxu0 0.0
        %1924 = vmatprep.subr.mxu0 0.0
        %1925 = vmatpush1.xpose.msra.mxu0 0.0
        %1926 = vmatprep.subr.mxu0 0.0
        %1927 = vmatpush1.xpose.msra.mxu0 0.0
        %1928 = vmatprep.subr.mxu0 0.0
        %1929 = vmatpush1.xpose.msra.mxu0 0.0
        %1930 = vmatprep.subr.mxu0 0.0
        %1931 = vmatpush1.xpose.msra.mxu0 0.0
        %1932 = vmatprep.subr.mxu0 0.0
        %1933 = vmatpush1.xpose.msra.mxu0 0.0
        %1934 = vmatprep.subr.mxu0 0.0
        %1935 = vmatpush1.xpose.msra.mxu0 0.0
        %1936 = vmatprep.subr.mxu0 0.0
        %1937 = vmatpush1.xpose.msra.mxu0 0.0
        %1938 = vmatprep.subr.mxu0 0.0
        %1939 = vmatpush1.xpose.msra.mxu0 0.0
        %1940 = vmatprep.subr.mxu0 0.0
        %1941 = vmatpush1.xpose.msra.mxu0 0.0
        %1942 = vmatprep.subr.mxu0 0.0
        %1943 = vmatpush1.xpose.msra.mxu0 0.0
        %1944 = vmatprep.subr.mxu0 0.0
        %1945 = vmatpush1.xpose.msra.mxu0 0.0
        %1946 = vmatprep.subr.mxu0 0.0
        %1947 = vmatpush1.xpose.msra.mxu0 0.0
        %1948 = vmatprep.subr.mxu0 0.0
        %1949 = vmatpush1.xpose.msra.mxu0 0.0
        %1950 = vmatprep.subr.mxu0 0.0
        %1951 = vmatpush1.xpose.msra.mxu0 0.0
        %1952 = vmatprep.subr.mxu0 0.0
        %1953 = vmatpush1.xpose.msra.mxu0 0.0
        %1954 = vmatprep.subr.mxu0 0.0
        %1955 = vmatpush1.xpose.msra.mxu0 0.0
        %1956 = vmatprep.subr.mxu0 0.0
        %1957 = vmatpush1.xpose.msra.mxu0 0.0
        %1958 = vmatprep.subr.mxu0 0.0
        %1959 = vmatpush1.xpose.msra.mxu0 0.0
        %1960 = vmatprep.subr.mxu0 0.0
        %1961 = vmatpush1.xpose.msra.mxu0 0.0
        %1962 = vmatprep.subr.mxu0 0.0
        %1963 = vmatpush1.xpose.msra.mxu0 0.0
        %1964 = vmatprep.subr.mxu0 0.0
        %1965 = vmatpush1.xpose.msra.mxu0 0.0
        %1966 = vmatprep.subr.mxu0 0.0
        %1967 = vmatpush1.xpose.msra.mxu0 0.0
        %1968 = vmatprep.subr.mxu0 0.0
        %1969 = vmatpush1.xpose.msra.mxu0 0.0
        %1970 = vmatprep.subr.mxu0 0.0
        %1971 = vmatpush1.xpose.msra.mxu0 0.0
        %1972 = vmatprep.subr.mxu0 0.0
        %1973 = vmatpush1.xpose.msra.mxu0 0.0
        %1974 = vmatprep.subr.mxu0 0.0
        %1975 = vmatpush1.xpose.msra.mxu0 0.0
        %1976 = vmatprep.mubr.f32.mxu0 0.0
        %1977 = vmatmul.mubr.f32.gmra.mrb[0].mxu0 %v1907
        %v1978 = vpop.f32.mrb[0].mxu0
        %v1979 = vadd.f32 0.0, %v1978
        %v1980 = vpop.f32.mrb[0].mxu0
        %1981 = vdwg.mxu0
        %v1982 = vmul.f32 %v1979, 0.35355338
        %v1983 = vadd.f32 %v1982, %v1905
        %v1984 = vsel %vm1016, %v1983, -inf
        %1985 = vmax.xlane.f32.xlu0 %v1984
        %v1986 = vpop.xlane.xlu0 %1985
        %v1987 = vsub.f32 %v1983, %v1986
        %v1988 = vmul.f32 %v1987, 1.442695
        %v1989 = vpow.pop %v1988
        %v1990 = vsel %vm1016, %v1989, 0.0
        %1991 = vadd.xlane.f32.xlu0 %v1990
        %v1992 = vpop.xlane.xlu0 %1991
        %1993 = vrot.lane.b32.xlu0 %v1900, 96
        %v1994 = vpop.permute.xlu0 %1993
        %v1997 = vsel %vm1016, %v1989, 0
        %1999 = vmatprep.subr.mxu0 0.0
        %2000 = vmatpush1.msra.mxu0 %v1994
        %2001 = vmatprep.subr.mxu0 0.0
        %2002 = vmatpush1.msra.mxu0 0.0
        %2003 = vmatprep.subr.mxu0 0.0
        %2004 = vmatpush1.msra.mxu0 0.0
        %2005 = vmatprep.subr.mxu0 0.0
        %2006 = vmatpush1.msra.mxu0 0.0
        %2007 = vmatprep.subr.mxu0 0.0
        %2008 = vmatpush1.msra.mxu0 0.0
        %2009 = vmatprep.subr.mxu0 0.0
        %2010 = vmatpush1.msra.mxu0 0.0
        %2011 = vmatprep.subr.mxu0 0.0
        %2012 = vmatpush1.msra.mxu0 0.0
        %2013 = vmatprep.subr.mxu0 0.0
        %2014 = vmatpush1.msra.mxu0 0.0
        %2015 = vmatprep.subr.mxu0 0.0
        %2016 = vmatpush1.msra.mxu0 0.0
        %2017 = vmatprep.subr.mxu0 0.0
        %2018 = vmatpush1.msra.mxu0 0.0
        %2019 = vmatprep.subr.mxu0 0.0
        %2020 = vmatpush1.msra.mxu0 0.0
        %2021 = vmatprep.subr.mxu0 0.0
        %2022 = vmatpush1.msra.mxu0 0.0
        %2023 = vmatprep.subr.mxu0 0.0
        %2024 = vmatpush1.msra.mxu0 0.0
        %2025 = vmatprep.subr.mxu0 0.0
        %2026 = vmatpush1.msra.mxu0 0.0
        %2027 = vmatprep.subr.mxu0 0.0
        %2028 = vmatpush1.msra.mxu0 0.0
        %2029 = vmatprep.subr.mxu0 0.0
        %2030 = vmatpush1.msra.mxu0 0.0
        %2031 = vmatprep.subr.mxu0 0.0
        %2032 = vmatpush1.msra.mxu0 0.0
        %2033 = vmatprep.subr.mxu0 0.0
        %2034 = vmatpush1.msra.mxu0 0.0
        %2035 = vmatprep.subr.mxu0 0.0
        %2036 = vmatpush1.msra.mxu0 0.0
        %2037 = vmatprep.subr.mxu0 0.0
        %2038 = vmatpush1.msra.mxu0 0.0
        %2039 = vmatprep.subr.mxu0 0.0
        %2040 = vmatpush1.msra.mxu0 0.0
        %2041 = vmatprep.subr.mxu0 0.0
        %2042 = vmatpush1.msra.mxu0 0.0
        %2043 = vmatprep.subr.mxu0 0.0
        %2044 = vmatpush1.msra.mxu0 0.0
        %2045 = vmatprep.subr.mxu0 0.0
        %2046 = vmatpush1.msra.mxu0 0.0
        %2047 = vmatprep.subr.mxu0 0.0
        %2048 = vmatpush1.msra.mxu0 0.0
        %2049 = vmatprep.subr.mxu0 0.0
        %2050 = vmatpush1.msra.mxu0 0.0
        %2051 = vmatprep.subr.mxu0 0.0
        %2052 = vmatpush1.msra.mxu0 0.0
        %2053 = vmatprep.subr.mxu0 0.0
        %2054 = vmatpush1.msra.mxu0 0.0
        %2055 = vmatprep.subr.mxu0 0.0
        %2056 = vmatpush1.msra.mxu0 0.0
        %2057 = vmatprep.subr.mxu0 0.0
        %2058 = vmatpush1.msra.mxu0 0.0
        %2059 = vmatprep.subr.mxu0 0.0
        %2060 = vmatpush1.msra.mxu0 0.0
        %2061 = vmatprep.subr.mxu0 0.0
        %2062 = vmatpush1.msra.mxu0 0.0
        %2063 = vmatprep.mubr.f32.mxu0 0.0
        %2064 = vmatmul.mubr.f32.gmra.mrb[0].mxu0 %v1997
        %v2065 = vpop.f32.mrb[0].mxu0
        %v2066 = vadd.f32 0.0, %v2065
        %v2067 = vpop.f32.mrb[0].mxu0
        %2068 = vdwg.mxu0
        %v2069 = vrcp.pop %v1992
        %v2070 = vmul.f32 %v2066, %v2069
        %2071 = vst.msk [vmem:[#allocation2] sm:$0xff] %vm1016, %v2070
        %2072 = vrot.lane.b32.xlu0 %v1843, 120
        %v2073 = vpop.permute.xlu0 %2072
        %2074 = vrot.lane.b32.xlu0 %v1900, 120
        %v2075 = vpop.permute.xlu0 %2074
        %v2076 = vsel %vm1016, %v2073, 0
        %v2078 = vsel %vm1016, %v2075, 0
        %2080 = vmatprep.subr.mxu0 0.0
        %2081 = vmatpush1.xpose.msra.mxu0 %v2078
        %2082 = vmatprep.subr.mxu0 0.0
        %2083 = vmatpush1.xpose.msra.mxu0 0.0
        %2084 = vmatprep.subr.mxu0 0.0
        %2085 = vmatpush1.xpose.msra.mxu0 0.0
        %2086 = vmatprep.subr.mxu0 0.0
        %2087 = vmatpush1.xpose.msra.mxu0 0.0
        %2088 = vmatprep.subr.mxu0 0.0
        %2089 = vmatpush1.xpose.msra.mxu0 0.0
        %2090 = vmatprep.subr.mxu0 0.0
        %2091 = vmatpush1.xpose.msra.mxu0 0.0
        %2092 = vmatprep.subr.mxu0 0.0
        %2093 = vmatpush1.xpose.msra.mxu0 0.0
        %2094 = vmatprep.subr.mxu0 0.0
        %2095 = vmatpush1.xpose.msra.mxu0 0.0
        %2096 = vmatprep.subr.mxu0 0.0
        %2097 = vmatpush1.xpose.msra.mxu0 0.0
        %2098 = vmatprep.subr.mxu0 0.0
        %2099 = vmatpush1.xpose.msra.mxu0 0.0
        %2100 = vmatprep.subr.mxu0 0.0
        %2101 = vmatpush1.xpose.msra.mxu0 0.0
        %2102 = vmatprep.subr.mxu0 0.0
        %2103 = vmatpush1.xpose.msra.mxu0 0.0
        %2104 = vmatprep.subr.mxu0 0.0
        %2105 = vmatpush1.xpose.msra.mxu0 0.0
        %2106 = vmatprep.subr.mxu0 0.0
        %2107 = vmatpush1.xpose.msra.mxu0 0.0
        %2108 = vmatprep.subr.mxu0 0.0
        %2109 = vmatpush1.xpose.msra.mxu0 0.0
        %2110 = vmatprep.subr.mxu0 0.0
        %2111 = vmatpush1.xpose.msra.mxu0 0.0
        %2112 = vmatprep.subr.mxu0 0.0
        %2113 = vmatpush1.xpose.msra.mxu0 0.0
        %2114 = vmatprep.subr.mxu0 0.0
        %2115 = vmatpush1.xpose.msra.mxu0 0.0
        %2116 = vmatprep.subr.mxu0 0.0
        %2117 = vmatpush1.xpose.msra.mxu0 0.0
        %2118 = vmatprep.subr.mxu0 0.0
        %2119 = vmatpush1.xpose.msra.mxu0 0.0
        %2120 = vmatprep.subr.mxu0 0.0
        %2121 = vmatpush1.xpose.msra.mxu0 0.0
        %2122 = vmatprep.subr.mxu0 0.0
        %2123 = vmatpush1.xpose.msra.mxu0 0.0
        %2124 = vmatprep.subr.mxu0 0.0
        %2125 = vmatpush1.xpose.msra.mxu0 0.0
        %2126 = vmatprep.subr.mxu0 0.0
        %2127 = vmatpush1.xpose.msra.mxu0 0.0
        %2128 = vmatprep.subr.mxu0 0.0
        %2129 = vmatpush1.xpose.msra.mxu0 0.0
        %2130 = vmatprep.subr.mxu0 0.0
        %2131 = vmatpush1.xpose.msra.mxu0 0.0
        %2132 = vmatprep.subr.mxu0 0.0
        %2133 = vmatpush1.xpose.msra.mxu0 0.0
        %2134 = vmatprep.subr.mxu0 0.0
        %2135 = vmatpush1.xpose.msra.mxu0 0.0
        %2136 = vmatprep.subr.mxu0 0.0
        %2137 = vmatpush1.xpose.msra.mxu0 0.0
        %2138 = vmatprep.subr.mxu0 0.0
        %2139 = vmatpush1.xpose.msra.mxu0 0.0
        %2140 = vmatprep.subr.mxu0 0.0
        %2141 = vmatpush1.xpose.msra.mxu0 0.0
        %2142 = vmatprep.subr.mxu0 0.0
        %2143 = vmatpush1.xpose.msra.mxu0 0.0
        %2144 = vmatprep.mubr.f32.mxu0 0.0
        %2145 = vmatmul.mubr.f32.gmra.mrb[0].mxu0 %v2076
        %v2146 = vpop.f32.mrb[0].mxu0
        %v2147 = vadd.f32 0.0, %v2146
        %v2148 = vpop.f32.mrb[0].mxu0
        %2149 = vdwg.mxu0
        %v2150 = vmul.f32 %v2147, 0.35355338
        %v2151 = vadd.f32 %v2150, %v1905
        %v2152 = vsel %vm1016, %v2151, -inf
        %2153 = vmax.xlane.f32.xlu0 %v2152
        %v2154 = vpop.xlane.xlu0 %2153
        %v2155 = vsub.f32 %v2151, %v2154
        %v2156 = vmul.f32 %v2155, 1.442695
        %v2157 = vpow.pop %v2156
        %v2158 = vsel %vm1016, %v2157, 0.0
        %2159 = vadd.xlane.f32.xlu0 %v2158
        %v2160 = vpop.xlane.xlu0 %2159
        %2161 = vrot.lane.b32.xlu0 %v1900, 88
        %v2162 = vpop.permute.xlu0 %2161
        %v2165 = vsel %vm1016, %v2157, 0
        %2167 = vmatprep.subr.mxu0 0.0
        %2168 = vmatpush1.msra.mxu0 %v2162
        %2169 = vmatprep.subr.mxu0 0.0
        %2170 = vmatpush1.msra.mxu0 0.0
        %2171 = vmatprep.subr.mxu0 0.0
        %2172 = vmatpush1.msra.mxu0 0.0
        %2173 = vmatprep.subr.mxu0 0.0
        %2174 = vmatpush1.msra.mxu0 0.0
        %2175 = vmatprep.subr.mxu0 0.0
        %2176 = vmatpush1.msra.mxu0 0.0
        %2177 = vmatprep.subr.mxu0 0.0
        %2178 = vmatpush1.msra.mxu0 0.0
        %2179 = vmatprep.subr.mxu0 0.0
        %2180 = vmatpush1.msra.mxu0 0.0
        %2181 = vmatprep.subr.mxu0 0.0
        %2182 = vmatpush1.msra.mxu0 0.0
        %2183 = vmatprep.subr.mxu0 0.0
        %2184 = vmatpush1.msra.mxu0 0.0
        %2185 = vmatprep.subr.mxu0 0.0
        %2186 = vmatpush1.msra.mxu0 0.0
        %2187 = vmatprep.subr.mxu0 0.0
        %2188 = vmatpush1.msra.mxu0 0.0
        %2189 = vmatprep.subr.mxu0 0.0
        %2190 = vmatpush1.msra.mxu0 0.0
        %2191 = vmatprep.subr.mxu0 0.0
        %2192 = vmatpush1.msra.mxu0 0.0
        %2193 = vmatprep.subr.mxu0 0.0
        %2194 = vmatpush1.msra.mxu0 0.0
        %2195 = vmatprep.subr.mxu0 0.0
        %2196 = vmatpush1.msra.mxu0 0.0
        %2197 = vmatprep.subr.mxu0 0.0
        %2198 = vmatpush1.msra.mxu0 0.0
        %2199 = vmatprep.subr.mxu0 0.0
        %2200 = vmatpush1.msra.mxu0 0.0
        %2201 = vmatprep.subr.mxu0 0.0
        %2202 = vmatpush1.msra.mxu0 0.0
        %2203 = vmatprep.subr.mxu0 0.0
        %2204 = vmatpush1.msra.mxu0 0.0
        %2205 = vmatprep.subr.mxu0 0.0
        %2206 = vmatpush1.msra.mxu0 0.0
        %2207 = vmatprep.subr.mxu0 0.0
        %2208 = vmatpush1.msra.mxu0 0.0
        %2209 = vmatprep.subr.mxu0 0.0
        %2210 = vmatpush1.msra.mxu0 0.0
        %2211 = vmatprep.subr.mxu0 0.0
        %2212 = vmatpush1.msra.mxu0 0.0
        %2213 = vmatprep.subr.mxu0 0.0
        %2214 = vmatpush1.msra.mxu0 0.0
        %2215 = vmatprep.subr.mxu0 0.0
        %2216 = vmatpush1.msra.mxu0 0.0
        %2217 = vmatprep.subr.mxu0 0.0
        %2218 = vmatpush1.msra.mxu0 0.0
        %2219 = vmatprep.subr.mxu0 0.0
        %2220 = vmatpush1.msra.mxu0 0.0
        %2221 = vmatprep.subr.mxu0 0.0
        %2222 = vmatpush1.msra.mxu0 0.0
        %2223 = vmatprep.subr.mxu0 0.0
        %2224 = vmatpush1.msra.mxu0 0.0
        %2225 = vmatprep.subr.mxu0 0.0
        %2226 = vmatpush1.msra.mxu0 0.0
        %2227 = vmatprep.subr.mxu0 0.0
        %2228 = vmatpush1.msra.mxu0 0.0
        %2229 = vmatprep.subr.mxu0 0.0
        %2230 = vmatpush1.msra.mxu0 0.0
        %2231 = vmatprep.mubr.f32.mxu0 0.0
        %2232 = vmatmul.mubr.f32.gmra.mrb[0].mxu0 %v2165
        %v2233 = vpop.f32.mrb[0].mxu0
        %v2234 = vadd.f32 0.0, %v2233
        %v2235 = vpop.f32.mrb[0].mxu0
        %2236 = vdwg.mxu0
        %v2237 = vrcp.pop %v2160
        %v2238 = vmul.f32 %v2234, %v2237
        %2240 = vrot.lane.b32.xlu0 %v2238, 8
        %v2241 = vpop.permute.xlu0 %2240
        %2243 = vst.msk [vmem:[#allocation2] sm:$0xff] %vm1354, %v2241
        %2244 = vrot.lane.b32.xlu0 %v1843, 112
        %v2245 = vpop.permute.xlu0 %2244
        %2246 = vrot.lane.b32.xlu0 %v1900, 112
        %v2247 = vpop.permute.xlu0 %2246
        %v2248 = vsel %vm1016, %v2245, 0
        %v2250 = vsel %vm1016, %v2247, 0
        %2252 = vmatprep.subr.mxu0 0.0
        %2253 = vmatpush1.xpose.msra.mxu0 %v2250
        %2254 = vmatprep.subr.mxu0 0.0
        %2255 = vmatpush1.xpose.msra.mxu0 0.0
        %2256 = vmatprep.subr.mxu0 0.0
        %2257 = vmatpush1.xpose.msra.mxu0 0.0
        %2258 = vmatprep.subr.mxu0 0.0
        %2259 = vmatpush1.xpose.msra.mxu0 0.0
        %2260 = vmatprep.subr.mxu0 0.0
        %2261 = vmatpush1.xpose.msra.mxu0 0.0
        %2262 = vmatprep.subr.mxu0 0.0
        %2263 = vmatpush1.xpose.msra.mxu0 0.0
        %2264 = vmatprep.subr.mxu0 0.0
        %2265 = vmatpush1.xpose.msra.mxu0 0.0
        %2266 = vmatprep.subr.mxu0 0.0
        %2267 = vmatpush1.xpose.msra.mxu0 0.0
        %2268 = vmatprep.subr.mxu0 0.0
        %2269 = vmatpush1.xpose.msra.mxu0 0.0
        %2270 = vmatprep.subr.mxu0 0.0
        %2271 = vmatpush1.xpose.msra.mxu0 0.0
        %2272 = vmatprep.subr.mxu0 0.0
        %2273 = vmatpush1.xpose.msra.mxu0 0.0
        %2274 = vmatprep.subr.mxu0 0.0
        %2275 = vmatpush1.xpose.msra.mxu0 0.0
        %2276 = vmatprep.subr.mxu0 0.0
        %2277 = vmatpush1.xpose.msra.mxu0 0.0
        %2278 = vmatprep.subr.mxu0 0.0
        %2279 = vmatpush1.xpose.msra.mxu0 0.0
        %2280 = vmatprep.subr.mxu0 0.0
        %2281 = vmatpush1.xpose.msra.mxu0 0.0
        %2282 = vmatprep.subr.mxu0 0.0
        %2283 = vmatpush1.xpose.msra.mxu0 0.0
        %2284 = vmatprep.subr.mxu0 0.0
        %2285 = vmatpush1.xpose.msra.mxu0 0.0
        %2286 = vmatprep.subr.mxu0 0.0
        %2287 = vmatpush1.xpose.msra.mxu0 0.0
        %2288 = vmatprep.subr.mxu0 0.0
        %2289 = vmatpush1.xpose.msra.mxu0 0.0
        %2290 = vmatprep.subr.mxu0 0.0
        %2291 = vmatpush1.xpose.msra.mxu0 0.0
        %2292 = vmatprep.subr.mxu0 0.0
        %2293 = vmatpush1.xpose.msra.mxu0 0.0
        %2294 = vmatprep.subr.mxu0 0.0
        %2295 = vmatpush1.xpose.msra.mxu0 0.0
        %2296 = vmatprep.subr.mxu0 0.0
        %2297 = vmatpush1.xpose.msra.mxu0 0.0
        %2298 = vmatprep.subr.mxu0 0.0
        %2299 = vmatpush1.xpose.msra.mxu0 0.0
        %2300 = vmatprep.subr.mxu0 0.0
        %2301 = vmatpush1.xpose.msra.mxu0 0.0
        %2302 = vmatprep.subr.mxu0 0.0
        %2303 = vmatpush1.xpose.msra.mxu0 0.0
        %2304 = vmatprep.subr.mxu0 0.0
        %2305 = vmatpush1.xpose.msra.mxu0 0.0
        %2306 = vmatprep.subr.mxu0 0.0
        %2307 = vmatpush1.xpose.msra.mxu0 0.0
        %2308 = vmatprep.subr.mxu0 0.0
        %2309 = vmatpush1.xpose.msra.mxu0 0.0
        %2310 = vmatprep.subr.mxu0 0.0
        %2311 = vmatpush1.xpose.msra.mxu0 0.0
        %2312 = vmatprep.subr.mxu0 0.0
        %2313 = vmatpush1.xpose.msra.mxu0 0.0
        %2314 = vmatprep.subr.mxu0 0.0
        %2315 = vmatpush1.xpose.msra.mxu0 0.0
        %2316 = vmatprep.mubr.f32.mxu0 0.0
        %2317 = vmatmul.mubr.f32.gmra.mrb[0].mxu0 %v2248
        %v2318 = vpop.f32.mrb[0].mxu0
        %v2319 = vadd.f32 0.0, %v2318
        %v2320 = vpop.f32.mrb[0].mxu0
        %2321 = vdwg.mxu0
        %v2322 = vmul.f32 %v2319, 0.35355338
        %v2323 = vadd.f32 %v2322, %v1905
        %v2324 = vsel %vm1016, %v2323, -inf
        %2325 = vmax.xlane.f32.xlu0 %v2324
        %v2326 = vpop.xlane.xlu0 %2325
        %v2327 = vsub.f32 %v2323, %v2326
        %v2328 = vmul.f32 %v2327, 1.442695
        %v2329 = vpow.pop %v2328
        %v2330 = vsel %vm1016, %v2329, 0.0
        %2331 = vadd.xlane.f32.xlu0 %v2330
        %v2332 = vpop.xlane.xlu0 %2331
        %2333 = vrot.lane.b32.xlu0 %v1900, 80
        %v2334 = vpop.permute.xlu0 %2333
        %v2337 = vsel %vm1016, %v2329, 0
        %2339 = vmatprep.subr.mxu0 0.0
        %2340 = vmatpush1.msra.mxu0 %v2334
        %2341 = vmatprep.subr.mxu0 0.0
        %2342 = vmatpush1.msra.mxu0 0.0
        %2343 = vmatprep.subr.mxu0 0.0
        %2344 = vmatpush1.msra.mxu0 0.0
        %2345 = vmatprep.subr.mxu0 0.0
        %2346 = vmatpush1.msra.mxu0 0.0
        %2347 = vmatprep.subr.mxu0 0.0
        %2348 = vmatpush1.msra.mxu0 0.0
        %2349 = vmatprep.subr.mxu0 0.0
        %2350 = vmatpush1.msra.mxu0 0.0
        %2351 = vmatprep.subr.mxu0 0.0
        %2352 = vmatpush1.msra.mxu0 0.0
        %2353 = vmatprep.subr.mxu0 0.0
        %2354 = vmatpush1.msra.mxu0 0.0
        %2355 = vmatprep.subr.mxu0 0.0
        %2356 = vmatpush1.msra.mxu0 0.0
        %2357 = vmatprep.subr.mxu0 0.0
        %2358 = vmatpush1.msra.mxu0 0.0
        %2359 = vmatprep.subr.mxu0 0.0
        %2360 = vmatpush1.msra.mxu0 0.0
        %2361 = vmatprep.subr.mxu0 0.0
        %2362 = vmatpush1.msra.mxu0 0.0
        %2363 = vmatprep.subr.mxu0 0.0
        %2364 = vmatpush1.msra.mxu0 0.0
        %2365 = vmatprep.subr.mxu0 0.0
        %2366 = vmatpush1.msra.mxu0 0.0
        %2367 = vmatprep.subr.mxu0 0.0
        %2368 = vmatpush1.msra.mxu0 0.0
        %2369 = vmatprep.subr.mxu0 0.0
        %2370 = vmatpush1.msra.mxu0 0.0
        %2371 = vmatprep.subr.mxu0 0.0
        %2372 = vmatpush1.msra.mxu0 0.0
        %2373 = vmatprep.subr.mxu0 0.0
        %2374 = vmatpush1.msra.mxu0 0.0
        %2375 = vmatprep.subr.mxu0 0.0
        %2376 = vmatpush1.msra.mxu0 0.0
        %2377 = vmatprep.subr.mxu0 0.0
        %2378 = vmatpush1.msra.mxu0 0.0
        %2379 = vmatprep.subr.mxu0 0.0
        %2380 = vmatpush1.msra.mxu0 0.0
        %2381 = vmatprep.subr.mxu0 0.0
        %2382 = vmatpush1.msra.mxu0 0.0
        %2383 = vmatprep.subr.mxu0 0.0
        %2384 = vmatpush1.msra.mxu0 0.0
        %2385 = vmatprep.subr.mxu0 0.0
        %2386 = vmatpush1.msra.mxu0 0.0
        %2387 = vmatprep.subr.mxu0 0.0
        %2388 = vmatpush1.msra.mxu0 0.0
        %2389 = vmatprep.subr.mxu0 0.0
        %2390 = vmatpush1.msra.mxu0 0.0
        %2391 = vmatprep.subr.mxu0 0.0
        %2392 = vmatpush1.msra.mxu0 0.0
        %2393 = vmatprep.subr.mxu0 0.0
        %2394 = vmatpush1.msra.mxu0 0.0
        %2395 = vmatprep.subr.mxu0 0.0
        %2396 = vmatpush1.msra.mxu0 0.0
        %2397 = vmatprep.subr.mxu0 0.0
        %2398 = vmatpush1.msra.mxu0 0.0
        %2399 = vmatprep.subr.mxu0 0.0
        %2400 = vmatpush1.msra.mxu0 0.0
        %2401 = vmatprep.subr.mxu0 0.0
        %2402 = vmatpush1.msra.mxu0 0.0
        %2403 = vmatprep.mubr.f32.mxu0 0.0
        %2404 = vmatmul.mubr.f32.gmra.mrb[0].mxu0 %v2337
        %v2405 = vpop.f32.mrb[0].mxu0
        %v2406 = vadd.f32 0.0, %v2405
        %v2407 = vpop.f32.mrb[0].mxu0
        %2408 = vdwg.mxu0
        %v2409 = vrcp.pop %v2332
        %v2410 = vmul.f32 %v2406, %v2409
        %2412 = vrot.lane.b32.xlu0 %v2410, 16
        %v2413 = vpop.permute.xlu0 %2412
        %2415 = vst.msk [vmem:[#allocation2] sm:$0xff] %vm1527, %v2413
        %2416 = vrot.lane.b32.xlu0 %v1843, 104
        %v2417 = vpop.permute.xlu0 %2416
        %2418 = vrot.lane.b32.xlu0 %v1900, 104
        %v2419 = vpop.permute.xlu0 %2418
        %v2420 = vsel %vm1016, %v2417, 0
        %v2422 = vsel %vm1016, %v2419, 0
        %2424 = vmatprep.subr.mxu0 0.0
        %2425 = vmatpush1.xpose.msra.mxu0 %v2422
        %2426 = vmatprep.subr.mxu0 0.0
        %2427 = vmatpush1.xpose.msra.mxu0 0.0
        %2428 = vmatprep.subr.mxu0 0.0
        %2429 = vmatpush1.xpose.msra.mxu0 0.0
        %2430 = vmatprep.subr.mxu0 0.0
        %2431 = vmatpush1.xpose.msra.mxu0 0.0
        %2432 = vmatprep.subr.mxu0 0.0
        %2433 = vmatpush1.xpose.msra.mxu0 0.0
        %2434 = vmatprep.subr.mxu0 0.0
        %2435 = vmatpush1.xpose.msra.mxu0 0.0
        %2436 = vmatprep.subr.mxu0 0.0
        %2437 = vmatpush1.xpose.msra.mxu0 0.0
        %2438 = vmatprep.subr.mxu0 0.0
        %2439 = vmatpush1.xpose.msra.mxu0 0.0
        %2440 = vmatprep.subr.mxu0 0.0
        %2441 = vmatpush1.xpose.msra.mxu0 0.0
        %2442 = vmatprep.subr.mxu0 0.0
        %2443 = vmatpush1.xpose.msra.mxu0 0.0
        %2444 = vmatprep.subr.mxu0 0.0
        %2445 = vmatpush1.xpose.msra.mxu0 0.0
        %2446 = vmatprep.subr.mxu0 0.0
        %2447 = vmatpush1.xpose.msra.mxu0 0.0
        %2448 = vmatprep.subr.mxu0 0.0
        %2449 = vmatpush1.xpose.msra.mxu0 0.0
        %2450 = vmatprep.subr.mxu0 0.0
        %2451 = vmatpush1.xpose.msra.mxu0 0.0
        %2452 = vmatprep.subr.mxu0 0.0
        %2453 = vmatpush1.xpose.msra.mxu0 0.0
        %2454 = vmatprep.subr.mxu0 0.0
        %2455 = vmatpush1.xpose.msra.mxu0 0.0
        %2456 = vmatprep.subr.mxu0 0.0
        %2457 = vmatpush1.xpose.msra.mxu0 0.0
        %2458 = vmatprep.subr.mxu0 0.0
        %2459 = vmatpush1.xpose.msra.mxu0 0.0
        %2460 = vmatprep.subr.mxu0 0.0
        %2461 = vmatpush1.xpose.msra.mxu0 0.0
        %2462 = vmatprep.subr.mxu0 0.0
        %2463 = vmatpush1.xpose.msra.mxu0 0.0
        %2464 = vmatprep.subr.mxu0 0.0
        %2465 = vmatpush1.xpose.msra.mxu0 0.0
        %2466 = vmatprep.subr.mxu0 0.0
        %2467 = vmatpush1.xpose.msra.mxu0 0.0
        %2468 = vmatprep.subr.mxu0 0.0
        %2469 = vmatpush1.xpose.msra.mxu0 0.0
        %2470 = vmatprep.subr.mxu0 0.0
        %2471 = vmatpush1.xpose.msra.mxu0 0.0
        %2472 = vmatprep.subr.mxu0 0.0
        %2473 = vmatpush1.xpose.msra.mxu0 0.0
        %2474 = vmatprep.subr.mxu0 0.0
        %2475 = vmatpush1.xpose.msra.mxu0 0.0
        %2476 = vmatprep.subr.mxu0 0.0
        %2477 = vmatpush1.xpose.msra.mxu0 0.0
        %2478 = vmatprep.subr.mxu0 0.0
        %2479 = vmatpush1.xpose.msra.mxu0 0.0
        %2480 = vmatprep.subr.mxu0 0.0
        %2481 = vmatpush1.xpose.msra.mxu0 0.0
        %2482 = vmatprep.subr.mxu0 0.0
        %2483 = vmatpush1.xpose.msra.mxu0 0.0
        %2484 = vmatprep.subr.mxu0 0.0
        %2485 = vmatpush1.xpose.msra.mxu0 0.0
        %2486 = vmatprep.subr.mxu0 0.0
        %2487 = vmatpush1.xpose.msra.mxu0 0.0
        %2488 = vmatprep.mubr.f32.mxu0 0.0
        %2489 = vmatmul.mubr.f32.gmra.mrb[0].mxu0 %v2420
        %v2490 = vpop.f32.mrb[0].mxu0
        %v2491 = vadd.f32 0.0, %v2490
        %v2492 = vpop.f32.mrb[0].mxu0
        %2493 = vdwg.mxu0
        %v2494 = vmul.f32 %v2491, 0.35355338
        %v2495 = vadd.f32 %v2494, %v1905
        %v2496 = vsel %vm1016, %v2495, -inf
        %2497 = vmax.xlane.f32.xlu0 %v2496
        %v2498 = vpop.xlane.xlu0 %2497
        %v2499 = vsub.f32 %v2495, %v2498
        %v2500 = vmul.f32 %v2499, 1.442695
        %v2501 = vpow.pop %v2500
        %v2502 = vsel %vm1016, %v2501, 0.0
        %2503 = vadd.xlane.f32.xlu0 %v2502
        %v2504 = vpop.xlane.xlu0 %2503
        %2505 = vrot.lane.b32.xlu0 %v1900, 72
        %v2506 = vpop.permute.xlu0 %2505
        %v2509 = vsel %vm1016, %v2501, 0
        %2511 = vmatprep.subr.mxu0 0.0
        %2512 = vmatpush1.msra.mxu0 %v2506
        %2513 = vmatprep.subr.mxu0 0.0
        %2514 = vmatpush1.msra.mxu0 0.0
        %2515 = vmatprep.subr.mxu0 0.0
        %2516 = vmatpush1.msra.mxu0 0.0
        %2517 = vmatprep.subr.mxu0 0.0
        %2518 = vmatpush1.msra.mxu0 0.0
        %2519 = vmatprep.subr.mxu0 0.0
        %2520 = vmatpush1.msra.mxu0 0.0
        %2521 = vmatprep.subr.mxu0 0.0
        %2522 = vmatpush1.msra.mxu0 0.0
        %2523 = vmatprep.subr.mxu0 0.0
        %2524 = vmatpush1.msra.mxu0 0.0
        %2525 = vmatprep.subr.mxu0 0.0
        %2526 = vmatpush1.msra.mxu0 0.0
        %2527 = vmatprep.subr.mxu0 0.0
        %2528 = vmatpush1.msra.mxu0 0.0
        %2529 = vmatprep.subr.mxu0 0.0
        %2530 = vmatpush1.msra.mxu0 0.0
        %2531 = vmatprep.subr.mxu0 0.0
        %2532 = vmatpush1.msra.mxu0 0.0
        %2533 = vmatprep.subr.mxu0 0.0
        %2534 = vmatpush1.msra.mxu0 0.0
        %2535 = vmatprep.subr.mxu0 0.0
        %2536 = vmatpush1.msra.mxu0 0.0
        %2537 = vmatprep.subr.mxu0 0.0
        %2538 = vmatpush1.msra.mxu0 0.0
        %2539 = vmatprep.subr.mxu0 0.0
        %2540 = vmatpush1.msra.mxu0 0.0
        %2541 = vmatprep.subr.mxu0 0.0
        %2542 = vmatpush1.msra.mxu0 0.0
        %2543 = vmatprep.subr.mxu0 0.0
        %2544 = vmatpush1.msra.mxu0 0.0
        %2545 = vmatprep.subr.mxu0 0.0
        %2546 = vmatpush1.msra.mxu0 0.0
        %2547 = vmatprep.subr.mxu0 0.0
        %2548 = vmatpush1.msra.mxu0 0.0
        %2549 = vmatprep.subr.mxu0 0.0
        %2550 = vmatpush1.msra.mxu0 0.0
        %2551 = vmatprep.subr.mxu0 0.0
        %2552 = vmatpush1.msra.mxu0 0.0
        %2553 = vmatprep.subr.mxu0 0.0
        %2554 = vmatpush1.msra.mxu0 0.0
        %2555 = vmatprep.subr.mxu0 0.0
        %2556 = vmatpush1.msra.mxu0 0.0
        %2557 = vmatprep.subr.mxu0 0.0
        %2558 = vmatpush1.msra.mxu0 0.0
        %2559 = vmatprep.subr.mxu0 0.0
        %2560 = vmatpush1.msra.mxu0 0.0
        %2561 = vmatprep.subr.mxu0 0.0
        %2562 = vmatpush1.msra.mxu0 0.0
        %2563 = vmatprep.subr.mxu0 0.0
        %2564 = vmatpush1.msra.mxu0 0.0
        %2565 = vmatprep.subr.mxu0 0.0
        %2566 = vmatpush1.msra.mxu0 0.0
        %2567 = vmatprep.subr.mxu0 0.0
        %2568 = vmatpush1.msra.mxu0 0.0
        %2569 = vmatprep.subr.mxu0 0.0
        %2570 = vmatpush1.msra.mxu0 0.0
        %2571 = vmatprep.subr.mxu0 0.0
        %2572 = vmatpush1.msra.mxu0 0.0
        %2573 = vmatprep.subr.mxu0 0.0
        %2574 = vmatpush1.msra.mxu0 0.0
        %2575 = vmatprep.mubr.f32.mxu0 0.0
        %2576 = vmatmul.mubr.f32.gmra.mrb[0].mxu0 %v2509
        %v2577 = vpop.f32.mrb[0].mxu0
        %v2578 = vadd.f32 0.0, %v2577
        %v2579 = vpop.f32.mrb[0].mxu0
        %2580 = vdwg.mxu0
        %v2581 = vrcp.pop %v2504
        %v2582 = vmul.f32 %v2578, %v2581
        %2584 = vrot.lane.b32.xlu0 %v2582, 24
        %v2585 = vpop.permute.xlu0 %2584
        %2587 = vst.msk [vmem:[#allocation2] sm:$0xff] %vm1700, %v2585
        %v2588 = vld [vmem:[#allocation2] sm:$0xff]
        %v2589 = vld [vmem:[%s14] sm:$0xff]
        %v2590 = vld [vmem:[%s14 + $0x8] sm:$0xff]
        %v2591 = vld [vmem:[%s14 + $0x10] sm:$0xff]
        %v2592 = vld [vmem:[%s14 + $0x18] sm:$0xff]
        %v2593 = vpack.c.bf16 %v2588, %v2588
        %v2594 = vpack.c.bf16 %v2590, %v2589
        %v2595 = vpack.c.bf16 %v2592, %v2591
        %v2596 = vld [vmem:[%s17] sm:$0x1]
        %v2598 = vlaneseq
        %v2599 = vshrl.u32 %v2598, 7
        %v2600 = vsub.s32 0, %v2599
        %v2601 = vrot.slane %v2596, %v2600
        %v2604 = vsel %vm918, %v2593, 0
        %2606 = vmatprep.subr.bf16.mxu0 0
        %2607 = vmatpush1.bf16.msra.mxu0 %v2594
        %2608 = vmatprep.subr.bf16.mxu0 0
        %2609 = vmatpush1.bf16.msra.mxu0 %v2595
        %2610 = vmatprep.subr.bf16.mxu0 0
        %2611 = vmatpush1.bf16.msra.mxu0 0
        %2612 = vmatprep.subr.bf16.mxu0 0
        %2613 = vmatpush1.bf16.msra.mxu0 0
        %2614 = vmatprep.subr.bf16.mxu0 0
        %2615 = vmatpush1.bf16.msra.mxu0 0
        %2616 = vmatprep.subr.bf16.mxu0 0
        %2617 = vmatpush1.bf16.msra.mxu0 0
        %2618 = vmatprep.subr.bf16.mxu0 0
        %2619 = vmatpush1.bf16.msra.mxu0 0
        %2620 = vmatprep.subr.bf16.mxu0 0
        %2621 = vmatpush1.bf16.msra.mxu0 0
        %2622 = vmatprep.subr.bf16.mxu0 0
        %2623 = vmatpush1.bf16.msra.mxu0 0
        %2624 = vmatprep.subr.bf16.mxu0 0
        %2625 = vmatpush1.bf16.msra.mxu0 0
        %2626 = vmatprep.subr.bf16.mxu0 0
        %2627 = vmatpush1.bf16.msra.mxu0 0
        %2628 = vmatprep.subr.bf16.mxu0 0
        %2629 = vmatpush1.bf16.msra.mxu0 0
        %2630 = vmatprep.subr.bf16.mxu0 0
        %2631 = vmatpush1.bf16.msra.mxu0 0
        %2632 = vmatprep.subr.bf16.mxu0 0
        %2633 = vmatpush1.bf16.msra.mxu0 0
        %2634 = vmatprep.subr.bf16.mxu0 0
        %2635 = vmatpush1.bf16.msra.mxu0 0
        %2636 = vmatprep.subr.bf16.mxu0 0
        %2637 = vmatpush1.bf16.msra.mxu0 0
        %2638 = vmatprep.mubr.bf16.mxu0 0
        %2639 = vmatmul.mubr.bf16.gmra.mrb[0].mxu0 %v2604
        %v2640 = vpop.f32.mrb[0].mxu0
        %v2641 = vadd.f32 %v2601, %v2640
        %v2642 = vpop.f32.mrb[0].mxu0
        %v2643 = vpop.f32.mrb[0].mxu0
        %v2644 = vpop.f32.mrb[0].mxu0
        %2645 = vdwg.mxu0
        %v2646 = vadd.f32 %v2641, %v1790
        %v2647 = vld [vmem:[%s18] sm:$0x1]
        %v2648 = vld [vmem:[#allocation3] sm:$0x1]
        %v2649 = vsel %vm918, %v2646, 0.0
        %2650 = vadd.xlane.f32.xlu0 %v2649
        %v2651 = vpop.xlane.xlu0 %2650
        %v2652 = vmul.f32 %v2651, %v1766
        %v2653 = vsub.f32 %v2646, %v2652
        %v2654 = vmul.f32 %v2653, %v2653
        %v2655 = vsel %vm918, %v2654, 0.0
        %2656 = vadd.xlane.f32.xlu0 %v2655
        %v2657 = vpop.xlane.xlu0 %2656
        %v2658 = vmul.f32 %v2657, %v1766
        %v2659 = vadd.f32 %v2658, 1e-05
        %v2660 = vrsqrt.pop %v2659
        %v2661 = vmul.f32 %v2653, %v2660
        %v2663 = vlaneseq
        %v2664 = vshrl.u32 %v2663, 7
        %v2665 = vsub.s32 0, %v2664
        %v2666 = vrot.slane %v2647, %v2665
        %v2668 = vmul.f32 %v2661, %v2666
        %v2670 = vlaneseq
        %v2671 = vshrl.u32 %v2670, 7
        %v2672 = vsub.s32 0, %v2671
        %v2673 = vrot.slane %v2648, %v2672
        %v2675 = vadd.f32 %v2668, %v2673
        %v2676 = vld [vmem:[%s20] sm:$0xff]
        %v2677 = vld [vmem:[%s20 + $0x8] sm:$0xff]
        %v2678 = vld [vmem:[%s20 + $0x10] sm:$0xff]
        %v2679 = vld [vmem:[%s20 + $0x18] sm:$0xff]
        %v2680 = vpack.c.bf16 %v2675, %v2675
        %v2681 = vpack.c.bf16 %v2677, %v2676
        %v2682 = vpack.c.bf16 %v2679, %v2678
        %v2683 = vld [vmem:[#allocation5] sm:$0x1]
        %v2685 = vlaneseq
        %v2686 = vshrl.u32 %v2685, 7
        %v2687 = vsub.s32 0, %v2686
        %v2688 = vrot.slane %v2683, %v2687
        %v2691 = vsel %vm918, %v2680, 0
        %2693 = vmatprep.subr.bf16.mxu0 0
        %2694 = vmatpush1.bf16.msra.mxu0 %v2681
        %2695 = vmatprep.subr.bf16.mxu0 0
        %2696 = vmatpush1.bf16.msra.mxu0 %v2682
        %2697 = vmatprep.subr.bf16.mxu0 0
        %2698 = vmatpush1.bf16.msra.mxu0 0
        %2699 = vmatprep.subr.bf16.mxu0 0
        %2700 = vmatpush1.bf16.msra.mxu0 0
        %2701 = vmatprep.subr.bf16.mxu0 0
        %2702 = vmatpush1.bf16.msra.mxu0 0
        %2703 = vmatprep.subr.bf16.mxu0 0
        %2704 = vmatpush1.bf16.msra.mxu0 0
        %2705 = vmatprep.subr.bf16.mxu0 0
        %2706 = vmatpush1.bf16.msra.mxu0 0
        %2707 = vmatprep.subr.bf16.mxu0 0
        %2708 = vmatpush1.bf16.msra.mxu0 0
        %2709 = vmatprep.subr.bf16.mxu0 0
        %2710 = vmatpush1.bf16.msra.mxu0 0
        %2711 = vmatprep.subr.bf16.mxu0 0
        %2712 = vmatpush1.bf16.msra.mxu0 0
        %2713 = vmatprep.subr.bf16.mxu0 0
        %2714 = vmatpush1.bf16.msra.mxu0 0
        %2715 = vmatprep.subr.bf16.mxu0 0
        %2716 = vmatpush1.bf16.msra.mxu0 0
        %2717 = vmatprep.subr.bf16.mxu0 0
        %2718 = vmatpush1.bf16.msra.mxu0 0
        %2719 = vmatprep.subr.bf16.mxu0 0
        %2720 = vmatpush1.bf16.msra.mxu0 0
        %2721 = vmatprep.subr.bf16.mxu0 0
        %2722 = vmatpush1.bf16.msra.mxu0 0
        %2723 = vmatprep.subr.bf16.mxu0 0
        %2724 = vmatpush1.bf16.msra.mxu0 0
        %2725 = vmatprep.mubr.bf16.mxu0 0
        %2726 = vmatmul.mubr.bf16.gmra.mrb[0].mxu0 %v2691
        %v2727 = vpop.f32.mrb[0].mxu0
        %v2728 = vadd.f32 %v2688, %v2727
        %v2729 = vpop.f32.mrb[0].mxu0
        %v2730 = vpop.f32.mrb[0].mxu0
        %v2731 = vpop.f32.mrb[0].mxu0
        %2732 = vdwg.mxu0
        %v2733 = vmax.f32 %v2728, 0.0
        %v2734 = vld [vmem:[%s22] sm:$0xff]
        %v2735 = vld [vmem:[%s22 + $0x8] sm:$0xff]
        %v2736 = vld [vmem:[%s22 + $0x10] sm:$0xff]
        %v2737 = vld [vmem:[%s22 + $0x18] sm:$0xff]
        %v2738 = vld [vmem:[%s22 + $0x20] sm:$0xff]
        %v2739 = vld [vmem:[%s22 + $0x28] sm:$0xff]
        %v2740 = vld [vmem:[%s22 + $0x30] sm:$0xff]
        %v2741 = vld [vmem:[%s22 + $0x38] sm:$0xff]
        %v2742 = vpack.c.bf16 %v2733, %v2733
        %v2743 = vpack.c.bf16 %v2735, %v2734
        %v2744 = vpack.c.bf16 %v2737, %v2736
        %v2745 = vpack.c.bf16 %v2739, %v2738
        %v2746 = vpack.c.bf16 %v2741, %v2740
        %v2747 = vld [vmem:[#allocation7] sm:$0x1]
        %v2749 = vlaneseq
        %v2750 = vshrl.u32 %v2749, 7
        %v2751 = vsub.s32 0, %v2750
        %v2752 = vrot.slane %v2747, %v2751
        %vm2754 = vcmask 523264
        %v2756 = vsel %vm2754, %v2742, 0
        %2758 = vmatprep.subr.bf16.mxu0 0
        %2759 = vmatpush1.bf16.msra.mxu0 %v2743
        %2760 = vmatprep.subr.bf16.mxu0 0
        %2761 = vmatpush1.bf16.msra.mxu0 %v2744
        %2762 = vmatprep.subr.bf16.mxu0 0
        %2763 = vmatpush1.bf16.msra.mxu0 %v2745
        %2764 = vmatprep.subr.bf16.mxu0 0
        %2765 = vmatpush1.bf16.msra.mxu0 %v2746
        %2766 = vmatprep.subr.bf16.mxu0 0
        %2767 = vmatpush1.bf16.msra.mxu0 0
        %2768 = vmatprep.subr.bf16.mxu0 0
        %2769 = vmatpush1.bf16.msra.mxu0 0
        %2770 = vmatprep.subr.bf16.mxu0 0
        %2771 = vmatpush1.bf16.msra.mxu0 0
        %2772 = vmatprep.subr.bf16.mxu0 0
        %2773 = vmatpush1.bf16.msra.mxu0 0
        %2774 = vmatprep.subr.bf16.mxu0 0
        %2775 = vmatpush1.bf16.msra.mxu0 0
        %2776 = vmatprep.subr.bf16.mxu0 0
        %2777 = vmatpush1.bf16.msra.mxu0 0
        %2778 = vmatprep.subr.bf16.mxu0 0
        %2779 = vmatpush1.bf16.msra.mxu0 0
        %2780 = vmatprep.subr.bf16.mxu0 0
        %2781 = vmatpush1.bf16.msra.mxu0 0
        %2782 = vmatprep.subr.bf16.mxu0 0
        %2783 = vmatpush1.bf16.msra.mxu0 0
        %2784 = vmatprep.subr.bf16.mxu0 0
        %2785 = vmatpush1.bf16.msra.mxu0 0
        %2786 = vmatprep.subr.bf16.mxu0 0
        %2787 = vmatpush1.bf16.msra.mxu0 0
        %2788 = vmatprep.subr.bf16.mxu0 0
        %2789 = vmatpush1.bf16.msra.mxu0 0
        %2790 = vmatprep.mubr.bf16.mxu0 0
        %2791 = vmatmul.mubr.bf16.gmra.mrb[0].mxu0 %v2756
        %v2792 = vpop.f32.mrb[0].mxu0
        %v2793 = vadd.f32 %v2752, %v2792
        %v2794 = vpop.f32.mrb[0].mxu0
        %v2795 = vpop.f32.mrb[0].mxu0
        %v2796 = vpop.f32.mrb[0].mxu0
        %2797 = vdwg.mxu0
        %v2798 = vadd.f32 %v2793, %v2675
        %v2799 = vld [vmem:[#allocation8] sm:$0x1]
        %v2800 = vld [vmem:[#allocation10] sm:$0x1]
        %v2801 = vsel %vm918, %v2798, 0.0
        %2802 = vadd.xlane.f32.xlu0 %v2801
        %v2803 = vpop.xlane.xlu0 %2802
        %v2804 = vmul.f32 %v2803, %v1766
        %v2805 = vsub.f32 %v2798, %v2804
        %v2806 = vmul.f32 %v2805, %v2805
        %v2807 = vsel %vm918, %v2806, 0.0
        %2808 = vadd.xlane.f32.xlu0 %v2807
        %v2809 = vpop.xlane.xlu0 %2808
        %v2810 = vmul.f32 %v2809, %v1766
        %v2811 = vadd.f32 %v2810, 1e-05
        %v2812 = vrsqrt.pop %v2811
        %v2813 = vmul.f32 %v2805, %v2812
        %v2815 = vlaneseq
        %v2816 = vshrl.u32 %v2815, 7
        %v2817 = vsub.s32 0, %v2816
        %v2818 = vrot.slane %v2799, %v2817
        %v2820 = vmul.f32 %v2813, %v2818
        %v2822 = vlaneseq
        %v2823 = vshrl.u32 %v2822, 7
        %v2824 = vsub.s32 0, %v2823
        %v2825 = vrot.slane %v2800, %v2824
        %v2827 = vadd.f32 %v2820, %v2825
        %2828 = vst.msk [vmem:[%s900] sm:$0xff] %vm918, %v2827
        %p2829 = scmp.lt.s32.totalorder %s40, 1
        %s2830 = scalar_select %p2829, %s40, 1
        %s2831 = smul.addr %s2830, 8
        %s2832 = scalar_lea.vmem %s26, %s2831
        // Predicated region
        $region145: #{seq2seq_transformer_forward.10} parent=123 // pred_check
          %p2833 = pneg %p624
        $region146: #{seq2seq_transformer_forward.10} parent=123 // pred_check_branch
          %2835 = sbr.rel (%p2833) target = $region148
        $region147: #{seq2seq_transformer_forward.10} parent=123 // pred_region
          _
        $region148: #{seq2seq_transformer_forward.10} parent=123 // pred_fallthru
          _
      $region124: #{seq2seq_transformer_forward.10} parent=5 // pred_fallthru
        _
      %p2836 = scmp.le.s32.totalorder 2, %s35
      // Predicated region
      $region149: #{seq2seq_transformer_forward.10} parent=5 // pred_check
        %p2837 = pneg %p2836
      $region150: #{seq2seq_transformer_forward.10} parent=5 // pred_check_branch
        %2839 = sbr.rel (%p2837) target = $region152
      $region151: #{seq2seq_transformer_forward.10} parent=5 // pred_region
        %s2840 = ssub.s32 %s35, 2
        // Predicated region
        $region153: #{seq2seq_transformer_forward.10} parent=151 // pred_check
          %p2841 = pneg %p630
        $region154: #{seq2seq_transformer_forward.10} parent=151 // pred_check_branch
          %2843 = sbr.rel (%p2841) target = $region156
        $region155: #{seq2seq_transformer_forward.10} parent=151 // pred_region
          %p2844 = scmp.lt.s32.totalorder %s41, 1
          %s2845 = scalar_select %p2844, %s41, 1
          %s2846 = smul.addr %s2845, 8
          %s2847 = scalar_lea.vmem %s26, %s2846
        $region156: #{seq2seq_transformer_forward.10} parent=151 // pred_fallthru
          _
      $region152: #{seq2seq_transformer_forward.10} parent=5 // pred_fallthru
        _
    $region6: #{seq2seq_transformer_forward.10} parent=1 // loop_footer
      %s39 = sadd.s32 1, %s35
    $region7: #{seq2seq_transformer_forward.10} parent=1 // loop_footer_branch
      %34 = sbr.rel target = $region3
    $region8: #{seq2seq_transformer_forward.10} parent=1 // loop_exit
      _
    %2848 = vsyncpa [#allocation4], 1
    %s2849 = scalar_lea.sflag [#allocation4], 1
    %2850 = vsyncpa %s2849, 1
    %2851 = vsyncpa [#allocation6], 1
    %2852 = vsyncpa [#allocation9], 1

// kernel: seq2seq_transformer_forward.9
$region0: #{seq2seq_transformer_forward.9}
  #allocation0 [shape = 'u32[]', space=smem, size = 0x4, offset = 0x4, fixed_abs, tag = 'smem constant byte address 0x4 - core index']
  #allocation1 [shape = 'u32[144,128]{1,0:T(1,128)}', space=vmem, size = 0x12000, scoped, tag = 'internal scratch']
  #allocation2 [shape = 'f32[8,32]{1,0:T(8,128)}', space=vmem, size = 0x1000, scoped, tag = 'scratch operand']
  %s0 = inlined_call_operand.vmem [shape: f32[16,32], index: 0, kind: input, shape index: {}]
  %s1 = inlined_call_operand.vmem [shape: f32[16,32], index: 1, kind: input, shape index: {}]
  %s2 = inlined_call_operand.vmem [shape: f32[2,8,8], index: 2, kind: input, shape index: {}]
  %s3 = inlined_call_operand.vmem [shape: f32[2,8,8], index: 3, kind: input, shape index: {}]
  %s4 = inlined_call_operand.vmem [shape: f32[32,32], index: 4, kind: input, shape index: {}]
  %s5 = inlined_call_operand.vmem [shape: f32[32,64], index: 5, kind: input, shape index: {}]
  %s6 = inlined_call_operand.vmem [shape: f32[32,32], index: 6, kind: input, shape index: {}]
  %s7 = inlined_call_operand.vmem [shape: f32[1,32], index: 7, kind: input, shape index: {}]
  %s8 = inlined_call_operand.vmem [shape: f32[1,64], index: 8, kind: input, shape index: {}]
  %s9 = inlined_call_operand.vmem [shape: f32[1,32], index: 9, kind: input, shape index: {}]
  %s10 = inlined_call_operand.vmem [shape: f32[1,32], index: 10, kind: input, shape index: {}]
  %s11 = inlined_call_operand.vmem [shape: f32[1,32], index: 11, kind: input, shape index: {}]
  %s12 = inlined_call_operand.vmem [shape: f32[32,32], index: 12, kind: input, shape index: {}]
  %s13 = inlined_call_operand.vmem [shape: f32[32,64], index: 13, kind: input, shape index: {}]
  %s14 = inlined_call_operand.vmem [shape: f32[32,32], index: 14, kind: input, shape index: {}]
  %s15 = inlined_call_operand.vmem [shape: f32[1,32], index: 15, kind: input, shape index: {}]
  %s16 = inlined_call_operand.vmem [shape: f32[1,64], index: 16, kind: input, shape index: {}]
  %s17 = inlined_call_operand.vmem [shape: f32[1,32], index: 17, kind: input, shape index: {}]
  %s18 = inlined_call_operand.vmem [shape: f32[1,32], index: 18, kind: input, shape index: {}]
  %s19 = inlined_call_operand.vmem [shape: f32[1,32], index: 19, kind: input, shape index: {}]
  %s20 = inlined_call_operand.vmem [shape: f32[32,64], index: 20, kind: input, shape index: {}]
  %s21 = inlined_call_operand.vmem [shape: f32[1,64], index: 21, kind: input, shape index: {}]
  %s22 = inlined_call_operand.vmem [shape: f32[64,32], index: 22, kind: input, shape index: {}]
  %s23 = inlined_call_operand.vmem [shape: f32[1,32], index: 23, kind: input, shape index: {}]
  %s24 = inlined_call_operand.vmem [shape: f32[1,32], index: 24, kind: input, shape index: {}]
  %s25 = inlined_call_operand.vmem [shape: f32[1,32], index: 25, kind: input, shape index: {}]
  %s26 = inlined_call_operand.vmem [shape: f32[16,32], index: 26, kind: output, shape index: {}]
  %s27 = sld [smem:[#allocation0]]
  $region137: #{seq2seq_transformer_forward.9} parent=0
    _
  %s29 = ssub.s32 1, %s27
  %s30 = scalar_select 0, %s29, %s27
  loop: start=0, step=1, limit=4
  $region2: #{seq2seq_transformer_forward.9} parent=0 // loop_pre_header
    _
  $region3: #{seq2seq_transformer_forward.9} parent=0 // loop_header
    %s32 = sphi 0, %s36
    %p33 = scmp.ge.s32.totalorder %s32, 4
    %s42 = sphi 0, %s44
    %s45 = sphi 0, %s42
    %s46 = sphi 0, %s45
    %s62 = sphi 0, %s46
    %s68 = sphi 0, %s70
    %s71 = sphi 0, %s68
    %s72 = sphi 0, %s71
    %s88 = sphi 0, %s72
    %s94 = sphi 0, %s96
    %s97 = sphi 0, %s94
    %s98 = sphi 0, %s97
    %s114 = sphi 0, %s98
    %s120 = sphi 0, %s122
    %s123 = sphi 0, %s120
    %s124 = sphi 0, %s123
    %s140 = sphi 0, %s124
    %s144 = sphi 0, %s144
    %s146 = sphi 0, %s144
    %s147 = sphi 0, %s146
    %s161 = sphi 0, %s147
    %s165 = sphi 0, %s165
    %s167 = sphi 0, %s165
    %s168 = sphi 0, %s167
    %s182 = sphi 0, %s168
    %s186 = sphi 0, %s186
    %s188 = sphi 0, %s186
    %s189 = sphi 0, %s188
    %s203 = sphi 0, %s189
    %s207 = sphi 0, %s207
    %s209 = sphi 0, %s207
    %s210 = sphi 0, %s209
    %s224 = sphi 0, %s210
    %s228 = sphi 0, %s228
    %s230 = sphi 0, %s228
    %s231 = sphi 0, %s230
    %s245 = sphi 0, %s231
    %s249 = sphi 0, %s249
    %s251 = sphi 0, %s249
    %s252 = sphi 0, %s251
    %s266 = sphi 0, %s252
    %s270 = sphi 0, %s270
    %s272 = sphi 0, %s270
    %s273 = sphi 0, %s272
    %s287 = sphi 0, %s273
    %s291 = sphi 0, %s291
    %s293 = sphi 0, %s291
    %s294 = sphi 0, %s293
    %s308 = sphi 0, %s294
    %s312 = sphi 0, %s312
    %s314 = sphi 0, %s312
    %s315 = sphi 0, %s314
    %s329 = sphi 0, %s315
    %s333 = sphi 0, %s333
    %s335 = sphi 0, %s333
    %s336 = sphi 0, %s335
    %s350 = sphi 0, %s336
    %s354 = sphi 0, %s354
    %s356 = sphi 0, %s354
    %s357 = sphi 0, %s356
    %s371 = sphi 0, %s357
    %s375 = sphi 0, %s375
    %s377 = sphi 0, %s375
    %s378 = sphi 0, %s377
    %s392 = sphi 0, %s378
    %s396 = sphi 0, %s396
    %s398 = sphi 0, %s396
    %s399 = sphi 0, %s398
    %s413 = sphi 0, %s399
    %s417 = sphi 0, %s417
    %s419 = sphi 0, %s417
    %s420 = sphi 0, %s419
    %s434 = sphi 0, %s420
    %s438 = sphi 0, %s438
    %s440 = sphi 0, %s438
    %s441 = sphi 0, %s440
    %s455 = sphi 0, %s441
    %s459 = sphi 0, %s459
    %s461 = sphi 0, %s459
    %s462 = sphi 0, %s461
    %s476 = sphi 0, %s462
    %s480 = sphi 0, %s480
    %s482 = sphi 0, %s480
    %s483 = sphi 0, %s482
    %s497 = sphi 0, %s483
    %s501 = sphi 0, %s501
    %s503 = sphi 0, %s501
    %s504 = sphi 0, %s503
    %s518 = sphi 0, %s504
    %s522 = sphi 0, %s522
    %s524 = sphi 0, %s522
    %s525 = sphi 0, %s524
    %s539 = sphi 0, %s525
    %s543 = sphi 0, %s543
    %s545 = sphi 0, %s543
    %s546 = sphi 0, %s545
    %s560 = sphi 0, %s546
    %s564 = sphi 0, %s564
    %s566 = sphi 0, %s564
    %s567 = sphi 0, %s566
    %s581 = sphi 0, %s567
    %s585 = sphi 0, %s585
    %s587 = sphi 0, %s585
    %s588 = sphi 0, %s587
    %s602 = sphi 0, %s588
    %s608 = sphi 0, %s610
    %s611 = sphi 0, %s608
    %s612 = sphi 0, %s611
    %s628 = sphi 0, %s612
  $region4: #{seq2seq_transformer_forward.9} parent=0 // loop_header_branch
    %35 = sbr.rel (%p33) target = $region8
  $region5: #{seq2seq_transformer_forward.9} parent=0 // loop_body
    %s37 = ssub.s32 %s32, 1
    %s38 = ssub.s32 %s32, 2
    %s39 = sadd.s32 %s32, 1
    %s40 = ssub.s32 %s32, %s39
    %p41 = scmp.eq.s32.totalorder %s40, 0
    %s43 = sadd.s32 %s42, 1
    %s44 = scalar_select %p41, %s42, %s43
    %p47 = pneg %p41
    %p48 = scmp.eq.s32.totalorder %s32, 1
    %p49 = por %p47, %p48
    %p50 = scmp.ne.s32.totalorder %s42, %s45
    %p51 = scmp.eq.s32.totalorder %s32, 0
    %p52 = por %p50, %p51
    %p53 = scmp.ne.s32.totalorder %s42, %s45
    %p54 = scmp.eq.s32.totalorder %s37, 1
    %p55 = por %p53, %p54
    %p56 = scmp.ne.s32.totalorder %s45, %s46
    %p57 = scmp.eq.s32.totalorder %s37, 0
    %p58 = por %p56, %p57
    %p59 = scmp.ne.s32.totalorder %s45, %s46
    %p60 = scmp.eq.s32.totalorder %s38, 1
    %p61 = por %p59, %p60
    %p63 = scmp.ne.s32.totalorder %s46, %s62
    %p64 = scmp.eq.s32.totalorder %s38, 0
    %p65 = por %p63, %p64
    %s66 = ssub.s32 %s32, %s39
    %p67 = scmp.eq.s32.totalorder %s66, 0
    %s69 = sadd.s32 %s68, 1
    %s70 = scalar_select %p67, %s68, %s69
    %p73 = pneg %p67
    %p74 = scmp.eq.s32.totalorder %s32, 1
    %p75 = por %p73, %p74
    %p76 = scmp.ne.s32.totalorder %s68, %s71
    %p77 = scmp.eq.s32.totalorder %s32, 0
    %p78 = por %p76, %p77
    %p79 = scmp.ne.s32.totalorder %s68, %s71
    %p80 = scmp.eq.s32.totalorder %s37, 1
    %p81 = por %p79, %p80
    %p82 = scmp.ne.s32.totalorder %s71, %s72
    %p83 = scmp.eq.s32.totalorder %s37, 0
    %p84 = por %p82, %p83
    %p85 = scmp.ne.s32.totalorder %s71, %s72
    %p86 = scmp.eq.s32.totalorder %s38, 1
    %p87 = por %p85, %p86
    %p89 = scmp.ne.s32.totalorder %s72, %s88
    %p90 = scmp.eq.s32.totalorder %s38, 0
    %p91 = por %p89, %p90
    %s92 = ssub.s32 %s32, %s39
    %p93 = scmp.eq.s32.totalorder %s92, 0
    %s95 = sadd.s32 %s94, 1
    %s96 = scalar_select %p93, %s94, %s95
    %p99 = pneg %p93
    %p100 = scmp.eq.s32.totalorder %s32, 1
    %p101 = por %p99, %p100
    %p102 = scmp.ne.s32.totalorder %s94, %s97
    %p103 = scmp.eq.s32.totalorder %s32, 0
    %p104 = por %p102, %p103
    %p105 = scmp.ne.s32.totalorder %s94, %s97
    %p106 = scmp.eq.s32.totalorder %s37, 1
    %p107 = por %p105, %p106
    %p108 = scmp.ne.s32.totalorder %s97, %s98
    %p109 = scmp.eq.s32.totalorder %s37, 0
    %p110 = por %p108, %p109
    %p111 = scmp.ne.s32.totalorder %s97, %s98
    %p112 = scmp.eq.s32.totalorder %s38, 1
    %p113 = por %p111, %p112
    %p115 = scmp.ne.s32.totalorder %s98, %s114
    %p116 = scmp.eq.s32.totalorder %s38, 0
    %p117 = por %p115, %p116
    %s118 = ssub.s32 %s32, %s39
    %p119 = scmp.eq.s32.totalorder %s118, 0
    %s121 = sadd.s32 %s120, 1
    %s122 = scalar_select %p119, %s120, %s121
    %p125 = pneg %p119
    %p126 = scmp.eq.s32.totalorder %s32, 1
    %p127 = por %p125, %p126
    %p128 = scmp.ne.s32.totalorder %s120, %s123
    %p129 = scmp.eq.s32.totalorder %s32, 0
    %p130 = por %p128, %p129
    %p131 = scmp.ne.s32.totalorder %s120, %s123
    %p132 = scmp.eq.s32.totalorder %s37, 1
    %p133 = por %p131, %p132
    %p134 = scmp.ne.s32.totalorder %s123, %s124
    %p135 = scmp.eq.s32.totalorder %s37, 0
    %p136 = por %p134, %p135
    %p137 = scmp.ne.s32.totalorder %s123, %s124
    %p138 = scmp.eq.s32.totalorder %s38, 1
    %p139 = por %p137, %p138
    %p141 = scmp.ne.s32.totalorder %s124, %s140
    %p142 = scmp.eq.s32.totalorder %s38, 0
    %p143 = por %p141, %p142
    %s145 = sadd.s32 %s144, 1
    %p148 = scmp.eq.s32.totalorder %s32, 1
    %p149 = scmp.ne.s32.totalorder %s144, %s146
    %p150 = scmp.eq.s32.totalorder %s32, 0
    %p151 = por %p149, %p150
    %p152 = scmp.ne.s32.totalorder %s144, %s146
    %p153 = scmp.eq.s32.totalorder %s37, 1
    %p154 = por %p152, %p153
    %p155 = scmp.ne.s32.totalorder %s146, %s147
    %p156 = scmp.eq.s32.totalorder %s37, 0
    %p157 = por %p155, %p156
    %p158 = scmp.ne.s32.totalorder %s146, %s147
    %p159 = scmp.eq.s32.totalorder %s38, 1
    %p160 = por %p158, %p159
    %p162 = scmp.ne.s32.totalorder %s147, %s161
    %p163 = scmp.eq.s32.totalorder %s38, 0
    %p164 = por %p162, %p163
    %s166 = sadd.s32 %s165, 1
    %p169 = scmp.eq.s32.totalorder %s32, 1
    %p170 = scmp.ne.s32.totalorder %s165, %s167
    %p171 = scmp.eq.s32.totalorder %s32, 0
    %p172 = por %p170, %p171
    %p173 = scmp.ne.s32.totalorder %s165, %s167
    %p174 = scmp.eq.s32.totalorder %s37, 1
    %p175 = por %p173, %p174
    %p176 = scmp.ne.s32.totalorder %s167, %s168
    %p177 = scmp.eq.s32.totalorder %s37, 0
    %p178 = por %p176, %p177
    %p179 = scmp.ne.s32.totalorder %s167, %s168
    %p180 = scmp.eq.s32.totalorder %s38, 1
    %p181 = por %p179, %p180
    %p183 = scmp.ne.s32.totalorder %s168, %s182
    %p184 = scmp.eq.s32.totalorder %s38, 0
    %p185 = por %p183, %p184
    %s187 = sadd.s32 %s186, 1
    %p190 = scmp.eq.s32.totalorder %s32, 1
    %p191 = scmp.ne.s32.totalorder %s186, %s188
    %p192 = scmp.eq.s32.totalorder %s32, 0
    %p193 = por %p191, %p192
    %p194 = scmp.ne.s32.totalorder %s186, %s188
    %p195 = scmp.eq.s32.totalorder %s37, 1
    %p196 = por %p194, %p195
    %p197 = scmp.ne.s32.totalorder %s188, %s189
    %p198 = scmp.eq.s32.totalorder %s37, 0
    %p199 = por %p197, %p198
    %p200 = scmp.ne.s32.totalorder %s188, %s189
    %p201 = scmp.eq.s32.totalorder %s38, 1
    %p202 = por %p200, %p201
    %p204 = scmp.ne.s32.totalorder %s189, %s203
    %p205 = scmp.eq.s32.totalorder %s38, 0
    %p206 = por %p204, %p205
    %s208 = sadd.s32 %s207, 1
    %p211 = scmp.eq.s32.totalorder %s32, 1
    %p212 = scmp.ne.s32.totalorder %s207, %s209
    %p213 = scmp.eq.s32.totalorder %s32, 0
    %p214 = por %p212, %p213
    %p215 = scmp.ne.s32.totalorder %s207, %s209
    %p216 = scmp.eq.s32.totalorder %s37, 1
    %p217 = por %p215, %p216
    %p218 = scmp.ne.s32.totalorder %s209, %s210
    %p219 = scmp.eq.s32.totalorder %s37, 0
    %p220 = por %p218, %p219
    %p221 = scmp.ne.s32.totalorder %s209, %s210
    %p222 = scmp.eq.s32.totalorder %s38, 1
    %p223 = por %p221, %p222
    %p225 = scmp.ne.s32.totalorder %s210, %s224
    %p226 = scmp.eq.s32.totalorder %s38, 0
    %p227 = por %p225, %p226
    %s229 = sadd.s32 %s228, 1
    %p232 = scmp.eq.s32.totalorder %s32, 1
    %p233 = scmp.ne.s32.totalorder %s228, %s230
    %p234 = scmp.eq.s32.totalorder %s32, 0
    %p235 = por %p233, %p234
    %p236 = scmp.ne.s32.totalorder %s228, %s230
    %p237 = scmp.eq.s32.totalorder %s37, 1
    %p238 = por %p236, %p237
    %p239 = scmp.ne.s32.totalorder %s230, %s231
    %p240 = scmp.eq.s32.totalorder %s37, 0
    %p241 = por %p239, %p240
    %p242 = scmp.ne.s32.totalorder %s230, %s231
    %p243 = scmp.eq.s32.totalorder %s38, 1
    %p244 = por %p242, %p243
    %p246 = scmp.ne.s32.totalorder %s231, %s245
    %p247 = scmp.eq.s32.totalorder %s38, 0
    %p248 = por %p246, %p247
    %s250 = sadd.s32 %s249, 1
    %p253 = scmp.eq.s32.totalorder %s32, 1
    %p254 = scmp.ne.s32.totalorder %s249, %s251
    %p255 = scmp.eq.s32.totalorder %s32, 0
    %p256 = por %p254, %p255
    %p257 = scmp.ne.s32.totalorder %s249, %s251
    %p258 = scmp.eq.s32.totalorder %s37, 1
    %p259 = por %p257, %p258
    %p260 = scmp.ne.s32.totalorder %s251, %s252
    %p261 = scmp.eq.s32.totalorder %s37, 0
    %p262 = por %p260, %p261
    %p263 = scmp.ne.s32.totalorder %s251, %s252
    %p264 = scmp.eq.s32.totalorder %s38, 1
    %p265 = por %p263, %p264
    %p267 = scmp.ne.s32.totalorder %s252, %s266
    %p268 = scmp.eq.s32.totalorder %s38, 0
    %p269 = por %p267, %p268
    %s271 = sadd.s32 %s270, 1
    %p274 = scmp.eq.s32.totalorder %s32, 1
    %p275 = scmp.ne.s32.totalorder %s270, %s272
    %p276 = scmp.eq.s32.totalorder %s32, 0
    %p277 = por %p275, %p276
    %p278 = scmp.ne.s32.totalorder %s270, %s272
    %p279 = scmp.eq.s32.totalorder %s37, 1
    %p280 = por %p278, %p279
    %p281 = scmp.ne.s32.totalorder %s272, %s273
    %p282 = scmp.eq.s32.totalorder %s37, 0
    %p283 = por %p281, %p282
    %p284 = scmp.ne.s32.totalorder %s272, %s273
    %p285 = scmp.eq.s32.totalorder %s38, 1
    %p286 = por %p284, %p285
    %p288 = scmp.ne.s32.totalorder %s273, %s287
    %p289 = scmp.eq.s32.totalorder %s38, 0
    %p290 = por %p288, %p289
    %s292 = sadd.s32 %s291, 1
    %p295 = scmp.eq.s32.totalorder %s32, 1
    %p296 = scmp.ne.s32.totalorder %s291, %s293
    %p297 = scmp.eq.s32.totalorder %s32, 0
    %p298 = por %p296, %p297
    %p299 = scmp.ne.s32.totalorder %s291, %s293
    %p300 = scmp.eq.s32.totalorder %s37, 1
    %p301 = por %p299, %p300
    %p302 = scmp.ne.s32.totalorder %s293, %s294
    %p303 = scmp.eq.s32.totalorder %s37, 0
    %p304 = por %p302, %p303
    %p305 = scmp.ne.s32.totalorder %s293, %s294
    %p306 = scmp.eq.s32.totalorder %s38, 1
    %p307 = por %p305, %p306
    %p309 = scmp.ne.s32.totalorder %s294, %s308
    %p310 = scmp.eq.s32.totalorder %s38, 0
    %p311 = por %p309, %p310
    %s313 = sadd.s32 %s312, 1
    %p316 = scmp.eq.s32.totalorder %s32, 1
    %p317 = scmp.ne.s32.totalorder %s312, %s314
    %p318 = scmp.eq.s32.totalorder %s32, 0
    %p319 = por %p317, %p318
    %p320 = scmp.ne.s32.totalorder %s312, %s314
    %p321 = scmp.eq.s32.totalorder %s37, 1
    %p322 = por %p320, %p321
    %p323 = scmp.ne.s32.totalorder %s314, %s315
    %p324 = scmp.eq.s32.totalorder %s37, 0
    %p325 = por %p323, %p324
    %p326 = scmp.ne.s32.totalorder %s314, %s315
    %p327 = scmp.eq.s32.totalorder %s38, 1
    %p328 = por %p326, %p327
    %p330 = scmp.ne.s32.totalorder %s315, %s329
    %p331 = scmp.eq.s32.totalorder %s38, 0
    %p332 = por %p330, %p331
    %s334 = sadd.s32 %s333, 1
    %p337 = scmp.eq.s32.totalorder %s32, 1
    %p338 = scmp.ne.s32.totalorder %s333, %s335
    %p339 = scmp.eq.s32.totalorder %s32, 0
    %p340 = por %p338, %p339
    %p341 = scmp.ne.s32.totalorder %s333, %s335
    %p342 = scmp.eq.s32.totalorder %s37, 1
    %p343 = por %p341, %p342
    %p344 = scmp.ne.s32.totalorder %s335, %s336
    %p345 = scmp.eq.s32.totalorder %s37, 0
    %p346 = por %p344, %p345
    %p347 = scmp.ne.s32.totalorder %s335, %s336
    %p348 = scmp.eq.s32.totalorder %s38, 1
    %p349 = por %p347, %p348
    %p351 = scmp.ne.s32.totalorder %s336, %s350
    %p352 = scmp.eq.s32.totalorder %s38, 0
    %p353 = por %p351, %p352
    %s355 = sadd.s32 %s354, 1
    %p358 = scmp.eq.s32.totalorder %s32, 1
    %p359 = scmp.ne.s32.totalorder %s354, %s356
    %p360 = scmp.eq.s32.totalorder %s32, 0
    %p361 = por %p359, %p360
    %p362 = scmp.ne.s32.totalorder %s354, %s356
    %p363 = scmp.eq.s32.totalorder %s37, 1
    %p364 = por %p362, %p363
    %p365 = scmp.ne.s32.totalorder %s356, %s357
    %p366 = scmp.eq.s32.totalorder %s37, 0
    %p367 = por %p365, %p366
    %p368 = scmp.ne.s32.totalorder %s356, %s357
    %p369 = scmp.eq.s32.totalorder %s38, 1
    %p370 = por %p368, %p369
    %p372 = scmp.ne.s32.totalorder %s357, %s371
    %p373 = scmp.eq.s32.totalorder %s38, 0
    %p374 = por %p372, %p373
    %s376 = sadd.s32 %s375, 1
    %p379 = scmp.eq.s32.totalorder %s32, 1
    %p380 = scmp.ne.s32.totalorder %s375, %s377
    %p381 = scmp.eq.s32.totalorder %s32, 0
    %p382 = por %p380, %p381
    %p383 = scmp.ne.s32.totalorder %s375, %s377
    %p384 = scmp.eq.s32.totalorder %s37, 1
    %p385 = por %p383, %p384
    %p386 = scmp.ne.s32.totalorder %s377, %s378
    %p387 = scmp.eq.s32.totalorder %s37, 0
    %p388 = por %p386, %p387
    %p389 = scmp.ne.s32.totalorder %s377, %s378
    %p390 = scmp.eq.s32.totalorder %s38, 1
    %p391 = por %p389, %p390
    %p393 = scmp.ne.s32.totalorder %s378, %s392
    %p394 = scmp.eq.s32.totalorder %s38, 0
    %p395 = por %p393, %p394
    %s397 = sadd.s32 %s396, 1
    %p400 = scmp.eq.s32.totalorder %s32, 1
    %p401 = scmp.ne.s32.totalorder %s396, %s398
    %p402 = scmp.eq.s32.totalorder %s32, 0
    %p403 = por %p401, %p402
    %p404 = scmp.ne.s32.totalorder %s396, %s398
    %p405 = scmp.eq.s32.totalorder %s37, 1
    %p406 = por %p404, %p405
    %p407 = scmp.ne.s32.totalorder %s398, %s399
    %p408 = scmp.eq.s32.totalorder %s37, 0
    %p409 = por %p407, %p408
    %p410 = scmp.ne.s32.totalorder %s398, %s399
    %p411 = scmp.eq.s32.totalorder %s38, 1
    %p412 = por %p410, %p411
    %p414 = scmp.ne.s32.totalorder %s399, %s413
    %p415 = scmp.eq.s32.totalorder %s38, 0
    %p416 = por %p414, %p415
    %s418 = sadd.s32 %s417, 1
    %p421 = scmp.eq.s32.totalorder %s32, 1
    %p422 = scmp.ne.s32.totalorder %s417, %s419
    %p423 = scmp.eq.s32.totalorder %s32, 0
    %p424 = por %p422, %p423
    %p425 = scmp.ne.s32.totalorder %s417, %s419
    %p426 = scmp.eq.s32.totalorder %s37, 1
    %p427 = por %p425, %p426
    %p428 = scmp.ne.s32.totalorder %s419, %s420
    %p429 = scmp.eq.s32.totalorder %s37, 0
    %p430 = por %p428, %p429
    %p431 = scmp.ne.s32.totalorder %s419, %s420
    %p432 = scmp.eq.s32.totalorder %s38, 1
    %p433 = por %p431, %p432
    %p435 = scmp.ne.s32.totalorder %s420, %s434
    %p436 = scmp.eq.s32.totalorder %s38, 0
    %p437 = por %p435, %p436
    %s439 = sadd.s32 %s438, 1
    %p442 = scmp.eq.s32.totalorder %s32, 1
    %p443 = scmp.ne.s32.totalorder %s438, %s440
    %p444 = scmp.eq.s32.totalorder %s32, 0
    %p445 = por %p443, %p444
    %p446 = scmp.ne.s32.totalorder %s438, %s440
    %p447 = scmp.eq.s32.totalorder %s37, 1
    %p448 = por %p446, %p447
    %p449 = scmp.ne.s32.totalorder %s440, %s441
    %p450 = scmp.eq.s32.totalorder %s37, 0
    %p451 = por %p449, %p450
    %p452 = scmp.ne.s32.totalorder %s440, %s441
    %p453 = scmp.eq.s32.totalorder %s38, 1
    %p454 = por %p452, %p453
    %p456 = scmp.ne.s32.totalorder %s441, %s455
    %p457 = scmp.eq.s32.totalorder %s38, 0
    %p458 = por %p456, %p457
    %s460 = sadd.s32 %s459, 1
    %p463 = scmp.eq.s32.totalorder %s32, 1
    %p464 = scmp.ne.s32.totalorder %s459, %s461
    %p465 = scmp.eq.s32.totalorder %s32, 0
    %p466 = por %p464, %p465
    %p467 = scmp.ne.s32.totalorder %s459, %s461
    %p468 = scmp.eq.s32.totalorder %s37, 1
    %p469 = por %p467, %p468
    %p470 = scmp.ne.s32.totalorder %s461, %s462
    %p471 = scmp.eq.s32.totalorder %s37, 0
    %p472 = por %p470, %p471
    %p473 = scmp.ne.s32.totalorder %s461, %s462
    %p474 = scmp.eq.s32.totalorder %s38, 1
    %p475 = por %p473, %p474
    %p477 = scmp.ne.s32.totalorder %s462, %s476
    %p478 = scmp.eq.s32.totalorder %s38, 0
    %p479 = por %p477, %p478
    %s481 = sadd.s32 %s480, 1
    %p484 = scmp.eq.s32.totalorder %s32, 1
    %p485 = scmp.ne.s32.totalorder %s480, %s482
    %p486 = scmp.eq.s32.totalorder %s32, 0
    %p487 = por %p485, %p486
    %p488 = scmp.ne.s32.totalorder %s480, %s482
    %p489 = scmp.eq.s32.totalorder %s37, 1
    %p490 = por %p488, %p489
    %p491 = scmp.ne.s32.totalorder %s482, %s483
    %p492 = scmp.eq.s32.totalorder %s37, 0
    %p493 = por %p491, %p492
    %p494 = scmp.ne.s32.totalorder %s482, %s483
    %p495 = scmp.eq.s32.totalorder %s38, 1
    %p496 = por %p494, %p495
    %p498 = scmp.ne.s32.totalorder %s483, %s497
    %p499 = scmp.eq.s32.totalorder %s38, 0
    %p500 = por %p498, %p499
    %s502 = sadd.s32 %s501, 1
    %p505 = scmp.eq.s32.totalorder %s32, 1
    %p506 = scmp.ne.s32.totalorder %s501, %s503
    %p507 = scmp.eq.s32.totalorder %s32, 0
    %p508 = por %p506, %p507
    %p509 = scmp.ne.s32.totalorder %s501, %s503
    %p510 = scmp.eq.s32.totalorder %s37, 1
    %p511 = por %p509, %p510
    %p512 = scmp.ne.s32.totalorder %s503, %s504
    %p513 = scmp.eq.s32.totalorder %s37, 0
    %p514 = por %p512, %p513
    %p515 = scmp.ne.s32.totalorder %s503, %s504
    %p516 = scmp.eq.s32.totalorder %s38, 1
    %p517 = por %p515, %p516
    %p519 = scmp.ne.s32.totalorder %s504, %s518
    %p520 = scmp.eq.s32.totalorder %s38, 0
    %p521 = por %p519, %p520
    %s523 = sadd.s32 %s522, 1
    %p526 = scmp.eq.s32.totalorder %s32, 1
    %p527 = scmp.ne.s32.totalorder %s522, %s524
    %p528 = scmp.eq.s32.totalorder %s32, 0
    %p529 = por %p527, %p528
    %p530 = scmp.ne.s32.totalorder %s522, %s524
    %p531 = scmp.eq.s32.totalorder %s37, 1
    %p532 = por %p530, %p531
    %p533 = scmp.ne.s32.totalorder %s524, %s525
    %p534 = scmp.eq.s32.totalorder %s37, 0
    %p535 = por %p533, %p534
    %p536 = scmp.ne.s32.totalorder %s524, %s525
    %p537 = scmp.eq.s32.totalorder %s38, 1
    %p538 = por %p536, %p537
    %p540 = scmp.ne.s32.totalorder %s525, %s539
    %p541 = scmp.eq.s32.totalorder %s38, 0
    %p542 = por %p540, %p541
    %s544 = sadd.s32 %s543, 1
    %p547 = scmp.eq.s32.totalorder %s32, 1
    %p548 = scmp.ne.s32.totalorder %s543, %s545
    %p549 = scmp.eq.s32.totalorder %s32, 0
    %p550 = por %p548, %p549
    %p551 = scmp.ne.s32.totalorder %s543, %s545
    %p552 = scmp.eq.s32.totalorder %s37, 1
    %p553 = por %p551, %p552
    %p554 = scmp.ne.s32.totalorder %s545, %s546
    %p555 = scmp.eq.s32.totalorder %s37, 0
    %p556 = por %p554, %p555
    %p557 = scmp.ne.s32.totalorder %s545, %s546
    %p558 = scmp.eq.s32.totalorder %s38, 1
    %p559 = por %p557, %p558
    %p561 = scmp.ne.s32.totalorder %s546, %s560
    %p562 = scmp.eq.s32.totalorder %s38, 0
    %p563 = por %p561, %p562
    %s565 = sadd.s32 %s564, 1
    %p568 = scmp.eq.s32.totalorder %s32, 1
    %p569 = scmp.ne.s32.totalorder %s564, %s566
    %p570 = scmp.eq.s32.totalorder %s32, 0
    %p571 = por %p569, %p570
    %p572 = scmp.ne.s32.totalorder %s564, %s566
    %p573 = scmp.eq.s32.totalorder %s37, 1
    %p574 = por %p572, %p573
    %p575 = scmp.ne.s32.totalorder %s566, %s567
    %p576 = scmp.eq.s32.totalorder %s37, 0
    %p577 = por %p575, %p576
    %p578 = scmp.ne.s32.totalorder %s566, %s567
    %p579 = scmp.eq.s32.totalorder %s38, 1
    %p580 = por %p578, %p579
    %p582 = scmp.ne.s32.totalorder %s567, %s581
    %p583 = scmp.eq.s32.totalorder %s38, 0
    %p584 = por %p582, %p583
    %s586 = sadd.s32 %s585, 1
    %p589 = scmp.eq.s32.totalorder %s32, 1
    %p590 = scmp.ne.s32.totalorder %s585, %s587
    %p591 = scmp.eq.s32.totalorder %s32, 0
    %p592 = por %p590, %p591
    %p593 = scmp.ne.s32.totalorder %s585, %s587
    %p594 = scmp.eq.s32.totalorder %s37, 1
    %p595 = por %p593, %p594
    %p596 = scmp.ne.s32.totalorder %s587, %s588
    %p597 = scmp.eq.s32.totalorder %s37, 0
    %p598 = por %p596, %p597
    %p599 = scmp.ne.s32.totalorder %s587, %s588
    %p600 = scmp.eq.s32.totalorder %s38, 1
    %p601 = por %p599, %p600
    %p603 = scmp.ne.s32.totalorder %s588, %s602
    %p604 = scmp.eq.s32.totalorder %s38, 0
    %p605 = por %p603, %p604
    %s606 = ssub.s32 %s32, %s39
    %p607 = scmp.eq.s32.totalorder %s606, 0
    %s609 = sadd.s32 %s608, 1
    %s610 = scalar_select %p607, %s608, %s609
    %p613 = pneg %p607
    %p614 = scmp.eq.s32.totalorder %s32, 1
    %p615 = por %p613, %p614
    %p616 = scmp.ne.s32.totalorder %s608, %s611
    %p617 = scmp.eq.s32.totalorder %s32, 0
    %p618 = por %p616, %p617
    %p619 = scmp.ne.s32.totalorder %s608, %s611
    %p620 = scmp.eq.s32.totalorder %s37, 1
    %p621 = por %p619, %p620
    %p622 = scmp.ne.s32.totalorder %s611, %s612
    %p623 = scmp.eq.s32.totalorder %s37, 0
    %p624 = por %p622, %p623
    %p625 = scmp.ne.s32.totalorder %s611, %s612
    %p626 = scmp.eq.s32.totalorder %s38, 1
    %p627 = por %p625, %p626
    %p629 = scmp.ne.s32.totalorder %s612, %s628
    %p630 = scmp.eq.s32.totalorder %s38, 0
    %p631 = por %p629, %p630
    %p632 = scmp.le.s32.totalorder 1, %s32
    %p633 = scmp.lt.s32.totalorder %s32, 3
    %p634 = pnand %p632, %p633
    %p635 = pneg %p634
    // Predicated region
    $region9: #{seq2seq_transformer_forward.9} parent=5 // pred_check
      _
    $region10: #{seq2seq_transformer_forward.9} parent=5 // pred_check_branch
      %637 = sbr.rel (%p634) target = $region12
    $region11: #{seq2seq_transformer_forward.9} parent=5 // pred_region
      %s638 = ssub.s32 %s32, 1
      // Predicated region
      $region13: #{seq2seq_transformer_forward.9} parent=11 // pred_check
        %p639 = pneg %p157
      $region14: #{seq2seq_transformer_forward.9} parent=11 // pred_check_branch
        %641 = sbr.rel (%p639) target = $region16
      $region15: #{seq2seq_transformer_forward.9} parent=11 // pred_region
        _
      $region16: #{seq2seq_transformer_forward.9} parent=11 // pred_fallthru
        _
      // Predicated region
      $region17: #{seq2seq_transformer_forward.9} parent=11 // pred_check
        %p642 = pneg %p178
      $region18: #{seq2seq_transformer_forward.9} parent=11 // pred_check_branch
        %644 = sbr.rel (%p642) target = $region20
      $region19: #{seq2seq_transformer_forward.9} parent=11 // pred_region
        _
      $region20: #{seq2seq_transformer_forward.9} parent=11 // pred_fallthru
        _
      // Predicated region
      $region21: #{seq2seq_transformer_forward.9} parent=11 // pred_check
        %p645 = pneg %p199
      $region22: #{seq2seq_transformer_forward.9} parent=11 // pred_check_branch
        %647 = sbr.rel (%p645) target = $region24
      $region23: #{seq2seq_transformer_forward.9} parent=11 // pred_region
        _
      $region24: #{seq2seq_transformer_forward.9} parent=11 // pred_fallthru
        _
      // Predicated region
      $region25: #{seq2seq_transformer_forward.9} parent=11 // pred_check
        %p648 = pneg %p220
      $region26: #{seq2seq_transformer_forward.9} parent=11 // pred_check_branch
        %650 = sbr.rel (%p648) target = $region28
      $region27: #{seq2seq_transformer_forward.9} parent=11 // pred_region
        _
      $region28: #{seq2seq_transformer_forward.9} parent=11 // pred_fallthru
        _
      // Predicated region
      $region29: #{seq2seq_transformer_forward.9} parent=11 // pred_check
        %p651 = pneg %p241
      $region30: #{seq2seq_transformer_forward.9} parent=11 // pred_check_branch
        %653 = sbr.rel (%p651) target = $region32
      $region31: #{seq2seq_transformer_forward.9} parent=11 // pred_region
        _
      $region32: #{seq2seq_transformer_forward.9} parent=11 // pred_fallthru
        _
      // Predicated region
      $region33: #{seq2seq_transformer_forward.9} parent=11 // pred_check
        %p654 = pneg %p262
      $region34: #{seq2seq_transformer_forward.9} parent=11 // pred_check_branch
        %656 = sbr.rel (%p654) target = $region36
      $region35: #{seq2seq_transformer_forward.9} parent=11 // pred_region
        _
      $region36: #{seq2seq_transformer_forward.9} parent=11 // pred_fallthru
        _
      // Predicated region
      $region37: #{seq2seq_transformer_forward.9} parent=11 // pred_check
        %p657 = pneg %p283
      $region38: #{seq2seq_transformer_forward.9} parent=11 // pred_check_branch
        %659 = sbr.rel (%p657) target = $region40
      $region39: #{seq2seq_transformer_forward.9} parent=11 // pred_region
        _
      $region40: #{seq2seq_transformer_forward.9} parent=11 // pred_fallthru
        _
      // Predicated region
      $region41: #{seq2seq_transformer_forward.9} parent=11 // pred_check
        %p660 = pneg %p304
      $region42: #{seq2seq_transformer_forward.9} parent=11 // pred_check_branch
        %662 = sbr.rel (%p660) target = $region44
      $region43: #{seq2seq_transformer_forward.9} parent=11 // pred_region
        _
      $region44: #{seq2seq_transformer_forward.9} parent=11 // pred_fallthru
        _
      // Predicated region
      $region45: #{seq2seq_transformer_forward.9} parent=11 // pred_check
        %p663 = pneg %p325
      $region46: #{seq2seq_transformer_forward.9} parent=11 // pred_check_branch
        %665 = sbr.rel (%p663) target = $region48
      $region47: #{seq2seq_transformer_forward.9} parent=11 // pred_region
        _
      $region48: #{seq2seq_transformer_forward.9} parent=11 // pred_fallthru
        _
      // Predicated region
      $region49: #{seq2seq_transformer_forward.9} parent=11 // pred_check
        %p666 = pneg %p346
      $region50: #{seq2seq_transformer_forward.9} parent=11 // pred_check_branch
        %668 = sbr.rel (%p666) target = $region52
      $region51: #{seq2seq_transformer_forward.9} parent=11 // pred_region
        _
      $region52: #{seq2seq_transformer_forward.9} parent=11 // pred_fallthru
        _
      // Predicated region
      $region53: #{seq2seq_transformer_forward.9} parent=11 // pred_check
        %p669 = pneg %p367
      $region54: #{seq2seq_transformer_forward.9} parent=11 // pred_check_branch
        %671 = sbr.rel (%p669) target = $region56
      $region55: #{seq2seq_transformer_forward.9} parent=11 // pred_region
        _
      $region56: #{seq2seq_transformer_forward.9} parent=11 // pred_fallthru
        _
      // Predicated region
      $region57: #{seq2seq_transformer_forward.9} parent=11 // pred_check
        %p672 = pneg %p388
      $region58: #{seq2seq_transformer_forward.9} parent=11 // pred_check_branch
        %674 = sbr.rel (%p672) target = $region60
      $region59: #{seq2seq_transformer_forward.9} parent=11 // pred_region
        _
      $region60: #{seq2seq_transformer_forward.9} parent=11 // pred_fallthru
        _
      // Predicated region
      $region61: #{seq2seq_transformer_forward.9} parent=11 // pred_check
        %p675 = pneg %p409
      $region62: #{seq2seq_transformer_forward.9} parent=11 // pred_check_branch
        %677 = sbr.rel (%p675) target = $region64
      $region63: #{seq2seq_transformer_forward.9} parent=11 // pred_region
        _
      $region64: #{seq2seq_transformer_forward.9} parent=11 // pred_fallthru
        _
      // Predicated region
      $region65: #{seq2seq_transformer_forward.9} parent=11 // pred_check
        %p678 = pneg %p430
      $region66: #{seq2seq_transformer_forward.9} parent=11 // pred_check_branch
        %680 = sbr.rel (%p678) target = $region68
      $region67: #{seq2seq_transformer_forward.9} parent=11 // pred_region
        _
      $region68: #{seq2seq_transformer_forward.9} parent=11 // pred_fallthru
        _
      // Predicated region
      $region69: #{seq2seq_transformer_forward.9} parent=11 // pred_check
        %p681 = pneg %p451
      $region70: #{seq2seq_transformer_forward.9} parent=11 // pred_check_branch
        %683 = sbr.rel (%p681) target = $region72
      $region71: #{seq2seq_transformer_forward.9} parent=11 // pred_region
        _
      $region72: #{seq2seq_transformer_forward.9} parent=11 // pred_fallthru
        _
      // Predicated region
      $region73: #{seq2seq_transformer_forward.9} parent=11 // pred_check
        %p684 = pneg %p472
      $region74: #{seq2seq_transformer_forward.9} parent=11 // pred_check_branch
        %686 = sbr.rel (%p684) target = $region76
      $region75: #{seq2seq_transformer_forward.9} parent=11 // pred_region
        _
      $region76: #{seq2seq_transformer_forward.9} parent=11 // pred_fallthru
        _
      // Predicated region
      $region77: #{seq2seq_transformer_forward.9} parent=11 // pred_check
        %p687 = pneg %p493
      $region78: #{seq2seq_transformer_forward.9} parent=11 // pred_check_branch
        %689 = sbr.rel (%p687) target = $region80
      $region79: #{seq2seq_transformer_forward.9} parent=11 // pred_region
        _
      $region80: #{seq2seq_transformer_forward.9} parent=11 // pred_fallthru
        _
      // Predicated region
      $region81: #{seq2seq_transformer_forward.9} parent=11 // pred_check
        %p690 = pneg %p514
      $region82: #{seq2seq_transformer_forward.9} parent=11 // pred_check_branch
        %692 = sbr.rel (%p690) target = $region84
      $region83: #{seq2seq_transformer_forward.9} parent=11 // pred_region
        _
      $region84: #{seq2seq_transformer_forward.9} parent=11 // pred_fallthru
        _
      // Predicated region
      $region85: #{seq2seq_transformer_forward.9} parent=11 // pred_check
        %p693 = pneg %p535
      $region86: #{seq2seq_transformer_forward.9} parent=11 // pred_check_branch
        %695 = sbr.rel (%p693) target = $region88
      $region87: #{seq2seq_transformer_forward.9} parent=11 // pred_region
        _
      $region88: #{seq2seq_transformer_forward.9} parent=11 // pred_fallthru
        _
      // Predicated region
      $region89: #{seq2seq_transformer_forward.9} parent=11 // pred_check
        %p696 = pneg %p556
      $region90: #{seq2seq_transformer_forward.9} parent=11 // pred_check_branch
        %698 = sbr.rel (%p696) target = $region92
      $region91: #{seq2seq_transformer_forward.9} parent=11 // pred_region
        _
      $region92: #{seq2seq_transformer_forward.9} parent=11 // pred_fallthru
        _
      // Predicated region
      $region93: #{seq2seq_transformer_forward.9} parent=11 // pred_check
        %p699 = pneg %p577
      $region94: #{seq2seq_transformer_forward.9} parent=11 // pred_check_branch
        %701 = sbr.rel (%p699) target = $region96
      $region95: #{seq2seq_transformer_forward.9} parent=11 // pred_region
        _
      $region96: #{seq2seq_transformer_forward.9} parent=11 // pred_fallthru
        _
      // Predicated region
      $region97: #{seq2seq_transformer_forward.9} parent=11 // pred_check
        %p702 = pneg %p598
      $region98: #{seq2seq_transformer_forward.9} parent=11 // pred_check_branch
        %704 = sbr.rel (%p702) target = $region100
      $region99: #{seq2seq_transformer_forward.9} parent=11 // pred_region
        _
      $region100: #{seq2seq_transformer_forward.9} parent=11 // pred_fallthru
        _
    $region12: #{seq2seq_transformer_forward.9} parent=5 // pred_fallthru
      _
    %p705 = scmp.lt.s32.totalorder %s32, 2
    // Predicated region
    $region101: #{seq2seq_transformer_forward.9} parent=5 // pred_check
      %p706 = pneg %p705
    $region102: #{seq2seq_transformer_forward.9} parent=5 // pred_check_branch
      %708 = sbr.rel (%p706) target = $region104
    $region103: #{seq2seq_transformer_forward.9} parent=5 // pred_region
      // Predicated region
      $region105: #{seq2seq_transformer_forward.9} parent=103 // pred_check
        %p709 = pneg %p52
      $region106: #{seq2seq_transformer_forward.9} parent=103 // pred_check_branch
        %711 = sbr.rel (%p709) target = $region108
      $region107: #{seq2seq_transformer_forward.9} parent=103 // pred_region
        %p712 = scmp.lt.s32.totalorder %s32, 1
        %s713 = scalar_select %p712, %s32, 1
        %s714 = smul.addr %s713, 8
        %s715 = scalar_lea.vmem %s0, %s714
      $region108: #{seq2seq_transformer_forward.9} parent=103 // pred_fallthru
        _
      // Predicated region
      $region109: #{seq2seq_transformer_forward.9} parent=103 // pred_check
        %p716 = pneg %p78
      $region110: #{seq2seq_transformer_forward.9} parent=103 // pred_check_branch
        %718 = sbr.rel (%p716) target = $region112
      $region111: #{seq2seq_transformer_forward.9} parent=103 // pred_region
        %p719 = scmp.lt.s32.totalorder %s32, 1
        %s720 = scalar_select %p719, %s32, 1
        %s721 = smul.addr %s720, 8
        %s722 = scalar_lea.vmem %s1, %s721
      $region112: #{seq2seq_transformer_forward.9} parent=103 // pred_fallthru
        _
      // Predicated region
      $region113: #{seq2seq_transformer_forward.9} parent=103 // pred_check
        %p723 = pneg %p104
      $region114: #{seq2seq_transformer_forward.9} parent=103 // pred_check_branch
        %725 = sbr.rel (%p723) target = $region116
      $region115: #{seq2seq_transformer_forward.9} parent=103 // pred_region
        %p726 = scmp.lt.s32.totalorder %s32, 1
        %s727 = scalar_select %p726, %s32, 1
        %s728 = smul.addr %s727, 8
        %s729 = scalar_lea.vmem %s2, %s728
      $region116: #{seq2seq_transformer_forward.9} parent=103 // pred_fallthru
        _
      // Predicated region
      $region117: #{seq2seq_transformer_forward.9} parent=103 // pred_check
        %p730 = pneg %p130
      $region118: #{seq2seq_transformer_forward.9} parent=103 // pred_check_branch
        %732 = sbr.rel (%p730) target = $region120
      $region119: #{seq2seq_transformer_forward.9} parent=103 // pred_region
        %p733 = scmp.lt.s32.totalorder %s32, 1
        %s734 = scalar_select %p733, %s32, 1
        %s735 = smul.addr %s734, 8
        %s736 = scalar_lea.vmem %s3, %s735
      $region120: #{seq2seq_transformer_forward.9} parent=103 // pred_fallthru
        _
    $region104: #{seq2seq_transformer_forward.9} parent=5 // pred_fallthru
      _
    %p737 = scmp.le.s32.totalorder 1, %s32
    %p738 = scmp.lt.s32.totalorder %s32, 3
    %p739 = pnand %p737, %p738
    %p740 = pneg %p739
    // Predicated region
    $region121: #{seq2seq_transformer_forward.9} parent=5 // pred_check
      _
    $region122: #{seq2seq_transformer_forward.9} parent=5 // pred_check_branch
      %742 = sbr.rel (%p739) target = $region124
    $region123: #{seq2seq_transformer_forward.9} parent=5 // pred_region
      %s743 = ssub.s32 %s32, 1
      %p744 = scmp.lt.s32.totalorder %s37, 1
      %s745 = scalar_select %p744, %s37, 1
      %s746 = smul.addr %s745, 8
      %s747 = scalar_lea.vmem %s0, %s746
      %p748 = pneg %p58
      %p749 = pneg %p55
      %p750 = scmp.lt.s32.totalorder %s37, 1
      %s751 = scalar_select %p750, %s37, 1
      %s752 = smul.addr %s751, 8
      %s753 = scalar_lea.vmem %s1, %s752
      %p754 = pneg %p84
      %p755 = pneg %p81
      %p756 = scmp.lt.s32.totalorder %s37, 1
      %s757 = scalar_select %p756, %s37, 1
      %s758 = smul.addr %s757, 8
      %s759 = scalar_lea.vmem %s2, %s758
      %p760 = pneg %p110
      %p761 = pneg %p107
      %p762 = scmp.lt.s32.totalorder %s37, 1
      %s763 = scalar_select %p762, %s37, 1
      %s764 = smul.addr %s763, 8
      %s765 = scalar_lea.vmem %s3, %s764
      %p766 = pneg %p136
      %p767 = pneg %p133
      %p768 = pneg %p157
      %p769 = pneg %p154
      %p770 = pneg %p178
      %p771 = pneg %p175
      %p772 = pneg %p199
      %p773 = pneg %p196
      %p774 = pneg %p220
      %p775 = pneg %p217
      %p776 = pneg %p241
      %p777 = pneg %p238
      %p778 = pneg %p262
      %p779 = pneg %p259
      %p780 = pneg %p283
      %p781 = pneg %p280
      %p782 = pneg %p304
      %p783 = pneg %p301
      %p784 = pneg %p325
      %p785 = pneg %p322
      %p786 = pneg %p346
      %p787 = pneg %p343
      %p788 = pneg %p367
      %p789 = pneg %p364
      %p790 = pneg %p388
      %p791 = pneg %p385
      %p792 = pneg %p409
      %p793 = pneg %p406
      %p794 = pneg %p430
      %p795 = pneg %p427
      %p796 = pneg %p451
      %p797 = pneg %p448
      %p798 = pneg %p472
      %p799 = pneg %p469
      %p800 = pneg %p493
      %p801 = pneg %p490
      %p802 = pneg %p514
      %p803 = pneg %p511
      %p804 = pneg %p535
      %p805 = pneg %p532
      %p806 = pneg %p556
      %p807 = pneg %p553
      %p808 = pneg %p577
      %p809 = pneg %p574
      %p810 = pneg %p598
      %p811 = pneg %p595
      %p812 = pneg %p624
      %p813 = pneg %p621
      %p814 = scmp.lt.s32.totalorder %s37, 1
      %s815 = scalar_select %p814, %s37, 1
      %s816 = smul.addr %s815, 8
      %s817 = scalar_lea.vmem %s26, %s816
      %p818 = scmp.lt.s32.totalorder %s37, 1
      %s819 = scalar_select %p818, %s37, 1
      %s820 = smul.addr %s819, 8
      %s821 = scalar_lea.vmem %s0, %s820
      %p822 = scmp.lt.s32.totalorder %s37, 1
      %s823 = scalar_select %p822, %s37, 1
      %s824 = smul.addr %s823, 8
      %s825 = scalar_lea.vmem %s1, %s824
      %p826 = scmp.lt.s32.totalorder %s37, 1
      %s827 = scalar_select %p826, %s37, 1
      %s828 = smul.addr %s827, 8
      %s829 = scalar_lea.vmem %s2, %s828
      %p830 = scmp.lt.s32.totalorder %s37, 1
      %s831 = scalar_select %p830, %s37, 1
      %s832 = smul.addr %s831, 8
      %s833 = scalar_lea.vmem %s3, %s832
      %p834 = scmp.lt.s32.totalorder %s37, 1
      %s835 = scalar_select %p834, %s37, 1
      %s836 = smul.addr %s835, 8
      %s837 = scalar_lea.vmem %s26, %s836
      %v839 = vld [vmem:[%s821] sm:$0xff]
      %v840 = vld [vmem:[%s825] sm:$0xff]
      %v841 = vld [vmem:[%s4] sm:$0xff]
      %v842 = vld [vmem:[%s4 + $0x8] sm:$0xff]
      %v843 = vld [vmem:[%s4 + $0x10] sm:$0xff]
      %v844 = vld [vmem:[%s4 + $0x18] sm:$0xff]
      %v845 = vpack.c.bf16 %v839, %v839
      %v846 = vpack.c.bf16 %v842, %v841
      %v847 = vpack.c.bf16 %v844, %v843
      %v848 = vld [vmem:[%s7] sm:$0x1]
      %v850 = vlaneseq
      %v851 = vshrl.u32 %v850, 7
      %v852 = vsub.s32 0, %v851
      %v853 = vrot.slane %v848, %v852
      %vm855 = vcmask 261120
      %v857 = vsel %vm855, %v845, 0
      %859 = vmatprep.subr.bf16.mxu0 0
      %860 = vmatpush1.bf16.msra.mxu0 %v846
      %861 = vmatprep.subr.bf16.mxu0 0
      %862 = vmatpush1.bf16.msra.mxu0 %v847
      %863 = vmatprep.subr.bf16.mxu0 0
      %864 = vmatpush1.bf16.msra.mxu0 0
      %865 = vmatprep.subr.bf16.mxu0 0
      %866 = vmatpush1.bf16.msra.mxu0 0
      %867 = vmatprep.subr.bf16.mxu0 0
      %868 = vmatpush1.bf16.msra.mxu0 0
      %869 = vmatprep.subr.bf16.mxu0 0
      %870 = vmatpush1.bf16.msra.mxu0 0
      %871 = vmatprep.subr.bf16.mxu0 0
      %872 = vmatpush1.bf16.msra.mxu0 0
      %873 = vmatprep.subr.bf16.mxu0 0
      %874 = vmatpush1.bf16.msra.mxu0 0
      %875 = vmatprep.subr.bf16.mxu0 0
      %876 = vmatpush1.bf16.msra.mxu0 0
      %877 = vmatprep.subr.bf16.mxu0 0
      %878 = vmatpush1.bf16.msra.mxu0 0
      %879 = vmatprep.subr.bf16.mxu0 0
      %880 = vmatpush1.bf16.msra.mxu0 0
      %881 = vmatprep.subr.bf16.mxu0 0
      %882 = vmatpush1.bf16.msra.mxu0 0
      %883 = vmatprep.subr.bf16.mxu0 0
      %884 = vmatpush1.bf16.msra.mxu0 0
      %885 = vmatprep.subr.bf16.mxu0 0
      %886 = vmatpush1.bf16.msra.mxu0 0
      %887 = vmatprep.subr.bf16.mxu0 0
      %888 = vmatpush1.bf16.msra.mxu0 0
      %889 = vmatprep.subr.bf16.mxu0 0
      %890 = vmatpush1.bf16.msra.mxu0 0
      %891 = vmatprep.mubr.bf16.mxu0 0
      %892 = vmatmul.mubr.bf16.gmra.mrb[0].mxu0 %v857
      %v893 = vpop.f32.mrb[0].mxu0
      %v894 = vadd.f32 %v853, %v893
      %v895 = vpop.f32.mrb[0].mxu0
      %v896 = vpop.f32.mrb[0].mxu0
      %v897 = vpop.f32.mrb[0].mxu0
      %898 = vdwg.mxu0
      %v899 = vld [vmem:[%s5] sm:$0xff]
      %v900 = vld [vmem:[%s5 + $0x8] sm:$0xff]
      %v901 = vld [vmem:[%s5 + $0x10] sm:$0xff]
      %v902 = vld [vmem:[%s5 + $0x18] sm:$0xff]
      %v903 = vpack.c.bf16 %v900, %v899
      %v904 = vpack.c.bf16 %v902, %v901
      %v905 = vld [vmem:[%s8] sm:$0x1]
      %v907 = vlaneseq
      %v908 = vshrl.u32 %v907, 7
      %v909 = vsub.s32 0, %v908
      %v910 = vrot.slane %v905, %v909
      %912 = vmatprep.subr.bf16.mxu0 0
      %913 = vmatpush1.bf16.msra.mxu0 %v903
      %914 = vmatprep.subr.bf16.mxu0 0
      %915 = vmatpush1.bf16.msra.mxu0 %v904
      %916 = vmatprep.subr.bf16.mxu0 0
      %917 = vmatpush1.bf16.msra.mxu0 0
      %918 = vmatprep.subr.bf16.mxu0 0
      %919 = vmatpush1.bf16.msra.mxu0 0
      %920 = vmatprep.subr.bf16.mxu0 0
      %921 = vmatpush1.bf16.msra.mxu0 0
      %922 = vmatprep.subr.bf16.mxu0 0
      %923 = vmatpush1.bf16.msra.mxu0 0
      %924 = vmatprep.subr.bf16.mxu0 0
      %925 = vmatpush1.bf16.msra.mxu0 0
      %926 = vmatprep.subr.bf16.mxu0 0
      %927 = vmatpush1.bf16.msra.mxu0 0
      %928 = vmatprep.subr.bf16.mxu0 0
      %929 = vmatpush1.bf16.msra.mxu0 0
      %930 = vmatprep.subr.bf16.mxu0 0
      %931 = vmatpush1.bf16.msra.mxu0 0
      %932 = vmatprep.subr.bf16.mxu0 0
      %933 = vmatpush1.bf16.msra.mxu0 0
      %934 = vmatprep.subr.bf16.mxu0 0
      %935 = vmatpush1.bf16.msra.mxu0 0
      %936 = vmatprep.subr.bf16.mxu0 0
      %937 = vmatpush1.bf16.msra.mxu0 0
      %938 = vmatprep.subr.bf16.mxu0 0
      %939 = vmatpush1.bf16.msra.mxu0 0
      %940 = vmatprep.subr.bf16.mxu0 0
      %941 = vmatpush1.bf16.msra.mxu0 0
      %942 = vmatprep.subr.bf16.mxu0 0
      %943 = vmatpush1.bf16.msra.mxu0 0
      %944 = vmatprep.mubr.bf16.mxu0 0
      %945 = vmatmul.mubr.bf16.gmra.mrb[0].mxu0 %v857
      %v946 = vpop.f32.mrb[0].mxu0
      %v947 = vadd.f32 %v910, %v946
      %v948 = vpop.f32.mrb[0].mxu0
      %v949 = vpop.f32.mrb[0].mxu0
      %v950 = vpop.f32.mrb[0].mxu0
      %951 = vdwg.mxu0
      %v952 = vld [vmem:[%s829] sm:$0xff]
      %vm953 = vcmask 64512
      %v955 = vsel %vm953, %v894, 0
      %v958 = vsel %vm953, %v947, 0
      %960 = vmatprep.subr.mxu0 0.0
      %961 = vmatpush1.xpose.msra.mxu0 %v958
      %962 = vmatprep.subr.mxu0 0.0
      %963 = vmatpush1.xpose.msra.mxu0 0.0
      %964 = vmatprep.subr.mxu0 0.0
      %965 = vmatpush1.xpose.msra.mxu0 0.0
      %966 = vmatprep.subr.mxu0 0.0
      %967 = vmatpush1.xpose.msra.mxu0 0.0
      %968 = vmatprep.subr.mxu0 0.0
      %969 = vmatpush1.xpose.msra.mxu0 0.0
      %970 = vmatprep.subr.mxu0 0.0
      %971 = vmatpush1.xpose.msra.mxu0 0.0
      %972 = vmatprep.subr.mxu0 0.0
      %973 = vmatpush1.xpose.msra.mxu0 0.0
      %974 = vmatprep.subr.mxu0 0.0
      %975 = vmatpush1.xpose.msra.mxu0 0.0
      %976 = vmatprep.subr.mxu0 0.0
      %977 = vmatpush1.xpose.msra.mxu0 0.0
      %978 = vmatprep.subr.mxu0 0.0
      %979 = vmatpush1.xpose.msra.mxu0 0.0
      %980 = vmatprep.subr.mxu0 0.0
      %981 = vmatpush1.xpose.msra.mxu0 0.0
      %982 = vmatprep.subr.mxu0 0.0
      %983 = vmatpush1.xpose.msra.mxu0 0.0
      %984 = vmatprep.subr.mxu0 0.0
      %985 = vmatpush1.xpose.msra.mxu0 0.0
      %986 = vmatprep.subr.mxu0 0.0
      %987 = vmatpush1.xpose.msra.mxu0 0.0
      %988 = vmatprep.subr.mxu0 0.0
      %989 = vmatpush1.xpose.msra.mxu0 0.0
      %990 = vmatprep.subr.mxu0 0.0
      %991 = vmatpush1.xpose.msra.mxu0 0.0
      %992 = vmatprep.subr.mxu0 0.0
      %993 = vmatpush1.xpose.msra.mxu0 0.0
      %994 = vmatprep.subr.mxu0 0.0
      %995 = vmatpush1.xpose.msra.mxu0 0.0
      %996 = vmatprep.subr.mxu0 0.0
      %997 = vmatpush1.xpose.msra.mxu0 0.0
      %998 = vmatprep.subr.mxu0 0.0
      %999 = vmatpush1.xpose.msra.mxu0 0.0
      %1000 = vmatprep.subr.mxu0 0.0
      %1001 = vmatpush1.xpose.msra.mxu0 0.0
      %1002 = vmatprep.subr.mxu0 0.0
      %1003 = vmatpush1.xpose.msra.mxu0 0.0
      %1004 = vmatprep.subr.mxu0 0.0
      %1005 = vmatpush1.xpose.msra.mxu0 0.0
      %1006 = vmatprep.subr.mxu0 0.0
      %1007 = vmatpush1.xpose.msra.mxu0 0.0
      %1008 = vmatprep.subr.mxu0 0.0
      %1009 = vmatpush1.xpose.msra.mxu0 0.0
      %1010 = vmatprep.subr.mxu0 0.0
      %1011 = vmatpush1.xpose.msra.mxu0 0.0
      %1012 = vmatprep.subr.mxu0 0.0
      %1013 = vmatpush1.xpose.msra.mxu0 0.0
      %1014 = vmatprep.subr.mxu0 0.0
      %1015 = vmatpush1.xpose.msra.mxu0 0.0
      %1016 = vmatprep.subr.mxu0 0.0
      %1017 = vmatpush1.xpose.msra.mxu0 0.0
      %1018 = vmatprep.subr.mxu0 0.0
      %1019 = vmatpush1.xpose.msra.mxu0 0.0
      %1020 = vmatprep.subr.mxu0 0.0
      %1021 = vmatpush1.xpose.msra.mxu0 0.0
      %1022 = vmatprep.subr.mxu0 0.0
      %1023 = vmatpush1.xpose.msra.mxu0 0.0
      %1024 = vmatprep.mubr.f32.mxu0 0.0
      %1025 = vmatmul.mubr.f32.gmra.mrb[0].mxu0 %v955
      %v1026 = vpop.f32.mrb[0].mxu0
      %v1027 = vadd.f32 0.0, %v1026
      %v1028 = vpop.f32.mrb[0].mxu0
      %1029 = vdwg.mxu0
      %v1030 = vmul.f32 %v1027, 0.35355338
      %v1031 = vadd.f32 %v1030, %v952
      %v1032 = vsel %vm953, %v1031, -inf
      %1033 = vmax.xlane.f32.xlu0 %v1032
      %v1034 = vpop.xlane.xlu0 %1033
      %v1035 = vsub.f32 %v1031, %v1034
      %v1036 = vmul.f32 %v1035, 1.442695
      %v1037 = vpow.pop %v1036
      %v1038 = vsel %vm953, %v1037, 0.0
      %1039 = vadd.xlane.f32.xlu0 %v1038
      %v1040 = vpop.xlane.xlu0 %1039
      %1041 = vrot.lane.b32.xlu0 %v947, 96
      %v1042 = vpop.permute.xlu0 %1041
      %v1045 = vsel %vm953, %v1037, 0
      %1047 = vmatprep.subr.mxu0 0.0
      %1048 = vmatpush1.msra.mxu0 %v1042
      %1049 = vmatprep.subr.mxu0 0.0
      %1050 = vmatpush1.msra.mxu0 0.0
      %1051 = vmatprep.subr.mxu0 0.0
      %1052 = vmatpush1.msra.mxu0 0.0
      %1053 = vmatprep.subr.mxu0 0.0
      %1054 = vmatpush1.msra.mxu0 0.0
      %1055 = vmatprep.subr.mxu0 0.0
      %1056 = vmatpush1.msra.mxu0 0.0
      %1057 = vmatprep.subr.mxu0 0.0
      %1058 = vmatpush1.msra.mxu0 0.0
      %1059 = vmatprep.subr.mxu0 0.0
      %1060 = vmatpush1.msra.mxu0 0.0
      %1061 = vmatprep.subr.mxu0 0.0
      %1062 = vmatpush1.msra.mxu0 0.0
      %1063 = vmatprep.subr.mxu0 0.0
      %1064 = vmatpush1.msra.mxu0 0.0
      %1065 = vmatprep.subr.mxu0 0.0
      %1066 = vmatpush1.msra.mxu0 0.0
      %1067 = vmatprep.subr.mxu0 0.0
      %1068 = vmatpush1.msra.mxu0 0.0
      %1069 = vmatprep.subr.mxu0 0.0
      %1070 = vmatpush1.msra.mxu0 0.0
      %1071 = vmatprep.subr.mxu0 0.0
      %1072 = vmatpush1.msra.mxu0 0.0
      %1073 = vmatprep.subr.mxu0 0.0
      %1074 = vmatpush1.msra.mxu0 0.0
      %1075 = vmatprep.subr.mxu0 0.0
      %1076 = vmatpush1.msra.mxu0 0.0
      %1077 = vmatprep.subr.mxu0 0.0
      %1078 = vmatpush1.msra.mxu0 0.0
      %1079 = vmatprep.subr.mxu0 0.0
      %1080 = vmatpush1.msra.mxu0 0.0
      %1081 = vmatprep.subr.mxu0 0.0
      %1082 = vmatpush1.msra.mxu0 0.0
      %1083 = vmatprep.subr.mxu0 0.0
      %1084 = vmatpush1.msra.mxu0 0.0
      %1085 = vmatprep.subr.mxu0 0.0
      %1086 = vmatpush1.msra.mxu0 0.0
      %1087 = vmatprep.subr.mxu0 0.0
      %1088 = vmatpush1.msra.mxu0 0.0
      %1089 = vmatprep.subr.mxu0 0.0
      %1090 = vmatpush1.msra.mxu0 0.0
      %1091 = vmatprep.subr.mxu0 0.0
      %1092 = vmatpush1.msra.mxu0 0.0
      %1093 = vmatprep.subr.mxu0 0.0
      %1094 = vmatpush1.msra.mxu0 0.0
      %1095 = vmatprep.subr.mxu0 0.0
      %1096 = vmatpush1.msra.mxu0 0.0
      %1097 = vmatprep.subr.mxu0 0.0
      %1098 = vmatpush1.msra.mxu0 0.0
      %1099 = vmatprep.subr.mxu0 0.0
      %1100 = vmatpush1.msra.mxu0 0.0
      %1101 = vmatprep.subr.mxu0 0.0
      %1102 = vmatpush1.msra.mxu0 0.0
      %1103 = vmatprep.subr.mxu0 0.0
      %1104 = vmatpush1.msra.mxu0 0.0
      %1105 = vmatprep.subr.mxu0 0.0
      %1106 = vmatpush1.msra.mxu0 0.0
      %1107 = vmatprep.subr.mxu0 0.0
      %1108 = vmatpush1.msra.mxu0 0.0
      %1109 = vmatprep.subr.mxu0 0.0
      %1110 = vmatpush1.msra.mxu0 0.0
      %1111 = vmatprep.mubr.f32.mxu0 0.0
      %1112 = vmatmul.mubr.f32.gmra.mrb[0].mxu0 %v1045
      %v1113 = vpop.f32.mrb[0].mxu0
      %v1114 = vadd.f32 0.0, %v1113
      %v1115 = vpop.f32.mrb[0].mxu0
      %1116 = vdwg.mxu0
      %v1117 = vrcp.pop %v1040
      %v1118 = vmul.f32 %v1114, %v1117
      %1119 = vst.msk [vmem:[#allocation2] sm:$0xff] %vm953, %v1118
      %1120 = vrot.lane.b32.xlu0 %v894, 120
      %v1121 = vpop.permute.xlu0 %1120
      %1122 = vrot.lane.b32.xlu0 %v947, 120
      %v1123 = vpop.permute.xlu0 %1122
      %v1124 = vsel %vm953, %v1121, 0
      %v1126 = vsel %vm953, %v1123, 0
      %1128 = vmatprep.subr.mxu0 0.0
      %1129 = vmatpush1.xpose.msra.mxu0 %v1126
      %1130 = vmatprep.subr.mxu0 0.0
      %1131 = vmatpush1.xpose.msra.mxu0 0.0
      %1132 = vmatprep.subr.mxu0 0.0
      %1133 = vmatpush1.xpose.msra.mxu0 0.0
      %1134 = vmatprep.subr.mxu0 0.0
      %1135 = vmatpush1.xpose.msra.mxu0 0.0
      %1136 = vmatprep.subr.mxu0 0.0
      %1137 = vmatpush1.xpose.msra.mxu0 0.0
      %1138 = vmatprep.subr.mxu0 0.0
      %1139 = vmatpush1.xpose.msra.mxu0 0.0
      %1140 = vmatprep.subr.mxu0 0.0
      %1141 = vmatpush1.xpose.msra.mxu0 0.0
      %1142 = vmatprep.subr.mxu0 0.0
      %1143 = vmatpush1.xpose.msra.mxu0 0.0
      %1144 = vmatprep.subr.mxu0 0.0
      %1145 = vmatpush1.xpose.msra.mxu0 0.0
      %1146 = vmatprep.subr.mxu0 0.0
      %1147 = vmatpush1.xpose.msra.mxu0 0.0
      %1148 = vmatprep.subr.mxu0 0.0
      %1149 = vmatpush1.xpose.msra.mxu0 0.0
      %1150 = vmatprep.subr.mxu0 0.0
      %1151 = vmatpush1.xpose.msra.mxu0 0.0
      %1152 = vmatprep.subr.mxu0 0.0
      %1153 = vmatpush1.xpose.msra.mxu0 0.0
      %1154 = vmatprep.subr.mxu0 0.0
      %1155 = vmatpush1.xpose.msra.mxu0 0.0
      %1156 = vmatprep.subr.mxu0 0.0
      %1157 = vmatpush1.xpose.msra.mxu0 0.0
      %1158 = vmatprep.subr.mxu0 0.0
      %1159 = vmatpush1.xpose.msra.mxu0 0.0
      %1160 = vmatprep.subr.mxu0 0.0
      %1161 = vmatpush1.xpose.msra.mxu0 0.0
      %1162 = vmatprep.subr.mxu0 0.0
      %1163 = vmatpush1.xpose.msra.mxu0 0.0
      %1164 = vmatprep.subr.mxu0 0.0
      %1165 = vmatpush1.xpose.msra.mxu0 0.0
      %1166 = vmatprep.subr.mxu0 0.0
      %1167 = vmatpush1.xpose.msra.mxu0 0.0
      %1168 = vmatprep.subr.mxu0 0.0
      %1169 = vmatpush1.xpose.msra.mxu0 0.0
      %1170 = vmatprep.subr.mxu0 0.0
      %1171 = vmatpush1.xpose.msra.mxu0 0.0
      %1172 = vmatprep.subr.mxu0 0.0
      %1173 = vmatpush1.xpose.msra.mxu0 0.0
      %1174 = vmatprep.subr.mxu0 0.0
      %1175 = vmatpush1.xpose.msra.mxu0 0.0
      %1176 = vmatprep.subr.mxu0 0.0
      %1177 = vmatpush1.xpose.msra.mxu0 0.0
      %1178 = vmatprep.subr.mxu0 0.0
      %1179 = vmatpush1.xpose.msra.mxu0 0.0
      %1180 = vmatprep.subr.mxu0 0.0
      %1181 = vmatpush1.xpose.msra.mxu0 0.0
      %1182 = vmatprep.subr.mxu0 0.0
      %1183 = vmatpush1.xpose.msra.mxu0 0.0
      %1184 = vmatprep.subr.mxu0 0.0
      %1185 = vmatpush1.xpose.msra.mxu0 0.0
      %1186 = vmatprep.subr.mxu0 0.0
      %1187 = vmatpush1.xpose.msra.mxu0 0.0
      %1188 = vmatprep.subr.mxu0 0.0
      %1189 = vmatpush1.xpose.msra.mxu0 0.0
      %1190 = vmatprep.subr.mxu0 0.0
      %1191 = vmatpush1.xpose.msra.mxu0 0.0
      %1192 = vmatprep.mubr.f32.mxu0 0.0
      %1193 = vmatmul.mubr.f32.gmra.mrb[0].mxu0 %v1124
      %v1194 = vpop.f32.mrb[0].mxu0
      %v1195 = vadd.f32 0.0, %v1194
      %v1196 = vpop.f32.mrb[0].mxu0
      %1197 = vdwg.mxu0
      %v1198 = vmul.f32 %v1195, 0.35355338
      %v1199 = vadd.f32 %v1198, %v952
      %v1200 = vsel %vm953, %v1199, -inf
      %1201 = vmax.xlane.f32.xlu0 %v1200
      %v1202 = vpop.xlane.xlu0 %1201
      %v1203 = vsub.f32 %v1199, %v1202
      %v1204 = vmul.f32 %v1203, 1.442695
      %v1205 = vpow.pop %v1204
      %v1206 = vsel %vm953, %v1205, 0.0
      %1207 = vadd.xlane.f32.xlu0 %v1206
      %v1208 = vpop.xlane.xlu0 %1207
      %1209 = vrot.lane.b32.xlu0 %v947, 88
      %v1210 = vpop.permute.xlu0 %1209
      %v1213 = vsel %vm953, %v1205, 0
      %1215 = vmatprep.subr.mxu0 0.0
      %1216 = vmatpush1.msra.mxu0 %v1210
      %1217 = vmatprep.subr.mxu0 0.0
      %1218 = vmatpush1.msra.mxu0 0.0
      %1219 = vmatprep.subr.mxu0 0.0
      %1220 = vmatpush1.msra.mxu0 0.0
      %1221 = vmatprep.subr.mxu0 0.0
      %1222 = vmatpush1.msra.mxu0 0.0
      %1223 = vmatprep.subr.mxu0 0.0
      %1224 = vmatpush1.msra.mxu0 0.0
      %1225 = vmatprep.subr.mxu0 0.0
      %1226 = vmatpush1.msra.mxu0 0.0
      %1227 = vmatprep.subr.mxu0 0.0
      %1228 = vmatpush1.msra.mxu0 0.0
      %1229 = vmatprep.subr.mxu0 0.0
      %1230 = vmatpush1.msra.mxu0 0.0
      %1231 = vmatprep.subr.mxu0 0.0
      %1232 = vmatpush1.msra.mxu0 0.0
      %1233 = vmatprep.subr.mxu0 0.0
      %1234 = vmatpush1.msra.mxu0 0.0
      %1235 = vmatprep.subr.mxu0 0.0
      %1236 = vmatpush1.msra.mxu0 0.0
      %1237 = vmatprep.subr.mxu0 0.0
      %1238 = vmatpush1.msra.mxu0 0.0
      %1239 = vmatprep.subr.mxu0 0.0
      %1240 = vmatpush1.msra.mxu0 0.0
      %1241 = vmatprep.subr.mxu0 0.0
      %1242 = vmatpush1.msra.mxu0 0.0
      %1243 = vmatprep.subr.mxu0 0.0
      %1244 = vmatpush1.msra.mxu0 0.0
      %1245 = vmatprep.subr.mxu0 0.0
      %1246 = vmatpush1.msra.mxu0 0.0
      %1247 = vmatprep.subr.mxu0 0.0
      %1248 = vmatpush1.msra.mxu0 0.0
      %1249 = vmatprep.subr.mxu0 0.0
      %1250 = vmatpush1.msra.mxu0 0.0
      %1251 = vmatprep.subr.mxu0 0.0
      %1252 = vmatpush1.msra.mxu0 0.0
      %1253 = vmatprep.subr.mxu0 0.0
      %1254 = vmatpush1.msra.mxu0 0.0
      %1255 = vmatprep.subr.mxu0 0.0
      %1256 = vmatpush1.msra.mxu0 0.0
      %1257 = vmatprep.subr.mxu0 0.0
      %1258 = vmatpush1.msra.mxu0 0.0
      %1259 = vmatprep.subr.mxu0 0.0
      %1260 = vmatpush1.msra.mxu0 0.0
      %1261 = vmatprep.subr.mxu0 0.0
      %1262 = vmatpush1.msra.mxu0 0.0
      %1263 = vmatprep.subr.mxu0 0.0
      %1264 = vmatpush1.msra.mxu0 0.0
      %1265 = vmatprep.subr.mxu0 0.0
      %1266 = vmatpush1.msra.mxu0 0.0
      %1267 = vmatprep.subr.mxu0 0.0
      %1268 = vmatpush1.msra.mxu0 0.0
      %1269 = vmatprep.subr.mxu0 0.0
      %1270 = vmatpush1.msra.mxu0 0.0
      %1271 = vmatprep.subr.mxu0 0.0
      %1272 = vmatpush1.msra.mxu0 0.0
      %1273 = vmatprep.subr.mxu0 0.0
      %1274 = vmatpush1.msra.mxu0 0.0
      %1275 = vmatprep.subr.mxu0 0.0
      %1276 = vmatpush1.msra.mxu0 0.0
      %1277 = vmatprep.subr.mxu0 0.0
      %1278 = vmatpush1.msra.mxu0 0.0
      %1279 = vmatprep.mubr.f32.mxu0 0.0
      %1280 = vmatmul.mubr.f32.gmra.mrb[0].mxu0 %v1213
      %v1281 = vpop.f32.mrb[0].mxu0
      %v1282 = vadd.f32 0.0, %v1281
      %v1283 = vpop.f32.mrb[0].mxu0
      %1284 = vdwg.mxu0
      %v1285 = vrcp.pop %v1208
      %v1286 = vmul.f32 %v1282, %v1285
      %1288 = vrot.lane.b32.xlu0 %v1286, 8
      %v1289 = vpop.permute.xlu0 %1288
      %vm1291 = vcmask 130112
      %1292 = vst.msk [vmem:[#allocation2] sm:$0xff] %vm1291, %v1289
      %1293 = vrot.lane.b32.xlu0 %v894, 112
      %v1294 = vpop.permute.xlu0 %1293
      %1295 = vrot.lane.b32.xlu0 %v947, 112
      %v1296 = vpop.permute.xlu0 %1295
      %v1297 = vsel %vm953, %v1294, 0
      %v1299 = vsel %vm953, %v1296, 0
      %1301 = vmatprep.subr.mxu0 0.0
      %1302 = vmatpush1.xpose.msra.mxu0 %v1299
      %1303 = vmatprep.subr.mxu0 0.0
      %1304 = vmatpush1.xpose.msra.mxu0 0.0
      %1305 = vmatprep.subr.mxu0 0.0
      %1306 = vmatpush1.xpose.msra.mxu0 0.0
      %1307 = vmatprep.subr.mxu0 0.0
      %1308 = vmatpush1.xpose.msra.mxu0 0.0
      %1309 = vmatprep.subr.mxu0 0.0
      %1310 = vmatpush1.xpose.msra.mxu0 0.0
      %1311 = vmatprep.subr.mxu0 0.0
      %1312 = vmatpush1.xpose.msra.mxu0 0.0
      %1313 = vmatprep.subr.mxu0 0.0
      %1314 = vmatpush1.xpose.msra.mxu0 0.0
      %1315 = vmatprep.subr.mxu0 0.0
      %1316 = vmatpush1.xpose.msra.mxu0 0.0
      %1317 = vmatprep.subr.mxu0 0.0
      %1318 = vmatpush1.xpose.msra.mxu0 0.0
      %1319 = vmatprep.subr.mxu0 0.0
      %1320 = vmatpush1.xpose.msra.mxu0 0.0
      %1321 = vmatprep.subr.mxu0 0.0
      %1322 = vmatpush1.xpose.msra.mxu0 0.0
      %1323 = vmatprep.subr.mxu0 0.0
      %1324 = vmatpush1.xpose.msra.mxu0 0.0
      %1325 = vmatprep.subr.mxu0 0.0
      %1326 = vmatpush1.xpose.msra.mxu0 0.0
      %1327 = vmatprep.subr.mxu0 0.0
      %1328 = vmatpush1.xpose.msra.mxu0 0.0
      %1329 = vmatprep.subr.mxu0 0.0
      %1330 = vmatpush1.xpose.msra.mxu0 0.0
      %1331 = vmatprep.subr.mxu0 0.0
      %1332 = vmatpush1.xpose.msra.mxu0 0.0
      %1333 = vmatprep.subr.mxu0 0.0
      %1334 = vmatpush1.xpose.msra.mxu0 0.0
      %1335 = vmatprep.subr.mxu0 0.0
      %1336 = vmatpush1.xpose.msra.mxu0 0.0
      %1337 = vmatprep.subr.mxu0 0.0
      %1338 = vmatpush1.xpose.msra.mxu0 0.0
      %1339 = vmatprep.subr.mxu0 0.0
      %1340 = vmatpush1.xpose.msra.mxu0 0.0
      %1341 = vmatprep.subr.mxu0 0.0
      %1342 = vmatpush1.xpose.msra.mxu0 0.0
      %1343 = vmatprep.subr.mxu0 0.0
      %1344 = vmatpush1.xpose.msra.mxu0 0.0
      %1345 = vmatprep.subr.mxu0 0.0
      %1346 = vmatpush1.xpose.msra.mxu0 0.0
      %1347 = vmatprep.subr.mxu0 0.0
      %1348 = vmatpush1.xpose.msra.mxu0 0.0
      %1349 = vmatprep.subr.mxu0 0.0
      %1350 = vmatpush1.xpose.msra.mxu0 0.0
      %1351 = vmatprep.subr.mxu0 0.0
      %1352 = vmatpush1.xpose.msra.mxu0 0.0
      %1353 = vmatprep.subr.mxu0 0.0
      %1354 = vmatpush1.xpose.msra.mxu0 0.0
      %1355 = vmatprep.subr.mxu0 0.0
      %1356 = vmatpush1.xpose.msra.mxu0 0.0
      %1357 = vmatprep.subr.mxu0 0.0
      %1358 = vmatpush1.xpose.msra.mxu0 0.0
      %1359 = vmatprep.subr.mxu0 0.0
      %1360 = vmatpush1.xpose.msra.mxu0 0.0
      %1361 = vmatprep.subr.mxu0 0.0
      %1362 = vmatpush1.xpose.msra.mxu0 0.0
      %1363 = vmatprep.subr.mxu0 0.0
      %1364 = vmatpush1.xpose.msra.mxu0 0.0
      %1365 = vmatprep.mubr.f32.mxu0 0.0
      %1366 = vmatmul.mubr.f32.gmra.mrb[0].mxu0 %v1297
      %v1367 = vpop.f32.mrb[0].mxu0
      %v1368 = vadd.f32 0.0, %v1367
      %v1369 = vpop.f32.mrb[0].mxu0
      %1370 = vdwg.mxu0
      %v1371 = vmul.f32 %v1368, 0.35355338
      %v1372 = vadd.f32 %v1371, %v952
      %v1373 = vsel %vm953, %v1372, -inf
      %1374 = vmax.xlane.f32.xlu0 %v1373
      %v1375 = vpop.xlane.xlu0 %1374
      %v1376 = vsub.f32 %v1372, %v1375
      %v1377 = vmul.f32 %v1376, 1.442695
      %v1378 = vpow.pop %v1377
      %v1379 = vsel %vm953, %v1378, 0.0
      %1380 = vadd.xlane.f32.xlu0 %v1379
      %v1381 = vpop.xlane.xlu0 %1380
      %1382 = vrot.lane.b32.xlu0 %v947, 80
      %v1383 = vpop.permute.xlu0 %1382
      %v1386 = vsel %vm953, %v1378, 0
      %1388 = vmatprep.subr.mxu0 0.0
      %1389 = vmatpush1.msra.mxu0 %v1383
      %1390 = vmatprep.subr.mxu0 0.0
      %1391 = vmatpush1.msra.mxu0 0.0
      %1392 = vmatprep.subr.mxu0 0.0
      %1393 = vmatpush1.msra.mxu0 0.0
      %1394 = vmatprep.subr.mxu0 0.0
      %1395 = vmatpush1.msra.mxu0 0.0
      %1396 = vmatprep.subr.mxu0 0.0
      %1397 = vmatpush1.msra.mxu0 0.0
      %1398 = vmatprep.subr.mxu0 0.0
      %1399 = vmatpush1.msra.mxu0 0.0
      %1400 = vmatprep.subr.mxu0 0.0
      %1401 = vmatpush1.msra.mxu0 0.0
      %1402 = vmatprep.subr.mxu0 0.0
      %1403 = vmatpush1.msra.mxu0 0.0
      %1404 = vmatprep.subr.mxu0 0.0
      %1405 = vmatpush1.msra.mxu0 0.0
      %1406 = vmatprep.subr.mxu0 0.0
      %1407 = vmatpush1.msra.mxu0 0.0
      %1408 = vmatprep.subr.mxu0 0.0
      %1409 = vmatpush1.msra.mxu0 0.0
      %1410 = vmatprep.subr.mxu0 0.0
      %1411 = vmatpush1.msra.mxu0 0.0
      %1412 = vmatprep.subr.mxu0 0.0
      %1413 = vmatpush1.msra.mxu0 0.0
      %1414 = vmatprep.subr.mxu0 0.0
      %1415 = vmatpush1.msra.mxu0 0.0
      %1416 = vmatprep.subr.mxu0 0.0
      %1417 = vmatpush1.msra.mxu0 0.0
      %1418 = vmatprep.subr.mxu0 0.0
      %1419 = vmatpush1.msra.mxu0 0.0
      %1420 = vmatprep.subr.mxu0 0.0
      %1421 = vmatpush1.msra.mxu0 0.0
      %1422 = vmatprep.subr.mxu0 0.0
      %1423 = vmatpush1.msra.mxu0 0.0
      %1424 = vmatprep.subr.mxu0 0.0
      %1425 = vmatpush1.msra.mxu0 0.0
      %1426 = vmatprep.subr.mxu0 0.0
      %1427 = vmatpush1.msra.mxu0 0.0
      %1428 = vmatprep.subr.mxu0 0.0
      %1429 = vmatpush1.msra.mxu0 0.0
      %1430 = vmatprep.subr.mxu0 0.0
      %1431 = vmatpush1.msra.mxu0 0.0
      %1432 = vmatprep.subr.mxu0 0.0
      %1433 = vmatpush1.msra.mxu0 0.0
      %1434 = vmatprep.subr.mxu0 0.0
      %1435 = vmatpush1.msra.mxu0 0.0
      %1436 = vmatprep.subr.mxu0 0.0
      %1437 = vmatpush1.msra.mxu0 0.0
      %1438 = vmatprep.subr.mxu0 0.0
      %1439 = vmatpush1.msra.mxu0 0.0
      %1440 = vmatprep.subr.mxu0 0.0
      %1441 = vmatpush1.msra.mxu0 0.0
      %1442 = vmatprep.subr.mxu0 0.0
      %1443 = vmatpush1.msra.mxu0 0.0
      %1444 = vmatprep.subr.mxu0 0.0
      %1445 = vmatpush1.msra.mxu0 0.0
      %1446 = vmatprep.subr.mxu0 0.0
      %1447 = vmatpush1.msra.mxu0 0.0
      %1448 = vmatprep.subr.mxu0 0.0
      %1449 = vmatpush1.msra.mxu0 0.0
      %1450 = vmatprep.subr.mxu0 0.0
      %1451 = vmatpush1.msra.mxu0 0.0
      %1452 = vmatprep.mubr.f32.mxu0 0.0
      %1453 = vmatmul.mubr.f32.gmra.mrb[0].mxu0 %v1386
      %v1454 = vpop.f32.mrb[0].mxu0
      %v1455 = vadd.f32 0.0, %v1454
      %v1456 = vpop.f32.mrb[0].mxu0
      %1457 = vdwg.mxu0
      %v1458 = vrcp.pop %v1381
      %v1459 = vmul.f32 %v1455, %v1458
      %1461 = vrot.lane.b32.xlu0 %v1459, 16
      %v1462 = vpop.permute.xlu0 %1461
      %vm1464 = vcmask 195712
      %1465 = vst.msk [vmem:[#allocation2] sm:$0xff] %vm1464, %v1462
      %1466 = vrot.lane.b32.xlu0 %v894, 104
      %v1467 = vpop.permute.xlu0 %1466
      %1468 = vrot.lane.b32.xlu0 %v947, 104
      %v1469 = vpop.permute.xlu0 %1468
      %v1470 = vsel %vm953, %v1467, 0
      %v1472 = vsel %vm953, %v1469, 0
      %1474 = vmatprep.subr.mxu0 0.0
      %1475 = vmatpush1.xpose.msra.mxu0 %v1472
      %1476 = vmatprep.subr.mxu0 0.0
      %1477 = vmatpush1.xpose.msra.mxu0 0.0
      %1478 = vmatprep.subr.mxu0 0.0
      %1479 = vmatpush1.xpose.msra.mxu0 0.0
      %1480 = vmatprep.subr.mxu0 0.0
      %1481 = vmatpush1.xpose.msra.mxu0 0.0
      %1482 = vmatprep.subr.mxu0 0.0
      %1483 = vmatpush1.xpose.msra.mxu0 0.0
      %1484 = vmatprep.subr.mxu0 0.0
      %1485 = vmatpush1.xpose.msra.mxu0 0.0
      %1486 = vmatprep.subr.mxu0 0.0
      %1487 = vmatpush1.xpose.msra.mxu0 0.0
      %1488 = vmatprep.subr.mxu0 0.0
      %1489 = vmatpush1.xpose.msra.mxu0 0.0
      %1490 = vmatprep.subr.mxu0 0.0
      %1491 = vmatpush1.xpose.msra.mxu0 0.0
      %1492 = vmatprep.subr.mxu0 0.0
      %1493 = vmatpush1.xpose.msra.mxu0 0.0
      %1494 = vmatprep.subr.mxu0 0.0
      %1495 = vmatpush1.xpose.msra.mxu0 0.0
      %1496 = vmatprep.subr.mxu0 0.0
      %1497 = vmatpush1.xpose.msra.mxu0 0.0
      %1498 = vmatprep.subr.mxu0 0.0
      %1499 = vmatpush1.xpose.msra.mxu0 0.0
      %1500 = vmatprep.subr.mxu0 0.0
      %1501 = vmatpush1.xpose.msra.mxu0 0.0
      %1502 = vmatprep.subr.mxu0 0.0
      %1503 = vmatpush1.xpose.msra.mxu0 0.0
      %1504 = vmatprep.subr.mxu0 0.0
      %1505 = vmatpush1.xpose.msra.mxu0 0.0
      %1506 = vmatprep.subr.mxu0 0.0
      %1507 = vmatpush1.xpose.msra.mxu0 0.0
      %1508 = vmatprep.subr.mxu0 0.0
      %1509 = vmatpush1.xpose.msra.mxu0 0.0
      %1510 = vmatprep.subr.mxu0 0.0
      %1511 = vmatpush1.xpose.msra.mxu0 0.0
      %1512 = vmatprep.subr.mxu0 0.0
      %1513 = vmatpush1.xpose.msra.mxu0 0.0
      %1514 = vmatprep.subr.mxu0 0.0
      %1515 = vmatpush1.xpose.msra.mxu0 0.0
      %1516 = vmatprep.subr.mxu0 0.0
      %1517 = vmatpush1.xpose.msra.mxu0 0.0
      %1518 = vmatprep.subr.mxu0 0.0
      %1519 = vmatpush1.xpose.msra.mxu0 0.0
      %1520 = vmatprep.subr.mxu0 0.0
      %1521 = vmatpush1.xpose.msra.mxu0 0.0
      %1522 = vmatprep.subr.mxu0 0.0
      %1523 = vmatpush1.xpose.msra.mxu0 0.0
      %1524 = vmatprep.subr.mxu0 0.0
      %1525 = vmatpush1.xpose.msra.mxu0 0.0
      %1526 = vmatprep.subr.mxu0 0.0
      %1527 = vmatpush1.xpose.msra.mxu0 0.0
      %1528 = vmatprep.subr.mxu0 0.0
      %1529 = vmatpush1.xpose.msra.mxu0 0.0
      %1530 = vmatprep.subr.mxu0 0.0
      %1531 = vmatpush1.xpose.msra.mxu0 0.0
      %1532 = vmatprep.subr.mxu0 0.0
      %1533 = vmatpush1.xpose.msra.mxu0 0.0
      %1534 = vmatprep.subr.mxu0 0.0
      %1535 = vmatpush1.xpose.msra.mxu0 0.0
      %1536 = vmatprep.subr.mxu0 0.0
      %1537 = vmatpush1.xpose.msra.mxu0 0.0
      %1538 = vmatprep.mubr.f32.mxu0 0.0
      %1539 = vmatmul.mubr.f32.gmra.mrb[0].mxu0 %v1470
      %v1540 = vpop.f32.mrb[0].mxu0
      %v1541 = vadd.f32 0.0, %v1540
      %v1542 = vpop.f32.mrb[0].mxu0
      %1543 = vdwg.mxu0
      %v1544 = vmul.f32 %v1541, 0.35355338
      %v1545 = vadd.f32 %v1544, %v952
      %v1546 = vsel %vm953, %v1545, -inf
      %1547 = vmax.xlane.f32.xlu0 %v1546
      %v1548 = vpop.xlane.xlu0 %1547
      %v1549 = vsub.f32 %v1545, %v1548
      %v1550 = vmul.f32 %v1549, 1.442695
      %v1551 = vpow.pop %v1550
      %v1552 = vsel %vm953, %v1551, 0.0
      %1553 = vadd.xlane.f32.xlu0 %v1552
      %v1554 = vpop.xlane.xlu0 %1553
      %1555 = vrot.lane.b32.xlu0 %v947, 72
      %v1556 = vpop.permute.xlu0 %1555
      %v1559 = vsel %vm953, %v1551, 0
      %1561 = vmatprep.subr.mxu0 0.0
      %1562 = vmatpush1.msra.mxu0 %v1556
      %1563 = vmatprep.subr.mxu0 0.0
      %1564 = vmatpush1.msra.mxu0 0.0
      %1565 = vmatprep.subr.mxu0 0.0
      %1566 = vmatpush1.msra.mxu0 0.0
      %1567 = vmatprep.subr.mxu0 0.0
      %1568 = vmatpush1.msra.mxu0 0.0
      %1569 = vmatprep.subr.mxu0 0.0
      %1570 = vmatpush1.msra.mxu0 0.0
      %1571 = vmatprep.subr.mxu0 0.0
      %1572 = vmatpush1.msra.mxu0 0.0
      %1573 = vmatprep.subr.mxu0 0.0
      %1574 = vmatpush1.msra.mxu0 0.0
      %1575 = vmatprep.subr.mxu0 0.0
      %1576 = vmatpush1.msra.mxu0 0.0
      %1577 = vmatprep.subr.mxu0 0.0
      %1578 = vmatpush1.msra.mxu0 0.0
      %1579 = vmatprep.subr.mxu0 0.0
      %1580 = vmatpush1.msra.mxu0 0.0
      %1581 = vmatprep.subr.mxu0 0.0
      %1582 = vmatpush1.msra.mxu0 0.0
      %1583 = vmatprep.subr.mxu0 0.0
      %1584 = vmatpush1.msra.mxu0 0.0
      %1585 = vmatprep.subr.mxu0 0.0
      %1586 = vmatpush1.msra.mxu0 0.0
      %1587 = vmatprep.subr.mxu0 0.0
      %1588 = vmatpush1.msra.mxu0 0.0
      %1589 = vmatprep.subr.mxu0 0.0
      %1590 = vmatpush1.msra.mxu0 0.0
      %1591 = vmatprep.subr.mxu0 0.0
      %1592 = vmatpush1.msra.mxu0 0.0
      %1593 = vmatprep.subr.mxu0 0.0
      %1594 = vmatpush1.msra.mxu0 0.0
      %1595 = vmatprep.subr.mxu0 0.0
      %1596 = vmatpush1.msra.mxu0 0.0
      %1597 = vmatprep.subr.mxu0 0.0
      %1598 = vmatpush1.msra.mxu0 0.0
      %1599 = vmatprep.subr.mxu0 0.0
      %1600 = vmatpush1.msra.mxu0 0.0
      %1601 = vmatprep.subr.mxu0 0.0
      %1602 = vmatpush1.msra.mxu0 0.0
      %1603 = vmatprep.subr.mxu0 0.0
      %1604 = vmatpush1.msra.mxu0 0.0
      %1605 = vmatprep.subr.mxu0 0.0
      %1606 = vmatpush1.msra.mxu0 0.0
      %1607 = vmatprep.subr.mxu0 0.0
      %1608 = vmatpush1.msra.mxu0 0.0
      %1609 = vmatprep.subr.mxu0 0.0
      %1610 = vmatpush1.msra.mxu0 0.0
      %1611 = vmatprep.subr.mxu0 0.0
      %1612 = vmatpush1.msra.mxu0 0.0
      %1613 = vmatprep.subr.mxu0 0.0
      %1614 = vmatpush1.msra.mxu0 0.0
      %1615 = vmatprep.subr.mxu0 0.0
      %1616 = vmatpush1.msra.mxu0 0.0
      %1617 = vmatprep.subr.mxu0 0.0
      %1618 = vmatpush1.msra.mxu0 0.0
      %1619 = vmatprep.subr.mxu0 0.0
      %1620 = vmatpush1.msra.mxu0 0.0
      %1621 = vmatprep.subr.mxu0 0.0
      %1622 = vmatpush1.msra.mxu0 0.0
      %1623 = vmatprep.subr.mxu0 0.0
      %1624 = vmatpush1.msra.mxu0 0.0
      %1625 = vmatprep.mubr.f32.mxu0 0.0
      %1626 = vmatmul.mubr.f32.gmra.mrb[0].mxu0 %v1559
      %v1627 = vpop.f32.mrb[0].mxu0
      %v1628 = vadd.f32 0.0, %v1627
      %v1629 = vpop.f32.mrb[0].mxu0
      %1630 = vdwg.mxu0
      %v1631 = vrcp.pop %v1554
      %v1632 = vmul.f32 %v1628, %v1631
      %1634 = vrot.lane.b32.xlu0 %v1632, 24
      %v1635 = vpop.permute.xlu0 %1634
      %vm1637 = vcmask 261312
      %1638 = vst.msk [vmem:[#allocation2] sm:$0xff] %vm1637, %v1635
      %v1639 = vld [vmem:[#allocation2] sm:$0xff]
      %v1640 = vld [vmem:[%s6] sm:$0xff]
      %v1641 = vld [vmem:[%s6 + $0x8] sm:$0xff]
      %v1642 = vld [vmem:[%s6 + $0x10] sm:$0xff]
      %v1643 = vld [vmem:[%s6 + $0x18] sm:$0xff]
      %v1644 = vpack.c.bf16 %v1639, %v1639
      %v1645 = vpack.c.bf16 %v1641, %v1640
      %v1646 = vpack.c.bf16 %v1643, %v1642
      %v1647 = vld [vmem:[%s9] sm:$0x1]
      %v1649 = vlaneseq
      %v1650 = vshrl.u32 %v1649, 7
      %v1651 = vsub.s32 0, %v1650
      %v1652 = vrot.slane %v1647, %v1651
      %v1655 = vsel %vm855, %v1644, 0
      %1657 = vmatprep.subr.bf16.mxu0 0
      %1658 = vmatpush1.bf16.msra.mxu0 %v1645
      %1659 = vmatprep.subr.bf16.mxu0 0
      %1660 = vmatpush1.bf16.msra.mxu0 %v1646
      %1661 = vmatprep.subr.bf16.mxu0 0
      %1662 = vmatpush1.bf16.msra.mxu0 0
      %1663 = vmatprep.subr.bf16.mxu0 0
      %1664 = vmatpush1.bf16.msra.mxu0 0
      %1665 = vmatprep.subr.bf16.mxu0 0
      %1666 = vmatpush1.bf16.msra.mxu0 0
      %1667 = vmatprep.subr.bf16.mxu0 0
      %1668 = vmatpush1.bf16.msra.mxu0 0
      %1669 = vmatprep.subr.bf16.mxu0 0
      %1670 = vmatpush1.bf16.msra.mxu0 0
      %1671 = vmatprep.subr.bf16.mxu0 0
      %1672 = vmatpush1.bf16.msra.mxu0 0
      %1673 = vmatprep.subr.bf16.mxu0 0
      %1674 = vmatpush1.bf16.msra.mxu0 0
      %1675 = vmatprep.subr.bf16.mxu0 0
      %1676 = vmatpush1.bf16.msra.mxu0 0
      %1677 = vmatprep.subr.bf16.mxu0 0
      %1678 = vmatpush1.bf16.msra.mxu0 0
      %1679 = vmatprep.subr.bf16.mxu0 0
      %1680 = vmatpush1.bf16.msra.mxu0 0
      %1681 = vmatprep.subr.bf16.mxu0 0
      %1682 = vmatpush1.bf16.msra.mxu0 0
      %1683 = vmatprep.subr.bf16.mxu0 0
      %1684 = vmatpush1.bf16.msra.mxu0 0
      %1685 = vmatprep.subr.bf16.mxu0 0
      %1686 = vmatpush1.bf16.msra.mxu0 0
      %1687 = vmatprep.subr.bf16.mxu0 0
      %1688 = vmatpush1.bf16.msra.mxu0 0
      %1689 = vmatprep.mubr.bf16.mxu0 0
      %1690 = vmatmul.mubr.bf16.gmra.mrb[0].mxu0 %v1655
      %v1691 = vpop.f32.mrb[0].mxu0
      %v1692 = vadd.f32 %v1652, %v1691
      %v1693 = vpop.f32.mrb[0].mxu0
      %v1694 = vpop.f32.mrb[0].mxu0
      %v1695 = vpop.f32.mrb[0].mxu0
      %1696 = vdwg.mxu0
      %v1697 = vadd.f32 %v1692, %v839
      %v1698 = vld [vmem:[%s10] sm:$0x1]
      %v1699 = vld [vmem:[%s11] sm:$0x1]
      %v1700 = vsel %vm855, %v1697, 0.0
      %1701 = vadd.xlane.f32.xlu0 %v1700
      %v1702 = vpop.xlane.xlu0 %1701
      %v1703 = vrcp.pop 32.0
      %v1704 = vmul.f32 %v1702, %v1703
      %v1705 = vsub.f32 %v1697, %v1704
      %v1706 = vmul.f32 %v1705, %v1705
      %v1707 = vsel %vm855, %v1706, 0.0
      %1708 = vadd.xlane.f32.xlu0 %v1707
      %v1709 = vpop.xlane.xlu0 %1708
      %v1710 = vmul.f32 %v1709, %v1703
      %v1711 = vadd.f32 %v1710, 1e-05
      %v1712 = vrsqrt.pop %v1711
      %v1713 = vmul.f32 %v1705, %v1712
      %v1715 = vlaneseq
      %v1716 = vshrl.u32 %v1715, 7
      %v1717 = vsub.s32 0, %v1716
      %v1718 = vrot.slane %v1698, %v1717
      %v1720 = vmul.f32 %v1713, %v1718
      %v1722 = vlaneseq
      %v1723 = vshrl.u32 %v1722, 7
      %v1724 = vsub.s32 0, %v1723
      %v1725 = vrot.slane %v1699, %v1724
      %v1727 = vadd.f32 %v1720, %v1725
      %v1728 = vld [vmem:[%s12] sm:$0xff]
      %v1729 = vld [vmem:[%s12 + $0x8] sm:$0xff]
      %v1730 = vld [vmem:[%s12 + $0x10] sm:$0xff]
      %v1731 = vld [vmem:[%s12 + $0x18] sm:$0xff]
      %v1732 = vpack.c.bf16 %v1727, %v1727
      %v1733 = vpack.c.bf16 %v1729, %v1728
      %v1734 = vpack.c.bf16 %v1731, %v1730
      %v1735 = vld [vmem:[%s15] sm:$0x1]
      %v1737 = vlaneseq
      %v1738 = vshrl.u32 %v1737, 7
      %v1739 = vsub.s32 0, %v1738
      %v1740 = vrot.slane %v1735, %v1739
      %v1743 = vsel %vm855, %v1732, 0
      %1745 = vmatprep.subr.bf16.mxu0 0
      %1746 = vmatpush1.bf16.msra.mxu0 %v1733
      %1747 = vmatprep.subr.bf16.mxu0 0
      %1748 = vmatpush1.bf16.msra.mxu0 %v1734
      %1749 = vmatprep.subr.bf16.mxu0 0
      %1750 = vmatpush1.bf16.msra.mxu0 0
      %1751 = vmatprep.subr.bf16.mxu0 0
      %1752 = vmatpush1.bf16.msra.mxu0 0
      %1753 = vmatprep.subr.bf16.mxu0 0
      %1754 = vmatpush1.bf16.msra.mxu0 0
      %1755 = vmatprep.subr.bf16.mxu0 0
      %1756 = vmatpush1.bf16.msra.mxu0 0
      %1757 = vmatprep.subr.bf16.mxu0 0
      %1758 = vmatpush1.bf16.msra.mxu0 0
      %1759 = vmatprep.subr.bf16.mxu0 0
      %1760 = vmatpush1.bf16.msra.mxu0 0
      %1761 = vmatprep.subr.bf16.mxu0 0
      %1762 = vmatpush1.bf16.msra.mxu0 0
      %1763 = vmatprep.subr.bf16.mxu0 0
      %1764 = vmatpush1.bf16.msra.mxu0 0
      %1765 = vmatprep.subr.bf16.mxu0 0
      %1766 = vmatpush1.bf16.msra.mxu0 0
      %1767 = vmatprep.subr.bf16.mxu0 0
      %1768 = vmatpush1.bf16.msra.mxu0 0
      %1769 = vmatprep.subr.bf16.mxu0 0
      %1770 = vmatpush1.bf16.msra.mxu0 0
      %1771 = vmatprep.subr.bf16.mxu0 0
      %1772 = vmatpush1.bf16.msra.mxu0 0
      %1773 = vmatprep.subr.bf16.mxu0 0
      %1774 = vmatpush1.bf16.msra.mxu0 0
      %1775 = vmatprep.subr.bf16.mxu0 0
      %1776 = vmatpush1.bf16.msra.mxu0 0
      %1777 = vmatprep.mubr.bf16.mxu0 0
      %1778 = vmatmul.mubr.bf16.gmra.mrb[0].mxu0 %v1743
      %v1779 = vpop.f32.mrb[0].mxu0
      %v1780 = vadd.f32 %v1740, %v1779
      %v1781 = vpop.f32.mrb[0].mxu0
      %v1782 = vpop.f32.mrb[0].mxu0
      %v1783 = vpop.f32.mrb[0].mxu0
      %1784 = vdwg.mxu0
      %v1785 = vld [vmem:[%s13] sm:$0xff]
      %v1786 = vld [vmem:[%s13 + $0x8] sm:$0xff]
      %v1787 = vld [vmem:[%s13 + $0x10] sm:$0xff]
      %v1788 = vld [vmem:[%s13 + $0x18] sm:$0xff]
      %v1789 = vpack.c.bf16 %v840, %v840
      %v1790 = vpack.c.bf16 %v1786, %v1785
      %v1791 = vpack.c.bf16 %v1788, %v1787
      %v1792 = vld [vmem:[%s16] sm:$0x1]
      %v1794 = vlaneseq
      %v1795 = vshrl.u32 %v1794, 7
      %v1796 = vsub.s32 0, %v1795
      %v1797 = vrot.slane %v1792, %v1796
      %v1800 = vsel %vm855, %v1789, 0
      %1802 = vmatprep.subr.bf16.mxu0 0
      %1803 = vmatpush1.bf16.msra.mxu0 %v1790
      %1804 = vmatprep.subr.bf16.mxu0 0
      %1805 = vmatpush1.bf16.msra.mxu0 %v1791
      %1806 = vmatprep.subr.bf16.mxu0 0
      %1807 = vmatpush1.bf16.msra.mxu0 0
      %1808 = vmatprep.subr.bf16.mxu0 0
      %1809 = vmatpush1.bf16.msra.mxu0 0
      %1810 = vmatprep.subr.bf16.mxu0 0
      %1811 = vmatpush1.bf16.msra.mxu0 0
      %1812 = vmatprep.subr.bf16.mxu0 0
      %1813 = vmatpush1.bf16.msra.mxu0 0
      %1814 = vmatprep.subr.bf16.mxu0 0
      %1815 = vmatpush1.bf16.msra.mxu0 0
      %1816 = vmatprep.subr.bf16.mxu0 0
      %1817 = vmatpush1.bf16.msra.mxu0 0
      %1818 = vmatprep.subr.bf16.mxu0 0
      %1819 = vmatpush1.bf16.msra.mxu0 0
      %1820 = vmatprep.subr.bf16.mxu0 0
      %1821 = vmatpush1.bf16.msra.mxu0 0
      %1822 = vmatprep.subr.bf16.mxu0 0
      %1823 = vmatpush1.bf16.msra.mxu0 0
      %1824 = vmatprep.subr.bf16.mxu0 0
      %1825 = vmatpush1.bf16.msra.mxu0 0
      %1826 = vmatprep.subr.bf16.mxu0 0
      %1827 = vmatpush1.bf16.msra.mxu0 0
      %1828 = vmatprep.subr.bf16.mxu0 0
      %1829 = vmatpush1.bf16.msra.mxu0 0
      %1830 = vmatprep.subr.bf16.mxu0 0
      %1831 = vmatpush1.bf16.msra.mxu0 0
      %1832 = vmatprep.subr.bf16.mxu0 0
      %1833 = vmatpush1.bf16.msra.mxu0 0
      %1834 = vmatprep.mubr.bf16.mxu0 0
      %1835 = vmatmul.mubr.bf16.gmra.mrb[0].mxu0 %v1800
      %v1836 = vpop.f32.mrb[0].mxu0
      %v1837 = vadd.f32 %v1797, %v1836
      %v1838 = vpop.f32.mrb[0].mxu0
      %v1839 = vpop.f32.mrb[0].mxu0
      %v1840 = vpop.f32.mrb[0].mxu0
      %1841 = vdwg.mxu0
      %v1842 = vld [vmem:[%s833] sm:$0xff]
      %v1844 = vsel %vm953, %v1780, 0
      %v1847 = vsel %vm953, %v1837, 0
      %1849 = vmatprep.subr.mxu0 0.0
      %1850 = vmatpush1.xpose.msra.mxu0 %v1847
      %1851 = vmatprep.subr.mxu0 0.0
      %1852 = vmatpush1.xpose.msra.mxu0 0.0
      %1853 = vmatprep.subr.mxu0 0.0
      %1854 = vmatpush1.xpose.msra.mxu0 0.0
      %1855 = vmatprep.subr.mxu0 0.0
      %1856 = vmatpush1.xpose.msra.mxu0 0.0
      %1857 = vmatprep.subr.mxu0 0.0
      %1858 = vmatpush1.xpose.msra.mxu0 0.0
      %1859 = vmatprep.subr.mxu0 0.0
      %1860 = vmatpush1.xpose.msra.mxu0 0.0
      %1861 = vmatprep.subr.mxu0 0.0
      %1862 = vmatpush1.xpose.msra.mxu0 0.0
      %1863 = vmatprep.subr.mxu0 0.0
      %1864 = vmatpush1.xpose.msra.mxu0 0.0
      %1865 = vmatprep.subr.mxu0 0.0
      %1866 = vmatpush1.xpose.msra.mxu0 0.0
      %1867 = vmatprep.subr.mxu0 0.0
      %1868 = vmatpush1.xpose.msra.mxu0 0.0
      %1869 = vmatprep.subr.mxu0 0.0
      %1870 = vmatpush1.xpose.msra.mxu0 0.0
      %1871 = vmatprep.subr.mxu0 0.0
      %1872 = vmatpush1.xpose.msra.mxu0 0.0
      %1873 = vmatprep.subr.mxu0 0.0
      %1874 = vmatpush1.xpose.msra.mxu0 0.0
      %1875 = vmatprep.subr.mxu0 0.0
      %1876 = vmatpush1.xpose.msra.mxu0 0.0
      %1877 = vmatprep.subr.mxu0 0.0
      %1878 = vmatpush1.xpose.msra.mxu0 0.0
      %1879 = vmatprep.subr.mxu0 0.0
      %1880 = vmatpush1.xpose.msra.mxu0 0.0
      %1881 = vmatprep.subr.mxu0 0.0
      %1882 = vmatpush1.xpose.msra.mxu0 0.0
      %1883 = vmatprep.subr.mxu0 0.0
      %1884 = vmatpush1.xpose.msra.mxu0 0.0
      %1885 = vmatprep.subr.mxu0 0.0
      %1886 = vmatpush1.xpose.msra.mxu0 0.0
      %1887 = vmatprep.subr.mxu0 0.0
      %1888 = vmatpush1.xpose.msra.mxu0 0.0
      %1889 = vmatprep.subr.mxu0 0.0
      %1890 = vmatpush1.xpose.msra.mxu0 0.0
      %1891 = vmatprep.subr.mxu0 0.0
      %1892 = vmatpush1.xpose.msra.mxu0 0.0
      %1893 = vmatprep.subr.mxu0 0.0
      %1894 = vmatpush1.xpose.msra.mxu0 0.0
      %1895 = vmatprep.subr.mxu0 0.0
      %1896 = vmatpush1.xpose.msra.mxu0 0.0
      %1897 = vmatprep.subr.mxu0 0.0
      %1898 = vmatpush1.xpose.msra.mxu0 0.0
      %1899 = vmatprep.subr.mxu0 0.0
      %1900 = vmatpush1.xpose.msra.mxu0 0.0
      %1901 = vmatprep.subr.mxu0 0.0
      %1902 = vmatpush1.xpose.msra.mxu0 0.0
      %1903 = vmatprep.subr.mxu0 0.0
      %1904 = vmatpush1.xpose.msra.mxu0 0.0
      %1905 = vmatprep.subr.mxu0 0.0
      %1906 = vmatpush1.xpose.msra.mxu0 0.0
      %1907 = vmatprep.subr.mxu0 0.0
      %1908 = vmatpush1.xpose.msra.mxu0 0.0
      %1909 = vmatprep.subr.mxu0 0.0
      %1910 = vmatpush1.xpose.msra.mxu0 0.0
      %1911 = vmatprep.subr.mxu0 0.0
      %1912 = vmatpush1.xpose.msra.mxu0 0.0
      %1913 = vmatprep.mubr.f32.mxu0 0.0
      %1914 = vmatmul.mubr.f32.gmra.mrb[0].mxu0 %v1844
      %v1915 = vpop.f32.mrb[0].mxu0
      %v1916 = vadd.f32 0.0, %v1915
      %v1917 = vpop.f32.mrb[0].mxu0
      %1918 = vdwg.mxu0
      %v1919 = vmul.f32 %v1916, 0.35355338
      %v1920 = vadd.f32 %v1919, %v1842
      %v1921 = vsel %vm953, %v1920, -inf
      %1922 = vmax.xlane.f32.xlu0 %v1921
      %v1923 = vpop.xlane.xlu0 %1922
      %v1924 = vsub.f32 %v1920, %v1923
      %v1925 = vmul.f32 %v1924, 1.442695
      %v1926 = vpow.pop %v1925
      %v1927 = vsel %vm953, %v1926, 0.0
      %1928 = vadd.xlane.f32.xlu0 %v1927
      %v1929 = vpop.xlane.xlu0 %1928
      %1930 = vrot.lane.b32.xlu0 %v1837, 96
      %v1931 = vpop.permute.xlu0 %1930
      %v1934 = vsel %vm953, %v1926, 0
      %1936 = vmatprep.subr.mxu0 0.0
      %1937 = vmatpush1.msra.mxu0 %v1931
      %1938 = vmatprep.subr.mxu0 0.0
      %1939 = vmatpush1.msra.mxu0 0.0
      %1940 = vmatprep.subr.mxu0 0.0
      %1941 = vmatpush1.msra.mxu0 0.0
      %1942 = vmatprep.subr.mxu0 0.0
      %1943 = vmatpush1.msra.mxu0 0.0
      %1944 = vmatprep.subr.mxu0 0.0
      %1945 = vmatpush1.msra.mxu0 0.0
      %1946 = vmatprep.subr.mxu0 0.0
      %1947 = vmatpush1.msra.mxu0 0.0
      %1948 = vmatprep.subr.mxu0 0.0
      %1949 = vmatpush1.msra.mxu0 0.0
      %1950 = vmatprep.subr.mxu0 0.0
      %1951 = vmatpush1.msra.mxu0 0.0
      %1952 = vmatprep.subr.mxu0 0.0
      %1953 = vmatpush1.msra.mxu0 0.0
      %1954 = vmatprep.subr.mxu0 0.0
      %1955 = vmatpush1.msra.mxu0 0.0
      %1956 = vmatprep.subr.mxu0 0.0
      %1957 = vmatpush1.msra.mxu0 0.0
      %1958 = vmatprep.subr.mxu0 0.0
      %1959 = vmatpush1.msra.mxu0 0.0
      %1960 = vmatprep.subr.mxu0 0.0
      %1961 = vmatpush1.msra.mxu0 0.0
      %1962 = vmatprep.subr.mxu0 0.0
      %1963 = vmatpush1.msra.mxu0 0.0
      %1964 = vmatprep.subr.mxu0 0.0
      %1965 = vmatpush1.msra.mxu0 0.0
      %1966 = vmatprep.subr.mxu0 0.0
      %1967 = vmatpush1.msra.mxu0 0.0
      %1968 = vmatprep.subr.mxu0 0.0
      %1969 = vmatpush1.msra.mxu0 0.0
      %1970 = vmatprep.subr.mxu0 0.0
      %1971 = vmatpush1.msra.mxu0 0.0
      %1972 = vmatprep.subr.mxu0 0.0
      %1973 = vmatpush1.msra.mxu0 0.0
      %1974 = vmatprep.subr.mxu0 0.0
      %1975 = vmatpush1.msra.mxu0 0.0
      %1976 = vmatprep.subr.mxu0 0.0
      %1977 = vmatpush1.msra.mxu0 0.0
      %1978 = vmatprep.subr.mxu0 0.0
      %1979 = vmatpush1.msra.mxu0 0.0
      %1980 = vmatprep.subr.mxu0 0.0
      %1981 = vmatpush1.msra.mxu0 0.0
      %1982 = vmatprep.subr.mxu0 0.0
      %1983 = vmatpush1.msra.mxu0 0.0
      %1984 = vmatprep.subr.mxu0 0.0
      %1985 = vmatpush1.msra.mxu0 0.0
      %1986 = vmatprep.subr.mxu0 0.0
      %1987 = vmatpush1.msra.mxu0 0.0
      %1988 = vmatprep.subr.mxu0 0.0
      %1989 = vmatpush1.msra.mxu0 0.0
      %1990 = vmatprep.subr.mxu0 0.0
      %1991 = vmatpush1.msra.mxu0 0.0
      %1992 = vmatprep.subr.mxu0 0.0
      %1993 = vmatpush1.msra.mxu0 0.0
      %1994 = vmatprep.subr.mxu0 0.0
      %1995 = vmatpush1.msra.mxu0 0.0
      %1996 = vmatprep.subr.mxu0 0.0
      %1997 = vmatpush1.msra.mxu0 0.0
      %1998 = vmatprep.subr.mxu0 0.0
      %1999 = vmatpush1.msra.mxu0 0.0
      %2000 = vmatprep.mubr.f32.mxu0 0.0
      %2001 = vmatmul.mubr.f32.gmra.mrb[0].mxu0 %v1934
      %v2002 = vpop.f32.mrb[0].mxu0
      %v2003 = vadd.f32 0.0, %v2002
      %v2004 = vpop.f32.mrb[0].mxu0
      %2005 = vdwg.mxu0
      %v2006 = vrcp.pop %v1929
      %v2007 = vmul.f32 %v2003, %v2006
      %2008 = vst.msk [vmem:[#allocation2] sm:$0xff] %vm953, %v2007
      %2009 = vrot.lane.b32.xlu0 %v1780, 120
      %v2010 = vpop.permute.xlu0 %2009
      %2011 = vrot.lane.b32.xlu0 %v1837, 120
      %v2012 = vpop.permute.xlu0 %2011
      %v2013 = vsel %vm953, %v2010, 0
      %v2015 = vsel %vm953, %v2012, 0
      %2017 = vmatprep.subr.mxu0 0.0
      %2018 = vmatpush1.xpose.msra.mxu0 %v2015
      %2019 = vmatprep.subr.mxu0 0.0
      %2020 = vmatpush1.xpose.msra.mxu0 0.0
      %2021 = vmatprep.subr.mxu0 0.0
      %2022 = vmatpush1.xpose.msra.mxu0 0.0
      %2023 = vmatprep.subr.mxu0 0.0
      %2024 = vmatpush1.xpose.msra.mxu0 0.0
      %2025 = vmatprep.subr.mxu0 0.0
      %2026 = vmatpush1.xpose.msra.mxu0 0.0
      %2027 = vmatprep.subr.mxu0 0.0
      %2028 = vmatpush1.xpose.msra.mxu0 0.0
      %2029 = vmatprep.subr.mxu0 0.0
      %2030 = vmatpush1.xpose.msra.mxu0 0.0
      %2031 = vmatprep.subr.mxu0 0.0
      %2032 = vmatpush1.xpose.msra.mxu0 0.0
      %2033 = vmatprep.subr.mxu0 0.0
      %2034 = vmatpush1.xpose.msra.mxu0 0.0
      %2035 = vmatprep.subr.mxu0 0.0
      %2036 = vmatpush1.xpose.msra.mxu0 0.0
      %2037 = vmatprep.subr.mxu0 0.0
      %2038 = vmatpush1.xpose.msra.mxu0 0.0
      %2039 = vmatprep.subr.mxu0 0.0
      %2040 = vmatpush1.xpose.msra.mxu0 0.0
      %2041 = vmatprep.subr.mxu0 0.0
      %2042 = vmatpush1.xpose.msra.mxu0 0.0
      %2043 = vmatprep.subr.mxu0 0.0
      %2044 = vmatpush1.xpose.msra.mxu0 0.0
      %2045 = vmatprep.subr.mxu0 0.0
      %2046 = vmatpush1.xpose.msra.mxu0 0.0
      %2047 = vmatprep.subr.mxu0 0.0
      %2048 = vmatpush1.xpose.msra.mxu0 0.0
      %2049 = vmatprep.subr.mxu0 0.0
      %2050 = vmatpush1.xpose.msra.mxu0 0.0
      %2051 = vmatprep.subr.mxu0 0.0
      %2052 = vmatpush1.xpose.msra.mxu0 0.0
      %2053 = vmatprep.subr.mxu0 0.0
      %2054 = vmatpush1.xpose.msra.mxu0 0.0
      %2055 = vmatprep.subr.mxu0 0.0
      %2056 = vmatpush1.xpose.msra.mxu0 0.0
      %2057 = vmatprep.subr.mxu0 0.0
      %2058 = vmatpush1.xpose.msra.mxu0 0.0
      %2059 = vmatprep.subr.mxu0 0.0
      %2060 = vmatpush1.xpose.msra.mxu0 0.0
      %2061 = vmatprep.subr.mxu0 0.0
      %2062 = vmatpush1.xpose.msra.mxu0 0.0
      %2063 = vmatprep.subr.mxu0 0.0
      %2064 = vmatpush1.xpose.msra.mxu0 0.0
      %2065 = vmatprep.subr.mxu0 0.0
      %2066 = vmatpush1.xpose.msra.mxu0 0.0
      %2067 = vmatprep.subr.mxu0 0.0
      %2068 = vmatpush1.xpose.msra.mxu0 0.0
      %2069 = vmatprep.subr.mxu0 0.0
      %2070 = vmatpush1.xpose.msra.mxu0 0.0
      %2071 = vmatprep.subr.mxu0 0.0
      %2072 = vmatpush1.xpose.msra.mxu0 0.0
      %2073 = vmatprep.subr.mxu0 0.0
      %2074 = vmatpush1.xpose.msra.mxu0 0.0
      %2075 = vmatprep.subr.mxu0 0.0
      %2076 = vmatpush1.xpose.msra.mxu0 0.0
      %2077 = vmatprep.subr.mxu0 0.0
      %2078 = vmatpush1.xpose.msra.mxu0 0.0
      %2079 = vmatprep.subr.mxu0 0.0
      %2080 = vmatpush1.xpose.msra.mxu0 0.0
      %2081 = vmatprep.mubr.f32.mxu0 0.0
      %2082 = vmatmul.mubr.f32.gmra.mrb[0].mxu0 %v2013
      %v2083 = vpop.f32.mrb[0].mxu0
      %v2084 = vadd.f32 0.0, %v2083
      %v2085 = vpop.f32.mrb[0].mxu0
      %2086 = vdwg.mxu0
      %v2087 = vmul.f32 %v2084, 0.35355338
      %v2088 = vadd.f32 %v2087, %v1842
      %v2089 = vsel %vm953, %v2088, -inf
      %2090 = vmax.xlane.f32.xlu0 %v2089
      %v2091 = vpop.xlane.xlu0 %2090
      %v2092 = vsub.f32 %v2088, %v2091
      %v2093 = vmul.f32 %v2092, 1.442695
      %v2094 = vpow.pop %v2093
      %v2095 = vsel %vm953, %v2094, 0.0
      %2096 = vadd.xlane.f32.xlu0 %v2095
      %v2097 = vpop.xlane.xlu0 %2096
      %2098 = vrot.lane.b32.xlu0 %v1837, 88
      %v2099 = vpop.permute.xlu0 %2098
      %v2102 = vsel %vm953, %v2094, 0
      %2104 = vmatprep.subr.mxu0 0.0
      %2105 = vmatpush1.msra.mxu0 %v2099
      %2106 = vmatprep.subr.mxu0 0.0
      %2107 = vmatpush1.msra.mxu0 0.0
      %2108 = vmatprep.subr.mxu0 0.0
      %2109 = vmatpush1.msra.mxu0 0.0
      %2110 = vmatprep.subr.mxu0 0.0
      %2111 = vmatpush1.msra.mxu0 0.0
      %2112 = vmatprep.subr.mxu0 0.0
      %2113 = vmatpush1.msra.mxu0 0.0
      %2114 = vmatprep.subr.mxu0 0.0
      %2115 = vmatpush1.msra.mxu0 0.0
      %2116 = vmatprep.subr.mxu0 0.0
      %2117 = vmatpush1.msra.mxu0 0.0
      %2118 = vmatprep.subr.mxu0 0.0
      %2119 = vmatpush1.msra.mxu0 0.0
      %2120 = vmatprep.subr.mxu0 0.0
      %2121 = vmatpush1.msra.mxu0 0.0
      %2122 = vmatprep.subr.mxu0 0.0
      %2123 = vmatpush1.msra.mxu0 0.0
      %2124 = vmatprep.subr.mxu0 0.0
      %2125 = vmatpush1.msra.mxu0 0.0
      %2126 = vmatprep.subr.mxu0 0.0
      %2127 = vmatpush1.msra.mxu0 0.0
      %2128 = vmatprep.subr.mxu0 0.0
      %2129 = vmatpush1.msra.mxu0 0.0
      %2130 = vmatprep.subr.mxu0 0.0
      %2131 = vmatpush1.msra.mxu0 0.0
      %2132 = vmatprep.subr.mxu0 0.0
      %2133 = vmatpush1.msra.mxu0 0.0
      %2134 = vmatprep.subr.mxu0 0.0
      %2135 = vmatpush1.msra.mxu0 0.0
      %2136 = vmatprep.subr.mxu0 0.0
      %2137 = vmatpush1.msra.mxu0 0.0
      %2138 = vmatprep.subr.mxu0 0.0
      %2139 = vmatpush1.msra.mxu0 0.0
      %2140 = vmatprep.subr.mxu0 0.0
      %2141 = vmatpush1.msra.mxu0 0.0
      %2142 = vmatprep.subr.mxu0 0.0
      %2143 = vmatpush1.msra.mxu0 0.0
      %2144 = vmatprep.subr.mxu0 0.0
      %2145 = vmatpush1.msra.mxu0 0.0
      %2146 = vmatprep.subr.mxu0 0.0
      %2147 = vmatpush1.msra.mxu0 0.0
      %2148 = vmatprep.subr.mxu0 0.0
      %2149 = vmatpush1.msra.mxu0 0.0
      %2150 = vmatprep.subr.mxu0 0.0
      %2151 = vmatpush1.msra.mxu0 0.0
      %2152 = vmatprep.subr.mxu0 0.0
      %2153 = vmatpush1.msra.mxu0 0.0
      %2154 = vmatprep.subr.mxu0 0.0
      %2155 = vmatpush1.msra.mxu0 0.0
      %2156 = vmatprep.subr.mxu0 0.0
      %2157 = vmatpush1.msra.mxu0 0.0
      %2158 = vmatprep.subr.mxu0 0.0
      %2159 = vmatpush1.msra.mxu0 0.0
      %2160 = vmatprep.subr.mxu0 0.0
      %2161 = vmatpush1.msra.mxu0 0.0
      %2162 = vmatprep.subr.mxu0 0.0
      %2163 = vmatpush1.msra.mxu0 0.0
      %2164 = vmatprep.subr.mxu0 0.0
      %2165 = vmatpush1.msra.mxu0 0.0
      %2166 = vmatprep.subr.mxu0 0.0
      %2167 = vmatpush1.msra.mxu0 0.0
      %2168 = vmatprep.mubr.f32.mxu0 0.0
      %2169 = vmatmul.mubr.f32.gmra.mrb[0].mxu0 %v2102
      %v2170 = vpop.f32.mrb[0].mxu0
      %v2171 = vadd.f32 0.0, %v2170
      %v2172 = vpop.f32.mrb[0].mxu0
      %2173 = vdwg.mxu0
      %v2174 = vrcp.pop %v2097
      %v2175 = vmul.f32 %v2171, %v2174
      %2177 = vrot.lane.b32.xlu0 %v2175, 8
      %v2178 = vpop.permute.xlu0 %2177
      %2180 = vst.msk [vmem:[#allocation2] sm:$0xff] %vm1291, %v2178
      %2181 = vrot.lane.b32.xlu0 %v1780, 112
      %v2182 = vpop.permute.xlu0 %2181
      %2183 = vrot.lane.b32.xlu0 %v1837, 112
      %v2184 = vpop.permute.xlu0 %2183
      %v2185 = vsel %vm953, %v2182, 0
      %v2187 = vsel %vm953, %v2184, 0
      %2189 = vmatprep.subr.mxu0 0.0
      %2190 = vmatpush1.xpose.msra.mxu0 %v2187
      %2191 = vmatprep.subr.mxu0 0.0
      %2192 = vmatpush1.xpose.msra.mxu0 0.0
      %2193 = vmatprep.subr.mxu0 0.0
      %2194 = vmatpush1.xpose.msra.mxu0 0.0
      %2195 = vmatprep.subr.mxu0 0.0
      %2196 = vmatpush1.xpose.msra.mxu0 0.0
      %2197 = vmatprep.subr.mxu0 0.0
      %2198 = vmatpush1.xpose.msra.mxu0 0.0
      %2199 = vmatprep.subr.mxu0 0.0
      %2200 = vmatpush1.xpose.msra.mxu0 0.0
      %2201 = vmatprep.subr.mxu0 0.0
      %2202 = vmatpush1.xpose.msra.mxu0 0.0
      %2203 = vmatprep.subr.mxu0 0.0
      %2204 = vmatpush1.xpose.msra.mxu0 0.0
      %2205 = vmatprep.subr.mxu0 0.0
      %2206 = vmatpush1.xpose.msra.mxu0 0.0
      %2207 = vmatprep.subr.mxu0 0.0
      %2208 = vmatpush1.xpose.msra.mxu0 0.0
      %2209 = vmatprep.subr.mxu0 0.0
      %2210 = vmatpush1.xpose.msra.mxu0 0.0
      %2211 = vmatprep.subr.mxu0 0.0
      %2212 = vmatpush1.xpose.msra.mxu0 0.0
      %2213 = vmatprep.subr.mxu0 0.0
      %2214 = vmatpush1.xpose.msra.mxu0 0.0
      %2215 = vmatprep.subr.mxu0 0.0
      %2216 = vmatpush1.xpose.msra.mxu0 0.0
      %2217 = vmatprep.subr.mxu0 0.0
      %2218 = vmatpush1.xpose.msra.mxu0 0.0
      %2219 = vmatprep.subr.mxu0 0.0
      %2220 = vmatpush1.xpose.msra.mxu0 0.0
      %2221 = vmatprep.subr.mxu0 0.0
      %2222 = vmatpush1.xpose.msra.mxu0 0.0
      %2223 = vmatprep.subr.mxu0 0.0
      %2224 = vmatpush1.xpose.msra.mxu0 0.0
      %2225 = vmatprep.subr.mxu0 0.0
      %2226 = vmatpush1.xpose.msra.mxu0 0.0
      %2227 = vmatprep.subr.mxu0 0.0
      %2228 = vmatpush1.xpose.msra.mxu0 0.0
      %2229 = vmatprep.subr.mxu0 0.0
      %2230 = vmatpush1.xpose.msra.mxu0 0.0
      %2231 = vmatprep.subr.mxu0 0.0
      %2232 = vmatpush1.xpose.msra.mxu0 0.0
      %2233 = vmatprep.subr.mxu0 0.0
      %2234 = vmatpush1.xpose.msra.mxu0 0.0
      %2235 = vmatprep.subr.mxu0 0.0
      %2236 = vmatpush1.xpose.msra.mxu0 0.0
      %2237 = vmatprep.subr.mxu0 0.0
      %2238 = vmatpush1.xpose.msra.mxu0 0.0
      %2239 = vmatprep.subr.mxu0 0.0
      %2240 = vmatpush1.xpose.msra.mxu0 0.0
      %2241 = vmatprep.subr.mxu0 0.0
      %2242 = vmatpush1.xpose.msra.mxu0 0.0
      %2243 = vmatprep.subr.mxu0 0.0
      %2244 = vmatpush1.xpose.msra.mxu0 0.0
      %2245 = vmatprep.subr.mxu0 0.0
      %2246 = vmatpush1.xpose.msra.mxu0 0.0
      %2247 = vmatprep.subr.mxu0 0.0
      %2248 = vmatpush1.xpose.msra.mxu0 0.0
      %2249 = vmatprep.subr.mxu0 0.0
      %2250 = vmatpush1.xpose.msra.mxu0 0.0
      %2251 = vmatprep.subr.mxu0 0.0
      %2252 = vmatpush1.xpose.msra.mxu0 0.0
      %2253 = vmatprep.mubr.f32.mxu0 0.0
      %2254 = vmatmul.mubr.f32.gmra.mrb[0].mxu0 %v2185
      %v2255 = vpop.f32.mrb[0].mxu0
      %v2256 = vadd.f32 0.0, %v2255
      %v2257 = vpop.f32.mrb[0].mxu0
      %2258 = vdwg.mxu0
      %v2259 = vmul.f32 %v2256, 0.35355338
      %v2260 = vadd.f32 %v2259, %v1842
      %v2261 = vsel %vm953, %v2260, -inf
      %2262 = vmax.xlane.f32.xlu0 %v2261
      %v2263 = vpop.xlane.xlu0 %2262
      %v2264 = vsub.f32 %v2260, %v2263
      %v2265 = vmul.f32 %v2264, 1.442695
      %v2266 = vpow.pop %v2265
      %v2267 = vsel %vm953, %v2266, 0.0
      %2268 = vadd.xlane.f32.xlu0 %v2267
      %v2269 = vpop.xlane.xlu0 %2268
      %2270 = vrot.lane.b32.xlu0 %v1837, 80
      %v2271 = vpop.permute.xlu0 %2270
      %v2274 = vsel %vm953, %v2266, 0
      %2276 = vmatprep.subr.mxu0 0.0
      %2277 = vmatpush1.msra.mxu0 %v2271
      %2278 = vmatprep.subr.mxu0 0.0
      %2279 = vmatpush1.msra.mxu0 0.0
      %2280 = vmatprep.subr.mxu0 0.0
      %2281 = vmatpush1.msra.mxu0 0.0
      %2282 = vmatprep.subr.mxu0 0.0
      %2283 = vmatpush1.msra.mxu0 0.0
      %2284 = vmatprep.subr.mxu0 0.0
      %2285 = vmatpush1.msra.mxu0 0.0
      %2286 = vmatprep.subr.mxu0 0.0
      %2287 = vmatpush1.msra.mxu0 0.0
      %2288 = vmatprep.subr.mxu0 0.0
      %2289 = vmatpush1.msra.mxu0 0.0
      %2290 = vmatprep.subr.mxu0 0.0
      %2291 = vmatpush1.msra.mxu0 0.0
      %2292 = vmatprep.subr.mxu0 0.0
      %2293 = vmatpush1.msra.mxu0 0.0
      %2294 = vmatprep.subr.mxu0 0.0
      %2295 = vmatpush1.msra.mxu0 0.0
      %2296 = vmatprep.subr.mxu0 0.0
      %2297 = vmatpush1.msra.mxu0 0.0
      %2298 = vmatprep.subr.mxu0 0.0
      %2299 = vmatpush1.msra.mxu0 0.0
      %2300 = vmatprep.subr.mxu0 0.0
      %2301 = vmatpush1.msra.mxu0 0.0
      %2302 = vmatprep.subr.mxu0 0.0
      %2303 = vmatpush1.msra.mxu0 0.0
      %2304 = vmatprep.subr.mxu0 0.0
      %2305 = vmatpush1.msra.mxu0 0.0
      %2306 = vmatprep.subr.mxu0 0.0
      %2307 = vmatpush1.msra.mxu0 0.0
      %2308 = vmatprep.subr.mxu0 0.0
      %2309 = vmatpush1.msra.mxu0 0.0
      %2310 = vmatprep.subr.mxu0 0.0
      %2311 = vmatpush1.msra.mxu0 0.0
      %2312 = vmatprep.subr.mxu0 0.0
      %2313 = vmatpush1.msra.mxu0 0.0
      %2314 = vmatprep.subr.mxu0 0.0
      %2315 = vmatpush1.msra.mxu0 0.0
      %2316 = vmatprep.subr.mxu0 0.0
      %2317 = vmatpush1.msra.mxu0 0.0
      %2318 = vmatprep.subr.mxu0 0.0
      %2319 = vmatpush1.msra.mxu0 0.0
      %2320 = vmatprep.subr.mxu0 0.0
      %2321 = vmatpush1.msra.mxu0 0.0
      %2322 = vmatprep.subr.mxu0 0.0
      %2323 = vmatpush1.msra.mxu0 0.0
      %2324 = vmatprep.subr.mxu0 0.0
      %2325 = vmatpush1.msra.mxu0 0.0
      %2326 = vmatprep.subr.mxu0 0.0
      %2327 = vmatpush1.msra.mxu0 0.0
      %2328 = vmatprep.subr.mxu0 0.0
      %2329 = vmatpush1.msra.mxu0 0.0
      %2330 = vmatprep.subr.mxu0 0.0
      %2331 = vmatpush1.msra.mxu0 0.0
      %2332 = vmatprep.subr.mxu0 0.0
      %2333 = vmatpush1.msra.mxu0 0.0
      %2334 = vmatprep.subr.mxu0 0.0
      %2335 = vmatpush1.msra.mxu0 0.0
      %2336 = vmatprep.subr.mxu0 0.0
      %2337 = vmatpush1.msra.mxu0 0.0
      %2338 = vmatprep.subr.mxu0 0.0
      %2339 = vmatpush1.msra.mxu0 0.0
      %2340 = vmatprep.mubr.f32.mxu0 0.0
      %2341 = vmatmul.mubr.f32.gmra.mrb[0].mxu0 %v2274
      %v2342 = vpop.f32.mrb[0].mxu0
      %v2343 = vadd.f32 0.0, %v2342
      %v2344 = vpop.f32.mrb[0].mxu0
      %2345 = vdwg.mxu0
      %v2346 = vrcp.pop %v2269
      %v2347 = vmul.f32 %v2343, %v2346
      %2349 = vrot.lane.b32.xlu0 %v2347, 16
      %v2350 = vpop.permute.xlu0 %2349
      %2352 = vst.msk [vmem:[#allocation2] sm:$0xff] %vm1464, %v2350
      %2353 = vrot.lane.b32.xlu0 %v1780, 104
      %v2354 = vpop.permute.xlu0 %2353
      %2355 = vrot.lane.b32.xlu0 %v1837, 104
      %v2356 = vpop.permute.xlu0 %2355
      %v2357 = vsel %vm953, %v2354, 0
      %v2359 = vsel %vm953, %v2356, 0
      %2361 = vmatprep.subr.mxu0 0.0
      %2362 = vmatpush1.xpose.msra.mxu0 %v2359
      %2363 = vmatprep.subr.mxu0 0.0
      %2364 = vmatpush1.xpose.msra.mxu0 0.0
      %2365 = vmatprep.subr.mxu0 0.0
      %2366 = vmatpush1.xpose.msra.mxu0 0.0
      %2367 = vmatprep.subr.mxu0 0.0
      %2368 = vmatpush1.xpose.msra.mxu0 0.0
      %2369 = vmatprep.subr.mxu0 0.0
      %2370 = vmatpush1.xpose.msra.mxu0 0.0
      %2371 = vmatprep.subr.mxu0 0.0
      %2372 = vmatpush1.xpose.msra.mxu0 0.0
      %2373 = vmatprep.subr.mxu0 0.0
      %2374 = vmatpush1.xpose.msra.mxu0 0.0
      %2375 = vmatprep.subr.mxu0 0.0
      %2376 = vmatpush1.xpose.msra.mxu0 0.0
      %2377 = vmatprep.subr.mxu0 0.0
      %2378 = vmatpush1.xpose.msra.mxu0 0.0
      %2379 = vmatprep.subr.mxu0 0.0
      %2380 = vmatpush1.xpose.msra.mxu0 0.0
      %2381 = vmatprep.subr.mxu0 0.0
      %2382 = vmatpush1.xpose.msra.mxu0 0.0
      %2383 = vmatprep.subr.mxu0 0.0
      %2384 = vmatpush1.xpose.msra.mxu0 0.0
      %2385 = vmatprep.subr.mxu0 0.0
      %2386 = vmatpush1.xpose.msra.mxu0 0.0
      %2387 = vmatprep.subr.mxu0 0.0
      %2388 = vmatpush1.xpose.msra.mxu0 0.0
      %2389 = vmatprep.subr.mxu0 0.0
      %2390 = vmatpush1.xpose.msra.mxu0 0.0
      %2391 = vmatprep.subr.mxu0 0.0
      %2392 = vmatpush1.xpose.msra.mxu0 0.0
      %2393 = vmatprep.subr.mxu0 0.0
      %2394 = vmatpush1.xpose.msra.mxu0 0.0
      %2395 = vmatprep.subr.mxu0 0.0
      %2396 = vmatpush1.xpose.msra.mxu0 0.0
      %2397 = vmatprep.subr.mxu0 0.0
      %2398 = vmatpush1.xpose.msra.mxu0 0.0
      %2399 = vmatprep.subr.mxu0 0.0
      %2400 = vmatpush1.xpose.msra.mxu0 0.0
      %2401 = vmatprep.subr.mxu0 0.0
      %2402 = vmatpush1.xpose.msra.mxu0 0.0
      %2403 = vmatprep.subr.mxu0 0.0
      %2404 = vmatpush1.xpose.msra.mxu0 0.0
      %2405 = vmatprep.subr.mxu0 0.0
      %2406 = vmatpush1.xpose.msra.mxu0 0.0
      %2407 = vmatprep.subr.mxu0 0.0
      %2408 = vmatpush1.xpose.msra.mxu0 0.0
      %2409 = vmatprep.subr.mxu0 0.0
      %2410 = vmatpush1.xpose.msra.mxu0 0.0
      %2411 = vmatprep.subr.mxu0 0.0
      %2412 = vmatpush1.xpose.msra.mxu0 0.0
      %2413 = vmatprep.subr.mxu0 0.0
      %2414 = vmatpush1.xpose.msra.mxu0 0.0
      %2415 = vmatprep.subr.mxu0 0.0
      %2416 = vmatpush1.xpose.msra.mxu0 0.0
      %2417 = vmatprep.subr.mxu0 0.0
      %2418 = vmatpush1.xpose.msra.mxu0 0.0
      %2419 = vmatprep.subr.mxu0 0.0
      %2420 = vmatpush1.xpose.msra.mxu0 0.0
      %2421 = vmatprep.subr.mxu0 0.0
      %2422 = vmatpush1.xpose.msra.mxu0 0.0
      %2423 = vmatprep.subr.mxu0 0.0
      %2424 = vmatpush1.xpose.msra.mxu0 0.0
      %2425 = vmatprep.mubr.f32.mxu0 0.0
      %2426 = vmatmul.mubr.f32.gmra.mrb[0].mxu0 %v2357
      %v2427 = vpop.f32.mrb[0].mxu0
      %v2428 = vadd.f32 0.0, %v2427
      %v2429 = vpop.f32.mrb[0].mxu0
      %2430 = vdwg.mxu0
      %v2431 = vmul.f32 %v2428, 0.35355338
      %v2432 = vadd.f32 %v2431, %v1842
      %v2433 = vsel %vm953, %v2432, -inf
      %2434 = vmax.xlane.f32.xlu0 %v2433
      %v2435 = vpop.xlane.xlu0 %2434
      %v2436 = vsub.f32 %v2432, %v2435
      %v2437 = vmul.f32 %v2436, 1.442695
      %v2438 = vpow.pop %v2437
      %v2439 = vsel %vm953, %v2438, 0.0
      %2440 = vadd.xlane.f32.xlu0 %v2439
      %v2441 = vpop.xlane.xlu0 %2440
      %2442 = vrot.lane.b32.xlu0 %v1837, 72
      %v2443 = vpop.permute.xlu0 %2442
      %v2446 = vsel %vm953, %v2438, 0
      %2448 = vmatprep.subr.mxu0 0.0
      %2449 = vmatpush1.msra.mxu0 %v2443
      %2450 = vmatprep.subr.mxu0 0.0
      %2451 = vmatpush1.msra.mxu0 0.0
      %2452 = vmatprep.subr.mxu0 0.0
      %2453 = vmatpush1.msra.mxu0 0.0
      %2454 = vmatprep.subr.mxu0 0.0
      %2455 = vmatpush1.msra.mxu0 0.0
      %2456 = vmatprep.subr.mxu0 0.0
      %2457 = vmatpush1.msra.mxu0 0.0
      %2458 = vmatprep.subr.mxu0 0.0
      %2459 = vmatpush1.msra.mxu0 0.0
      %2460 = vmatprep.subr.mxu0 0.0
      %2461 = vmatpush1.msra.mxu0 0.0
      %2462 = vmatprep.subr.mxu0 0.0
      %2463 = vmatpush1.msra.mxu0 0.0
      %2464 = vmatprep.subr.mxu0 0.0
      %2465 = vmatpush1.msra.mxu0 0.0
      %2466 = vmatprep.subr.mxu0 0.0
      %2467 = vmatpush1.msra.mxu0 0.0
      %2468 = vmatprep.subr.mxu0 0.0
      %2469 = vmatpush1.msra.mxu0 0.0
      %2470 = vmatprep.subr.mxu0 0.0
      %2471 = vmatpush1.msra.mxu0 0.0
      %2472 = vmatprep.subr.mxu0 0.0
      %2473 = vmatpush1.msra.mxu0 0.0
      %2474 = vmatprep.subr.mxu0 0.0
      %2475 = vmatpush1.msra.mxu0 0.0
      %2476 = vmatprep.subr.mxu0 0.0
      %2477 = vmatpush1.msra.mxu0 0.0
      %2478 = vmatprep.subr.mxu0 0.0
      %2479 = vmatpush1.msra.mxu0 0.0
      %2480 = vmatprep.subr.mxu0 0.0
      %2481 = vmatpush1.msra.mxu0 0.0
      %2482 = vmatprep.subr.mxu0 0.0
      %2483 = vmatpush1.msra.mxu0 0.0
      %2484 = vmatprep.subr.mxu0 0.0
      %2485 = vmatpush1.msra.mxu0 0.0
      %2486 = vmatprep.subr.mxu0 0.0
      %2487 = vmatpush1.msra.mxu0 0.0
      %2488 = vmatprep.subr.mxu0 0.0
      %2489 = vmatpush1.msra.mxu0 0.0
      %2490 = vmatprep.subr.mxu0 0.0
      %2491 = vmatpush1.msra.mxu0 0.0
      %2492 = vmatprep.subr.mxu0 0.0
      %2493 = vmatpush1.msra.mxu0 0.0
      %2494 = vmatprep.subr.mxu0 0.0
      %2495 = vmatpush1.msra.mxu0 0.0
      %2496 = vmatprep.subr.mxu0 0.0
      %2497 = vmatpush1.msra.mxu0 0.0
      %2498 = vmatprep.subr.mxu0 0.0
      %2499 = vmatpush1.msra.mxu0 0.0
      %2500 = vmatprep.subr.mxu0 0.0
      %2501 = vmatpush1.msra.mxu0 0.0
      %2502 = vmatprep.subr.mxu0 0.0
      %2503 = vmatpush1.msra.mxu0 0.0
      %2504 = vmatprep.subr.mxu0 0.0
      %2505 = vmatpush1.msra.mxu0 0.0
      %2506 = vmatprep.subr.mxu0 0.0
      %2507 = vmatpush1.msra.mxu0 0.0
      %2508 = vmatprep.subr.mxu0 0.0
      %2509 = vmatpush1.msra.mxu0 0.0
      %2510 = vmatprep.subr.mxu0 0.0
      %2511 = vmatpush1.msra.mxu0 0.0
      %2512 = vmatprep.mubr.f32.mxu0 0.0
      %2513 = vmatmul.mubr.f32.gmra.mrb[0].mxu0 %v2446
      %v2514 = vpop.f32.mrb[0].mxu0
      %v2515 = vadd.f32 0.0, %v2514
      %v2516 = vpop.f32.mrb[0].mxu0
      %2517 = vdwg.mxu0
      %v2518 = vrcp.pop %v2441
      %v2519 = vmul.f32 %v2515, %v2518
      %2521 = vrot.lane.b32.xlu0 %v2519, 24
      %v2522 = vpop.permute.xlu0 %2521
      %2524 = vst.msk [vmem:[#allocation2] sm:$0xff] %vm1637, %v2522
      %v2525 = vld [vmem:[#allocation2] sm:$0xff]
      %v2526 = vld [vmem:[%s14] sm:$0xff]
      %v2527 = vld [vmem:[%s14 + $0x8] sm:$0xff]
      %v2528 = vld [vmem:[%s14 + $0x10] sm:$0xff]
      %v2529 = vld [vmem:[%s14 + $0x18] sm:$0xff]
      %v2530 = vpack.c.bf16 %v2525, %v2525
      %v2531 = vpack.c.bf16 %v2527, %v2526
      %v2532 = vpack.c.bf16 %v2529, %v2528
      %v2533 = vld [vmem:[%s17] sm:$0x1]
      %v2535 = vlaneseq
      %v2536 = vshrl.u32 %v2535, 7
      %v2537 = vsub.s32 0, %v2536
      %v2538 = vrot.slane %v2533, %v2537
      %v2541 = vsel %vm855, %v2530, 0
      %2543 = vmatprep.subr.bf16.mxu0 0
      %2544 = vmatpush1.bf16.msra.mxu0 %v2531
      %2545 = vmatprep.subr.bf16.mxu0 0
      %2546 = vmatpush1.bf16.msra.mxu0 %v2532
      %2547 = vmatprep.subr.bf16.mxu0 0
      %2548 = vmatpush1.bf16.msra.mxu0 0
      %2549 = vmatprep.subr.bf16.mxu0 0
      %2550 = vmatpush1.bf16.msra.mxu0 0
      %2551 = vmatprep.subr.bf16.mxu0 0
      %2552 = vmatpush1.bf16.msra.mxu0 0
      %2553 = vmatprep.subr.bf16.mxu0 0
      %2554 = vmatpush1.bf16.msra.mxu0 0
      %2555 = vmatprep.subr.bf16.mxu0 0
      %2556 = vmatpush1.bf16.msra.mxu0 0
      %2557 = vmatprep.subr.bf16.mxu0 0
      %2558 = vmatpush1.bf16.msra.mxu0 0
      %2559 = vmatprep.subr.bf16.mxu0 0
      %2560 = vmatpush1.bf16.msra.mxu0 0
      %2561 = vmatprep.subr.bf16.mxu0 0
      %2562 = vmatpush1.bf16.msra.mxu0 0
      %2563 = vmatprep.subr.bf16.mxu0 0
      %2564 = vmatpush1.bf16.msra.mxu0 0
      %2565 = vmatprep.subr.bf16.mxu0 0
      %2566 = vmatpush1.bf16.msra.mxu0 0
      %2567 = vmatprep.subr.bf16.mxu0 0
      %2568 = vmatpush1.bf16.msra.mxu0 0
      %2569 = vmatprep.subr.bf16.mxu0 0
      %2570 = vmatpush1.bf16.msra.mxu0 0
      %2571 = vmatprep.subr.bf16.mxu0 0
      %2572 = vmatpush1.bf16.msra.mxu0 0
      %2573 = vmatprep.subr.bf16.mxu0 0
      %2574 = vmatpush1.bf16.msra.mxu0 0
      %2575 = vmatprep.mubr.bf16.mxu0 0
      %2576 = vmatmul.mubr.bf16.gmra.mrb[0].mxu0 %v2541
      %v2577 = vpop.f32.mrb[0].mxu0
      %v2578 = vadd.f32 %v2538, %v2577
      %v2579 = vpop.f32.mrb[0].mxu0
      %v2580 = vpop.f32.mrb[0].mxu0
      %v2581 = vpop.f32.mrb[0].mxu0
      %2582 = vdwg.mxu0
      %v2583 = vadd.f32 %v2578, %v1727
      %v2584 = vld [vmem:[%s18] sm:$0x1]
      %v2585 = vld [vmem:[%s19] sm:$0x1]
      %v2586 = vsel %vm855, %v2583, 0.0
      %2587 = vadd.xlane.f32.xlu0 %v2586
      %v2588 = vpop.xlane.xlu0 %2587
      %v2589 = vmul.f32 %v2588, %v1703
      %v2590 = vsub.f32 %v2583, %v2589
      %v2591 = vmul.f32 %v2590, %v2590
      %v2592 = vsel %vm855, %v2591, 0.0
      %2593 = vadd.xlane.f32.xlu0 %v2592
      %v2594 = vpop.xlane.xlu0 %2593
      %v2595 = vmul.f32 %v2594, %v1703
      %v2596 = vadd.f32 %v2595, 1e-05
      %v2597 = vrsqrt.pop %v2596
      %v2598 = vmul.f32 %v2590, %v2597
      %v2600 = vlaneseq
      %v2601 = vshrl.u32 %v2600, 7
      %v2602 = vsub.s32 0, %v2601
      %v2603 = vrot.slane %v2584, %v2602
      %v2605 = vmul.f32 %v2598, %v2603
      %v2607 = vlaneseq
      %v2608 = vshrl.u32 %v2607, 7
      %v2609 = vsub.s32 0, %v2608
      %v2610 = vrot.slane %v2585, %v2609
      %v2612 = vadd.f32 %v2605, %v2610
      %v2613 = vld [vmem:[%s20] sm:$0xff]
      %v2614 = vld [vmem:[%s20 + $0x8] sm:$0xff]
      %v2615 = vld [vmem:[%s20 + $0x10] sm:$0xff]
      %v2616 = vld [vmem:[%s20 + $0x18] sm:$0xff]
      %v2617 = vpack.c.bf16 %v2612, %v2612
      %v2618 = vpack.c.bf16 %v2614, %v2613
      %v2619 = vpack.c.bf16 %v2616, %v2615
      %v2620 = vld [vmem:[%s21] sm:$0x1]
      %v2622 = vlaneseq
      %v2623 = vshrl.u32 %v2622, 7
      %v2624 = vsub.s32 0, %v2623
      %v2625 = vrot.slane %v2620, %v2624
      %v2628 = vsel %vm855, %v2617, 0
      %2630 = vmatprep.subr.bf16.mxu0 0
      %2631 = vmatpush1.bf16.msra.mxu0 %v2618
      %2632 = vmatprep.subr.bf16.mxu0 0
      %2633 = vmatpush1.bf16.msra.mxu0 %v2619
      %2634 = vmatprep.subr.bf16.mxu0 0
      %2635 = vmatpush1.bf16.msra.mxu0 0
      %2636 = vmatprep.subr.bf16.mxu0 0
      %2637 = vmatpush1.bf16.msra.mxu0 0
      %2638 = vmatprep.subr.bf16.mxu0 0
      %2639 = vmatpush1.bf16.msra.mxu0 0
      %2640 = vmatprep.subr.bf16.mxu0 0
      %2641 = vmatpush1.bf16.msra.mxu0 0
      %2642 = vmatprep.subr.bf16.mxu0 0
      %2643 = vmatpush1.bf16.msra.mxu0 0
      %2644 = vmatprep.subr.bf16.mxu0 0
      %2645 = vmatpush1.bf16.msra.mxu0 0
      %2646 = vmatprep.subr.bf16.mxu0 0
      %2647 = vmatpush1.bf16.msra.mxu0 0
      %2648 = vmatprep.subr.bf16.mxu0 0
      %2649 = vmatpush1.bf16.msra.mxu0 0
      %2650 = vmatprep.subr.bf16.mxu0 0
      %2651 = vmatpush1.bf16.msra.mxu0 0
      %2652 = vmatprep.subr.bf16.mxu0 0
      %2653 = vmatpush1.bf16.msra.mxu0 0
      %2654 = vmatprep.subr.bf16.mxu0 0
      %2655 = vmatpush1.bf16.msra.mxu0 0
      %2656 = vmatprep.subr.bf16.mxu0 0
      %2657 = vmatpush1.bf16.msra.mxu0 0
      %2658 = vmatprep.subr.bf16.mxu0 0
      %2659 = vmatpush1.bf16.msra.mxu0 0
      %2660 = vmatprep.subr.bf16.mxu0 0
      %2661 = vmatpush1.bf16.msra.mxu0 0
      %2662 = vmatprep.mubr.bf16.mxu0 0
      %2663 = vmatmul.mubr.bf16.gmra.mrb[0].mxu0 %v2628
      %v2664 = vpop.f32.mrb[0].mxu0
      %v2665 = vadd.f32 %v2625, %v2664
      %v2666 = vpop.f32.mrb[0].mxu0
      %v2667 = vpop.f32.mrb[0].mxu0
      %v2668 = vpop.f32.mrb[0].mxu0
      %2669 = vdwg.mxu0
      %v2670 = vmax.f32 %v2665, 0.0
      %v2671 = vld [vmem:[%s22] sm:$0xff]
      %v2672 = vld [vmem:[%s22 + $0x8] sm:$0xff]
      %v2673 = vld [vmem:[%s22 + $0x10] sm:$0xff]
      %v2674 = vld [vmem:[%s22 + $0x18] sm:$0xff]
      %v2675 = vld [vmem:[%s22 + $0x20] sm:$0xff]
      %v2676 = vld [vmem:[%s22 + $0x28] sm:$0xff]
      %v2677 = vld [vmem:[%s22 + $0x30] sm:$0xff]
      %v2678 = vld [vmem:[%s22 + $0x38] sm:$0xff]
      %v2679 = vpack.c.bf16 %v2670, %v2670
      %v2680 = vpack.c.bf16 %v2672, %v2671
      %v2681 = vpack.c.bf16 %v2674, %v2673
      %v2682 = vpack.c.bf16 %v2676, %v2675
      %v2683 = vpack.c.bf16 %v2678, %v2677
      %v2684 = vld [vmem:[%s23] sm:$0x1]
      %v2686 = vlaneseq
      %v2687 = vshrl.u32 %v2686, 7
      %v2688 = vsub.s32 0, %v2687
      %v2689 = vrot.slane %v2684, %v2688
      %vm2691 = vcmask 523264
      %v2693 = vsel %vm2691, %v2679, 0
      %2695 = vmatprep.subr.bf16.mxu0 0
      %2696 = vmatpush1.bf16.msra.mxu0 %v2680
      %2697 = vmatprep.subr.bf16.mxu0 0
      %2698 = vmatpush1.bf16.msra.mxu0 %v2681
      %2699 = vmatprep.subr.bf16.mxu0 0
      %2700 = vmatpush1.bf16.msra.mxu0 %v2682
      %2701 = vmatprep.subr.bf16.mxu0 0
      %2702 = vmatpush1.bf16.msra.mxu0 %v2683
      %2703 = vmatprep.subr.bf16.mxu0 0
      %2704 = vmatpush1.bf16.msra.mxu0 0
      %2705 = vmatprep.subr.bf16.mxu0 0
      %2706 = vmatpush1.bf16.msra.mxu0 0
      %2707 = vmatprep.subr.bf16.mxu0 0
      %2708 = vmatpush1.bf16.msra.mxu0 0
      %2709 = vmatprep.subr.bf16.mxu0 0
      %2710 = vmatpush1.bf16.msra.mxu0 0
      %2711 = vmatprep.subr.bf16.mxu0 0
      %2712 = vmatpush1.bf16.msra.mxu0 0
      %2713 = vmatprep.subr.bf16.mxu0 0
      %2714 = vmatpush1.bf16.msra.mxu0 0
      %2715 = vmatprep.subr.bf16.mxu0 0
      %2716 = vmatpush1.bf16.msra.mxu0 0
      %2717 = vmatprep.subr.bf16.mxu0 0
      %2718 = vmatpush1.bf16.msra.mxu0 0
      %2719 = vmatprep.subr.bf16.mxu0 0
      %2720 = vmatpush1.bf16.msra.mxu0 0
      %2721 = vmatprep.subr.bf16.mxu0 0
      %2722 = vmatpush1.bf16.msra.mxu0 0
      %2723 = vmatprep.subr.bf16.mxu0 0
      %2724 = vmatpush1.bf16.msra.mxu0 0
      %2725 = vmatprep.subr.bf16.mxu0 0
      %2726 = vmatpush1.bf16.msra.mxu0 0
      %2727 = vmatprep.mubr.bf16.mxu0 0
      %2728 = vmatmul.mubr.bf16.gmra.mrb[0].mxu0 %v2693
      %v2729 = vpop.f32.mrb[0].mxu0
      %v2730 = vadd.f32 %v2689, %v2729
      %v2731 = vpop.f32.mrb[0].mxu0
      %v2732 = vpop.f32.mrb[0].mxu0
      %v2733 = vpop.f32.mrb[0].mxu0
      %2734 = vdwg.mxu0
      %v2735 = vadd.f32 %v2730, %v2612
      %v2736 = vld [vmem:[%s24] sm:$0x1]
      %v2737 = vld [vmem:[%s25] sm:$0x1]
      %v2738 = vsel %vm855, %v2735, 0.0
      %2739 = vadd.xlane.f32.xlu0 %v2738
      %v2740 = vpop.xlane.xlu0 %2739
      %v2741 = vmul.f32 %v2740, %v1703
      %v2742 = vsub.f32 %v2735, %v2741
      %v2743 = vmul.f32 %v2742, %v2742
      %v2744 = vsel %vm855, %v2743, 0.0
      %2745 = vadd.xlane.f32.xlu0 %v2744
      %v2746 = vpop.xlane.xlu0 %2745
      %v2747 = vmul.f32 %v2746, %v1703
      %v2748 = vadd.f32 %v2747, 1e-05
      %v2749 = vrsqrt.pop %v2748
      %v2750 = vmul.f32 %v2742, %v2749
      %v2752 = vlaneseq
      %v2753 = vshrl.u32 %v2752, 7
      %v2754 = vsub.s32 0, %v2753
      %v2755 = vrot.slane %v2736, %v2754
      %v2757 = vmul.f32 %v2750, %v2755
      %v2759 = vlaneseq
      %v2760 = vshrl.u32 %v2759, 7
      %v2761 = vsub.s32 0, %v2760
      %v2762 = vrot.slane %v2737, %v2761
      %v2764 = vadd.f32 %v2757, %v2762
      %2765 = vst.msk [vmem:[%s837] sm:$0xff] %vm855, %v2764
      %p2766 = scmp.lt.s32.totalorder %s37, 1
      %s2767 = scalar_select %p2766, %s37, 1
      %s2768 = smul.addr %s2767, 8
      %s2769 = scalar_lea.vmem %s26, %s2768
      // Predicated region
      $region125: #{seq2seq_transformer_forward.9} parent=123 // pred_check
        %p2770 = pneg %p621
      $region126: #{seq2seq_transformer_forward.9} parent=123 // pred_check_branch
        %2772 = sbr.rel (%p2770) target = $region128
      $region127: #{seq2seq_transformer_forward.9} parent=123 // pred_region
        _
      $region128: #{seq2seq_transformer_forward.9} parent=123 // pred_fallthru
        _
    $region124: #{seq2seq_transformer_forward.9} parent=5 // pred_fallthru
      _
    %p2773 = scmp.le.s32.totalorder 2, %s32
    // Predicated region
    $region129: #{seq2seq_transformer_forward.9} parent=5 // pred_check
      %p2774 = pneg %p2773
    $region130: #{seq2seq_transformer_forward.9} parent=5 // pred_check_branch
      %2776 = sbr.rel (%p2774) target = $region132
    $region131: #{seq2seq_transformer_forward.9} parent=5 // pred_region
      %s2777 = ssub.s32 %s32, 2
      // Predicated region
      $region133: #{seq2seq_transformer_forward.9} parent=131 // pred_check
        %p2778 = pneg %p627
      $region134: #{seq2seq_transformer_forward.9} parent=131 // pred_check_branch
        %2780 = sbr.rel (%p2778) target = $region136
      $region135: #{seq2seq_transformer_forward.9} parent=131 // pred_region
        %p2781 = scmp.lt.s32.totalorder %s38, 1
        %s2782 = scalar_select %p2781, %s38, 1
        %s2783 = smul.addr %s2782, 8
        %s2784 = scalar_lea.vmem %s26, %s2783
      $region136: #{seq2seq_transformer_forward.9} parent=131 // pred_fallthru
        _
    $region132: #{seq2seq_transformer_forward.9} parent=5 // pred_fallthru
      _
  $region6: #{seq2seq_transformer_forward.9} parent=0 // loop_footer
    %s36 = sadd.s32 1, %s32
  $region7: #{seq2seq_transformer_forward.9} parent=0 // loop_footer_branch
    %31 = sbr.rel target = $region3
  $region8: #{seq2seq_transformer_forward.9} parent=0 // loop_exit
    _

</llo_original>
